<compile_context>
chip_gen: v5e
topology: v5e:2x2
jax: 0.10.0
libtpu: 0.0.40
codegen_flags: <defaults>
</compile_context>

<pallas_src>
import numpy as np
import jax
import jax.numpy as jnp
from jax.experimental import pallas as pl
from jax.experimental.pallas import tpu as pltpu

# ---------------- static configuration (small synthetic shapes) ----------------
H1, W1 = 8, 8            # search spatial size
H2, W2 = 8, 8            # template spatial size
D_MODEL = 32
NHEAD = 8
D_FF = 64
STACK_NUM = 2
BATCH = 2
NUM_QUERIES = 4
L_ALL = H1 * W1 + 2 * H2 * W2          # 192
HEAD_DIM = D_MODEL // NHEAD            # 4
SCALE = float(HEAD_DIM) ** (-0.5)
WINDOW_SIZES = [1, 2, 4, 8, 1, 2, 4, 8]   # TransformerLayer(window_size=0) path
WINDOW_LIST = [1, 2, 4]                   # rel-pos bias tables exist only for these
UNIQ_WS = sorted(set(WINDOW_SIZES))       # [1, 2, 4, 8]
NEG_INF = -1e30


# ============================ static numpy index precomputation ============================

def _np_window_partition(x, ws, shift):
    """(1, L_all, c) -> (1, L, ws*ws*c); mirrors the PyTorch _window_partition."""
    if ws <= 1:
        return x
    b, _, c = x.shape
    fl = H2 * W2

    def part(t, hh, ww):
        t = t.reshape(b, hh // ws, ws, ww // ws, ws, c)
        return t.transpose(0, 1, 3, 2, 4, 5).reshape(b, -1, ws * ws * c)

    t1 = part(x[:, :fl], H2, W2)
    t2 = part(x[:, fl:2 * fl], H2, W2)
    s = x[:, 2 * fl:].reshape(b, H1, W1, c)
    if shift > 0:
        s = np.roll(s, shift=(-shift, -shift), axis=(1, 2))
    s = s.reshape(b, H1 // ws, ws, W1 // ws, ws, c)
    s = s.transpose(0, 1, 3, 2, 4, 5).reshape(b, -1, ws * ws * c)
    return np.concatenate([t1, t2, s], axis=1)


def _np_cyclic_gather(x, ws):
    """(1, L, ws*ws*c) -> (1, L*ws*ws, ws*ws*c); mirrors key/value cyclic expansion."""
    b, L, cw = x.shape
    c = cw // (ws * ws)
    x = x.reshape(b, L, ws, ws, c)
    a = np.arange(ws * ws)
    idx = np.mod((a % ws) - (a // ws), ws)     # torch negative-index wrap
    g = x[:, :, idx[:, None], idx[None, :], :]
    g = g.reshape(b, L, ws, ws, ws, ws, c).transpose(0, 1, 2, 4, 3, 5, 6)
    return g.reshape(b, L * ws * ws, ws * ws * c)


_TOK = np.arange(L_ALL).reshape(1, L_ALL, 1)

# Per-head static gather indices (derived by running the reference partition /
# cyclic-gather logic on a token-index array -> identical semantics).
_HEAD_CFG = []
for _idx, _ws in enumerate(WINDOW_SIZES):
    _shift = _ws // 2 if _idx >= NHEAD // 2 else 0   # window_shift is None path
    if _ws == 1:
        _HEAD_CFG.append(dict(ws=1, q_perm=None, kv_idx=None, inv_perm=None))
    else:
        _part = _np_window_partition(_TOK, _ws, _shift)          # (1, L, ws*ws)
        _qp = _part.reshape(-1).astype(np.int32)                 # (L_all,)
        _kv = _np_cyclic_gather(_part, _ws).reshape(-1).astype(np.int32)
        _HEAD_CFG.append(dict(ws=_ws, q_perm=_qp, kv_idx=_kv,
                              inv_perm=np.argsort(_qp).astype(np.int32)))

# Mask windows always use shift=0 in the reference.
_MASK_PERM = {w: (None if w == 1 else
                  _np_window_partition(_TOK, w, 0).reshape(-1).astype(np.int32))
              for w in UNIQ_WS}


def _rel_index(ws):
    num_win = L_ALL // ws
    L = L_ALL // (ws * ws)
    cf0 = np.repeat(np.arange(num_win), ws)
    cf1 = np.tile(np.tile(np.arange(ws), num_win // ws), ws)
    rel0 = cf0[:, None] - cf0[None, :] + (num_win - 1)
    rel1 = cf1[:, None] - cf1[None, :] + (ws - 1)
    return (rel0 * (2 * ws - 1) + rel1)[:L]                      # (L, L_all)


_REL_IDX = {w: _rel_index(w) for w in WINDOW_LIST}


def _sr_attn_mask_pattern(ws):
    # per key-window additive mask over (a1, b1); computed through fp16 like the reference
    v = np.arange(0, 1, 1.0 / ws)
    wv = np.array([x if x > 0.5 else 1.0 - x for x in v],
                  dtype=np.float16).reshape(1, ws)
    return (wv.T * wv - np.float16(1.0)).astype(np.float32).reshape(ws * ws)


# static part of bias2d: sr_attn_mask / ws^2, tiled over the key axis
_SR_BASE = {}
for _w in UNIQ_WS:
    if _w > 1:
        _L = L_ALL // (_w * _w)
        _pat = np.tile(_sr_attn_mask_pattern(_w), _L) / float(_w * _w)
        _SR_BASE[_w] = np.tile(_pat[None, :], (_L, 1)).astype(np.float32)


# ============================ Pallas kernels ============================

def _ln(y, g, b):
    mu = jnp.mean(y, axis=-1, keepdims=True)
    d = y - mu
    var = jnp.mean(d * d, axis=-1, keepdims=True)
    return d * jax.lax.rsqrt(var + 1e-5) * g + b


def _qkv_kernel(x_ref, w_ref, b_ref, o_ref):
    o_ref[...] = (jnp.dot(x_ref[...].astype(jnp.bfloat16), w_ref[...],
                          preferred_element_type=jnp.float32) + b_ref[...])


def _fused_attn_kernel(*refs):
    """All 8 heads (window sizes 1/2/4/8, shifted & unshifted) for one batch element.

    refs layout: [q0,k0,v0, ..., q7,k7,v7,
                  bias2d[ws=1,2,4,8], biascol[ws=1,2,4,8],
                  out0..out7]
    """
    n_qkv = 3 * NHEAD
    b2 = {w: refs[n_qkv + i] for i, w in enumerate(UNIQ_WS)}
    bc = {w: refs[n_qkv + len(UNIQ_WS) + i] for i, w in enumerate(UNIQ_WS)}
    out_refs = refs[n_qkv + 2 * len(UNIQ_WS):]
    for h, ws in enumerate(WINDOW_SIZES):
        q = refs[3 * h][0].astype(jnp.bfloat16)        # (L, c_win)
        k = refs[3 * h + 1][0].astype(jnp.bfloat16)    # (L_all, c_win)
        v = refs[3 * h + 2][0].astype(jnp.bfloat16)
        s = jax.lax.dot_general(q, k, (((1,), (1,)), ((), ())),
                                preferred_element_type=jnp.float32)
        # fused: scale * QK^T / ws^2 + sr_attn_mask/ws^2 + rel_pos + padding(-inf)
        s = s * (SCALE / float(ws * ws)) + b2[ws][...] + bc[ws][0]
        m = jnp.max(s, axis=-1, keepdims=True)
        e = jnp.exp(s - m)
        p = (e * pl.reciprocal(jnp.sum(e, axis=-1, keepdims=True), approx=True)
             ).astype(jnp.bfloat16)
        out_refs[h][0] = jnp.dot(p, v, preferred_element_type=jnp.float32)


def _tail_kernel(res_ref, attn_ref, ow_ref, ob_ref, g1_ref, b1_ref,
                 f1w_ref, f1b_ref, f2w_ref, f2b_ref, g2_ref, b2_ref, o_ref):
    # out-projection + residual + LN1 + FFN + residual + LN2, fully in VMEM
    a = jnp.dot(attn_ref[...].astype(jnp.bfloat16), ow_ref[...],
                preferred_element_type=jnp.float32) + ob_ref[...]
    y = _ln(res_ref[...] + a, g1_ref[...], b1_ref[...])
    h = jnp.dot(y.astype(jnp.bfloat16), f1w_ref[...],
                preferred_element_type=jnp.float32) + f1b_ref[...]
    h = jnp.maximum(h, 0.0)
    f = jnp.dot(h.astype(jnp.bfloat16), f2w_ref[...],
                preferred_element_type=jnp.float32) + f2b_ref[...]
    o_ref[...] = _ln(y + f, g2_ref[...], b2_ref[...])


def _ln_kernel(x_ref, g_ref, b_ref, o_ref):
    o_ref[...] = _ln(x_ref[...], g_ref[...], b_ref[...])


# ============================ Pallas wrappers ============================

def qkv_p(x, w, b):
    n, din = x.shape
    dout = w.shape[1]
    return pl.pallas_call(
        _qkv_kernel,
        out_shape=jax.ShapeDtypeStruct((n, dout), jnp.float32),
        grid=(1,),
        in_specs=[pl.BlockSpec((n, din), lambda i: (0, 0)),
                  pl.BlockSpec((din, dout), lambda i: (0, 0)),
                  pl.BlockSpec((1, dout), lambda i: (0, 0))],
        out_specs=pl.BlockSpec((n, dout), lambda i: (0, 0)),
    )(x, w, b.reshape(1, dout))


def fused_attention_p(q_heads, k_heads, v_heads, bias2d, biascol):
    in_arrays, in_specs = [], []
    for h in range(NHEAD):
        for arr in (q_heads[h], k_heads[h], v_heads[h]):
            _, Lh, cw = arr.shape
            in_arrays.append(arr)
            in_specs.append(pl.BlockSpec((1, Lh, cw), lambda g: (g, 0, 0)))
    for w in UNIQ_WS:
        arr = bias2d[w]
        in_arrays.append(arr)
        in_specs.append(pl.BlockSpec(arr.shape, lambda g: (0, 0)))
    for w in UNIQ_WS:
        in_arrays.append(biascol[w])                      # (B, 1, L_all)
        in_specs.append(pl.BlockSpec((1, 1, L_ALL), lambda g: (g, 0, 0)))

    out_shapes, out_specs = [], []
    for h in range(NHEAD):
        b, Lh, cw = q_heads[h].shape
        out_shapes.append(jax.ShapeDtypeStruct((b, Lh, cw), jnp.float32))
        out_specs.append(pl.BlockSpec((1, Lh, cw), lambda g: (g, 0, 0)))

    return pl.pallas_call(
        _fused_attn_kernel,
        out_shape=tuple(out_shapes),
        grid=(BATCH,),
        in_specs=in_specs,
        out_specs=tuple(out_specs),
        compiler_params=pltpu.CompilerParams(dimension_semantics=("parallel",)),
    )(*in_arrays)


def tail_p(res, attn, lp):
    n, d = res.shape
    f = lp['ff1_w'].shape[1]
    return pl.pallas_call(
        _tail_kernel,
        out_shape=jax.ShapeDtypeStruct((n, d), jnp.float32),
        grid=(1,),
        in_specs=[pl.BlockSpec((n, d), lambda i: (0, 0)),
                  pl.BlockSpec((n, d), lambda i: (0, 0)),
                  pl.BlockSpec((d, d), lambda i: (0, 0)),
                  pl.BlockSpec((1, d), lambda i: (0, 0)),
                  pl.BlockSpec((1, d), lambda i: (0, 0)),
                  pl.BlockSpec((1, d), lambda i: (0, 0)),
                  pl.BlockSpec((d, f), lambda i: (0, 0)),
                  pl.BlockSpec((1, f), lambda i: (0, 0)),
                  pl.BlockSpec((f, d), lambda i: (0, 0)),
                  pl.BlockSpec((1, d), lambda i: (0, 0)),
                  pl.BlockSpec((1, d), lambda i: (0, 0)),
                  pl.BlockSpec((1, d), lambda i: (0, 0))],
        out_specs=pl.BlockSpec((n, d), lambda i: (0, 0)),
    )(res, attn, lp['out_w'], lp['out_b'].reshape(1, d),
      lp['n1_g'].reshape(1, d), lp['n1_b'].reshape(1, d),
      lp['ff1_w'], lp['ff1_b'].reshape(1, f),
      lp['ff2_w'], lp['ff2_b'].reshape(1, d),
      lp['n2_g'].reshape(1, d), lp['n2_b'].reshape(1, d))


def layernorm_p(x, g, b):
    n, d = x.shape
    return pl.pallas_call(
        _ln_kernel,
        out_shape=jax.ShapeDtypeStruct((n, d), jnp.float32),
        grid=(1,),
        in_specs=[pl.BlockSpec((n, d), lambda i: (0, 0)),
                  pl.BlockSpec((1, d), lambda i: (0, 0)),
                  pl.BlockSpec((1, d), lambda i: (0, 0))],
        out_specs=pl.BlockSpec((n, d), lambda i: (0, 0)),
    )(x, g.reshape(1, d), b.reshape(1, d))


# ============================ JAX glue (bias construction, gathers) ============================

def _build_biascol(mm, ws):
    """(b, 1, L_all) additive column bias: NEG_INF for fully-padded key windows.

    NOTE: the reference partitions the mask with shift=0 for ALL heads (its
    _window_partition is called without shift); we replicate that exactly.
    """
    if ws == 1:
        col = jnp.where(mm, NEG_INF, 0.0).astype(jnp.float32)
    else:
        mp = jnp.take(mm.astype(jnp.float32), _MASK_PERM[ws], axis=1)
        mp = mp.reshape(BATCH, -1, ws * ws)
        padded = jnp.mean(mp, axis=-1) >= 1.0                 # (b, L)
        col = jnp.where(padded, NEG_INF, 0.0)
        col = jnp.repeat(col[:, :, None], ws * ws, axis=-1).reshape(BATCH, L_ALL)
        col = col.astype(jnp.float32)
    return col.reshape(BATCH, 1, L_ALL)


# ============================ model ============================

def transformer_layer(mf, bias2d, biascol, lp):
    b, L_all, d = mf.shape
    x2d = mf.reshape(b * L_all, d)

    qkv = qkv_p(x2d, lp['qkv_w'], lp['qkv_b'])                 # (b*L, 3*d)
    qkv = qkv.reshape(b, L_all, 3, NHEAD, HEAD_DIM)
    q_all, k_all, v_all = qkv[:, :, 0], qkv[:, :, 1], qkv[:, :, 2]

    q_heads, k_heads, v_heads = [], [], []
    for h, cfg in enumerate(_HEAD_CFG):
        ws = cfg['ws']
        qh = q_all[:, :, h, :]                                 # (b, L_all, hd)
        kh = k_all[:, :, h, :]
        vh = v_all[:, :, h, :]
        if ws == 1:
            q_heads.append(qh)
            k_heads.append(kh)
            v_heads.append(vh)
        else:
            L = L_ALL // (ws * ws)
            cw = ws * ws * HEAD_DIM
            q_heads.append(jnp.take(qh, cfg['q_perm'], axis=1).reshape(b, L, cw))
            k_heads.append(jnp.take(kh, cfg['kv_idx'], axis=1).reshape(b, L_ALL, cw))
            v_heads.append(jnp.take(vh, cfg['kv_idx'], axis=1).reshape(b, L_ALL, cw))

    outs = fused_attention_p(q_heads, k_heads, v_heads, bias2d, biascol)

    head_out = []
    for h, cfg in enumerate(_HEAD_CFG):
        o = outs[h].reshape(b, L_ALL, HEAD_DIM)                # partition-token order
        if cfg['ws'] > 1:
            o = jnp.take(o, cfg['inv_perm'], axis=1)           # back to original order
        head_out.append(o)
    attn_cat = jnp.concatenate(head_out, axis=-1).reshape(b * L_all, d)

    return tail_p(x2d, attn_cat, lp).reshape(b, L_all, d)


@jax.jit
def transformer_cs_forward(params, t1_feat, t1_mask, t2_feat, t2_mask,
                           s_feat, s_mask, query_embed):
    def flat(f):  # (H, W, B, C) -> (B, H*W, C)
        hh, ww, b, c = f.shape
        return f.reshape(hh * ww, b, c).transpose(1, 0, 2)

    mf = jnp.concatenate([flat(t1_feat), flat(t2_feat), flat(s_feat)], axis=1)
    mm = jnp.concatenate([t1_mask.reshape(BATCH, -1),
                          t2_mask.reshape(BATCH, -1),
                          s_mask.reshape(BATCH, -1)], axis=1)

    # relative position bias per window size in window_list (once per forward)
    rel_pos = {}
    for wsz in WINDOW_LIST:
        tbl = params['rel_bias_table'][f"w{wsz}"]
        idx = _REL_IDX[wsz]
        rel_pos[wsz] = tbl[idx.reshape(-1)].reshape(L_ALL // (wsz * wsz), L_ALL)

    bias2d, biascol = {}, {}
    for wsz in UNIQ_WS:
        if wsz == 1:
            base = rel_pos[1]
        else:
            base = jnp.asarray(_SR_BASE[wsz])
            if wsz in rel_pos:
                base = base + rel_pos[wsz]
        bias2d[wsz] = base
        biascol[wsz] = _build_biascol(mm, wsz)

    for lp in params['layers']:
        mf = transformer_layer(mf, bias2d, biascol, lp)

    first_L = H2 * W2
    search_feat = mf[:, 2 * first_L:, :].transpose(1, 0, 2)    # (h1*w1, b, d)

    # TODO(synk): TransformerDecoderLayer (transformer_post) source not provided
    # in the reference; decoder stack is skipped (output stays the zero `tgt`),
    # only post_norm is applied — implemented with the LayerNorm kernel.
    nq = query_embed.shape[0]
    tgt = jnp.zeros((nq * BATCH, D_MODEL), jnp.float32)
    hs = layernorm_p(tgt, params['post_norm_g'], params['post_norm_b'])
    hs = hs.reshape(nq, BATCH, D_MODEL)
    return search_feat, hs


# ============================ parameters ============================

def init_params(key):
    params = {'layers': []}
    k_tbl, k_layers = jax.random.split(key)
    rbt = {}
    for wsz in WINDOW_LIST:
        L = L_ALL // (wsz * wsz)
        size = (2 * wsz - 1) * (L_ALL // wsz + L // wsz - 1)
        rbt[f"w{wsz}"] = 0.02 * jax.random.normal(
            jax.random.fold_in(k_tbl, wsz), (size,), jnp.float32)
    params['rel_bias_table'] = rbt
    d, f = D_MODEL, D_FF
    for li in range(STACK_NUM):
        ks = jax.random.split(jax.random.fold_in(k_layers, li), 4)
        lp = dict(
            qkv_w=(0.02 * jax.random.normal(ks[0], (d, 3 * d))).astype(jnp.bfloat16),
            qkv_b=jnp.zeros((3 * d,), jnp.float32),
            out_w=(0.02 * jax.random.normal(ks[1], (d, d))).astype(jnp.bfloat16),
            out_b=jnp.zeros((d,), jnp.float32),
            ff1_w=(0.02 * jax.random.normal(ks[2], (d, f))).astype(jnp.bfloat16),
            ff1_b=jnp.zeros((f,), jnp.float32),
            ff2_w=(0.02 * jax.random.normal(ks[3], (f, d))).astype(jnp.bfloat16),
            ff2_b=jnp.zeros((d,), jnp.float32),
            n1_g=jnp.ones((d,), jnp.float32), n1_b=jnp.zeros((d,), jnp.float32),
            n2_g=jnp.ones((d,), jnp.float32), n2_b=jnp.zeros((d,), jnp.float32),
        )
        params['layers'].append(lp)
    params['post_norm_g'] = jnp.ones((d,), jnp.float32)
    params['post_norm_b'] = jnp.zeros((d,), jnp.float32)
    return params


# ============================ main ============================

if __name__ == "__main__":
    key = jax.random.PRNGKey(0)
    kp, k1, k2, k3, kq = jax.random.split(key, 5)
    params = init_params(kp)

    t1_feat = 0.1 * jax.random.normal(k1, (H2, W2, BATCH, D_MODEL), jnp.float32)
    t2_feat = 0.1 * jax.random.normal(k2, (H2, W2, BATCH, D_MODEL), jnp.float32)
    s_feat = 0.1 * jax.random.normal(k3, (H1, W1, BATCH, D_MODEL), jnp.float32)
    t1_mask = jnp.zeros((BATCH, H2, W2), bool)
    t2_mask = jnp.zeros((BATCH, H2, W2), bool)
    # pad the last two rows of the search region to exercise the masking paths
    s_mask = jnp.zeros((BATCH, H1, W1), bool).at[:, 6:, :].set(True)
    query_embed = 0.1 * jax.random.normal(kq, (NUM_QUERIES, D_MODEL), jnp.float32)

    search_feat, hs = transformer_cs_forward(
        params, t1_feat, t1_mask, t2_feat, t2_mask, s_feat, s_mask, query_embed)
    jax.block_until_ready((search_feat, hs))

    assert search_feat.shape == (H1 * W1, BATCH, D_MODEL)
    assert hs.shape == (NUM_QUERIES, BATCH, D_MODEL)
    assert bool(jnp.all(jnp.isfinite(search_feat))) and bool(jnp.all(jnp.isfinite(hs)))
    print("KERNEL_OK")
</pallas_src>

<mosaic_0001>
module attributes {stable_mosaic.version = 11 : i64} {
  func.func @_ln_kernel(%arg0: i32, %arg1: memref<8x32xf32, #tpu.memory_space<vmem>>, %arg2: memref<1x32xf32, #tpu.memory_space<vmem>>, %arg3: memref<1x32xf32, #tpu.memory_space<vmem>>, %arg4: memref<8x32xf32, #tpu.memory_space<vmem>>) attributes {dimension_semantics = [#tpu.dimension_semantics<arbitrary>], iteration_bounds = array<i64: 1>, scalar_prefetch = 0 : i64, scratch_operands = 0 : i64, tpu.core_type = #tpu.core_type<tc>, window_params = [{pipeline_mode = #tpu.pipeline_mode<synchronous>, transform_indices = @transform_0, window_bounds = array<i64: 8, 32>}, {pipeline_mode = #tpu.pipeline_mode<synchronous>, transform_indices = @transform_1, window_bounds = array<i64: 1, 32>}, {pipeline_mode = #tpu.pipeline_mode<synchronous>, transform_indices = @transform_2, window_bounds = array<i64: 1, 32>}, {pipeline_mode = #tpu.pipeline_mode<synchronous>, transform_indices = @transform_3, window_bounds = array<i64: 8, 32>}]} {
    %c0 = arith.constant 0 : index
    %c0_0 = arith.constant 0 : index
    %0 = vector.load %arg1[%c0, %c0_0] : memref<8x32xf32, #tpu.memory_space<vmem>>, vector<8x32xf32>
    %c0_1 = arith.constant 0 : index
    %c0_2 = arith.constant 0 : index
    %1 = vector.load %arg2[%c0_1, %c0_2] : memref<1x32xf32, #tpu.memory_space<vmem>>, vector<1x32xf32>
    %c0_3 = arith.constant 0 : index
    %c0_4 = arith.constant 0 : index
    %2 = vector.load %arg3[%c0_3, %c0_4] : memref<1x32xf32, #tpu.memory_space<vmem>>, vector<1x32xf32>
    %cst = arith.constant dense<0.000000e+00> : vector<8xf32>
    %3 = vector.multi_reduction <add>, %0, %cst [1] : vector<8x32xf32> to vector<8xf32>
    %4 = vector.shape_cast %3 : vector<8xf32> to vector<8x1xf32>
    %cst_5 = arith.constant 3.200000e+01 : f32
    %5 = vector.broadcast %cst_5 : f32 to vector<8x1xf32>
    %6 = arith.divf %4, %5 : vector<8x1xf32>
    %7 = vector.broadcast %6 : vector<8x1xf32> to vector<8x32xf32>
    %8 = arith.subf %0, %7 : vector<8x32xf32>
    %9 = arith.mulf %8, %8 : vector<8x32xf32>
    %cst_6 = arith.constant dense<0.000000e+00> : vector<8xf32>
    %10 = vector.multi_reduction <add>, %9, %cst_6 [1] : vector<8x32xf32> to vector<8xf32>
    %11 = vector.shape_cast %10 : vector<8xf32> to vector<8x1xf32>
    %cst_7 = arith.constant 3.200000e+01 : f32
    %12 = vector.broadcast %cst_7 : f32 to vector<8x1xf32>
    %13 = arith.divf %11, %12 : vector<8x1xf32>
    %cst_8 = arith.constant 9.99999974E-6 : f32
    %14 = vector.broadcast %cst_8 : f32 to vector<8x1xf32>
    %15 = arith.addf %13, %14 : vector<8x1xf32>
    %16 = math.rsqrt %15 : vector<8x1xf32>
    %17 = vector.broadcast %16 : vector<8x1xf32> to vector<8x32xf32>
    %18 = arith.mulf %8, %17 : vector<8x32xf32>
    %19 = vector.broadcast %1 : vector<1x32xf32> to vector<8x32xf32>
    %20 = arith.mulf %18, %19 : vector<8x32xf32>
    %21 = vector.broadcast %2 : vector<1x32xf32> to vector<8x32xf32>
    %22 = arith.addf %20, %21 : vector<8x32xf32>
    %c0_9 = arith.constant 0 : index
    %c0_10 = arith.constant 0 : index
    %23 = vector.load %arg4[%c0_9, %c0_10] : memref<8x32xf32, #tpu.memory_space<vmem>>, vector<8x32xf32>
    tpu.vector_store %arg4[%c0_9, %c0_10], %22 {strides = array<i32>} : memref<8x32xf32, #tpu.memory_space<vmem>>, vector<8x32xf32>,
    return
  }
  func.func @transform_0(%arg0: i32) -> (i32, i32) {
    %c0_i32 = arith.constant 0 : i32
    %c0_i32_0 = arith.constant 0 : i32
    %c0_i32_1 = arith.constant 0 : i32
    return %c0_i32, %c0_i32_0 : i32, i32
  }
  func.func @transform_1(%arg0: i32) -> (i32, i32) {
    %c0_i32 = arith.constant 0 : i32
    %c0_i32_0 = arith.constant 0 : i32
    %c0_i32_1 = arith.constant 0 : i32
    return %c0_i32, %c0_i32_0 : i32, i32
  }
  func.func @transform_2(%arg0: i32) -> (i32, i32) {
    %c0_i32 = arith.constant 0 : i32
    %c0_i32_0 = arith.constant 0 : i32
    %c0_i32_1 = arith.constant 0 : i32
    return %c0_i32, %c0_i32_0 : i32, i32
  }
  func.func @transform_3(%arg0: i32) -> (i32, i32) {
    %c0_i32 = arith.constant 0 : i32
    %c0_i32_0 = arith.constant 0 : i32
    %c0_i32_1 = arith.constant 0 : i32
    return %c0_i32, %c0_i32_0 : i32, i32
  }
}

module attributes {stable_mosaic.version = 11 : i64} {
  func.func @_qkv_kernel(%arg0: i32, %arg1: memref<384x32xf32, #tpu.memory_space<vmem>>, %arg2: memref<32x96xbf16, #tpu.memory_space<vmem>>, %arg3: memref<1x96xf32, #tpu.memory_space<vmem>>, %arg4: memref<384x96xf32, #tpu.memory_space<vmem>>) attributes {dimension_semantics = [#tpu.dimension_semantics<arbitrary>], iteration_bounds = array<i64: 1>, scalar_prefetch = 0 : i64, scratch_operands = 0 : i64, tpu.core_type = #tpu.core_type<tc>, window_params = [{pipeline_mode = #tpu.pipeline_mode<synchronous>, transform_indices = @transform_0, window_bounds = array<i64: 384, 32>}, {pipeline_mode = #tpu.pipeline_mode<synchronous>, transform_indices = @transform_1, window_bounds = array<i64: 32, 96>}, {pipeline_mode = #tpu.pipeline_mode<synchronous>, transform_indices = @transform_2, window_bounds = array<i64: 1, 96>}, {pipeline_mode = #tpu.pipeline_mode<synchronous>, transform_indices = @transform_3, window_bounds = array<i64: 384, 96>}]} {
    %c0 = arith.constant 0 : index
    %c0_0 = arith.constant 0 : index
    %0 = vector.load %arg1[%c0, %c0_0] : memref<384x32xf32, #tpu.memory_space<vmem>>, vector<384x32xf32>
    %1 = arith.truncf %0 : vector<384x32xf32> to vector<384x32xbf16>
    %c0_1 = arith.constant 0 : index
    %c0_2 = arith.constant 0 : index
    %2 = vector.load %arg2[%c0_1, %c0_2] : memref<32x96xbf16, #tpu.memory_space<vmem>>, vector<32x96xbf16>
    %cst = arith.constant dense<0.000000e+00> : vector<384x96xf32>
    %3 = tpu.matmul %1, %2, %cst {dimension_numbers = #tpu.dot_dimension_numbers<[1], [0], [0], [1], [0, 0, 1, 1], [], []>} : vector<384x32xbf16>, vector<32x96xbf16>, vector<384x96xf32> -> vector<384x96xf32>
    %c0_3 = arith.constant 0 : index
    %c0_4 = arith.constant 0 : index
    %4 = vector.load %arg3[%c0_3, %c0_4] : memref<1x96xf32, #tpu.memory_space<vmem>>, vector<1x96xf32>
    %5 = vector.broadcast %4 : vector<1x96xf32> to vector<384x96xf32>
    %6 = arith.addf %3, %5 : vector<384x96xf32>
    %c0_5 = arith.constant 0 : index
    %c0_6 = arith.constant 0 : index
    %7 = vector.load %arg4[%c0_5, %c0_6] : memref<384x96xf32, #tpu.memory_space<vmem>>, vector<384x96xf32>
    tpu.vector_store %arg4[%c0_5, %c0_6], %6 {strides = array<i32>} : memref<384x96xf32, #tpu.memory_space<vmem>>, vector<384x96xf32>,
    return
  }
  func.func @transform_0(%arg0: i32) -> (i32, i32) {
    %c0_i32 = arith.constant 0 : i32
    %c0_i32_0 = arith.constant 0 : i32
    %c0_i32_1 = arith.constant 0 : i32
    return %c0_i32, %c0_i32_0 : i32, i32
  }
  func.func @transform_1(%arg0: i32) -> (i32, i32) {
    %c0_i32 = arith.constant 0 : i32
    %c0_i32_0 = arith.constant 0 : i32
    %c0_i32_1 = arith.constant 0 : i32
    return %c0_i32, %c0_i32_0 : i32, i32
  }
  func.func @transform_2(%arg0: i32) -> (i32, i32) {
    %c0_i32 = arith.constant 0 : i32
    %c0_i32_0 = arith.constant 0 : i32
    %c0_i32_1 = arith.constant 0 : i32
    return %c0_i32, %c0_i32_0 : i32, i32
  }
  func.func @transform_3(%arg0: i32) -> (i32, i32) {
    %c0_i32 = arith.constant 0 : i32
    %c0_i32_0 = arith.constant 0 : i32
    %c0_i32_1 = arith.constant 0 : i32
    return %c0_i32, %c0_i32_0 : i32, i32
  }
}

module attributes {stable_mosaic.version = 11 : i64} {
  func.func @_fused_attn_kernel(%arg0: i32, %arg1: memref<1x192x4xf32, #tpu.memory_space<vmem>>, %arg2: memref<1x192x4xf32, #tpu.memory_space<vmem>>, %arg3: memref<1x192x4xf32, #tpu.memory_space<vmem>>, %arg4: memref<1x48x16xf32, #tpu.memory_space<vmem>>, %arg5: memref<1x192x16xf32, #tpu.memory_space<vmem>>, %arg6: memref<1x192x16xf32, #tpu.memory_space<vmem>>, %arg7: memref<1x12x64xf32, #tpu.memory_space<vmem>>, %arg8: memref<1x192x64xf32, #tpu.memory_space<vmem>>, %arg9: memref<1x192x64xf32, #tpu.memory_space<vmem>>, %arg10: memref<1x3x256xf32, #tpu.memory_space<vmem>>, %arg11: memref<1x192x256xf32, #tpu.memory_space<vmem>>, %arg12: memref<1x192x256xf32, #tpu.memory_space<vmem>>, %arg13: memref<1x192x4xf32, #tpu.memory_space<vmem>>, %arg14: memref<1x192x4xf32, #tpu.memory_space<vmem>>, %arg15: memref<1x192x4xf32, #tpu.memory_space<vmem>>, %arg16: memref<1x48x16xf32, #tpu.memory_space<vmem>>, %arg17: memref<1x192x16xf32, #tpu.memory_space<vmem>>, %arg18: memref<1x192x16xf32, #tpu.memory_space<vmem>>, %arg19: memref<1x12x64xf32, #tpu.memory_space<vmem>>, %arg20: memref<1x192x64xf32, #tpu.memory_space<vmem>>, %arg21: memref<1x192x64xf32, #tpu.memory_space<vmem>>, %arg22: memref<1x3x256xf32, #tpu.memory_space<vmem>>, %arg23: memref<1x192x256xf32, #tpu.memory_space<vmem>>, %arg24: memref<1x192x256xf32, #tpu.memory_space<vmem>>, %arg25: memref<192x192xf32, #tpu.memory_space<vmem>>, %arg26: memref<48x192xf32, #tpu.memory_space<vmem>>, %arg27: memref<12x192xf32, #tpu.memory_space<vmem>>, %arg28: memref<3x192xf32, #tpu.memory_space<vmem>>, %arg29: memref<1x1x192xf32, #tpu.memory_space<vmem>>, %arg30: memref<1x1x192xf32, #tpu.memory_space<vmem>>, %arg31: memref<1x1x192xf32, #tpu.memory_space<vmem>>, %arg32: memref<1x1x192xf32, #tpu.memory_space<vmem>>, %arg33: memref<1x192x4xf32, #tpu.memory_space<vmem>>, %arg34: memref<1x48x16xf32, #tpu.memory_space<vmem>>, %arg35: memref<1x12x64xf32, #tpu.memory_space<vmem>>, %arg36: memref<1x3x256xf32, #tpu.memory_space<vmem>>, %arg37: memref<1x192x4xf32, #tpu.memory_space<vmem>>, %arg38: memref<1x48x16xf32, #tpu.memory_space<vmem>>, %arg39: memref<1x12x64xf32, #tpu.memory_space<vmem>>, %arg40: memref<1x3x256xf32, #tpu.memory_space<vmem>>) attributes {dimension_semantics = [#tpu.dimension_semantics<parallel>], iteration_bounds = array<i64: 2>, scalar_prefetch = 0 : i64, scratch_operands = 0 : i64, tpu.core_type = #tpu.core_type<tc>, window_params = [{transform_indices = @transform_0, window_bounds = array<i64: 1, 192, 4>}, {transform_indices = @transform_1, window_bounds = array<i64: 1, 192, 4>}, {transform_indices = @transform_2, window_bounds = array<i64: 1, 192, 4>}, {transform_indices = @transform_3, window_bounds = array<i64: 1, 48, 16>}, {transform_indices = @transform_4, window_bounds = array<i64: 1, 192, 16>}, {transform_indices = @transform_5, window_bounds = array<i64: 1, 192, 16>}, {transform_indices = @transform_6, window_bounds = array<i64: 1, 12, 64>}, {transform_indices = @transform_7, window_bounds = array<i64: 1, 192, 64>}, {transform_indices = @transform_8, window_bounds = array<i64: 1, 192, 64>}, {transform_indices = @transform_9, window_bounds = array<i64: 1, 3, 256>}, {transform_indices = @transform_10, window_bounds = array<i64: 1, 192, 256>}, {transform_indices = @transform_11, window_bounds = array<i64: 1, 192, 256>}, {transform_indices = @transform_12, window_bounds = array<i64: 1, 192, 4>}, {transform_indices = @transform_13, window_bounds = array<i64: 1, 192, 4>}, {transform_indices = @transform_14, window_bounds = array<i64: 1, 192, 4>}, {transform_indices = @transform_15, window_bounds = array<i64: 1, 48, 16>}, {transform_indices = @transform_16, window_bounds = array<i64: 1, 192, 16>}, {transform_indices = @transform_17, window_bounds = array<i64: 1, 192, 16>}, {transform_indices = @transform_18, window_bounds = array<i64: 1, 12, 64>}, {transform_indices = @transform_19, window_bounds = array<i64: 1, 192, 64>}, {transform_indices = @transform_20, window_bounds = array<i64: 1, 192, 64>}, {transform_indices = @transform_21, window_bounds = array<i64: 1, 3, 256>}, {transform_indices = @transform_22, window_bounds = array<i64: 1, 192, 256>}, {transform_indices = @transform_23, window_bounds = array<i64: 1, 192, 256>}, {pipeline_mode = #tpu.pipeline_mode<synchronous>, transform_indices = @transform_24, window_bounds = array<i64: 192, 192>}, {pipeline_mode = #tpu.pipeline_mode<synchronous>, transform_indices = @transform_25, window_bounds = array<i64: 48, 192>}, {pipeline_mode = #tpu.pipeline_mode<synchronous>, transform_indices = @transform_26, window_bounds = array<i64: 12, 192>}, {pipeline_mode = #tpu.pipeline_mode<synchronous>, transform_indices = @transform_27, window_bounds = array<i64: 3, 192>}, {transform_indices = @transform_28, window_bounds = array<i64: 1, 1, 192>}, {transform_indices = @transform_29, window_bounds = array<i64: 1, 1, 192>}, {transform_indices = @transform_30, window_bounds = array<i64: 1, 1, 192>}, {transform_indices = @transform_31, window_bounds = array<i64: 1, 1, 192>}, {transform_indices = @transform_32, window_bounds = array<i64: 1, 192, 4>}, {transform_indices = @transform_33, window_bounds = array<i64: 1, 48, 16>}, {transform_indices = @transform_34, window_bounds = array<i64: 1, 12, 64>}, {transform_indices = @transform_35, window_bounds = array<i64: 1, 3, 256>}, {transform_indices = @transform_36, window_bounds = array<i64: 1, 192, 4>}, {transform_indices = @transform_37, window_bounds = array<i64: 1, 48, 16>}, {transform_indices = @transform_38, window_bounds = array<i64: 1, 12, 64>}, {transform_indices = @transform_39, window_bounds = array<i64: 1, 3, 256>}]} {
    %c0 = arith.constant 0 : index
    %c0_0 = arith.constant 0 : index
    %c0_1 = arith.constant 0 : index
    %0 = vector.load %arg1[%c0, %c0_0, %c0_1] : memref<1x192x4xf32, #tpu.memory_space<vmem>>, vector<1x192x4xf32>
    %1 = vector.shape_cast %0 : vector<1x192x4xf32> to vector<192x4xf32>
    %2 = arith.truncf %1 : vector<192x4xf32> to vector<192x4xbf16>
    %c0_2 = arith.constant 0 : index
    %c0_3 = arith.constant 0 : index
    %c0_4 = arith.constant 0 : index
    %3 = vector.load %arg2[%c0_2, %c0_3, %c0_4] : memref<1x192x4xf32, #tpu.memory_space<vmem>>, vector<1x192x4xf32>
    %4 = vector.shape_cast %3 : vector<1x192x4xf32> to vector<192x4xf32>
    %5 = arith.truncf %4 : vector<192x4xf32> to vector<192x4xbf16>
    %c0_5 = arith.constant 0 : index
    %c0_6 = arith.constant 0 : index
    %c0_7 = arith.constant 0 : index
    %6 = vector.load %arg3[%c0_5, %c0_6, %c0_7] : memref<1x192x4xf32, #tpu.memory_space<vmem>>, vector<1x192x4xf32>
    %7 = vector.shape_cast %6 : vector<1x192x4xf32> to vector<192x4xf32>
    %8 = arith.truncf %7 : vector<192x4xf32> to vector<192x4xbf16>
    %cst = arith.constant dense<0.000000e+00> : vector<192x192xf32>
    %9 = tpu.matmul %2, %5, %cst {dimension_numbers = #tpu.dot_dimension_numbers<[1], [1], [0], [0], [0, 0, 1, 0], [], []>} : vector<192x4xbf16>, vector<192x4xbf16>, vector<192x192xf32> -> vector<192x192xf32>
    %cst_8 = arith.constant 5.000000e-01 : f32
    %10 = vector.broadcast %cst_8 : f32 to vector<192x192xf32>
    %11 = arith.mulf %9, %10 : vector<192x192xf32>
    %c0_9 = arith.constant 0 : index
    %c0_10 = arith.constant 0 : index
    %12 = vector.load %arg25[%c0_9, %c0_10] : memref<192x192xf32, #tpu.memory_space<vmem>>, vector<192x192xf32>
    %13 = arith.addf %11, %12 : vector<192x192xf32>
    %c0_11 = arith.constant 0 : index
    %c0_12 = arith.constant 0 : index
    %c0_13 = arith.constant 0 : index
    %14 = vector.load %arg29[%c0_11, %c0_12, %c0_13] : memref<1x1x192xf32, #tpu.memory_space<vmem>>, vector<1x1x192xf32>
    %15 = vector.shape_cast %14 : vector<1x1x192xf32> to vector<1x192xf32>
    %16 = vector.broadcast %15 : vector<1x192xf32> to vector<192x192xf32>
    %17 = arith.addf %13, %16 : vector<192x192xf32>
    %cst_14 = arith.constant dense<0xFF800000> : vector<192xf32>
    %18 = vector.multi_reduction <maximumf>, %17, %cst_14 [1] : vector<192x192xf32> to vector<192xf32>
    %19 = vector.shape_cast %18 : vector<192xf32> to vector<192x1xf32>
    %20 = vector.broadcast %19 : vector<192x1xf32> to vector<192x192xf32>
    %21 = arith.subf %17, %20 : vector<192x192xf32>
    %22 = math.exp %21 : vector<192x192xf32>
    %cst_15 = arith.constant dense<0.000000e+00> : vector<192xf32>
    %23 = vector.multi_reduction <add>, %22, %cst_15 [1] : vector<192x192xf32> to vector<192xf32>
    %24 = vector.shape_cast %23 : vector<192xf32> to vector<192x1xf32>
    %25 = tpu.reciprocal %24 {approx = true} : vector<192x1xf32> -> vector<192x1xf32>
    %26 = vector.broadcast %25 : vector<192x1xf32> to vector<192x192xf32>
    %27 = arith.mulf %22, %26 : vector<192x192xf32>
    %28 = arith.truncf %27 : vector<192x192xf32> to vector<192x192xbf16>
    %cst_16 = arith.constant dense<0.000000e+00> : vector<192x4xf32>
    %29 = tpu.matmul %28, %8, %cst_16 {dimension_numbers = #tpu.dot_dimension_numbers<[1], [0], [0], [1], [0, 0, 1, 1], [], []>} : vector<192x192xbf16>, vector<192x4xbf16>, vector<192x4xf32> -> vector<192x4xf32>
    %c0_17 = arith.constant 0 : index
    %c0_18 = arith.constant 0 : index
    %c0_19 = arith.constant 0 : index
    %30 = vector.load %arg33[%c0_17, %c0_18, %c0_19] : memref<1x192x4xf32, #tpu.memory_space<vmem>>, vector<1x192x4xf32>
    %31 = vector.shape_cast %30 : vector<1x192x4xf32> to vector<192x4xf32>
    %32 = vector.shape_cast %29 : vector<192x4xf32> to vector<1x192x4xf32>
    tpu.vector_store %arg33[%c0_17, %c0_18, %c0_19], %32 {strides = array<i32>} : memref<1x192x4xf32, #tpu.memory_space<vmem>>, vector<1x192x4xf32>,
    %c0_20 = arith.constant 0 : index
    %c0_21 = arith.constant 0 : index
    %c0_22 = arith.constant 0 : index
    %33 = vector.load %arg4[%c0_20, %c0_21, %c0_22] : memref<1x48x16xf32, #tpu.memory_space<vmem>>, vector<1x48x16xf32>
    %34 = vector.shape_cast %33 : vector<1x48x16xf32> to vector<48x16xf32>
    %35 = arith.truncf %34 : vector<48x16xf32> to vector<48x16xbf16>
    %c0_23 = arith.constant 0 : index
    %c0_24 = arith.constant 0 : index
    %c0_25 = arith.constant 0 : index
    %36 = vector.load %arg5[%c0_23, %c0_24, %c0_25] : memref<1x192x16xf32, #tpu.memory_space<vmem>>, vector<1x192x16xf32>
    %37 = vector.shape_cast %36 : vector<1x192x16xf32> to vector<192x16xf32>
    %38 = arith.truncf %37 : vector<192x16xf32> to vector<192x16xbf16>
    %c0_26 = arith.constant 0 : index
    %c0_27 = arith.constant 0 : index
    %c0_28 = arith.constant 0 : index
    %39 = vector.load %arg6[%c0_26, %c0_27, %c0_28] : memref<1x192x16xf32, #tpu.memory_space<vmem>>, vector<1x192x16xf32>
    %40 = vector.shape_cast %39 : vector<1x192x16xf32> to vector<192x16xf32>
    %41 = arith.truncf %40 : vector<192x16xf32> to vector<192x16xbf16>
    %cst_29 = arith.constant dense<0.000000e+00> : vector<48x192xf32>
    %42 = tpu.matmul %35, %38, %cst_29 {dimension_numbers = #tpu.dot_dimension_numbers<[1], [1], [0], [0], [0, 0, 1, 0], [], []>} : vector<48x16xbf16>, vector<192x16xbf16>, vector<48x192xf32> -> vector<48x192xf32>
    %cst_30 = arith.constant 1.250000e-01 : f32
    %43 = vector.broadcast %cst_30 : f32 to vector<48x192xf32>
    %44 = arith.mulf %42, %43 : vector<48x192xf32>
    %c0_31 = arith.constant 0 : index
    %c0_32 = arith.constant 0 : index
    %45 = vector.load %arg26[%c0_31, %c0_32] : memref<48x192xf32, #tpu.memory_space<vmem>>, vector<48x192xf32>
    %46 = arith.addf %44, %45 : vector<48x192xf32>
    %c0_33 = arith.constant 0 : index
    %c0_34 = arith.constant 0 : index
    %c0_35 = arith.constant 0 : index
    %47 = vector.load %arg30[%c0_33, %c0_34, %c0_35] : memref<1x1x192xf32, #tpu.memory_space<vmem>>, vector<1x1x192xf32>
    %48 = vector.shape_cast %47 : vector<1x1x192xf32> to vector<1x192xf32>
    %49 = vector.broadcast %48 : vector<1x192xf32> to vector<48x192xf32>
    %50 = arith.addf %46, %49 : vector<48x192xf32>
    %cst_36 = arith.constant dense<0xFF800000> : vector<48xf32>
    %51 = vector.multi_reduction <maximumf>, %50, %cst_36 [1] : vector<48x192xf32> to vector<48xf32>
    %52 = vector.shape_cast %51 : vector<48xf32> to vector<48x1xf32>
    %53 = vector.broadcast %52 : vector<48x1xf32> to vector<48x192xf32>
    %54 = arith.subf %50, %53 : vector<48x192xf32>
    %55 = math.exp %54 : vector<48x192xf32>
    %cst_37 = arith.constant dense<0.000000e+00> : vector<48xf32>
    %56 = vector.multi_reduction <add>, %55, %cst_37 [1] : vector<48x192xf32> to vector<48xf32>
    %57 = vector.shape_cast %56 : vector<48xf32> to vector<48x1xf32>
    %58 = tpu.reciprocal %57 {approx = true} : vector<48x1xf32> -> vector<48x1xf32>
    %59 = vector.broadcast %58 : vector<48x1xf32> to vector<48x192xf32>
    %60 = arith.mulf %55, %59 : vector<48x192xf32>
    %61 = arith.truncf %60 : vector<48x192xf32> to vector<48x192xbf16>
    %cst_38 = arith.constant dense<0.000000e+00> : vector<48x16xf32>
    %62 = tpu.matmul %61, %41, %cst_38 {dimension_numbers = #tpu.dot_dimension_numbers<[1], [0], [0], [1], [0, 0, 1, 1], [], []>} : vector<48x192xbf16>, vector<192x16xbf16>, vector<48x16xf32> -> vector<48x16xf32>
    %c0_39 = arith.constant 0 : index
    %c0_40 = arith.constant 0 : index
    %c0_41 = arith.constant 0 : index
    %63 = vector.load %arg34[%c0_39, %c0_40, %c0_41] : memref<1x48x16xf32, #tpu.memory_space<vmem>>, vector<1x48x16xf32>
    %64 = vector.shape_cast %63 : vector<1x48x16xf32> to vector<48x16xf32>
    %65 = vector.shape_cast %62 : vector<48x16xf32> to vector<1x48x16xf32>
    tpu.vector_store %arg34[%c0_39, %c0_40, %c0_41], %65 {strides = array<i32>} : memref<1x48x16xf32, #tpu.memory_space<vmem>>, vector<1x48x16xf32>,
    %c0_42 = arith.constant 0 : index
    %c0_43 = arith.constant 0 : index
    %c0_44 = arith.constant 0 : index
    %66 = vector.load %arg7[%c0_42, %c0_43, %c0_44] : memref<1x12x64xf32, #tpu.memory_space<vmem>>, vector<1x12x64xf32>
    %67 = vector.shape_cast %66 : vector<1x12x64xf32> to vector<12x64xf32>
    %68 = arith.truncf %67 : vector<12x64xf32> to vector<12x64xbf16>
    %c0_45 = arith.constant 0 : index
    %c0_46 = arith.constant 0 : index
    %c0_47 = arith.constant 0 : index
    %69 = vector.load %arg8[%c0_45, %c0_46, %c0_47] : memref<1x192x64xf32, #tpu.memory_space<vmem>>, vector<1x192x64xf32>
    %70 = vector.shape_cast %69 : vector<1x192x64xf32> to vector<192x64xf32>
    %71 = arith.truncf %70 : vector<192x64xf32> to vector<192x64xbf16>
    %c0_48 = arith.constant 0 : index
    %c0_49 = arith.constant 0 : index
    %c0_50 = arith.constant 0 : index
    %72 = vector.load %arg9[%c0_48, %c0_49, %c0_50] : memref<1x192x64xf32, #tpu.memory_space<vmem>>, vector<1x192x64xf32>
    %73 = vector.shape_cast %72 : vector<1x192x64xf32> to vector<192x64xf32>
    %74 = arith.truncf %73 : vector<192x64xf32> to vector<192x64xbf16>
    %cst_51 = arith.constant dense<0.000000e+00> : vector<12x192xf32>
    %75 = tpu.matmul %68, %71, %cst_51 {dimension_numbers = #tpu.dot_dimension_numbers<[1], [1], [0], [0], [0, 0, 1, 0], [], []>} : vector<12x64xbf16>, vector<192x64xbf16>, vector<12x192xf32> -> vector<12x192xf32>
    %cst_52 = arith.constant 3.125000e-02 : f32
    %76 = vector.broadcast %cst_52 : f32 to vector<12x192xf32>
    %77 = arith.mulf %75, %76 : vector<12x192xf32>
    %c0_53 = arith.constant 0 : index
    %c0_54 = arith.constant 0 : index
    %78 = vector.load %arg27[%c0_53, %c0_54] : memref<12x192xf32, #tpu.memory_space<vmem>>, vector<12x192xf32>
    %79 = arith.addf %77, %78 : vector<12x192xf32>
    %c0_55 = arith.constant 0 : index
    %c0_56 = arith.constant 0 : index
    %c0_57 = arith.constant 0 : index
    %80 = vector.load %arg31[%c0_55, %c0_56, %c0_57] : memref<1x1x192xf32, #tpu.memory_space<vmem>>, vector<1x1x192xf32>
    %81 = vector.shape_cast %80 : vector<1x1x192xf32> to vector<1x192xf32>
    %82 = vector.broadcast %81 : vector<1x192xf32> to vector<12x192xf32>
    %83 = arith.addf %79, %82 : vector<12x192xf32>
    %cst_58 = arith.constant dense<0xFF800000> : vector<12xf32>
    %84 = vector.multi_reduction <maximumf>, %83, %cst_58 [1] : vector<12x192xf32> to vector<12xf32>
    %85 = vector.shape_cast %84 : vector<12xf32> to vector<12x1xf32>
    %86 = vector.broadcast %85 : vector<12x1xf32> to vector<12x192xf32>
    %87 = arith.subf %83, %86 : vector<12x192xf32>
    %88 = math.exp %87 : vector<12x192xf32>
    %cst_59 = arith.constant dense<0.000000e+00> : vector<12xf32>
    %89 = vector.multi_reduction <add>, %88, %cst_59 [1] : vector<12x192xf32> to vector<12xf32>
    %90 = vector.shape_cast %89 : vector<12xf32> to vector<12x1xf32>
    %91 = tpu.reciprocal %90 {approx = true} : vector<12x1xf32> -> vector<12x1xf32>
    %92 = vector.broadcast %91 : vector<12x1xf32> to vector<12x192xf32>
    %93 = arith.mulf %88, %92 : vector<12x192xf32>
    %94 = arith.truncf %93 : vector<12x192xf32> to vector<12x192xbf16>
    %cst_60 = arith.constant dense<0.000000e+00> : vector<12x64xf32>
    %95 = tpu.matmul %94, %74, %cst_60 {dimension_numbers = #tpu.dot_dimension_numbers<[1], [0], [0], [1], [0, 0, 1, 1], [], []>} : vector<12x192xbf16>, vector<192x64xbf16>, vector<12x64xf32> -> vector<12x64xf32>
    %c0_61 = arith.constant 0 : index
    %c0_62 = arith.constant 0 : index
    %c0_63 = arith.constant 0 : index
    %96 = vector.load %arg35[%c0_61, %c0_62, %c0_63] : memref<1x12x64xf32, #tpu.memory_space<vmem>>, vector<1x12x64xf32>
    %97 = vector.shape_cast %96 : vector<1x12x64xf32> to vector<12x64xf32>
    %98 = vector.shape_cast %95 : vector<12x64xf32> to vector<1x12x64xf32>
    tpu.vector_store %arg35[%c0_61, %c0_62, %c0_63], %98 {strides = array<i32>} : memref<1x12x64xf32, #tpu.memory_space<vmem>>, vector<1x12x64xf32>,
    %c0_64 = arith.constant 0 : index
    %c0_65 = arith.constant 0 : index
    %c0_66 = arith.constant 0 : index
    %99 = vector.load %arg10[%c0_64, %c0_65, %c0_66] : memref<1x3x256xf32, #tpu.memory_space<vmem>>, vector<1x3x256xf32>
    %100 = vector.shape_cast %99 : vector<1x3x256xf32> to vector<3x256xf32>
    %101 = arith.truncf %100 : vector<3x256xf32> to vector<3x256xbf16>
    %c0_67 = arith.constant 0 : index
    %c0_68 = arith.constant 0 : index
    %c0_69 = arith.constant 0 : index
    %102 = vector.load %arg11[%c0_67, %c0_68, %c0_69] : memref<1x192x256xf32, #tpu.memory_space<vmem>>, vector<1x192x256xf32>
    %103 = vector.shape_cast %102 : vector<1x192x256xf32> to vector<192x256xf32>
    %104 = arith.truncf %103 : vector<192x256xf32> to vector<192x256xbf16>
    %c0_70 = arith.constant 0 : index
    %c0_71 = arith.constant 0 : index
    %c0_72 = arith.constant 0 : index
    %105 = vector.load %arg12[%c0_70, %c0_71, %c0_72] : memref<1x192x256xf32, #tpu.memory_space<vmem>>, vector<1x192x256xf32>
    %106 = vector.shape_cast %105 : vector<1x192x256xf32> to vector<192x256xf32>
    %107 = arith.truncf %106 : vector<192x256xf32> to vector<192x256xbf16>
    %cst_73 = arith.constant dense<0.000000e+00> : vector<3x192xf32>
    %108 = tpu.matmul %101, %104, %cst_73 {dimension_numbers = #tpu.dot_dimension_numbers<[1], [1], [0], [0], [0, 0, 1, 0], [], []>} : vector<3x256xbf16>, vector<192x256xbf16>, vector<3x192xf32> -> vector<3x192xf32>
    %cst_74 = arith.constant 7.812500e-03 : f32
    %109 = vector.broadcast %cst_74 : f32 to vector<3x192xf32>
    %110 = arith.mulf %108, %109 : vector<3x192xf32>
    %c0_75 = arith.constant 0 : index
    %c0_76 = arith.constant 0 : index
    %111 = vector.load %arg28[%c0_75, %c0_76] : memref<3x192xf32, #tpu.memory_space<vmem>>, vector<3x192xf32>
    %112 = arith.addf %110, %111 : vector<3x192xf32>
    %c0_77 = arith.constant 0 : index
    %c0_78 = arith.constant 0 : index
    %c0_79 = arith.constant 0 : index
    %113 = vector.load %arg32[%c0_77, %c0_78, %c0_79] : memref<1x1x192xf32, #tpu.memory_space<vmem>>, vector<1x1x192xf32>
    %114 = vector.shape_cast %113 : vector<1x1x192xf32> to vector<1x192xf32>
    %115 = vector.broadcast %114 : vector<1x192xf32> to vector<3x192xf32>
    %116 = arith.addf %112, %115 : vector<3x192xf32>
    %cst_80 = arith.constant dense<0xFF800000> : vector<3xf32>
    %117 = vector.multi_reduction <maximumf>, %116, %cst_80 [1] : vector<3x192xf32> to vector<3xf32>
    %118 = vector.shape_cast %117 : vector<3xf32> to vector<3x1xf32>
    %119 = vector.broadcast %118 : vector<3x1xf32> to vector<3x192xf32>
    %120 = arith.subf %116, %119 : vector<3x192xf32>
    %121 = math.exp %120 : vector<3x192xf32>
    %cst_81 = arith.constant dense<0.000000e+00> : vector<3xf32>
    %122 = vector.multi_reduction <add>, %121, %cst_81 [1] : vector<3x192xf32> to vector<3xf32>
    %123 = vector.shape_cast %122 : vector<3xf32> to vector<3x1xf32>
    %124 = tpu.reciprocal %123 {approx = true} : vector<3x1xf32> -> vector<3x1xf32>
    %125 = vector.broadcast %124 : vector<3x1xf32> to vector<3x192xf32>
    %126 = arith.mulf %121, %125 : vector<3x192xf32>
    %127 = arith.truncf %126 : vector<3x192xf32> to vector<3x192xbf16>
    %cst_82 = arith.constant dense<0.000000e+00> : vector<3x256xf32>
    %128 = tpu.matmul %127, %107, %cst_82 {dimension_numbers = #tpu.dot_dimension_numbers<[1], [0], [0], [1], [0, 0, 1, 1], [], []>} : vector<3x192xbf16>, vector<192x256xbf16>, vector<3x256xf32> -> vector<3x256xf32>
    %c0_83 = arith.constant 0 : index
    %c0_84 = arith.constant 0 : index
    %c0_85 = arith.constant 0 : index
    %129 = vector.load %arg36[%c0_83, %c0_84, %c0_85] : memref<1x3x256xf32, #tpu.memory_space<vmem>>, vector<1x3x256xf32>
    %130 = vector.shape_cast %129 : vector<1x3x256xf32> to vector<3x256xf32>
    %131 = vector.shape_cast %128 : vector<3x256xf32> to vector<1x3x256xf32>
    tpu.vector_store %arg36[%c0_83, %c0_84, %c0_85], %131 {strides = array<i32>} : memref<1x3x256xf32, #tpu.memory_space<vmem>>, vector<1x3x256xf32>,
    %c0_86 = arith.constant 0 : index
    %c0_87 = arith.constant 0 : index
    %c0_88 = arith.constant 0 : index
    %132 = vector.load %arg13[%c0_86, %c0_87, %c0_88] : memref<1x192x4xf32, #tpu.memory_space<vmem>>, vector<1x192x4xf32>
    %133 = vector.shape_cast %132 : vector<1x192x4xf32> to vector<192x4xf32>
    %134 = arith.truncf %133 : vector<192x4xf32> to vector<192x4xbf16>
    %c0_89 = arith.constant 0 : index
    %c0_90 = arith.constant 0 : index
    %c0_91 = arith.constant 0 : index
    %135 = vector.load %arg14[%c0_89, %c0_90, %c0_91] : memref<1x192x4xf32, #tpu.memory_space<vmem>>, vector<1x192x4xf32>
    %136 = vector.shape_cast %135 : vector<1x192x4xf32> to vector<192x4xf32>
    %137 = arith.truncf %136 : vector<192x4xf32> to vector<192x4xbf16>
    %c0_92 = arith.constant 0 : index
    %c0_93 = arith.constant 0 : index
    %c0_94 = arith.constant 0 : index
    %138 = vector.load %arg15[%c0_92, %c0_93, %c0_94] : memref<1x192x4xf32, #tpu.memory_space<vmem>>, vector<1x192x4xf32>
    %139 = vector.shape_cast %138 : vector<1x192x4xf32> to vector<192x4xf32>
    %140 = arith.truncf %139 : vector<192x4xf32> to vector<192x4xbf16>
    %cst_95 = arith.constant dense<0.000000e+00> : vector<192x192xf32>
    %141 = tpu.matmul %134, %137, %cst_95 {dimension_numbers = #tpu.dot_dimension_numbers<[1], [1], [0], [0], [0, 0, 1, 0], [], []>} : vector<192x4xbf16>, vector<192x4xbf16>, vector<192x192xf32> -> vector<192x192xf32>
    %cst_96 = arith.constant 5.000000e-01 : f32
    %142 = vector.broadcast %cst_96 : f32 to vector<192x192xf32>
    %143 = arith.mulf %141, %142 : vector<192x192xf32>
    %c0_97 = arith.constant 0 : index
    %c0_98 = arith.constant 0 : index
    %144 = vector.load %arg25[%c0_97, %c0_98] : memref<192x192xf32, #tpu.memory_space<vmem>>, vector<192x192xf32>
    %145 = arith.addf %143, %144 : vector<192x192xf32>
    %c0_99 = arith.constant 0 : index
    %c0_100 = arith.constant 0 : index
    %c0_101 = arith.constant 0 : index
    %146 = vector.load %arg29[%c0_99, %c0_100, %c0_101] : memref<1x1x192xf32, #tpu.memory_space<vmem>>, vector<1x1x192xf32>
    %147 = vector.shape_cast %146 : vector<1x1x192xf32> to vector<1x192xf32>
    %148 = vector.broadcast %147 : vector<1x192xf32> to vector<192x192xf32>
    %149 = arith.addf %145, %148 : vector<192x192xf32>
    %cst_102 = arith.constant dense<0xFF800000> : vector<192xf32>
    %150 = vector.multi_reduction <maximumf>, %149, %cst_102 [1] : vector<192x192xf32> to vector<192xf32>
    %151 = vector.shape_cast %150 : vector<192xf32> to vector<192x1xf32>
    %152 = vector.broadcast %151 : vector<192x1xf32> to vector<192x192xf32>
    %153 = arith.subf %149, %152 : vector<192x192xf32>
    %154 = math.exp %153 : vector<192x192xf32>
    %cst_103 = arith.constant dense<0.000000e+00> : vector<192xf32>
    %155 = vector.multi_reduction <add>, %154, %cst_103 [1] : vector<192x192xf32> to vector<192xf32>
    %156 = vector.shape_cast %155 : vector<192xf32> to vector<192x1xf32>
    %157 = tpu.reciprocal %156 {approx = true} : vector<192x1xf32> -> vector<192x1xf32>
    %158 = vector.broadcast %157 : vector<192x1xf32> to vector<192x192xf32>
    %159 = arith.mulf %154, %158 : vector<192x192xf32>
    %160 = arith.truncf %159 : vector<192x192xf32> to vector<192x192xbf16>
    %cst_104 = arith.constant dense<0.000000e+00> : vector<192x4xf32>
    %161 = tpu.matmul %160, %140, %cst_104 {dimension_numbers = #tpu.dot_dimension_numbers<[1], [0], [0], [1], [0, 0, 1, 1], [], []>} : vector<192x192xbf16>, vector<192x4xbf16>, vector<192x4xf32> -> vector<192x4xf32>
    %c0_105 = arith.constant 0 : index
    %c0_106 = arith.constant 0 : index
    %c0_107 = arith.constant 0 : index
    %162 = vector.load %arg37[%c0_105, %c0_106, %c0_107] : memref<1x192x4xf32, #tpu.memory_space<vmem>>, vector<1x192x4xf32>
    %163 = vector.shape_cast %162 : vector<1x192x4xf32> to vector<192x4xf32>
    %164 = vector.shape_cast %161 : vector<192x4xf32> to vector<1x192x4xf32>
    tpu.vector_store %arg37[%c0_105, %c0_106, %c0_107], %164 {strides = array<i32>} : memref<1x192x4xf32, #tpu.memory_space<vmem>>, vector<1x192x4xf32>,
    %c0_108 = arith.constant 0 : index
    %c0_109 = arith.constant 0 : index
    %c0_110 = arith.constant 0 : index
    %165 = vector.load %arg16[%c0_108, %c0_109, %c0_110] : memref<1x48x16xf32, #tpu.memory_space<vmem>>, vector<1x48x16xf32>
    %166 = vector.shape_cast %165 : vector<1x48x16xf32> to vector<48x16xf32>
    %167 = arith.truncf %166 : vector<48x16xf32> to vector<48x16xbf16>
    %c0_111 = arith.constant 0 : index
    %c0_112 = arith.constant 0 : index
    %c0_113 = arith.constant 0 : index
    %168 = vector.load %arg17[%c0_111, %c0_112, %c0_113] : memref<1x192x16xf32, #tpu.memory_space<vmem>>, vector<1x192x16xf32>
    %169 = vector.shape_cast %168 : vector<1x192x16xf32> to vector<192x16xf32>
    %170 = arith.truncf %169 : vector<192x16xf32> to vector<192x16xbf16>
    %c0_114 = arith.constant 0 : index
    %c0_115 = arith.constant 0 : index
    %c0_116 = arith.constant 0 : index
    %171 = vector.load %arg18[%c0_114, %c0_115, %c0_116] : memref<1x192x16xf32, #tpu.memory_space<vmem>>, vector<1x192x16xf32>
    %172 = vector.shape_cast %171 : vector<1x192x16xf32> to vector<192x16xf32>
    %173 = arith.truncf %172 : vector<192x16xf32> to vector<192x16xbf16>
    %cst_117 = arith.constant dense<0.000000e+00> : vector<48x192xf32>
    %174 = tpu.matmul %167, %170, %cst_117 {dimension_numbers = #tpu.dot_dimension_numbers<[1], [1], [0], [0], [0, 0, 1, 0], [], []>} : vector<48x16xbf16>, vector<192x16xbf16>, vector<48x192xf32> -> vector<48x192xf32>
    %cst_118 = arith.constant 1.250000e-01 : f32
    %175 = vector.broadcast %cst_118 : f32 to vector<48x192xf32>
    %176 = arith.mulf %174, %175 : vector<48x192xf32>
    %c0_119 = arith.constant 0 : index
    %c0_120 = arith.constant 0 : index
    %177 = vector.load %arg26[%c0_119, %c0_120] : memref<48x192xf32, #tpu.memory_space<vmem>>, vector<48x192xf32>
    %178 = arith.addf %176, %177 : vector<48x192xf32>
    %c0_121 = arith.constant 0 : index
    %c0_122 = arith.constant 0 : index
    %c0_123 = arith.constant 0 : index
    %179 = vector.load %arg30[%c0_121, %c0_122, %c0_123] : memref<1x1x192xf32, #tpu.memory_space<vmem>>, vector<1x1x192xf32>
    %180 = vector.shape_cast %179 : vector<1x1x192xf32> to vector<1x192xf32>
    %181 = vector.broadcast %180 : vector<1x192xf32> to vector<48x192xf32>
    %182 = arith.addf %178, %181 : vector<48x192xf32>
    %cst_124 = arith.constant dense<0xFF800000> : vector<48xf32>
    %183 = vector.multi_reduction <maximumf>, %182, %cst_124 [1] : vector<48x192xf32> to vector<48xf32>
    %184 = vector.shape_cast %183 : vector<48xf32> to vector<48x1xf32>
    %185 = vector.broadcast %184 : vector<48x1xf32> to vector<48x192xf32>
    %186 = arith.subf %182, %185 : vector<48x192xf32>
    %187 = math.exp %186 : vector<48x192xf32>
    %cst_125 = arith.constant dense<0.000000e+00> : vector<48xf32>
    %188 = vector.multi_reduction <add>, %187, %cst_125 [1] : vector<48x192xf32> to vector<48xf32>
    %189 = vector.shape_cast %188 : vector<48xf32> to vector<48x1xf32>
    %190 = tpu.reciprocal %189 {approx = true} : vector<48x1xf32> -> vector<48x1xf32>
    %191 = vector.broadcast %190 : vector<48x1xf32> to vector<48x192xf32>
    %192 = arith.mulf %187, %191 : vector<48x192xf32>
    %193 = arith.truncf %192 : vector<48x192xf32> to vector<48x192xbf16>
    %cst_126 = arith.constant dense<0.000000e+00> : vector<48x16xf32>
    %194 = tpu.matmul %193, %173, %cst_126 {dimension_numbers = #tpu.dot_dimension_numbers<[1], [0], [0], [1], [0, 0, 1, 1], [], []>} : vector<48x192xbf16>, vector<192x16xbf16>, vector<48x16xf32> -> vector<48x16xf32>
    %c0_127 = arith.constant 0 : index
    %c0_128 = arith.constant 0 : index
    %c0_129 = arith.constant 0 : index
    %195 = vector.load %arg38[%c0_127, %c0_128, %c0_129] : memref<1x48x16xf32, #tpu.memory_space<vmem>>, vector<1x48x16xf32>
    %196 = vector.shape_cast %195 : vector<1x48x16xf32> to vector<48x16xf32>
    %197 = vector.shape_cast %194 : vector<48x16xf32> to vector<1x48x16xf32>
    tpu.vector_store %arg38[%c0_127, %c0_128, %c0_129], %197 {strides = array<i32>} : memref<1x48x16xf32, #tpu.memory_space<vmem>>, vector<1x48x16xf32>,
    %c0_130 = arith.constant 0 : index
    %c0_131 = arith.constant 0 : index
    %c0_132 = arith.constant 0 : index
    %198 = vector.load %arg19[%c0_130, %c0_131, %c0_132] : memref<1x12x64xf32, #tpu.memory_space<vmem>>, vector<1x12x64xf32>
    %199 = vector.shape_cast %198 : vector<1x12x64xf32> to vector<12x64xf32>
    %200 = arith.truncf %199 : vector<12x64xf32> to vector<12x64xbf16>
    %c0_133 = arith.constant 0 : index
    %c0_134 = arith.constant 0 : index
    %c0_135 = arith.constant 0 : index
    %201 = vector.load %arg20[%c0_133, %c0_134, %c0_135] : memref<1x192x64xf32, #tpu.memory_space<vmem>>, vector<1x192x64xf32>
    %202 = vector.shape_cast %201 : vector<1x192x64xf32> to vector<192x64xf32>
    %203 = arith.truncf %202 : vector<192x64xf32> to vector<192x64xbf16>
    %c0_136 = arith.constant 0 : index
    %c0_137 = arith.constant 0 : index
    %c0_138 = arith.constant 0 : index
    %204 = vector.load %arg21[%c0_136, %c0_137, %c0_138] : memref<1x192x64xf32, #tpu.memory_space<vmem>>, vector<1x192x64xf32>
    %205 = vector.shape_cast %204 : vector<1x192x64xf32> to vector<192x64xf32>
    %206 = arith.truncf %205 : vector<192x64xf32> to vector<192x64xbf16>
    %cst_139 = arith.constant dense<0.000000e+00> : vector<12x192xf32>
    %207 = tpu.matmul %200, %203, %cst_139 {dimension_numbers = #tpu.dot_dimension_numbers<[1], [1], [0], [0], [0, 0, 1, 0], [], []>} : vector<12x64xbf16>, vector<192x64xbf16>, vector<12x192xf32> -> vector<12x192xf32>
    %cst_140 = arith.constant 3.125000e-02 : f32
    %208 = vector.broadcast %cst_140 : f32 to vector<12x192xf32>
    %209 = arith.mulf %207, %208 : vector<12x192xf32>
    %c0_141 = arith.constant 0 : index
    %c0_142 = arith.constant 0 : index
    %210 = vector.load %arg27[%c0_141, %c0_142] : memref<12x192xf32, #tpu.memory_space<vmem>>, vector<12x192xf32>
    %211 = arith.addf %209, %210 : vector<12x192xf32>
    %c0_143 = arith.constant 0 : index
    %c0_144 = arith.constant 0 : index
    %c0_145 = arith.constant 0 : index
    %212 = vector.load %arg31[%c0_143, %c0_144, %c0_145] : memref<1x1x192xf32, #tpu.memory_space<vmem>>, vector<1x1x192xf32>
    %213 = vector.shape_cast %212 : vector<1x1x192xf32> to vector<1x192xf32>
    %214 = vector.broadcast %213 : vector<1x192xf32> to vector<12x192xf32>
    %215 = arith.addf %211, %214 : vector<12x192xf32>
    %cst_146 = arith.constant dense<0xFF800000> : vector<12xf32>
    %216 = vector.multi_reduction <maximumf>, %215, %cst_146 [1] : vector<12x192xf32> to vector<12xf32>
    %217 = vector.shape_cast %216 : vector<12xf32> to vector<12x1xf32>
    %218 = vector.broadcast %217 : vector<12x1xf32> to vector<12x192xf32>
    %219 = arith.subf %215, %218 : vector<12x192xf32>
    %220 = math.exp %219 : vector<12x192xf32>
    %cst_147 = arith.constant dense<0.000000e+00> : vector<12xf32>
    %221 = vector.multi_reduction <add>, %220, %cst_147 [1] : vector<12x192xf32> to vector<12xf32>
    %222 = vector.shape_cast %221 : vector<12xf32> to vector<12x1xf32>
    %223 = tpu.reciprocal %222 {approx = true} : vector<12x1xf32> -> vector<12x1xf32>
    %224 = vector.broadcast %223 : vector<12x1xf32> to vector<12x192xf32>
    %225 = arith.mulf %220, %224 : vector<12x192xf32>
    %226 = arith.truncf %225 : vector<12x192xf32> to vector<12x192xbf16>
    %cst_148 = arith.constant dense<0.000000e+00> : vector<12x64xf32>
    %227 = tpu.matmul %226, %206, %cst_148 {dimension_numbers = #tpu.dot_dimension_numbers<[1], [0], [0], [1], [0, 0, 1, 1], [], []>} : vector<12x192xbf16>, vector<192x64xbf16>, vector<12x64xf32> -> vector<12x64xf32>
    %c0_149 = arith.constant 0 : index
    %c0_150 = arith.constant 0 : index
    %c0_151 = arith.constant 0 : index
    %228 = vector.load %arg39[%c0_149, %c0_150, %c0_151] : memref<1x12x64xf32, #tpu.memory_space<vmem>>, vector<1x12x64xf32>
    %229 = vector.shape_cast %228 : vector<1x12x64xf32> to vector<12x64xf32>
    %230 = vector.shape_cast %227 : vector<12x64xf32> to vector<1x12x64xf32>
    tpu.vector_store %arg39[%c0_149, %c0_150, %c0_151], %230 {strides = array<i32>} : memref<1x12x64xf32, #tpu.memory_space<vmem>>, vector<1x12x64xf32>,
    %c0_152 = arith.constant 0 : index
    %c0_153 = arith.constant 0 : index
    %c0_154 = arith.constant 0 : index
    %231 = vector.load %arg22[%c0_152, %c0_153, %c0_154] : memref<1x3x256xf32, #tpu.memory_space<vmem>>, vector<1x3x256xf32>
    %232 = vector.shape_cast %231 : vector<1x3x256xf32> to vector<3x256xf32>
    %233 = arith.truncf %232 : vector<3x256xf32> to vector<3x256xbf16>
    %c0_155 = arith.constant 0 : index
    %c0_156 = arith.constant 0 : index
    %c0_157 = arith.constant 0 : index
    %234 = vector.load %arg23[%c0_155, %c0_156, %c0_157] : memref<1x192x256xf32, #tpu.memory_space<vmem>>, vector<1x192x256xf32>
    %235 = vector.shape_cast %234 : vector<1x192x256xf32> to vector<192x256xf32>
    %236 = arith.truncf %235 : vector<192x256xf32> to vector<192x256xbf16>
    %c0_158 = arith.constant 0 : index
    %c0_159 = arith.constant 0 : index
    %c0_160 = arith.constant 0 : index
    %237 = vector.load %arg24[%c0_158, %c0_159, %c0_160] : memref<1x192x256xf32, #tpu.memory_space<vmem>>, vector<1x192x256xf32>
    %238 = vector.shape_cast %237 : vector<1x192x256xf32> to vector<192x256xf32>
    %239 = arith.truncf %238 : vector<192x256xf32> to vector<192x256xbf16>
    %cst_161 = arith.constant dense<0.000000e+00> : vector<3x192xf32>
    %240 = tpu.matmul %233, %236, %cst_161 {dimension_numbers = #tpu.dot_dimension_numbers<[1], [1], [0], [0], [0, 0, 1, 0], [], []>} : vector<3x256xbf16>, vector<192x256xbf16>, vector<3x192xf32> -> vector<3x192xf32>
    %cst_162 = arith.constant 7.812500e-03 : f32
    %241 = vector.broadcast %cst_162 : f32 to vector<3x192xf32>
    %242 = arith.mulf %240, %241 : vector<3x192xf32>
    %c0_163 = arith.constant 0 : index
    %c0_164 = arith.constant 0 : index
    %243 = vector.load %arg28[%c0_163, %c0_164] : memref<3x192xf32, #tpu.memory_space<vmem>>, vector<3x192xf32>
    %244 = arith.addf %242, %243 : vector<3x192xf32>
    %c0_165 = arith.constant 0 : index
    %c0_166 = arith.constant 0 : index
    %c0_167 = arith.constant 0 : index
    %245 = vector.load %arg32[%c0_165, %c0_166, %c0_167] : memref<1x1x192xf32, #tpu.memory_space<vmem>>, vector<1x1x192xf32>
    %246 = vector.shape_cast %245 : vector<1x1x192xf32> to vector<1x192xf32>
    %247 = vector.broadcast %246 : vector<1x192xf32> to vector<3x192xf32>
    %248 = arith.addf %244, %247 : vector<3x192xf32>
    %cst_168 = arith.constant dense<0xFF800000> : vector<3xf32>
    %249 = vector.multi_reduction <maximumf>, %248, %cst_168 [1] : vector<3x192xf32> to vector<3xf32>
    %250 = vector.shape_cast %249 : vector<3xf32> to vector<3x1xf32>
    %251 = vector.broadcast %250 : vector<3x1xf32> to vector<3x192xf32>
    %252 = arith.subf %248, %251 : vector<3x192xf32>
    %253 = math.exp %252 : vector<3x192xf32>
    %cst_169 = arith.constant dense<0.000000e+00> : vector<3xf32>
    %254 = vector.multi_reduction <add>, %253, %cst_169 [1] : vector<3x192xf32> to vector<3xf32>
    %255 = vector.shape_cast %254 : vector<3xf32> to vector<3x1xf32>
    %256 = tpu.reciprocal %255 {approx = true} : vector<3x1xf32> -> vector<3x1xf32>
    %257 = vector.broadcast %256 : vector<3x1xf32> to vector<3x192xf32>
    %258 = arith.mulf %253, %257 : vector<3x192xf32>
    %259 = arith.truncf %258 : vector<3x192xf32> to vector<3x192xbf16>
    %cst_170 = arith.constant dense<0.000000e+00> : vector<3x256xf32>
    %260 = tpu.matmul %259, %239, %cst_170 {dimension_numbers = #tpu.dot_dimension_numbers<[1], [0], [0], [1], [0, 0, 1, 1], [], []>} : vector<3x192xbf16>, vector<192x256xbf16>, vector<3x256xf32> -> vector<3x256xf32>
    %c0_171 = arith.constant 0 : index
    %c0_172 = arith.constant 0 : index
    %c0_173 = arith.constant 0 : index
    %261 = vector.load %arg40[%c0_171, %c0_172, %c0_173] : memref<1x3x256xf32, #tpu.memory_space<vmem>>, vector<1x3x256xf32>
    %262 = vector.shape_cast %261 : vector<1x3x256xf32> to vector<3x256xf32>
    %263 = vector.shape_cast %260 : vector<3x256xf32> to vector<1x3x256xf32>
    tpu.vector_store %arg40[%c0_171, %c0_172, %c0_173], %263 {strides = array<i32>} : memref<1x3x256xf32, #tpu.memory_space<vmem>>, vector<1x3x256xf32>,
    return
  }
  func.func @transform_0(%arg0: i32) -> (i32, i32, i32) {
    %c0_i32 = arith.constant 0 : i32
    %c0_i32_0 = arith.constant 0 : i32
    %c0_i32_1 = arith.constant 0 : i32
    return %arg0, %c0_i32, %c0_i32_0 : i32, i32, i32
  }
  func.func @transform_1(%arg0: i32) -> (i32, i32, i32) {
    %c0_i32 = arith.constant 0 : i32
    %c0_i32_0 = arith.constant 0 : i32
    %c0_i32_1 = arith.constant 0 : i32
    return %arg0, %c0_i32, %c0_i32_0 : i32, i32, i32
  }
  func.func @transform_2(%arg0: i32) -> (i32, i32, i32) {
    %c0_i32 = arith.constant 0 : i32
    %c0_i32_0 = arith.constant 0 : i32
    %c0_i32_1 = arith.constant 0 : i32
    return %arg0, %c0_i32, %c0_i32_0 : i32, i32, i32
  }
  func.func @transform_3(%arg0: i32) -> (i32, i32, i32) {
    %c0_i32 = arith.constant 0 : i32
    %c0_i32_0 = arith.constant 0 : i32
    %c0_i32_1 = arith.constant 0 : i32
    return %arg0, %c0_i32, %c0_i32_0 : i32, i32, i32
  }
  func.func @transform_4(%arg0: i32) -> (i32, i32, i32) {
    %c0_i32 = arith.constant 0 : i32
    %c0_i32_0 = arith.constant 0 : i32
    %c0_i32_1 = arith.constant 0 : i32
    return %arg0, %c0_i32, %c0_i32_0 : i32, i32, i32
  }
  func.func @transform_5(%arg0: i32) -> (i32, i32, i32) {
    %c0_i32 = arith.constant 0 : i32
    %c0_i32_0 = arith.constant 0 : i32
    %c0_i32_1 = arith.constant 0 : i32
    return %arg0, %c0_i32, %c0_i32_0 : i32, i32, i32
  }
  func.func @transform_6(%arg0: i32) -> (i32, i32, i32) {
    %c0_i32 = arith.constant 0 : i32
    %c0_i32_0 = arith.constant 0 : i32
    %c0_i32_1 = arith.constant 0 : i32
    return %arg0, %c0_i32, %c0_i32_0 : i32, i32, i32
  }
  func.func @transform_7(%arg0: i32) -> (i32, i32, i32) {
    %c0_i32 = arith.constant 0 : i32
    %c0_i32_0 = arith.constant 0 : i32
    %c0_i32_1 = arith.constant 0 : i32
    return %arg0, %c0_i32, %c0_i32_0 : i32, i32, i32
  }
  func.func @transform_8(%arg0: i32) -> (i32, i32, i32) {
    %c0_i32 = arith.constant 0 : i32
    %c0_i32_0 = arith.constant 0 : i32
    %c0_i32_1 = arith.constant 0 : i32
    return %arg0, %c0_i32, %c0_i32_0 : i32, i32, i32
  }
  func.func @transform_9(%arg0: i32) -> (i32, i32, i32) {
    %c0_i32 = arith.constant 0 : i32
    %c0_i32_0 = arith.constant 0 : i32
    %c0_i32_1 = arith.constant 0 : i32
    return %arg0, %c0_i32, %c0_i32_0 : i32, i32, i32
  }
  func.func @transform_10(%arg0: i32) -> (i32, i32, i32) {
    %c0_i32 = arith.constant 0 : i32
    %c0_i32_0 = arith.constant 0 : i32
    %c0_i32_1 = arith.constant 0 : i32
    return %arg0, %c0_i32, %c0_i32_0 : i32, i32, i32
  }
  func.func @transform_11(%arg0: i32) -> (i32, i32, i32) {
    %c0_i32 = arith.constant 0 : i32
    %c0_i32_0 = arith.constant 0 : i32
    %c0_i32_1 = arith.constant 0 : i32
    return %arg0, %c0_i32, %c0_i32_0 : i32, i32, i32
  }
  func.func @transform_12(%arg0: i32) -> (i32, i32, i32) {
    %c0_i32 = arith.constant 0 : i32
    %c0_i32_0 = arith.constant 0 : i32
    %c0_i32_1 = arith.constant 0 : i32
    return %arg0, %c0_i32, %c0_i32_0 : i32, i32, i32
  }
  func.func @transform_13(%arg0: i32) -> (i32, i32, i32) {
    %c0_i32 = arith.constant 0 : i32
    %c0_i32_0 = arith.constant 0 : i32
    %c0_i32_1 = arith.constant 0 : i32
    return %arg0, %c0_i32, %c0_i32_0 : i32, i32, i32
  }
  func.func @transform_14(%arg0: i32) -> (i32, i32, i32) {
    %c0_i32 = arith.constant 0 : i32
    %c0_i32_0 = arith.constant 0 : i32
    %c0_i32_1 = arith.constant 0 : i32
    return %arg0, %c0_i32, %c0_i32_0 : i32, i32, i32
  }
  func.func @transform_15(%arg0: i32) -> (i32, i32, i32) {
    %c0_i32 = arith.constant 0 : i32
    %c0_i32_0 = arith.constant 0 : i32
    %c0_i32_1 = arith.constant 0 : i32
    return %arg0, %c0_i32, %c0_i32_0 : i32, i32, i32
  }
  func.func @transform_16(%arg0: i32) -> (i32, i32, i32) {
    %c0_i32 = arith.constant 0 : i32
    %c0_i32_0 = arith.constant 0 : i32
    %c0_i32_1 = arith.constant 0 : i32
    return %arg0, %c0_i32, %c0_i32_0 : i32, i32, i32
  }
  func.func @transform_17(%arg0: i32) -> (i32, i32, i32) {
    %c0_i32 = arith.constant 0 : i32
    %c0_i32_0 = arith.constant 0 : i32
    %c0_i32_1 = arith.constant 0 : i32
    return %arg0, %c0_i32, %c0_i32_0 : i32, i32, i32
  }
  func.func @transform_18(%arg0: i32) -> (i32, i32, i32) {
    %c0_i32 = arith.constant 0 : i32
    %c0_i32_0 = arith.constant 0 : i32
    %c0_i32_1 = arith.constant 0 : i32
    return %arg0, %c0_i32, %c0_i32_0 : i32, i32, i32
  }
  func.func @transform_19(%arg0: i32) -> (i32, i32, i32) {
    %c0_i32 = arith.constant 0 : i32
    %c0_i32_0 = arith.constant 0 : i32
    %c0_i32_1 = arith.constant 0 : i32
    return %arg0, %c0_i32, %c0_i32_0 : i32, i32, i32
  }
  func.func @transform_20(%arg0: i32) -> (i32, i32, i32) {
    %c0_i32 = arith.constant 0 : i32
    %c0_i32_0 = arith.constant 0 : i32
    %c0_i32_1 = arith.constant 0 : i32
    return %arg0, %c0_i32, %c0_i32_0 : i32, i32, i32
  }
  func.func @transform_21(%arg0: i32) -> (i32, i32, i32) {
    %c0_i32 = arith.constant 0 : i32
    %c0_i32_0 = arith.constant 0 : i32
    %c0_i32_1 = arith.constant 0 : i32
    return %arg0, %c0_i32, %c0_i32_0 : i32, i32, i32
  }
  func.func @transform_22(%arg0: i32) -> (i32, i32, i32) {
    %c0_i32 = arith.constant 0 : i32
    %c0_i32_0 = arith.constant 0 : i32
    %c0_i32_1 = arith.constant 0 : i32
    return %arg0, %c0_i32, %c0_i32_0 : i32, i32, i32
  }
  func.func @transform_23(%arg0: i32) -> (i32, i32, i32) {
    %c0_i32 = arith.constant 0 : i32
    %c0_i32_0 = arith.constant 0 : i32
    %c0_i32_1 = arith.constant 0 : i32
    return %arg0, %c0_i32, %c0_i32_0 : i32, i32, i32
  }
  func.func @transform_24(%arg0: i32) -> (i32, i32) {
    %c0_i32 = arith.constant 0 : i32
    %c0_i32_0 = arith.constant 0 : i32
    %c0_i32_1 = arith.constant 0 : i32
    return %c0_i32, %c0_i32_0 : i32, i32
  }
  func.func @transform_25(%arg0: i32) -> (i32, i32) {
    %c0_i32 = arith.constant 0 : i32
    %c0_i32_0 = arith.constant 0 : i32
    %c0_i32_1 = arith.constant 0 : i32
    return %c0_i32, %c0_i32_0 : i32, i32
  }
  func.func @transform_26(%arg0: i32) -> (i32, i32) {
    %c0_i32 = arith.constant 0 : i32
    %c0_i32_0 = arith.constant 0 : i32
    %c0_i32_1 = arith.constant 0 : i32
    return %c0_i32, %c0_i32_0 : i32, i32
  }
  func.func @transform_27(%arg0: i32) -> (i32, i32) {
    %c0_i32 = arith.constant 0 : i32
    %c0_i32_0 = arith.constant 0 : i32
    %c0_i32_1 = arith.constant 0 : i32
    return %c0_i32, %c0_i32_0 : i32, i32
  }
  func.func @transform_28(%arg0: i32) -> (i32, i32, i32) {
    %c0_i32 = arith.constant 0 : i32
    %c0_i32_0 = arith.constant 0 : i32
    %c0_i32_1 = arith.constant 0 : i32
    return %arg0, %c0_i32, %c0_i32_0 : i32, i32, i32
  }
  func.func @transform_29(%arg0: i32) -> (i32, i32, i32) {
    %c0_i32 = arith.constant 0 : i32
    %c0_i32_0 = arith.constant 0 : i32
    %c0_i32_1 = arith.constant 0 : i32
    return %arg0, %c0_i32, %c0_i32_0 : i32, i32, i32
  }
  func.func @transform_30(%arg0: i32) -> (i32, i32, i32) {
    %c0_i32 = arith.constant 0 : i32
    %c0_i32_0 = arith.constant 0 : i32
    %c0_i32_1 = arith.constant 0 : i32
    return %arg0, %c0_i32, %c0_i32_0 : i32, i32, i32
  }
  func.func @transform_31(%arg0: i32) -> (i32, i32, i32) {
    %c0_i32 = arith.constant 0 : i32
    %c0_i32_0 = arith.constant 0 : i32
    %c0_i32_1 = arith.constant 0 : i32
    return %arg0, %c0_i32, %c0_i32_0 : i32, i32, i32
  }
  func.func @transform_32(%arg0: i32) -> (i32, i32, i32) {
    %c0_i32 = arith.constant 0 : i32
    %c0_i32_0 = arith.constant 0 : i32
    %c0_i32_1 = arith.constant 0 : i32
    return %arg0, %c0_i32, %c0_i32_0 : i32, i32, i32
  }
  func.func @transform_33(%arg0: i32) -> (i32, i32, i32) {
    %c0_i32 = arith.constant 0 : i32
    %c0_i32_0 = arith.constant 0 : i32
    %c0_i32_1 = arith.constant 0 : i32
    return %arg0, %c0_i32, %c0_i32_0 : i32, i32, i32
  }
  func.func @transform_34(%arg0: i32) -> (i32, i32, i32) {
    %c0_i32 = arith.constant 0 : i32
    %c0_i32_0 = arith.constant 0 : i32
    %c0_i32_1 = arith.constant 0 : i32
    return %arg0, %c0_i32, %c0_i32_0 : i32, i32, i32
  }
  func.func @transform_35(%arg0: i32) -> (i32, i32, i32) {
    %c0_i32 = arith.constant 0 : i32
    %c0_i32_0 = arith.constant 0 : i32
    %c0_i32_1 = arith.constant 0 : i32
    return %arg0, %c0_i32, %c0_i32_0 : i32, i32, i32
  }
  func.func @transform_36(%arg0: i32) -> (i32, i32, i32) {
    %c0_i32 = arith.constant 0 : i32
    %c0_i32_0 = arith.constant 0 : i32
    %c0_i32_1 = arith.constant 0 : i32
    return %arg0, %c0_i32, %c0_i32_0 : i32, i32, i32
  }
  func.func @transform_37(%arg0: i32) -> (i32, i32, i32) {
    %c0_i32 = arith.constant 0 : i32
    %c0_i32_0 = arith.constant 0 : i32
    %c0_i32_1 = arith.constant 0 : i32
    return %arg0, %c0_i32, %c0_i32_0 : i32, i32, i32
  }
  func.func @transform_38(%arg0: i32) -> (i32, i32, i32) {
    %c0_i32 = arith.constant 0 : i32
    %c0_i32_0 = arith.constant 0 : i32
    %c0_i32_1 = arith.constant 0 : i32
    return %arg0, %c0_i32, %c0_i32_0 : i32, i32, i32
  }
  func.func @transform_39(%arg0: i32) -> (i32, i32, i32) {
    %c0_i32 = arith.constant 0 : i32
    %c0_i32_0 = arith.constant 0 : i32
    %c0_i32_1 = arith.constant 0 : i32
    return %arg0, %c0_i32, %c0_i32_0 : i32, i32, i32
  }
}

module attributes {stable_mosaic.version = 11 : i64} {
  func.func @_tail_kernel(%arg0: i32, %arg1: memref<384x32xf32, #tpu.memory_space<vmem>>, %arg2: memref<384x32xf32, #tpu.memory_space<vmem>>, %arg3: memref<32x32xbf16, #tpu.memory_space<vmem>>, %arg4: memref<1x32xf32, #tpu.memory_space<vmem>>, %arg5: memref<1x32xf32, #tpu.memory_space<vmem>>, %arg6: memref<1x32xf32, #tpu.memory_space<vmem>>, %arg7: memref<32x64xbf16, #tpu.memory_space<vmem>>, %arg8: memref<1x64xf32, #tpu.memory_space<vmem>>, %arg9: memref<64x32xbf16, #tpu.memory_space<vmem>>, %arg10: memref<1x32xf32, #tpu.memory_space<vmem>>, %arg11: memref<1x32xf32, #tpu.memory_space<vmem>>, %arg12: memref<1x32xf32, #tpu.memory_space<vmem>>, %arg13: memref<384x32xf32, #tpu.memory_space<vmem>>) attributes {dimension_semantics = [#tpu.dimension_semantics<arbitrary>], iteration_bounds = array<i64: 1>, scalar_prefetch = 0 : i64, scratch_operands = 0 : i64, tpu.core_type = #tpu.core_type<tc>, window_params = [{pipeline_mode = #tpu.pipeline_mode<synchronous>, transform_indices = @transform_0, window_bounds = array<i64: 384, 32>}, {pipeline_mode = #tpu.pipeline_mode<synchronous>, transform_indices = @transform_1, window_bounds = array<i64: 384, 32>}, {pipeline_mode = #tpu.pipeline_mode<synchronous>, transform_indices = @transform_2, window_bounds = array<i64: 32, 32>}, {pipeline_mode = #tpu.pipeline_mode<synchronous>, transform_indices = @transform_3, window_bounds = array<i64: 1, 32>}, {pipeline_mode = #tpu.pipeline_mode<synchronous>, transform_indices = @transform_4, window_bounds = array<i64: 1, 32>}, {pipeline_mode = #tpu.pipeline_mode<synchronous>, transform_indices = @transform_5, window_bounds = array<i64: 1, 32>}, {pipeline_mode = #tpu.pipeline_mode<synchronous>, transform_indices = @transform_6, window_bounds = array<i64: 32, 64>}, {pipeline_mode = #tpu.pipeline_mode<synchronous>, transform_indices = @transform_7, window_bounds = array<i64: 1, 64>}, {pipeline_mode = #tpu.pipeline_mode<synchronous>, transform_indices = @transform_8, window_bounds = array<i64: 64, 32>}, {pipeline_mode = #tpu.pipeline_mode<synchronous>, transform_indices = @transform_9, window_bounds = array<i64: 1, 32>}, {pipeline_mode = #tpu.pipeline_mode<synchronous>, transform_indices = @transform_10, window_bounds = array<i64: 1, 32>}, {pipeline_mode = #tpu.pipeline_mode<synchronous>, transform_indices = @transform_11, window_bounds = array<i64: 1, 32>}, {pipeline_mode = #tpu.pipeline_mode<synchronous>, transform_indices = @transform_12, window_bounds = array<i64: 384, 32>}]} {
    %c0 = arith.constant 0 : index
    %c0_0 = arith.constant 0 : index
    %0 = vector.load %arg2[%c0, %c0_0] : memref<384x32xf32, #tpu.memory_space<vmem>>, vector<384x32xf32>
    %1 = arith.truncf %0 : vector<384x32xf32> to vector<384x32xbf16>
    %c0_1 = arith.constant 0 : index
    %c0_2 = arith.constant 0 : index
    %2 = vector.load %arg3[%c0_1, %c0_2] : memref<32x32xbf16, #tpu.memory_space<vmem>>, vector<32x32xbf16>
    %cst = arith.constant dense<0.000000e+00> : vector<384x32xf32>
    %3 = tpu.matmul %1, %2, %cst {dimension_numbers = #tpu.dot_dimension_numbers<[1], [0], [0], [1], [0, 0, 1, 1], [], []>} : vector<384x32xbf16>, vector<32x32xbf16>, vector<384x32xf32> -> vector<384x32xf32>
    %c0_3 = arith.constant 0 : index
    %c0_4 = arith.constant 0 : index
    %4 = vector.load %arg4[%c0_3, %c0_4] : memref<1x32xf32, #tpu.memory_space<vmem>>, vector<1x32xf32>
    %5 = vector.broadcast %4 : vector<1x32xf32> to vector<384x32xf32>
    %6 = arith.addf %3, %5 : vector<384x32xf32>
    %c0_5 = arith.constant 0 : index
    %c0_6 = arith.constant 0 : index
    %7 = vector.load %arg1[%c0_5, %c0_6] : memref<384x32xf32, #tpu.memory_space<vmem>>, vector<384x32xf32>
    %8 = arith.addf %7, %6 : vector<384x32xf32>
    %c0_7 = arith.constant 0 : index
    %c0_8 = arith.constant 0 : index
    %9 = vector.load %arg5[%c0_7, %c0_8] : memref<1x32xf32, #tpu.memory_space<vmem>>, vector<1x32xf32>
    %c0_9 = arith.constant 0 : index
    %c0_10 = arith.constant 0 : index
    %10 = vector.load %arg6[%c0_9, %c0_10] : memref<1x32xf32, #tpu.memory_space<vmem>>, vector<1x32xf32>
    %cst_11 = arith.constant dense<0.000000e+00> : vector<384xf32>
    %11 = vector.multi_reduction <add>, %8, %cst_11 [1] : vector<384x32xf32> to vector<384xf32>
    %12 = vector.shape_cast %11 : vector<384xf32> to vector<384x1xf32>
    %cst_12 = arith.constant 3.200000e+01 : f32
    %13 = vector.broadcast %cst_12 : f32 to vector<384x1xf32>
    %14 = arith.divf %12, %13 : vector<384x1xf32>
    %15 = vector.broadcast %14 : vector<384x1xf32> to vector<384x32xf32>
    %16 = arith.subf %8, %15 : vector<384x32xf32>
    %17 = arith.mulf %16, %16 : vector<384x32xf32>
    %cst_13 = arith.constant dense<0.000000e+00> : vector<384xf32>
    %18 = vector.multi_reduction <add>, %17, %cst_13 [1] : vector<384x32xf32> to vector<384xf32>
    %19 = vector.shape_cast %18 : vector<384xf32> to vector<384x1xf32>
    %cst_14 = arith.constant 3.200000e+01 : f32
    %20 = vector.broadcast %cst_14 : f32 to vector<384x1xf32>
    %21 = arith.divf %19, %20 : vector<384x1xf32>
    %cst_15 = arith.constant 9.99999974E-6 : f32
    %22 = vector.broadcast %cst_15 : f32 to vector<384x1xf32>
    %23 = arith.addf %21, %22 : vector<384x1xf32>
    %24 = math.rsqrt %23 : vector<384x1xf32>
    %25 = vector.broadcast %24 : vector<384x1xf32> to vector<384x32xf32>
    %26 = arith.mulf %16, %25 : vector<384x32xf32>
    %27 = vector.broadcast %9 : vector<1x32xf32> to vector<384x32xf32>
    %28 = arith.mulf %26, %27 : vector<384x32xf32>
    %29 = vector.broadcast %10 : vector<1x32xf32> to vector<384x32xf32>
    %30 = arith.addf %28, %29 : vector<384x32xf32>
    %31 = arith.truncf %30 : vector<384x32xf32> to vector<384x32xbf16>
    %c0_16 = arith.constant 0 : index
    %c0_17 = arith.constant 0 : index
    %32 = vector.load %arg7[%c0_16, %c0_17] : memref<32x64xbf16, #tpu.memory_space<vmem>>, vector<32x64xbf16>
    %cst_18 = arith.constant dense<0.000000e+00> : vector<384x64xf32>
    %33 = tpu.matmul %31, %32, %cst_18 {dimension_numbers = #tpu.dot_dimension_numbers<[1], [0], [0], [1], [0, 0, 1, 1], [], []>} : vector<384x32xbf16>, vector<32x64xbf16>, vector<384x64xf32> -> vector<384x64xf32>
    %c0_19 = arith.constant 0 : index
    %c0_20 = arith.constant 0 : index
    %34 = vector.load %arg8[%c0_19, %c0_20] : memref<1x64xf32, #tpu.memory_space<vmem>>, vector<1x64xf32>
    %35 = vector.broadcast %34 : vector<1x64xf32> to vector<384x64xf32>
    %36 = arith.addf %33, %35 : vector<384x64xf32>
    %cst_21 = arith.constant 0.000000e+00 : f32
    %37 = vector.broadcast %cst_21 : f32 to vector<384x64xf32>
    %38 = arith.maximumf %36, %37 : vector<384x64xf32>
    %39 = arith.truncf %38 : vector<384x64xf32> to vector<384x64xbf16>
    %c0_22 = arith.constant 0 : index
    %c0_23 = arith.constant 0 : index
    %40 = vector.load %arg9[%c0_22, %c0_23] : memref<64x32xbf16, #tpu.memory_space<vmem>>, vector<64x32xbf16>
    %cst_24 = arith.constant dense<0.000000e+00> : vector<384x32xf32>
    %41 = tpu.matmul %39, %40, %cst_24 {dimension_numbers = #tpu.dot_dimension_numbers<[1], [0], [0], [1], [0, 0, 1, 1], [], []>} : vector<384x64xbf16>, vector<64x32xbf16>, vector<384x32xf32> -> vector<384x32xf32>
    %c0_25 = arith.constant 0 : index
    %c0_26 = arith.constant 0 : index
    %42 = vector.load %arg10[%c0_25, %c0_26] : memref<1x32xf32, #tpu.memory_space<vmem>>, vector<1x32xf32>
    %43 = vector.broadcast %42 : vector<1x32xf32> to vector<384x32xf32>
    %44 = arith.addf %41, %43 : vector<384x32xf32>
    %45 = arith.addf %30, %44 : vector<384x32xf32>
    %c0_27 = arith.constant 0 : index
    %c0_28 = arith.constant 0 : index
    %46 = vector.load %arg11[%c0_27, %c0_28] : memref<1x32xf32, #tpu.memory_space<vmem>>, vector<1x32xf32>
    %c0_29 = arith.constant 0 : index
    %c0_30 = arith.constant 0 : index
    %47 = vector.load %arg12[%c0_29, %c0_30] : memref<1x32xf32, #tpu.memory_space<vmem>>, vector<1x32xf32>
    %cst_31 = arith.constant dense<0.000000e+00> : vector<384xf32>
    %48 = vector.multi_reduction <add>, %45, %cst_31 [1] : vector<384x32xf32> to vector<384xf32>
    %49 = vector.shape_cast %48 : vector<384xf32> to vector<384x1xf32>
    %cst_32 = arith.constant 3.200000e+01 : f32
    %50 = vector.broadcast %cst_32 : f32 to vector<384x1xf32>
    %51 = arith.divf %49, %50 : vector<384x1xf32>
    %52 = vector.broadcast %51 : vector<384x1xf32> to vector<384x32xf32>
    %53 = arith.subf %45, %52 : vector<384x32xf32>
    %54 = arith.mulf %53, %53 : vector<384x32xf32>
    %cst_33 = arith.constant dense<0.000000e+00> : vector<384xf32>
    %55 = vector.multi_reduction <add>, %54, %cst_33 [1] : vector<384x32xf32> to vector<384xf32>
    %56 = vector.shape_cast %55 : vector<384xf32> to vector<384x1xf32>
    %cst_34 = arith.constant 3.200000e+01 : f32
    %57 = vector.broadcast %cst_34 : f32 to vector<384x1xf32>
    %58 = arith.divf %56, %57 : vector<384x1xf32>
    %cst_35 = arith.constant 9.99999974E-6 : f32
    %59 = vector.broadcast %cst_35 : f32 to vector<384x1xf32>
    %60 = arith.addf %58, %59 : vector<384x1xf32>
    %61 = math.rsqrt %60 : vector<384x1xf32>
    %62 = vector.broadcast %61 : vector<384x1xf32> to vector<384x32xf32>
    %63 = arith.mulf %53, %62 : vector<384x32xf32>
    %64 = vector.broadcast %46 : vector<1x32xf32> to vector<384x32xf32>
    %65 = arith.mulf %63, %64 : vector<384x32xf32>
    %66 = vector.broadcast %47 : vector<1x32xf32> to vector<384x32xf32>
    %67 = arith.addf %65, %66 : vector<384x32xf32>
    %c0_36 = arith.constant 0 : index
    %c0_37 = arith.constant 0 : index
    %68 = vector.load %arg13[%c0_36, %c0_37] : memref<384x32xf32, #tpu.memory_space<vmem>>, vector<384x32xf32>
    tpu.vector_store %arg13[%c0_36, %c0_37], %67 {strides = array<i32>} : memref<384x32xf32, #tpu.memory_space<vmem>>, vector<384x32xf32>,
    return
  }
  func.func @transform_0(%arg0: i32) -> (i32, i32) {
    %c0_i32 = arith.constant 0 : i32
    %c0_i32_0 = arith.constant 0 : i32
    %c0_i32_1 = arith.constant 0 : i32
    return %c0_i32, %c0_i32_0 : i32, i32
  }
  func.func @transform_1(%arg0: i32) -> (i32, i32) {
    %c0_i32 = arith.constant 0 : i32
    %c0_i32_0 = arith.constant 0 : i32
    %c0_i32_1 = arith.constant 0 : i32
    return %c0_i32, %c0_i32_0 : i32, i32
  }
  func.func @transform_2(%arg0: i32) -> (i32, i32) {
    %c0_i32 = arith.constant 0 : i32
    %c0_i32_0 = arith.constant 0 : i32
    %c0_i32_1 = arith.constant 0 : i32
    return %c0_i32, %c0_i32_0 : i32, i32
  }
  func.func @transform_3(%arg0: i32) -> (i32, i32) {
    %c0_i32 = arith.constant 0 : i32
    %c0_i32_0 = arith.constant 0 : i32
    %c0_i32_1 = arith.constant 0 : i32
    return %c0_i32, %c0_i32_0 : i32, i32
  }
  func.func @transform_4(%arg0: i32) -> (i32, i32) {
    %c0_i32 = arith.constant 0 : i32
    %c0_i32_0 = arith.constant 0 : i32
    %c0_i32_1 = arith.constant 0 : i32
    return %c0_i32, %c0_i32_0 : i32, i32
  }
  func.func @transform_5(%arg0: i32) -> (i32, i32) {
    %c0_i32 = arith.constant 0 : i32
    %c0_i32_0 = arith.constant 0 : i32
    %c0_i32_1 = arith.constant 0 : i32
    return %c0_i32, %c0_i32_0 : i32, i32
  }
  func.func @transform_6(%arg0: i32) -> (i32, i32) {
    %c0_i32 = arith.constant 0 : i32
    %c0_i32_0 = arith.constant 0 : i32
    %c0_i32_1 = arith.constant 0 : i32
    return %c0_i32, %c0_i32_0 : i32, i32
  }
  func.func @transform_7(%arg0: i32) -> (i32, i32) {
    %c0_i32 = arith.constant 0 : i32
    %c0_i32_0 = arith.constant 0 : i32
    %c0_i32_1 = arith.constant 0 : i32
    return %c0_i32, %c0_i32_0 : i32, i32
  }
  func.func @transform_8(%arg0: i32) -> (i32, i32) {
    %c0_i32 = arith.constant 0 : i32
    %c0_i32_0 = arith.constant 0 : i32
    %c0_i32_1 = arith.constant 0 : i32
    return %c0_i32, %c0_i32_0 : i32, i32
  }
  func.func @transform_9(%arg0: i32) -> (i32, i32) {
    %c0_i32 = arith.constant 0 : i32
    %c0_i32_0 = arith.constant 0 : i32
    %c0_i32_1 = arith.constant 0 : i32
    return %c0_i32, %c0_i32_0 : i32, i32
  }
  func.func @transform_10(%arg0: i32) -> (i32, i32) {
    %c0_i32 = arith.constant 0 : i32
    %c0_i32_0 = arith.constant 0 : i32
    %c0_i32_1 = arith.constant 0 : i32
    return %c0_i32, %c0_i32_0 : i32, i32
  }
  func.func @transform_11(%arg0: i32) -> (i32, i32) {
    %c0_i32 = arith.constant 0 : i32
    %c0_i32_0 = arith.constant 0 : i32
    %c0_i32_1 = arith.constant 0 : i32
    return %c0_i32, %c0_i32_0 : i32, i32
  }
  func.func @transform_12(%arg0: i32) -> (i32, i32) {
    %c0_i32 = arith.constant 0 : i32
    %c0_i32_0 = arith.constant 0 : i32
    %c0_i32_1 = arith.constant 0 : i32
    return %c0_i32, %c0_i32_0 : i32, i32
  }
}

</mosaic_0001>

<llo_original>
// kernel: transformer_cs_forward.13
$region0: #{transformer_cs_forward.13}
  #allocation0 [shape = 'u32[]', space=smem, size = 0x4, offset = 0x4, fixed_abs, tag = 'smem constant byte address 0x4 - core index']
  #allocation1 [shape = 'u32[72,128]{1,0:T(1,128)}', space=vmem, size = 0x9000, scoped, tag = 'internal scratch']
  %s0 = inlined_call_operand.vmem [shape: f32[8,32], index: 0, kind: input, shape index: {}]
  %s1 = inlined_call_operand.hbm [shape: f32[1,32], index: 1, kind: input, shape index: {}]
  %s2 = inlined_call_operand.hbm [shape: f32[1,32], index: 2, kind: input, shape index: {}]
  %s3 = inlined_call_operand.hbm [shape: f32[8,32], index: 3, kind: output, shape index: {}]
  %s4 = sld [smem:[#allocation0]]
  $region30: #{transformer_cs_forward.13} parent=0
    _
  %s6 = ssub.s32 1, %s4
  %s7 = scalar_select 0, %s6, %s4
  $region1: #{transformer_cs_forward.13} parent=0
    #allocation2 [shape = 'u8[512]{0}', space=vmem, size = 0x400, scoped, tag = 'input window, operand 1, single buffered']
    #allocation3 [shape = 's32[1]{0}', space=sflag, size = 0x4, scoped, tag = 'scoped memory for transformer_cs_forward.13']
    #allocation4 [shape = 's32[1]{0}', space=sflag, size = 0x4, scoped, tag = 'scoped memory for transformer_cs_forward.13']
    #allocation5 [shape = 'u8[512]{0}', space=vmem, size = 0x400, scoped, tag = 'input window, operand 2, single buffered']
    #allocation6 [shape = 's32[1]{0}', space=sflag, size = 0x4, scoped, tag = 'scoped memory for transformer_cs_forward.13']
    #allocation7 [shape = 'u8[4096]{0}', space=vmem, size = 0x1000, scoped, tag = 'output window, operand 0, single buffered']
    %8 = vsyncpa [#allocation3], 0
    %9 = vsyncpa [#allocation6], 0
    %10 = vsyncpa [#allocation4], 0
    // Predicated region
    $region2: #{transformer_cs_forward.13} parent=1 // pred_check
      _
    $region3: #{transformer_cs_forward.13} parent=1 // pred_check_branch
      %12 = sbr.rel (0) target = $region5
    $region4: #{transformer_cs_forward.13} parent=1 // pred_region
      _
    $region5: #{transformer_cs_forward.13} parent=1 // pred_fallthru
      _
    // Predicated region
    $region6: #{transformer_cs_forward.13} parent=1 // pred_check
      _
    $region7: #{transformer_cs_forward.13} parent=1 // pred_check_branch
      %14 = sbr.rel (0) target = $region9
    $region8: #{transformer_cs_forward.13} parent=1 // pred_region
      %16 = vsyncadd [#allocation3], 0
      %s18 = sshll.u32 %s1, 4
      %s19 = int_to_ptr.hbm [resolvable:$true] %s18
      %s20 = sshll.u32 [#allocation2], 4
      %s21 = int_to_ptr.vmem [resolvable:$true] %s20
      %23 = dma.hbm_to_vmem [thread:$0]  %s19, 16, %s21, [#allocation3]
    $region9: #{transformer_cs_forward.13} parent=1 // pred_fallthru
      _
    // Predicated region
    $region10: #{transformer_cs_forward.13} parent=1 // pred_check
      _
    $region11: #{transformer_cs_forward.13} parent=1 // pred_check_branch
      %25 = sbr.rel (0) target = $region13
    $region12: #{transformer_cs_forward.13} parent=1 // pred_region
      %27 = vsyncadd [#allocation6], 0
      %s29 = sshll.u32 %s2, 4
      %s30 = int_to_ptr.hbm [resolvable:$true] %s29
      %s31 = sshll.u32 [#allocation5], 4
      %s32 = int_to_ptr.vmem [resolvable:$true] %s31
      %34 = dma.hbm_to_vmem [thread:$0]  %s30, 16, %s32, [#allocation6]
    $region13: #{transformer_cs_forward.13} parent=1 // pred_fallthru
      _
    // Predicated region
    $region14: #{transformer_cs_forward.13} parent=1 // pred_check
      _
    $region15: #{transformer_cs_forward.13} parent=1 // pred_check_branch
      %36 = sbr.rel (0) target = $region17
    $region16: #{transformer_cs_forward.13} parent=1 // pred_region
      %38 = dma.done [#allocation3], 16
    $region17: #{transformer_cs_forward.13} parent=1 // pred_fallthru
      _
    // Predicated region
    $region18: #{transformer_cs_forward.13} parent=1 // pred_check
      _
    $region19: #{transformer_cs_forward.13} parent=1 // pred_check_branch
      %40 = sbr.rel (0) target = $region21
    $region20: #{transformer_cs_forward.13} parent=1 // pred_region
      %42 = dma.done [#allocation6], 16
    $region21: #{transformer_cs_forward.13} parent=1 // pred_fallthru
      _
    %v43 = vld [vmem:[%s0] sm:$0xff]
    %v44 = vld [vmem:[#allocation2] sm:$0x1]
    %v45 = vld [vmem:[#allocation5] sm:$0x1]
    %vm46 = vcmask 261120
    %v47 = vsel %vm46, %v43, 0.0
    %48 = vadd.xlane.f32.xlu0 %v47
    %v49 = vpop.xlane.xlu0 %48
    %v50 = vrcp.pop 32.0
    %v51 = vmul.f32 32.0, %v50
    %v52 = vsub.f32 1.0, %v51
    %v53 = vmul.f32 %v50, %v52
    %v54 = vadd.f32 %v50, %v53
    %vm55 = vweird.f32 %v50
    %v56 = vsel %vm55, %v50, %v54
    %v57 = vmul.f32 %v49, %v56
    %v58 = vsub.f32 %v43, %v57
    %v59 = vmul.f32 %v58, %v58
    %v60 = vsel %vm46, %v59, 0.0
    %61 = vadd.xlane.f32.xlu0 %v60
    %v62 = vpop.xlane.xlu0 %61
    %v63 = vmul.f32 %v62, %v56
    %v64 = vadd.f32 %v63, 1e-05
    %v65 = vrsqrt.pop %v64
    %v66 = vmul.f32 %v65, %v64
    %v67 = vmul.f32 %v66, %v65
    %v68 = vmul.f32 0.5, %v67
    %v69 = vsub.f32 1.5, %v68
    %v70 = vmul.f32 %v65, %v69
    %vm71 = vweird.f32 %v64
    %vm72 = vweird.f32 %v65
    %vm73 = vmor %vm71, %vm72
    %v74 = vsel %vm73, %v65, %v70
    %v75 = vmul.f32 %v58, %v74
    %v77 = vperm.slane %v44, 0
    %v79 = vmul.f32 %v75, %v77
    %v81 = vperm.slane %v45, 0
    %v83 = vadd.f32 %v79, %v81
    %84 = vst.msk [vmem:[#allocation7] sm:$0xff] %vm46, %v83
    // Predicated region
    $region22: #{transformer_cs_forward.13} parent=1 // pred_check
      _
    $region23: #{transformer_cs_forward.13} parent=1 // pred_check_branch
      %86 = sbr.rel (0) target = $region25
    $region24: #{transformer_cs_forward.13} parent=1 // pred_region
      %88 = vsyncadd [#allocation4], 0
      %s90 = sshll.u32 [#allocation7], 4
      %s91 = int_to_ptr.vmem [resolvable:$true] %s90
      %s92 = sshll.u32 %s3, 4
      %s93 = int_to_ptr.hbm [resolvable:$true] %s92
      %95 = dma.vmem_to_hbm [thread:$0]  %s91, 128, %s93, [#allocation4]
    $region25: #{transformer_cs_forward.13} parent=1 // pred_fallthru
      _
    // Predicated region
    $region26: #{transformer_cs_forward.13} parent=1 // pred_check
      _
    $region27: #{transformer_cs_forward.13} parent=1 // pred_check_branch
      %97 = sbr.rel (0) target = $region29
    $region28: #{transformer_cs_forward.13} parent=1 // pred_region
      %99 = dma.done [#allocation4], 128
    $region29: #{transformer_cs_forward.13} parent=1 // pred_fallthru
      _
    %100 = vsyncpa [#allocation3], 1
    %101 = vsyncpa [#allocation6], 1
    %102 = vsyncpa [#allocation4], 1

// kernel: transformer_cs_forward.7
$region0: #{transformer_cs_forward.7}
  #allocation0 [shape = 'u32[]', space=smem, size = 0x4, offset = 0x4, fixed_abs, tag = 'smem constant byte address 0x4 - core index']
  #allocation1 [shape = 'u32[72,128]{1,0:T(1,128)}', space=vmem, size = 0x9000, scoped, tag = 'internal scratch']
  %s0 = inlined_call_operand.vmem [shape: f32[384,32], index: 0, kind: input, shape index: {}]
  %s1 = inlined_call_operand.vmem [shape: bf16[32,96], index: 1, kind: input, shape index: {}]
  %s2 = inlined_call_operand.vmem [shape: f32[1,96], index: 2, kind: input, shape index: {}]
  %s3 = inlined_call_operand.vmem [shape: f32[384,96], index: 3, kind: output, shape index: {}]
  %s4 = sld [smem:[#allocation0]]
  $region22: #{transformer_cs_forward.7} parent=0
    _
  %s6 = ssub.s32 1, %s4
  %s7 = scalar_select 0, %s6, %s4
  // Predicated region
  $region2: #{transformer_cs_forward.7} parent=0 // pred_check
    _
  $region3: #{transformer_cs_forward.7} parent=0 // pred_check_branch
    %9 = sbr.rel (0) target = $region5
  $region4: #{transformer_cs_forward.7} parent=0 // pred_region
    _
  $region5: #{transformer_cs_forward.7} parent=0 // pred_fallthru
    _
  // Predicated region
  $region6: #{transformer_cs_forward.7} parent=0 // pred_check
    _
  $region7: #{transformer_cs_forward.7} parent=0 // pred_check_branch
    %11 = sbr.rel (0) target = $region9
  $region8: #{transformer_cs_forward.7} parent=0 // pred_region
    _
  $region9: #{transformer_cs_forward.7} parent=0 // pred_fallthru
    _
  // Predicated region
  $region10: #{transformer_cs_forward.7} parent=0 // pred_check
    _
  $region11: #{transformer_cs_forward.7} parent=0 // pred_check_branch
    %13 = sbr.rel (0) target = $region13
  $region12: #{transformer_cs_forward.7} parent=0 // pred_region
    _
  $region13: #{transformer_cs_forward.7} parent=0 // pred_fallthru
    _
  %v15 = vld [vmem:[%s0] sm:$0xff]
  %v16 = vld [vmem:[%s0 + $0x8] sm:$0xff]
  %v17 = vld [vmem:[%s0 + $0x10] sm:$0xff]
  %v18 = vld [vmem:[%s0 + $0x18] sm:$0xff]
  %v19 = vld [vmem:[%s0 + $0x20] sm:$0xff]
  %v20 = vld [vmem:[%s0 + $0x28] sm:$0xff]
  %v21 = vld [vmem:[%s0 + $0x30] sm:$0xff]
  %v22 = vld [vmem:[%s0 + $0x38] sm:$0xff]
  %v23 = vld [vmem:[%s0 + $0x40] sm:$0xff]
  %v24 = vld [vmem:[%s0 + $0x48] sm:$0xff]
  %v25 = vld [vmem:[%s0 + $0x50] sm:$0xff]
  %v26 = vld [vmem:[%s0 + $0x58] sm:$0xff]
  %v27 = vld [vmem:[%s0 + $0x60] sm:$0xff]
  %v28 = vld [vmem:[%s0 + $0x68] sm:$0xff]
  %v29 = vld [vmem:[%s0 + $0x70] sm:$0xff]
  %v30 = vld [vmem:[%s0 + $0x78] sm:$0xff]
  %v31 = vld [vmem:[%s0 + $0x80] sm:$0xff]
  %v32 = vld [vmem:[%s0 + $0x88] sm:$0xff]
  %v33 = vld [vmem:[%s0 + $0x90] sm:$0xff]
  %v34 = vld [vmem:[%s0 + $0x98] sm:$0xff]
  %v35 = vld [vmem:[%s0 + $0xa0] sm:$0xff]
  %v36 = vld [vmem:[%s0 + $0xa8] sm:$0xff]
  %v37 = vld [vmem:[%s0 + $0xb0] sm:$0xff]
  %v38 = vld [vmem:[%s0 + $0xb8] sm:$0xff]
  %v39 = vld [vmem:[%s0 + $0xc0] sm:$0xff]
  %v40 = vld [vmem:[%s0 + $0xc8] sm:$0xff]
  %v41 = vld [vmem:[%s0 + $0xd0] sm:$0xff]
  %v42 = vld [vmem:[%s0 + $0xd8] sm:$0xff]
  %v43 = vld [vmem:[%s0 + $0xe0] sm:$0xff]
  %v44 = vld [vmem:[%s0 + $0xe8] sm:$0xff]
  %v45 = vld [vmem:[%s0 + $0xf0] sm:$0xff]
  %v46 = vld [vmem:[%s0 + $0xf8] sm:$0xff]
  %v47 = vld [vmem:[%s0 + $0x100] sm:$0xff]
  %v48 = vld [vmem:[%s0 + $0x108] sm:$0xff]
  %v49 = vld [vmem:[%s0 + $0x110] sm:$0xff]
  %v50 = vld [vmem:[%s0 + $0x118] sm:$0xff]
  %v51 = vld [vmem:[%s0 + $0x120] sm:$0xff]
  %v52 = vld [vmem:[%s0 + $0x128] sm:$0xff]
  %v53 = vld [vmem:[%s0 + $0x130] sm:$0xff]
  %v54 = vld [vmem:[%s0 + $0x138] sm:$0xff]
  %v55 = vld [vmem:[%s0 + $0x140] sm:$0xff]
  %v56 = vld [vmem:[%s0 + $0x148] sm:$0xff]
  %v57 = vld [vmem:[%s0 + $0x150] sm:$0xff]
  %v58 = vld [vmem:[%s0 + $0x158] sm:$0xff]
  %v59 = vld [vmem:[%s0 + $0x160] sm:$0xff]
  %v60 = vld [vmem:[%s0 + $0x168] sm:$0xff]
  %v61 = vld [vmem:[%s0 + $0x170] sm:$0xff]
  %v62 = vld [vmem:[%s0 + $0x178] sm:$0xff]
  %v63 = vpack.c.bf16 %v16, %v15
  %v64 = vpack.c.bf16 %v18, %v17
  %v65 = vpack.c.bf16 %v20, %v19
  %v66 = vpack.c.bf16 %v22, %v21
  %v67 = vpack.c.bf16 %v24, %v23
  %v68 = vpack.c.bf16 %v26, %v25
  %v69 = vpack.c.bf16 %v28, %v27
  %v70 = vpack.c.bf16 %v30, %v29
  %v71 = vpack.c.bf16 %v32, %v31
  %v72 = vpack.c.bf16 %v34, %v33
  %v73 = vpack.c.bf16 %v36, %v35
  %v74 = vpack.c.bf16 %v38, %v37
  %v75 = vpack.c.bf16 %v40, %v39
  %v76 = vpack.c.bf16 %v42, %v41
  %v77 = vpack.c.bf16 %v44, %v43
  %v78 = vpack.c.bf16 %v46, %v45
  %v79 = vpack.c.bf16 %v48, %v47
  %v80 = vpack.c.bf16 %v50, %v49
  %v81 = vpack.c.bf16 %v52, %v51
  %v82 = vpack.c.bf16 %v54, %v53
  %v83 = vpack.c.bf16 %v56, %v55
  %v84 = vpack.c.bf16 %v58, %v57
  %v85 = vpack.c.bf16 %v60, %v59
  %v86 = vpack.c.bf16 %v62, %v61
  %v87 = vld [vmem:[%s1] sm:$0xf]
  %v88 = vld [vmem:[%s1 + $0x4] sm:$0xf]
  %v89 = vld [vmem:[%s1 + $0x8] sm:$0xf]
  %v90 = vld [vmem:[%s1 + $0xc] sm:$0xf]
  %v91 = vld [vmem:[%s2] sm:$0x1]
  %v93 = vperm.slane %v91, 0
  %v99 = vunpack.c.l.b16 %v87
  %v100 = vunpack.c.l.b16 %v88
  %v101 = vunpack.c.l.b16 %v89
  %v102 = vunpack.c.l.b16 %v90
  %v103 = vpack.c.b16 %v100, %v99
  %v104 = vpack.c.b16 %v102, %v101
  %vm107 = vcmask 261120
  %v109 = vsel %vm107, %v63, 0
  %v112 = vsel %vm107, %v64, 0
  %v115 = vsel %vm107, %v65, 0
  %v118 = vsel %vm107, %v66, 0
  %v121 = vsel %vm107, %v67, 0
  %v124 = vsel %vm107, %v68, 0
  %v127 = vsel %vm107, %v69, 0
  %v130 = vsel %vm107, %v70, 0
  %v133 = vsel %vm107, %v71, 0
  %v136 = vsel %vm107, %v72, 0
  %v139 = vsel %vm107, %v73, 0
  %v142 = vsel %vm107, %v74, 0
  %v145 = vsel %vm107, %v75, 0
  %v148 = vsel %vm107, %v76, 0
  %v151 = vsel %vm107, %v77, 0
  %v154 = vsel %vm107, %v78, 0
  %v157 = vsel %vm107, %v79, 0
  %v160 = vsel %vm107, %v80, 0
  %v163 = vsel %vm107, %v81, 0
  %v166 = vsel %vm107, %v82, 0
  %v169 = vsel %vm107, %v83, 0
  %v172 = vsel %vm107, %v84, 0
  %v175 = vsel %vm107, %v85, 0
  %v178 = vsel %vm107, %v86, 0
  %180 = vmatpush.bf16.msra.mxu0 0
  %181 = vmatpush.bf16.msra.mxu0 0
  %182 = vmatpush.bf16.msra.mxu0 0
  %183 = vmatpush.bf16.msra.mxu0 0
  %184 = vmatpush.bf16.msra.mxu0 0
  %185 = vmatpush.bf16.msra.mxu0 0
  %186 = vmatpush.bf16.msra.mxu0 %v104
  %187 = vmatpush.bf16.msra.mxu0 %v103
  %188 = vmatmul.bf16.gmra.mxu0 %v109
  %v189 = vpop.f32.mrf.mxu0
  %v190 = vadd.f32 %v93, %v189
  %v191 = vpop.f32.mrf.mxu0
  %v192 = vadd.f32 %v93, %v191
  %193 = vmatmul.bf16.gmra.mxu0 %v112
  %v194 = vpop.f32.mrf.mxu0
  %v195 = vadd.f32 %v93, %v194
  %v196 = vpop.f32.mrf.mxu0
  %v197 = vadd.f32 %v93, %v196
  %198 = vmatmul.bf16.gmra.mxu0 %v115
  %v199 = vpop.f32.mrf.mxu0
  %v200 = vadd.f32 %v93, %v199
  %v201 = vpop.f32.mrf.mxu0
  %v202 = vadd.f32 %v93, %v201
  %203 = vmatmul.bf16.gmra.mxu0 %v118
  %v204 = vpop.f32.mrf.mxu0
  %v205 = vadd.f32 %v93, %v204
  %v206 = vpop.f32.mrf.mxu0
  %v207 = vadd.f32 %v93, %v206
  %208 = vmatmul.bf16.gmra.mxu0 %v121
  %v209 = vpop.f32.mrf.mxu0
  %v210 = vadd.f32 %v93, %v209
  %v211 = vpop.f32.mrf.mxu0
  %v212 = vadd.f32 %v93, %v211
  %213 = vmatmul.bf16.gmra.mxu0 %v124
  %v214 = vpop.f32.mrf.mxu0
  %v215 = vadd.f32 %v93, %v214
  %v216 = vpop.f32.mrf.mxu0
  %v217 = vadd.f32 %v93, %v216
  %218 = vmatmul.bf16.gmra.mxu0 %v127
  %v219 = vpop.f32.mrf.mxu0
  %v220 = vadd.f32 %v93, %v219
  %v221 = vpop.f32.mrf.mxu0
  %v222 = vadd.f32 %v93, %v221
  %223 = vmatmul.bf16.gmra.mxu0 %v130
  %v224 = vpop.f32.mrf.mxu0
  %v225 = vadd.f32 %v93, %v224
  %v226 = vpop.f32.mrf.mxu0
  %v227 = vadd.f32 %v93, %v226
  %228 = vmatmul.bf16.gmra.mxu0 %v133
  %v229 = vpop.f32.mrf.mxu0
  %v230 = vadd.f32 %v93, %v229
  %v231 = vpop.f32.mrf.mxu0
  %v232 = vadd.f32 %v93, %v231
  %233 = vmatmul.bf16.gmra.mxu0 %v136
  %v234 = vpop.f32.mrf.mxu0
  %v235 = vadd.f32 %v93, %v234
  %v236 = vpop.f32.mrf.mxu0
  %v237 = vadd.f32 %v93, %v236
  %238 = vmatmul.bf16.gmra.mxu0 %v139
  %v239 = vpop.f32.mrf.mxu0
  %v240 = vadd.f32 %v93, %v239
  %v241 = vpop.f32.mrf.mxu0
  %v242 = vadd.f32 %v93, %v241
  %243 = vmatmul.bf16.gmra.mxu0 %v142
  %v244 = vpop.f32.mrf.mxu0
  %v245 = vadd.f32 %v93, %v244
  %v246 = vpop.f32.mrf.mxu0
  %v247 = vadd.f32 %v93, %v246
  %248 = vmatmul.bf16.gmra.mxu0 %v145
  %v249 = vpop.f32.mrf.mxu0
  %v250 = vadd.f32 %v93, %v249
  %v251 = vpop.f32.mrf.mxu0
  %v252 = vadd.f32 %v93, %v251
  %253 = vmatmul.bf16.gmra.mxu0 %v148
  %v254 = vpop.f32.mrf.mxu0
  %v255 = vadd.f32 %v93, %v254
  %v256 = vpop.f32.mrf.mxu0
  %v257 = vadd.f32 %v93, %v256
  %258 = vmatmul.bf16.gmra.mxu0 %v151
  %v259 = vpop.f32.mrf.mxu0
  %v260 = vadd.f32 %v93, %v259
  %v261 = vpop.f32.mrf.mxu0
  %v262 = vadd.f32 %v93, %v261
  %263 = vmatmul.bf16.gmra.mxu0 %v154
  %v264 = vpop.f32.mrf.mxu0
  %v265 = vadd.f32 %v93, %v264
  %v266 = vpop.f32.mrf.mxu0
  %v267 = vadd.f32 %v93, %v266
  %268 = vmatmul.bf16.gmra.mxu0 %v157
  %v269 = vpop.f32.mrf.mxu0
  %v270 = vadd.f32 %v93, %v269
  %v271 = vpop.f32.mrf.mxu0
  %v272 = vadd.f32 %v93, %v271
  %273 = vmatmul.bf16.gmra.mxu0 %v160
  %v274 = vpop.f32.mrf.mxu0
  %v275 = vadd.f32 %v93, %v274
  %v276 = vpop.f32.mrf.mxu0
  %v277 = vadd.f32 %v93, %v276
  %278 = vmatmul.bf16.gmra.mxu0 %v163
  %v279 = vpop.f32.mrf.mxu0
  %v280 = vadd.f32 %v93, %v279
  %v281 = vpop.f32.mrf.mxu0
  %v282 = vadd.f32 %v93, %v281
  %283 = vmatmul.bf16.gmra.mxu0 %v166
  %v284 = vpop.f32.mrf.mxu0
  %v285 = vadd.f32 %v93, %v284
  %v286 = vpop.f32.mrf.mxu0
  %v287 = vadd.f32 %v93, %v286
  %288 = vmatmul.bf16.gmra.mxu0 %v169
  %v289 = vpop.f32.mrf.mxu0
  %v290 = vadd.f32 %v93, %v289
  %v291 = vpop.f32.mrf.mxu0
  %v292 = vadd.f32 %v93, %v291
  %293 = vmatmul.bf16.gmra.mxu0 %v172
  %v294 = vpop.f32.mrf.mxu0
  %v295 = vadd.f32 %v93, %v294
  %v296 = vpop.f32.mrf.mxu0
  %v297 = vadd.f32 %v93, %v296
  %298 = vmatmul.bf16.gmra.mxu0 %v175
  %v299 = vpop.f32.mrf.mxu0
  %v300 = vadd.f32 %v93, %v299
  %v301 = vpop.f32.mrf.mxu0
  %v302 = vadd.f32 %v93, %v301
  %303 = vmatmul.bf16.gmra.mxu0 %v178
  %v304 = vpop.f32.mrf.mxu0
  %v305 = vadd.f32 %v93, %v304
  %v306 = vpop.f32.mrf.mxu0
  %v307 = vadd.f32 %v93, %v306
  %308 = vdwg.mxu0
  %vm309 = vcmask 785408
  %310 = vst.msk [vmem:[%s3] sm:$0xff] %vm309, %v190
  %311 = vst.msk [vmem:[%s3 + $0x8] sm:$0xff] %vm309, %v192
  %312 = vst.msk [vmem:[%s3 + $0x10] sm:$0xff] %vm309, %v195
  %313 = vst.msk [vmem:[%s3 + $0x18] sm:$0xff] %vm309, %v197
  %314 = vst.msk [vmem:[%s3 + $0x20] sm:$0xff] %vm309, %v200
  %315 = vst.msk [vmem:[%s3 + $0x28] sm:$0xff] %vm309, %v202
  %316 = vst.msk [vmem:[%s3 + $0x30] sm:$0xff] %vm309, %v205
  %317 = vst.msk [vmem:[%s3 + $0x38] sm:$0xff] %vm309, %v207
  %318 = vst.msk [vmem:[%s3 + $0x40] sm:$0xff] %vm309, %v210
  %319 = vst.msk [vmem:[%s3 + $0x48] sm:$0xff] %vm309, %v212
  %320 = vst.msk [vmem:[%s3 + $0x50] sm:$0xff] %vm309, %v215
  %321 = vst.msk [vmem:[%s3 + $0x58] sm:$0xff] %vm309, %v217
  %322 = vst.msk [vmem:[%s3 + $0x60] sm:$0xff] %vm309, %v220
  %323 = vst.msk [vmem:[%s3 + $0x68] sm:$0xff] %vm309, %v222
  %324 = vst.msk [vmem:[%s3 + $0x70] sm:$0xff] %vm309, %v225
  %325 = vst.msk [vmem:[%s3 + $0x78] sm:$0xff] %vm309, %v227
  %326 = vst.msk [vmem:[%s3 + $0x80] sm:$0xff] %vm309, %v230
  %327 = vst.msk [vmem:[%s3 + $0x88] sm:$0xff] %vm309, %v232
  %328 = vst.msk [vmem:[%s3 + $0x90] sm:$0xff] %vm309, %v235
  %329 = vst.msk [vmem:[%s3 + $0x98] sm:$0xff] %vm309, %v237
  %330 = vst.msk [vmem:[%s3 + $0xa0] sm:$0xff] %vm309, %v240
  %331 = vst.msk [vmem:[%s3 + $0xa8] sm:$0xff] %vm309, %v242
  %332 = vst.msk [vmem:[%s3 + $0xb0] sm:$0xff] %vm309, %v245
  %333 = vst.msk [vmem:[%s3 + $0xb8] sm:$0xff] %vm309, %v247
  %334 = vst.msk [vmem:[%s3 + $0xc0] sm:$0xff] %vm309, %v250
  %335 = vst.msk [vmem:[%s3 + $0xc8] sm:$0xff] %vm309, %v252
  %336 = vst.msk [vmem:[%s3 + $0xd0] sm:$0xff] %vm309, %v255
  %337 = vst.msk [vmem:[%s3 + $0xd8] sm:$0xff] %vm309, %v257
  %338 = vst.msk [vmem:[%s3 + $0xe0] sm:$0xff] %vm309, %v260
  %339 = vst.msk [vmem:[%s3 + $0xe8] sm:$0xff] %vm309, %v262
  %340 = vst.msk [vmem:[%s3 + $0xf0] sm:$0xff] %vm309, %v265
  %341 = vst.msk [vmem:[%s3 + $0xf8] sm:$0xff] %vm309, %v267
  %342 = vst.msk [vmem:[%s3 + $0x100] sm:$0xff] %vm309, %v270
  %343 = vst.msk [vmem:[%s3 + $0x108] sm:$0xff] %vm309, %v272
  %344 = vst.msk [vmem:[%s3 + $0x110] sm:$0xff] %vm309, %v275
  %345 = vst.msk [vmem:[%s3 + $0x118] sm:$0xff] %vm309, %v277
  %346 = vst.msk [vmem:[%s3 + $0x120] sm:$0xff] %vm309, %v280
  %347 = vst.msk [vmem:[%s3 + $0x128] sm:$0xff] %vm309, %v282
  %348 = vst.msk [vmem:[%s3 + $0x130] sm:$0xff] %vm309, %v285
  %349 = vst.msk [vmem:[%s3 + $0x138] sm:$0xff] %vm309, %v287
  %350 = vst.msk [vmem:[%s3 + $0x140] sm:$0xff] %vm309, %v290
  %351 = vst.msk [vmem:[%s3 + $0x148] sm:$0xff] %vm309, %v292
  %352 = vst.msk [vmem:[%s3 + $0x150] sm:$0xff] %vm309, %v295
  %353 = vst.msk [vmem:[%s3 + $0x158] sm:$0xff] %vm309, %v297
  %354 = vst.msk [vmem:[%s3 + $0x160] sm:$0xff] %vm309, %v300
  %355 = vst.msk [vmem:[%s3 + $0x168] sm:$0xff] %vm309, %v302
  %356 = vst.msk [vmem:[%s3 + $0x170] sm:$0xff] %vm309, %v305
  %357 = vst.msk [vmem:[%s3 + $0x178] sm:$0xff] %vm309, %v307
  // Predicated region
  $region14: #{transformer_cs_forward.7} parent=0 // pred_check
    _
  $region15: #{transformer_cs_forward.7} parent=0 // pred_check_branch
    %359 = sbr.rel (0) target = $region17
  $region16: #{transformer_cs_forward.7} parent=0 // pred_region
    _
  $region17: #{transformer_cs_forward.7} parent=0 // pred_fallthru
    _
  // Predicated region
  $region18: #{transformer_cs_forward.7} parent=0 // pred_check
    _
  $region19: #{transformer_cs_forward.7} parent=0 // pred_check_branch
    %361 = sbr.rel (0) target = $region21
  $region20: #{transformer_cs_forward.7} parent=0 // pred_region
    _
  $region21: #{transformer_cs_forward.7} parent=0 // pred_fallthru
    _

// kernel: transformer_cs_forward.8
$region0: #{transformer_cs_forward.8}
  #allocation0 [shape = 'u32[]', space=smem, size = 0x4, offset = 0x4, fixed_abs, tag = 'smem constant byte address 0x4 - core index']
  #allocation1 [shape = 'u32[72,128]{1,0:T(1,128)}', space=vmem, size = 0x9000, scoped, tag = 'internal scratch']
  %s0 = inlined_call_operand.smem [shape: u32[40], index: -1, kind: input, shape index: {}]
  %s1 = sld [smem:[%s0]]
  %s2 = scalar_lea.smem %s0, 1
  %s3 = sld [smem:[%s2]]
  %s4 = scalar_lea.smem %s0, 2
  %s5 = sld [smem:[%s4]]
  %s6 = scalar_lea.smem %s0, 3
  %s7 = sld [smem:[%s6]]
  %s8 = scalar_lea.smem %s0, 4
  %s9 = sld [smem:[%s8]]
  %s10 = scalar_lea.smem %s0, 5
  %s11 = sld [smem:[%s10]]
  %s12 = scalar_lea.smem %s0, 6
  %s13 = sld [smem:[%s12]]
  %s14 = scalar_lea.smem %s0, 7
  %s15 = sld [smem:[%s14]]
  %s16 = scalar_lea.smem %s0, 8
  %s17 = sld [smem:[%s16]]
  %s18 = scalar_lea.smem %s0, 9
  %s19 = sld [smem:[%s18]]
  %s20 = scalar_lea.smem %s0, 10
  %s21 = sld [smem:[%s20]]
  %s22 = scalar_lea.smem %s0, 11
  %s23 = sld [smem:[%s22]]
  %s24 = scalar_lea.smem %s0, 12
  %s25 = sld [smem:[%s24]]
  %s26 = scalar_lea.smem %s0, 13
  %s27 = sld [smem:[%s26]]
  %s28 = scalar_lea.smem %s0, 14
  %s29 = sld [smem:[%s28]]
  %s30 = scalar_lea.smem %s0, 15
  %s31 = sld [smem:[%s30]]
  %s32 = scalar_lea.smem %s0, 16
  %s33 = sld [smem:[%s32]]
  %s34 = scalar_lea.smem %s0, 17
  %s35 = sld [smem:[%s34]]
  %s36 = scalar_lea.smem %s0, 18
  %s37 = sld [smem:[%s36]]
  %s38 = scalar_lea.smem %s0, 19
  %s39 = sld [smem:[%s38]]
  %s40 = scalar_lea.smem %s0, 20
  %s41 = sld [smem:[%s40]]
  %s42 = scalar_lea.smem %s0, 21
  %s43 = sld [smem:[%s42]]
  %s44 = scalar_lea.smem %s0, 22
  %s45 = sld [smem:[%s44]]
  %s46 = scalar_lea.smem %s0, 23
  %s47 = sld [smem:[%s46]]
  %s48 = scalar_lea.smem %s0, 24
  %s49 = sld [smem:[%s48]]
  %s50 = scalar_lea.smem %s0, 25
  %s51 = sld [smem:[%s50]]
  %s52 = scalar_lea.smem %s0, 26
  %s53 = sld [smem:[%s52]]
  %s54 = scalar_lea.smem %s0, 27
  %s55 = sld [smem:[%s54]]
  %s56 = scalar_lea.smem %s0, 28
  %s57 = sld [smem:[%s56]]
  %s58 = scalar_lea.smem %s0, 29
  %s59 = sld [smem:[%s58]]
  %s60 = scalar_lea.smem %s0, 30
  %s61 = sld [smem:[%s60]]
  %s62 = scalar_lea.smem %s0, 31
  %s63 = sld [smem:[%s62]]
  %s64 = scalar_lea.smem %s0, 32
  %s65 = sld [smem:[%s64]]
  %s66 = scalar_lea.smem %s0, 33
  %s67 = sld [smem:[%s66]]
  %s68 = scalar_lea.smem %s0, 34
  %s69 = sld [smem:[%s68]]
  %s70 = scalar_lea.smem %s0, 35
  %s71 = sld [smem:[%s70]]
  %s72 = scalar_lea.smem %s0, 36
  %s73 = sld [smem:[%s72]]
  %s74 = scalar_lea.smem %s0, 37
  %s75 = sld [smem:[%s74]]
  %s76 = scalar_lea.smem %s0, 38
  %s77 = sld [smem:[%s76]]
  %s78 = scalar_lea.smem %s0, 39
  %s79 = sld [smem:[%s78]]
  %80 = xla_tuple %s65, %s67, %s69, %s71, %s73, %s75, %s77, %s79
  %s81 = sld [smem:[#allocation0]]
  $region217: #{transformer_cs_forward.8} parent=0
    _
  %s83 = ssub.s32 1, %s81
  %s84 = scalar_select 0, %s83, %s81
  loop: start=0, step=1, limit=4
  $region2: #{transformer_cs_forward.8} parent=0 // loop_pre_header
    _
  $region3: #{transformer_cs_forward.8} parent=0 // loop_header
    %s86 = sphi 0, %s90
    %p87 = scmp.ge.s32.totalorder %s86, 4
    %s96 = sphi 0, %s98
    %s99 = sphi 0, %s96
    %s100 = sphi 0, %s99
    %s116 = sphi 0, %s100
    %s122 = sphi 0, %s124
    %s125 = sphi 0, %s122
    %s126 = sphi 0, %s125
    %s142 = sphi 0, %s126
    %s148 = sphi 0, %s150
    %s151 = sphi 0, %s148
    %s152 = sphi 0, %s151
    %s168 = sphi 0, %s152
    %s174 = sphi 0, %s176
    %s177 = sphi 0, %s174
    %s178 = sphi 0, %s177
    %s194 = sphi 0, %s178
    %s200 = sphi 0, %s202
    %s203 = sphi 0, %s200
    %s204 = sphi 0, %s203
    %s220 = sphi 0, %s204
    %s226 = sphi 0, %s228
    %s229 = sphi 0, %s226
    %s230 = sphi 0, %s229
    %s246 = sphi 0, %s230
    %s252 = sphi 0, %s254
    %s255 = sphi 0, %s252
    %s256 = sphi 0, %s255
    %s272 = sphi 0, %s256
    %s278 = sphi 0, %s280
    %s281 = sphi 0, %s278
    %s282 = sphi 0, %s281
    %s298 = sphi 0, %s282
    %s304 = sphi 0, %s306
    %s307 = sphi 0, %s304
    %s308 = sphi 0, %s307
    %s324 = sphi 0, %s308
    %s330 = sphi 0, %s332
    %s333 = sphi 0, %s330
    %s334 = sphi 0, %s333
    %s350 = sphi 0, %s334
    %s356 = sphi 0, %s358
    %s359 = sphi 0, %s356
    %s360 = sphi 0, %s359
    %s376 = sphi 0, %s360
    %s382 = sphi 0, %s384
    %s385 = sphi 0, %s382
    %s386 = sphi 0, %s385
    %s402 = sphi 0, %s386
    %s408 = sphi 0, %s410
    %s411 = sphi 0, %s408
    %s412 = sphi 0, %s411
    %s428 = sphi 0, %s412
    %s434 = sphi 0, %s436
    %s437 = sphi 0, %s434
    %s438 = sphi 0, %s437
    %s454 = sphi 0, %s438
    %s460 = sphi 0, %s462
    %s463 = sphi 0, %s460
    %s464 = sphi 0, %s463
    %s480 = sphi 0, %s464
    %s486 = sphi 0, %s488
    %s489 = sphi 0, %s486
    %s490 = sphi 0, %s489
    %s506 = sphi 0, %s490
    %s512 = sphi 0, %s514
    %s515 = sphi 0, %s512
    %s516 = sphi 0, %s515
    %s532 = sphi 0, %s516
    %s538 = sphi 0, %s540
    %s541 = sphi 0, %s538
    %s542 = sphi 0, %s541
    %s558 = sphi 0, %s542
    %s564 = sphi 0, %s566
    %s567 = sphi 0, %s564
    %s568 = sphi 0, %s567
    %s584 = sphi 0, %s568
    %s590 = sphi 0, %s592
    %s593 = sphi 0, %s590
    %s594 = sphi 0, %s593
    %s610 = sphi 0, %s594
    %s616 = sphi 0, %s618
    %s619 = sphi 0, %s616
    %s620 = sphi 0, %s619
    %s636 = sphi 0, %s620
    %s642 = sphi 0, %s644
    %s645 = sphi 0, %s642
    %s646 = sphi 0, %s645
    %s662 = sphi 0, %s646
    %s668 = sphi 0, %s670
    %s671 = sphi 0, %s668
    %s672 = sphi 0, %s671
    %s688 = sphi 0, %s672
    %s694 = sphi 0, %s696
    %s697 = sphi 0, %s694
    %s698 = sphi 0, %s697
    %s714 = sphi 0, %s698
    %s718 = sphi 0, %s718
    %s720 = sphi 0, %s718
    %s721 = sphi 0, %s720
    %s735 = sphi 0, %s721
    %s739 = sphi 0, %s739
    %s741 = sphi 0, %s739
    %s742 = sphi 0, %s741
    %s756 = sphi 0, %s742
    %s760 = sphi 0, %s760
    %s762 = sphi 0, %s760
    %s763 = sphi 0, %s762
    %s777 = sphi 0, %s763
    %s781 = sphi 0, %s781
    %s783 = sphi 0, %s781
    %s784 = sphi 0, %s783
    %s798 = sphi 0, %s784
    %s804 = sphi 0, %s806
    %s807 = sphi 0, %s804
    %s808 = sphi 0, %s807
    %s824 = sphi 0, %s808
    %s830 = sphi 0, %s832
    %s833 = sphi 0, %s830
    %s834 = sphi 0, %s833
    %s850 = sphi 0, %s834
    %s856 = sphi 0, %s858
    %s859 = sphi 0, %s856
    %s860 = sphi 0, %s859
    %s876 = sphi 0, %s860
    %s882 = sphi 0, %s884
    %s885 = sphi 0, %s882
    %s886 = sphi 0, %s885
    %s902 = sphi 0, %s886
    %s908 = sphi 0, %s910
    %s911 = sphi 0, %s908
    %s912 = sphi 0, %s911
    %s928 = sphi 0, %s912
    %s934 = sphi 0, %s936
    %s937 = sphi 0, %s934
    %s938 = sphi 0, %s937
    %s954 = sphi 0, %s938
    %s960 = sphi 0, %s962
    %s963 = sphi 0, %s960
    %s964 = sphi 0, %s963
    %s980 = sphi 0, %s964
    %s986 = sphi 0, %s988
    %s989 = sphi 0, %s986
    %s990 = sphi 0, %s989
    %s1006 = sphi 0, %s990
    %s1012 = sphi 0, %s1014
    %s1015 = sphi 0, %s1012
    %s1016 = sphi 0, %s1015
    %s1032 = sphi 0, %s1016
    %s1038 = sphi 0, %s1040
    %s1041 = sphi 0, %s1038
    %s1042 = sphi 0, %s1041
    %s1058 = sphi 0, %s1042
    %s1064 = sphi 0, %s1066
    %s1067 = sphi 0, %s1064
    %s1068 = sphi 0, %s1067
    %s1084 = sphi 0, %s1068
    %s1090 = sphi 0, %s1092
    %s1093 = sphi 0, %s1090
    %s1094 = sphi 0, %s1093
    %s1110 = sphi 0, %s1094
  $region4: #{transformer_cs_forward.8} parent=0 // loop_header_branch
    %89 = sbr.rel (%p87) target = $region8
  $region5: #{transformer_cs_forward.8} parent=0 // loop_body
    %s91 = ssub.s32 %s86, 1
    %s92 = ssub.s32 %s86, 2
    %s93 = sadd.s32 %s86, 1
    %s94 = ssub.s32 %s86, %s93
    %p95 = scmp.eq.s32.totalorder %s94, 0
    %s97 = sadd.s32 %s96, 1
    %s98 = scalar_select %p95, %s96, %s97
    %p101 = pneg %p95
    %p102 = scmp.eq.s32.totalorder %s86, 1
    %p103 = por %p101, %p102
    %p104 = scmp.ne.s32.totalorder %s96, %s99
    %p105 = scmp.eq.s32.totalorder %s86, 0
    %p106 = por %p104, %p105
    %p107 = scmp.ne.s32.totalorder %s96, %s99
    %p108 = scmp.eq.s32.totalorder %s91, 1
    %p109 = por %p107, %p108
    %p110 = scmp.ne.s32.totalorder %s99, %s100
    %p111 = scmp.eq.s32.totalorder %s91, 0
    %p112 = por %p110, %p111
    %p113 = scmp.ne.s32.totalorder %s99, %s100
    %p114 = scmp.eq.s32.totalorder %s92, 1
    %p115 = por %p113, %p114
    %p117 = scmp.ne.s32.totalorder %s100, %s116
    %p118 = scmp.eq.s32.totalorder %s92, 0
    %p119 = por %p117, %p118
    %s120 = ssub.s32 %s86, %s93
    %p121 = scmp.eq.s32.totalorder %s120, 0
    %s123 = sadd.s32 %s122, 1
    %s124 = scalar_select %p121, %s122, %s123
    %p127 = pneg %p121
    %p128 = scmp.eq.s32.totalorder %s86, 1
    %p129 = por %p127, %p128
    %p130 = scmp.ne.s32.totalorder %s122, %s125
    %p131 = scmp.eq.s32.totalorder %s86, 0
    %p132 = por %p130, %p131
    %p133 = scmp.ne.s32.totalorder %s122, %s125
    %p134 = scmp.eq.s32.totalorder %s91, 1
    %p135 = por %p133, %p134
    %p136 = scmp.ne.s32.totalorder %s125, %s126
    %p137 = scmp.eq.s32.totalorder %s91, 0
    %p138 = por %p136, %p137
    %p139 = scmp.ne.s32.totalorder %s125, %s126
    %p140 = scmp.eq.s32.totalorder %s92, 1
    %p141 = por %p139, %p140
    %p143 = scmp.ne.s32.totalorder %s126, %s142
    %p144 = scmp.eq.s32.totalorder %s92, 0
    %p145 = por %p143, %p144
    %s146 = ssub.s32 %s86, %s93
    %p147 = scmp.eq.s32.totalorder %s146, 0
    %s149 = sadd.s32 %s148, 1
    %s150 = scalar_select %p147, %s148, %s149
    %p153 = pneg %p147
    %p154 = scmp.eq.s32.totalorder %s86, 1
    %p155 = por %p153, %p154
    %p156 = scmp.ne.s32.totalorder %s148, %s151
    %p157 = scmp.eq.s32.totalorder %s86, 0
    %p158 = por %p156, %p157
    %p159 = scmp.ne.s32.totalorder %s148, %s151
    %p160 = scmp.eq.s32.totalorder %s91, 1
    %p161 = por %p159, %p160
    %p162 = scmp.ne.s32.totalorder %s151, %s152
    %p163 = scmp.eq.s32.totalorder %s91, 0
    %p164 = por %p162, %p163
    %p165 = scmp.ne.s32.totalorder %s151, %s152
    %p166 = scmp.eq.s32.totalorder %s92, 1
    %p167 = por %p165, %p166
    %p169 = scmp.ne.s32.totalorder %s152, %s168
    %p170 = scmp.eq.s32.totalorder %s92, 0
    %p171 = por %p169, %p170
    %s172 = ssub.s32 %s86, %s93
    %p173 = scmp.eq.s32.totalorder %s172, 0
    %s175 = sadd.s32 %s174, 1
    %s176 = scalar_select %p173, %s174, %s175
    %p179 = pneg %p173
    %p180 = scmp.eq.s32.totalorder %s86, 1
    %p181 = por %p179, %p180
    %p182 = scmp.ne.s32.totalorder %s174, %s177
    %p183 = scmp.eq.s32.totalorder %s86, 0
    %p184 = por %p182, %p183
    %p185 = scmp.ne.s32.totalorder %s174, %s177
    %p186 = scmp.eq.s32.totalorder %s91, 1
    %p187 = por %p185, %p186
    %p188 = scmp.ne.s32.totalorder %s177, %s178
    %p189 = scmp.eq.s32.totalorder %s91, 0
    %p190 = por %p188, %p189
    %p191 = scmp.ne.s32.totalorder %s177, %s178
    %p192 = scmp.eq.s32.totalorder %s92, 1
    %p193 = por %p191, %p192
    %p195 = scmp.ne.s32.totalorder %s178, %s194
    %p196 = scmp.eq.s32.totalorder %s92, 0
    %p197 = por %p195, %p196
    %s198 = ssub.s32 %s86, %s93
    %p199 = scmp.eq.s32.totalorder %s198, 0
    %s201 = sadd.s32 %s200, 1
    %s202 = scalar_select %p199, %s200, %s201
    %p205 = pneg %p199
    %p206 = scmp.eq.s32.totalorder %s86, 1
    %p207 = por %p205, %p206
    %p208 = scmp.ne.s32.totalorder %s200, %s203
    %p209 = scmp.eq.s32.totalorder %s86, 0
    %p210 = por %p208, %p209
    %p211 = scmp.ne.s32.totalorder %s200, %s203
    %p212 = scmp.eq.s32.totalorder %s91, 1
    %p213 = por %p211, %p212
    %p214 = scmp.ne.s32.totalorder %s203, %s204
    %p215 = scmp.eq.s32.totalorder %s91, 0
    %p216 = por %p214, %p215
    %p217 = scmp.ne.s32.totalorder %s203, %s204
    %p218 = scmp.eq.s32.totalorder %s92, 1
    %p219 = por %p217, %p218
    %p221 = scmp.ne.s32.totalorder %s204, %s220
    %p222 = scmp.eq.s32.totalorder %s92, 0
    %p223 = por %p221, %p222
    %s224 = ssub.s32 %s86, %s93
    %p225 = scmp.eq.s32.totalorder %s224, 0
    %s227 = sadd.s32 %s226, 1
    %s228 = scalar_select %p225, %s226, %s227
    %p231 = pneg %p225
    %p232 = scmp.eq.s32.totalorder %s86, 1
    %p233 = por %p231, %p232
    %p234 = scmp.ne.s32.totalorder %s226, %s229
    %p235 = scmp.eq.s32.totalorder %s86, 0
    %p236 = por %p234, %p235
    %p237 = scmp.ne.s32.totalorder %s226, %s229
    %p238 = scmp.eq.s32.totalorder %s91, 1
    %p239 = por %p237, %p238
    %p240 = scmp.ne.s32.totalorder %s229, %s230
    %p241 = scmp.eq.s32.totalorder %s91, 0
    %p242 = por %p240, %p241
    %p243 = scmp.ne.s32.totalorder %s229, %s230
    %p244 = scmp.eq.s32.totalorder %s92, 1
    %p245 = por %p243, %p244
    %p247 = scmp.ne.s32.totalorder %s230, %s246
    %p248 = scmp.eq.s32.totalorder %s92, 0
    %p249 = por %p247, %p248
    %s250 = ssub.s32 %s86, %s93
    %p251 = scmp.eq.s32.totalorder %s250, 0
    %s253 = sadd.s32 %s252, 1
    %s254 = scalar_select %p251, %s252, %s253
    %p257 = pneg %p251
    %p258 = scmp.eq.s32.totalorder %s86, 1
    %p259 = por %p257, %p258
    %p260 = scmp.ne.s32.totalorder %s252, %s255
    %p261 = scmp.eq.s32.totalorder %s86, 0
    %p262 = por %p260, %p261
    %p263 = scmp.ne.s32.totalorder %s252, %s255
    %p264 = scmp.eq.s32.totalorder %s91, 1
    %p265 = por %p263, %p264
    %p266 = scmp.ne.s32.totalorder %s255, %s256
    %p267 = scmp.eq.s32.totalorder %s91, 0
    %p268 = por %p266, %p267
    %p269 = scmp.ne.s32.totalorder %s255, %s256
    %p270 = scmp.eq.s32.totalorder %s92, 1
    %p271 = por %p269, %p270
    %p273 = scmp.ne.s32.totalorder %s256, %s272
    %p274 = scmp.eq.s32.totalorder %s92, 0
    %p275 = por %p273, %p274
    %s276 = ssub.s32 %s86, %s93
    %p277 = scmp.eq.s32.totalorder %s276, 0
    %s279 = sadd.s32 %s278, 1
    %s280 = scalar_select %p277, %s278, %s279
    %p283 = pneg %p277
    %p284 = scmp.eq.s32.totalorder %s86, 1
    %p285 = por %p283, %p284
    %p286 = scmp.ne.s32.totalorder %s278, %s281
    %p287 = scmp.eq.s32.totalorder %s86, 0
    %p288 = por %p286, %p287
    %p289 = scmp.ne.s32.totalorder %s278, %s281
    %p290 = scmp.eq.s32.totalorder %s91, 1
    %p291 = por %p289, %p290
    %p292 = scmp.ne.s32.totalorder %s281, %s282
    %p293 = scmp.eq.s32.totalorder %s91, 0
    %p294 = por %p292, %p293
    %p295 = scmp.ne.s32.totalorder %s281, %s282
    %p296 = scmp.eq.s32.totalorder %s92, 1
    %p297 = por %p295, %p296
    %p299 = scmp.ne.s32.totalorder %s282, %s298
    %p300 = scmp.eq.s32.totalorder %s92, 0
    %p301 = por %p299, %p300
    %s302 = ssub.s32 %s86, %s93
    %p303 = scmp.eq.s32.totalorder %s302, 0
    %s305 = sadd.s32 %s304, 1
    %s306 = scalar_select %p303, %s304, %s305
    %p309 = pneg %p303
    %p310 = scmp.eq.s32.totalorder %s86, 1
    %p311 = por %p309, %p310
    %p312 = scmp.ne.s32.totalorder %s304, %s307
    %p313 = scmp.eq.s32.totalorder %s86, 0
    %p314 = por %p312, %p313
    %p315 = scmp.ne.s32.totalorder %s304, %s307
    %p316 = scmp.eq.s32.totalorder %s91, 1
    %p317 = por %p315, %p316
    %p318 = scmp.ne.s32.totalorder %s307, %s308
    %p319 = scmp.eq.s32.totalorder %s91, 0
    %p320 = por %p318, %p319
    %p321 = scmp.ne.s32.totalorder %s307, %s308
    %p322 = scmp.eq.s32.totalorder %s92, 1
    %p323 = por %p321, %p322
    %p325 = scmp.ne.s32.totalorder %s308, %s324
    %p326 = scmp.eq.s32.totalorder %s92, 0
    %p327 = por %p325, %p326
    %s328 = ssub.s32 %s86, %s93
    %p329 = scmp.eq.s32.totalorder %s328, 0
    %s331 = sadd.s32 %s330, 1
    %s332 = scalar_select %p329, %s330, %s331
    %p335 = pneg %p329
    %p336 = scmp.eq.s32.totalorder %s86, 1
    %p337 = por %p335, %p336
    %p338 = scmp.ne.s32.totalorder %s330, %s333
    %p339 = scmp.eq.s32.totalorder %s86, 0
    %p340 = por %p338, %p339
    %p341 = scmp.ne.s32.totalorder %s330, %s333
    %p342 = scmp.eq.s32.totalorder %s91, 1
    %p343 = por %p341, %p342
    %p344 = scmp.ne.s32.totalorder %s333, %s334
    %p345 = scmp.eq.s32.totalorder %s91, 0
    %p346 = por %p344, %p345
    %p347 = scmp.ne.s32.totalorder %s333, %s334
    %p348 = scmp.eq.s32.totalorder %s92, 1
    %p349 = por %p347, %p348
    %p351 = scmp.ne.s32.totalorder %s334, %s350
    %p352 = scmp.eq.s32.totalorder %s92, 0
    %p353 = por %p351, %p352
    %s354 = ssub.s32 %s86, %s93
    %p355 = scmp.eq.s32.totalorder %s354, 0
    %s357 = sadd.s32 %s356, 1
    %s358 = scalar_select %p355, %s356, %s357
    %p361 = pneg %p355
    %p362 = scmp.eq.s32.totalorder %s86, 1
    %p363 = por %p361, %p362
    %p364 = scmp.ne.s32.totalorder %s356, %s359
    %p365 = scmp.eq.s32.totalorder %s86, 0
    %p366 = por %p364, %p365
    %p367 = scmp.ne.s32.totalorder %s356, %s359
    %p368 = scmp.eq.s32.totalorder %s91, 1
    %p369 = por %p367, %p368
    %p370 = scmp.ne.s32.totalorder %s359, %s360
    %p371 = scmp.eq.s32.totalorder %s91, 0
    %p372 = por %p370, %p371
    %p373 = scmp.ne.s32.totalorder %s359, %s360
    %p374 = scmp.eq.s32.totalorder %s92, 1
    %p375 = por %p373, %p374
    %p377 = scmp.ne.s32.totalorder %s360, %s376
    %p378 = scmp.eq.s32.totalorder %s92, 0
    %p379 = por %p377, %p378
    %s380 = ssub.s32 %s86, %s93
    %p381 = scmp.eq.s32.totalorder %s380, 0
    %s383 = sadd.s32 %s382, 1
    %s384 = scalar_select %p381, %s382, %s383
    %p387 = pneg %p381
    %p388 = scmp.eq.s32.totalorder %s86, 1
    %p389 = por %p387, %p388
    %p390 = scmp.ne.s32.totalorder %s382, %s385
    %p391 = scmp.eq.s32.totalorder %s86, 0
    %p392 = por %p390, %p391
    %p393 = scmp.ne.s32.totalorder %s382, %s385
    %p394 = scmp.eq.s32.totalorder %s91, 1
    %p395 = por %p393, %p394
    %p396 = scmp.ne.s32.totalorder %s385, %s386
    %p397 = scmp.eq.s32.totalorder %s91, 0
    %p398 = por %p396, %p397
    %p399 = scmp.ne.s32.totalorder %s385, %s386
    %p400 = scmp.eq.s32.totalorder %s92, 1
    %p401 = por %p399, %p400
    %p403 = scmp.ne.s32.totalorder %s386, %s402
    %p404 = scmp.eq.s32.totalorder %s92, 0
    %p405 = por %p403, %p404
    %s406 = ssub.s32 %s86, %s93
    %p407 = scmp.eq.s32.totalorder %s406, 0
    %s409 = sadd.s32 %s408, 1
    %s410 = scalar_select %p407, %s408, %s409
    %p413 = pneg %p407
    %p414 = scmp.eq.s32.totalorder %s86, 1
    %p415 = por %p413, %p414
    %p416 = scmp.ne.s32.totalorder %s408, %s411
    %p417 = scmp.eq.s32.totalorder %s86, 0
    %p418 = por %p416, %p417
    %p419 = scmp.ne.s32.totalorder %s408, %s411
    %p420 = scmp.eq.s32.totalorder %s91, 1
    %p421 = por %p419, %p420
    %p422 = scmp.ne.s32.totalorder %s411, %s412
    %p423 = scmp.eq.s32.totalorder %s91, 0
    %p424 = por %p422, %p423
    %p425 = scmp.ne.s32.totalorder %s411, %s412
    %p426 = scmp.eq.s32.totalorder %s92, 1
    %p427 = por %p425, %p426
    %p429 = scmp.ne.s32.totalorder %s412, %s428
    %p430 = scmp.eq.s32.totalorder %s92, 0
    %p431 = por %p429, %p430
    %s432 = ssub.s32 %s86, %s93
    %p433 = scmp.eq.s32.totalorder %s432, 0
    %s435 = sadd.s32 %s434, 1
    %s436 = scalar_select %p433, %s434, %s435
    %p439 = pneg %p433
    %p440 = scmp.eq.s32.totalorder %s86, 1
    %p441 = por %p439, %p440
    %p442 = scmp.ne.s32.totalorder %s434, %s437
    %p443 = scmp.eq.s32.totalorder %s86, 0
    %p444 = por %p442, %p443
    %p445 = scmp.ne.s32.totalorder %s434, %s437
    %p446 = scmp.eq.s32.totalorder %s91, 1
    %p447 = por %p445, %p446
    %p448 = scmp.ne.s32.totalorder %s437, %s438
    %p449 = scmp.eq.s32.totalorder %s91, 0
    %p450 = por %p448, %p449
    %p451 = scmp.ne.s32.totalorder %s437, %s438
    %p452 = scmp.eq.s32.totalorder %s92, 1
    %p453 = por %p451, %p452
    %p455 = scmp.ne.s32.totalorder %s438, %s454
    %p456 = scmp.eq.s32.totalorder %s92, 0
    %p457 = por %p455, %p456
    %s458 = ssub.s32 %s86, %s93
    %p459 = scmp.eq.s32.totalorder %s458, 0
    %s461 = sadd.s32 %s460, 1
    %s462 = scalar_select %p459, %s460, %s461
    %p465 = pneg %p459
    %p466 = scmp.eq.s32.totalorder %s86, 1
    %p467 = por %p465, %p466
    %p468 = scmp.ne.s32.totalorder %s460, %s463
    %p469 = scmp.eq.s32.totalorder %s86, 0
    %p470 = por %p468, %p469
    %p471 = scmp.ne.s32.totalorder %s460, %s463
    %p472 = scmp.eq.s32.totalorder %s91, 1
    %p473 = por %p471, %p472
    %p474 = scmp.ne.s32.totalorder %s463, %s464
    %p475 = scmp.eq.s32.totalorder %s91, 0
    %p476 = por %p474, %p475
    %p477 = scmp.ne.s32.totalorder %s463, %s464
    %p478 = scmp.eq.s32.totalorder %s92, 1
    %p479 = por %p477, %p478
    %p481 = scmp.ne.s32.totalorder %s464, %s480
    %p482 = scmp.eq.s32.totalorder %s92, 0
    %p483 = por %p481, %p482
    %s484 = ssub.s32 %s86, %s93
    %p485 = scmp.eq.s32.totalorder %s484, 0
    %s487 = sadd.s32 %s486, 1
    %s488 = scalar_select %p485, %s486, %s487
    %p491 = pneg %p485
    %p492 = scmp.eq.s32.totalorder %s86, 1
    %p493 = por %p491, %p492
    %p494 = scmp.ne.s32.totalorder %s486, %s489
    %p495 = scmp.eq.s32.totalorder %s86, 0
    %p496 = por %p494, %p495
    %p497 = scmp.ne.s32.totalorder %s486, %s489
    %p498 = scmp.eq.s32.totalorder %s91, 1
    %p499 = por %p497, %p498
    %p500 = scmp.ne.s32.totalorder %s489, %s490
    %p501 = scmp.eq.s32.totalorder %s91, 0
    %p502 = por %p500, %p501
    %p503 = scmp.ne.s32.totalorder %s489, %s490
    %p504 = scmp.eq.s32.totalorder %s92, 1
    %p505 = por %p503, %p504
    %p507 = scmp.ne.s32.totalorder %s490, %s506
    %p508 = scmp.eq.s32.totalorder %s92, 0
    %p509 = por %p507, %p508
    %s510 = ssub.s32 %s86, %s93
    %p511 = scmp.eq.s32.totalorder %s510, 0
    %s513 = sadd.s32 %s512, 1
    %s514 = scalar_select %p511, %s512, %s513
    %p517 = pneg %p511
    %p518 = scmp.eq.s32.totalorder %s86, 1
    %p519 = por %p517, %p518
    %p520 = scmp.ne.s32.totalorder %s512, %s515
    %p521 = scmp.eq.s32.totalorder %s86, 0
    %p522 = por %p520, %p521
    %p523 = scmp.ne.s32.totalorder %s512, %s515
    %p524 = scmp.eq.s32.totalorder %s91, 1
    %p525 = por %p523, %p524
    %p526 = scmp.ne.s32.totalorder %s515, %s516
    %p527 = scmp.eq.s32.totalorder %s91, 0
    %p528 = por %p526, %p527
    %p529 = scmp.ne.s32.totalorder %s515, %s516
    %p530 = scmp.eq.s32.totalorder %s92, 1
    %p531 = por %p529, %p530
    %p533 = scmp.ne.s32.totalorder %s516, %s532
    %p534 = scmp.eq.s32.totalorder %s92, 0
    %p535 = por %p533, %p534
    %s536 = ssub.s32 %s86, %s93
    %p537 = scmp.eq.s32.totalorder %s536, 0
    %s539 = sadd.s32 %s538, 1
    %s540 = scalar_select %p537, %s538, %s539
    %p543 = pneg %p537
    %p544 = scmp.eq.s32.totalorder %s86, 1
    %p545 = por %p543, %p544
    %p546 = scmp.ne.s32.totalorder %s538, %s541
    %p547 = scmp.eq.s32.totalorder %s86, 0
    %p548 = por %p546, %p547
    %p549 = scmp.ne.s32.totalorder %s538, %s541
    %p550 = scmp.eq.s32.totalorder %s91, 1
    %p551 = por %p549, %p550
    %p552 = scmp.ne.s32.totalorder %s541, %s542
    %p553 = scmp.eq.s32.totalorder %s91, 0
    %p554 = por %p552, %p553
    %p555 = scmp.ne.s32.totalorder %s541, %s542
    %p556 = scmp.eq.s32.totalorder %s92, 1
    %p557 = por %p555, %p556
    %p559 = scmp.ne.s32.totalorder %s542, %s558
    %p560 = scmp.eq.s32.totalorder %s92, 0
    %p561 = por %p559, %p560
    %s562 = ssub.s32 %s86, %s93
    %p563 = scmp.eq.s32.totalorder %s562, 0
    %s565 = sadd.s32 %s564, 1
    %s566 = scalar_select %p563, %s564, %s565
    %p569 = pneg %p563
    %p570 = scmp.eq.s32.totalorder %s86, 1
    %p571 = por %p569, %p570
    %p572 = scmp.ne.s32.totalorder %s564, %s567
    %p573 = scmp.eq.s32.totalorder %s86, 0
    %p574 = por %p572, %p573
    %p575 = scmp.ne.s32.totalorder %s564, %s567
    %p576 = scmp.eq.s32.totalorder %s91, 1
    %p577 = por %p575, %p576
    %p578 = scmp.ne.s32.totalorder %s567, %s568
    %p579 = scmp.eq.s32.totalorder %s91, 0
    %p580 = por %p578, %p579
    %p581 = scmp.ne.s32.totalorder %s567, %s568
    %p582 = scmp.eq.s32.totalorder %s92, 1
    %p583 = por %p581, %p582
    %p585 = scmp.ne.s32.totalorder %s568, %s584
    %p586 = scmp.eq.s32.totalorder %s92, 0
    %p587 = por %p585, %p586
    %s588 = ssub.s32 %s86, %s93
    %p589 = scmp.eq.s32.totalorder %s588, 0
    %s591 = sadd.s32 %s590, 1
    %s592 = scalar_select %p589, %s590, %s591
    %p595 = pneg %p589
    %p596 = scmp.eq.s32.totalorder %s86, 1
    %p597 = por %p595, %p596
    %p598 = scmp.ne.s32.totalorder %s590, %s593
    %p599 = scmp.eq.s32.totalorder %s86, 0
    %p600 = por %p598, %p599
    %p601 = scmp.ne.s32.totalorder %s590, %s593
    %p602 = scmp.eq.s32.totalorder %s91, 1
    %p603 = por %p601, %p602
    %p604 = scmp.ne.s32.totalorder %s593, %s594
    %p605 = scmp.eq.s32.totalorder %s91, 0
    %p606 = por %p604, %p605
    %p607 = scmp.ne.s32.totalorder %s593, %s594
    %p608 = scmp.eq.s32.totalorder %s92, 1
    %p609 = por %p607, %p608
    %p611 = scmp.ne.s32.totalorder %s594, %s610
    %p612 = scmp.eq.s32.totalorder %s92, 0
    %p613 = por %p611, %p612
    %s614 = ssub.s32 %s86, %s93
    %p615 = scmp.eq.s32.totalorder %s614, 0
    %s617 = sadd.s32 %s616, 1
    %s618 = scalar_select %p615, %s616, %s617
    %p621 = pneg %p615
    %p622 = scmp.eq.s32.totalorder %s86, 1
    %p623 = por %p621, %p622
    %p624 = scmp.ne.s32.totalorder %s616, %s619
    %p625 = scmp.eq.s32.totalorder %s86, 0
    %p626 = por %p624, %p625
    %p627 = scmp.ne.s32.totalorder %s616, %s619
    %p628 = scmp.eq.s32.totalorder %s91, 1
    %p629 = por %p627, %p628
    %p630 = scmp.ne.s32.totalorder %s619, %s620
    %p631 = scmp.eq.s32.totalorder %s91, 0
    %p632 = por %p630, %p631
    %p633 = scmp.ne.s32.totalorder %s619, %s620
    %p634 = scmp.eq.s32.totalorder %s92, 1
    %p635 = por %p633, %p634
    %p637 = scmp.ne.s32.totalorder %s620, %s636
    %p638 = scmp.eq.s32.totalorder %s92, 0
    %p639 = por %p637, %p638
    %s640 = ssub.s32 %s86, %s93
    %p641 = scmp.eq.s32.totalorder %s640, 0
    %s643 = sadd.s32 %s642, 1
    %s644 = scalar_select %p641, %s642, %s643
    %p647 = pneg %p641
    %p648 = scmp.eq.s32.totalorder %s86, 1
    %p649 = por %p647, %p648
    %p650 = scmp.ne.s32.totalorder %s642, %s645
    %p651 = scmp.eq.s32.totalorder %s86, 0
    %p652 = por %p650, %p651
    %p653 = scmp.ne.s32.totalorder %s642, %s645
    %p654 = scmp.eq.s32.totalorder %s91, 1
    %p655 = por %p653, %p654
    %p656 = scmp.ne.s32.totalorder %s645, %s646
    %p657 = scmp.eq.s32.totalorder %s91, 0
    %p658 = por %p656, %p657
    %p659 = scmp.ne.s32.totalorder %s645, %s646
    %p660 = scmp.eq.s32.totalorder %s92, 1
    %p661 = por %p659, %p660
    %p663 = scmp.ne.s32.totalorder %s646, %s662
    %p664 = scmp.eq.s32.totalorder %s92, 0
    %p665 = por %p663, %p664
    %s666 = ssub.s32 %s86, %s93
    %p667 = scmp.eq.s32.totalorder %s666, 0
    %s669 = sadd.s32 %s668, 1
    %s670 = scalar_select %p667, %s668, %s669
    %p673 = pneg %p667
    %p674 = scmp.eq.s32.totalorder %s86, 1
    %p675 = por %p673, %p674
    %p676 = scmp.ne.s32.totalorder %s668, %s671
    %p677 = scmp.eq.s32.totalorder %s86, 0
    %p678 = por %p676, %p677
    %p679 = scmp.ne.s32.totalorder %s668, %s671
    %p680 = scmp.eq.s32.totalorder %s91, 1
    %p681 = por %p679, %p680
    %p682 = scmp.ne.s32.totalorder %s671, %s672
    %p683 = scmp.eq.s32.totalorder %s91, 0
    %p684 = por %p682, %p683
    %p685 = scmp.ne.s32.totalorder %s671, %s672
    %p686 = scmp.eq.s32.totalorder %s92, 1
    %p687 = por %p685, %p686
    %p689 = scmp.ne.s32.totalorder %s672, %s688
    %p690 = scmp.eq.s32.totalorder %s92, 0
    %p691 = por %p689, %p690
    %s692 = ssub.s32 %s86, %s93
    %p693 = scmp.eq.s32.totalorder %s692, 0
    %s695 = sadd.s32 %s694, 1
    %s696 = scalar_select %p693, %s694, %s695
    %p699 = pneg %p693
    %p700 = scmp.eq.s32.totalorder %s86, 1
    %p701 = por %p699, %p700
    %p702 = scmp.ne.s32.totalorder %s694, %s697
    %p703 = scmp.eq.s32.totalorder %s86, 0
    %p704 = por %p702, %p703
    %p705 = scmp.ne.s32.totalorder %s694, %s697
    %p706 = scmp.eq.s32.totalorder %s91, 1
    %p707 = por %p705, %p706
    %p708 = scmp.ne.s32.totalorder %s697, %s698
    %p709 = scmp.eq.s32.totalorder %s91, 0
    %p710 = por %p708, %p709
    %p711 = scmp.ne.s32.totalorder %s697, %s698
    %p712 = scmp.eq.s32.totalorder %s92, 1
    %p713 = por %p711, %p712
    %p715 = scmp.ne.s32.totalorder %s698, %s714
    %p716 = scmp.eq.s32.totalorder %s92, 0
    %p717 = por %p715, %p716
    %s719 = sadd.s32 %s718, 1
    %p722 = scmp.eq.s32.totalorder %s86, 1
    %p723 = scmp.ne.s32.totalorder %s718, %s720
    %p724 = scmp.eq.s32.totalorder %s86, 0
    %p725 = por %p723, %p724
    %p726 = scmp.ne.s32.totalorder %s718, %s720
    %p727 = scmp.eq.s32.totalorder %s91, 1
    %p728 = por %p726, %p727
    %p729 = scmp.ne.s32.totalorder %s720, %s721
    %p730 = scmp.eq.s32.totalorder %s91, 0
    %p731 = por %p729, %p730
    %p732 = scmp.ne.s32.totalorder %s720, %s721
    %p733 = scmp.eq.s32.totalorder %s92, 1
    %p734 = por %p732, %p733
    %p736 = scmp.ne.s32.totalorder %s721, %s735
    %p737 = scmp.eq.s32.totalorder %s92, 0
    %p738 = por %p736, %p737
    %s740 = sadd.s32 %s739, 1
    %p743 = scmp.eq.s32.totalorder %s86, 1
    %p744 = scmp.ne.s32.totalorder %s739, %s741
    %p745 = scmp.eq.s32.totalorder %s86, 0
    %p746 = por %p744, %p745
    %p747 = scmp.ne.s32.totalorder %s739, %s741
    %p748 = scmp.eq.s32.totalorder %s91, 1
    %p749 = por %p747, %p748
    %p750 = scmp.ne.s32.totalorder %s741, %s742
    %p751 = scmp.eq.s32.totalorder %s91, 0
    %p752 = por %p750, %p751
    %p753 = scmp.ne.s32.totalorder %s741, %s742
    %p754 = scmp.eq.s32.totalorder %s92, 1
    %p755 = por %p753, %p754
    %p757 = scmp.ne.s32.totalorder %s742, %s756
    %p758 = scmp.eq.s32.totalorder %s92, 0
    %p759 = por %p757, %p758
    %s761 = sadd.s32 %s760, 1
    %p764 = scmp.eq.s32.totalorder %s86, 1
    %p765 = scmp.ne.s32.totalorder %s760, %s762
    %p766 = scmp.eq.s32.totalorder %s86, 0
    %p767 = por %p765, %p766
    %p768 = scmp.ne.s32.totalorder %s760, %s762
    %p769 = scmp.eq.s32.totalorder %s91, 1
    %p770 = por %p768, %p769
    %p771 = scmp.ne.s32.totalorder %s762, %s763
    %p772 = scmp.eq.s32.totalorder %s91, 0
    %p773 = por %p771, %p772
    %p774 = scmp.ne.s32.totalorder %s762, %s763
    %p775 = scmp.eq.s32.totalorder %s92, 1
    %p776 = por %p774, %p775
    %p778 = scmp.ne.s32.totalorder %s763, %s777
    %p779 = scmp.eq.s32.totalorder %s92, 0
    %p780 = por %p778, %p779
    %s782 = sadd.s32 %s781, 1
    %p785 = scmp.eq.s32.totalorder %s86, 1
    %p786 = scmp.ne.s32.totalorder %s781, %s783
    %p787 = scmp.eq.s32.totalorder %s86, 0
    %p788 = por %p786, %p787
    %p789 = scmp.ne.s32.totalorder %s781, %s783
    %p790 = scmp.eq.s32.totalorder %s91, 1
    %p791 = por %p789, %p790
    %p792 = scmp.ne.s32.totalorder %s783, %s784
    %p793 = scmp.eq.s32.totalorder %s91, 0
    %p794 = por %p792, %p793
    %p795 = scmp.ne.s32.totalorder %s783, %s784
    %p796 = scmp.eq.s32.totalorder %s92, 1
    %p797 = por %p795, %p796
    %p799 = scmp.ne.s32.totalorder %s784, %s798
    %p800 = scmp.eq.s32.totalorder %s92, 0
    %p801 = por %p799, %p800
    %s802 = ssub.s32 %s86, %s93
    %p803 = scmp.eq.s32.totalorder %s802, 0
    %s805 = sadd.s32 %s804, 1
    %s806 = scalar_select %p803, %s804, %s805
    %p809 = pneg %p803
    %p810 = scmp.eq.s32.totalorder %s86, 1
    %p811 = por %p809, %p810
    %p812 = scmp.ne.s32.totalorder %s804, %s807
    %p813 = scmp.eq.s32.totalorder %s86, 0
    %p814 = por %p812, %p813
    %p815 = scmp.ne.s32.totalorder %s804, %s807
    %p816 = scmp.eq.s32.totalorder %s91, 1
    %p817 = por %p815, %p816
    %p818 = scmp.ne.s32.totalorder %s807, %s808
    %p819 = scmp.eq.s32.totalorder %s91, 0
    %p820 = por %p818, %p819
    %p821 = scmp.ne.s32.totalorder %s807, %s808
    %p822 = scmp.eq.s32.totalorder %s92, 1
    %p823 = por %p821, %p822
    %p825 = scmp.ne.s32.totalorder %s808, %s824
    %p826 = scmp.eq.s32.totalorder %s92, 0
    %p827 = por %p825, %p826
    %s828 = ssub.s32 %s86, %s93
    %p829 = scmp.eq.s32.totalorder %s828, 0
    %s831 = sadd.s32 %s830, 1
    %s832 = scalar_select %p829, %s830, %s831
    %p835 = pneg %p829
    %p836 = scmp.eq.s32.totalorder %s86, 1
    %p837 = por %p835, %p836
    %p838 = scmp.ne.s32.totalorder %s830, %s833
    %p839 = scmp.eq.s32.totalorder %s86, 0
    %p840 = por %p838, %p839
    %p841 = scmp.ne.s32.totalorder %s830, %s833
    %p842 = scmp.eq.s32.totalorder %s91, 1
    %p843 = por %p841, %p842
    %p844 = scmp.ne.s32.totalorder %s833, %s834
    %p845 = scmp.eq.s32.totalorder %s91, 0
    %p846 = por %p844, %p845
    %p847 = scmp.ne.s32.totalorder %s833, %s834
    %p848 = scmp.eq.s32.totalorder %s92, 1
    %p849 = por %p847, %p848
    %p851 = scmp.ne.s32.totalorder %s834, %s850
    %p852 = scmp.eq.s32.totalorder %s92, 0
    %p853 = por %p851, %p852
    %s854 = ssub.s32 %s86, %s93
    %p855 = scmp.eq.s32.totalorder %s854, 0
    %s857 = sadd.s32 %s856, 1
    %s858 = scalar_select %p855, %s856, %s857
    %p861 = pneg %p855
    %p862 = scmp.eq.s32.totalorder %s86, 1
    %p863 = por %p861, %p862
    %p864 = scmp.ne.s32.totalorder %s856, %s859
    %p865 = scmp.eq.s32.totalorder %s86, 0
    %p866 = por %p864, %p865
    %p867 = scmp.ne.s32.totalorder %s856, %s859
    %p868 = scmp.eq.s32.totalorder %s91, 1
    %p869 = por %p867, %p868
    %p870 = scmp.ne.s32.totalorder %s859, %s860
    %p871 = scmp.eq.s32.totalorder %s91, 0
    %p872 = por %p870, %p871
    %p873 = scmp.ne.s32.totalorder %s859, %s860
    %p874 = scmp.eq.s32.totalorder %s92, 1
    %p875 = por %p873, %p874
    %p877 = scmp.ne.s32.totalorder %s860, %s876
    %p878 = scmp.eq.s32.totalorder %s92, 0
    %p879 = por %p877, %p878
    %s880 = ssub.s32 %s86, %s93
    %p881 = scmp.eq.s32.totalorder %s880, 0
    %s883 = sadd.s32 %s882, 1
    %s884 = scalar_select %p881, %s882, %s883
    %p887 = pneg %p881
    %p888 = scmp.eq.s32.totalorder %s86, 1
    %p889 = por %p887, %p888
    %p890 = scmp.ne.s32.totalorder %s882, %s885
    %p891 = scmp.eq.s32.totalorder %s86, 0
    %p892 = por %p890, %p891
    %p893 = scmp.ne.s32.totalorder %s882, %s885
    %p894 = scmp.eq.s32.totalorder %s91, 1
    %p895 = por %p893, %p894
    %p896 = scmp.ne.s32.totalorder %s885, %s886
    %p897 = scmp.eq.s32.totalorder %s91, 0
    %p898 = por %p896, %p897
    %p899 = scmp.ne.s32.totalorder %s885, %s886
    %p900 = scmp.eq.s32.totalorder %s92, 1
    %p901 = por %p899, %p900
    %p903 = scmp.ne.s32.totalorder %s886, %s902
    %p904 = scmp.eq.s32.totalorder %s92, 0
    %p905 = por %p903, %p904
    %s906 = ssub.s32 %s86, %s93
    %p907 = scmp.eq.s32.totalorder %s906, 0
    %s909 = sadd.s32 %s908, 1
    %s910 = scalar_select %p907, %s908, %s909
    %p913 = pneg %p907
    %p914 = scmp.eq.s32.totalorder %s86, 1
    %p915 = por %p913, %p914
    %p916 = scmp.ne.s32.totalorder %s908, %s911
    %p917 = scmp.eq.s32.totalorder %s86, 0
    %p918 = por %p916, %p917
    %p919 = scmp.ne.s32.totalorder %s908, %s911
    %p920 = scmp.eq.s32.totalorder %s91, 1
    %p921 = por %p919, %p920
    %p922 = scmp.ne.s32.totalorder %s911, %s912
    %p923 = scmp.eq.s32.totalorder %s91, 0
    %p924 = por %p922, %p923
    %p925 = scmp.ne.s32.totalorder %s911, %s912
    %p926 = scmp.eq.s32.totalorder %s92, 1
    %p927 = por %p925, %p926
    %p929 = scmp.ne.s32.totalorder %s912, %s928
    %p930 = scmp.eq.s32.totalorder %s92, 0
    %p931 = por %p929, %p930
    %s932 = ssub.s32 %s86, %s93
    %p933 = scmp.eq.s32.totalorder %s932, 0
    %s935 = sadd.s32 %s934, 1
    %s936 = scalar_select %p933, %s934, %s935
    %p939 = pneg %p933
    %p940 = scmp.eq.s32.totalorder %s86, 1
    %p941 = por %p939, %p940
    %p942 = scmp.ne.s32.totalorder %s934, %s937
    %p943 = scmp.eq.s32.totalorder %s86, 0
    %p944 = por %p942, %p943
    %p945 = scmp.ne.s32.totalorder %s934, %s937
    %p946 = scmp.eq.s32.totalorder %s91, 1
    %p947 = por %p945, %p946
    %p948 = scmp.ne.s32.totalorder %s937, %s938
    %p949 = scmp.eq.s32.totalorder %s91, 0
    %p950 = por %p948, %p949
    %p951 = scmp.ne.s32.totalorder %s937, %s938
    %p952 = scmp.eq.s32.totalorder %s92, 1
    %p953 = por %p951, %p952
    %p955 = scmp.ne.s32.totalorder %s938, %s954
    %p956 = scmp.eq.s32.totalorder %s92, 0
    %p957 = por %p955, %p956
    %s958 = ssub.s32 %s86, %s93
    %p959 = scmp.eq.s32.totalorder %s958, 0
    %s961 = sadd.s32 %s960, 1
    %s962 = scalar_select %p959, %s960, %s961
    %p965 = pneg %p959
    %p966 = scmp.eq.s32.totalorder %s86, 1
    %p967 = por %p965, %p966
    %p968 = scmp.ne.s32.totalorder %s960, %s963
    %p969 = scmp.eq.s32.totalorder %s86, 0
    %p970 = por %p968, %p969
    %p971 = scmp.ne.s32.totalorder %s960, %s963
    %p972 = scmp.eq.s32.totalorder %s91, 1
    %p973 = por %p971, %p972
    %p974 = scmp.ne.s32.totalorder %s963, %s964
    %p975 = scmp.eq.s32.totalorder %s91, 0
    %p976 = por %p974, %p975
    %p977 = scmp.ne.s32.totalorder %s963, %s964
    %p978 = scmp.eq.s32.totalorder %s92, 1
    %p979 = por %p977, %p978
    %p981 = scmp.ne.s32.totalorder %s964, %s980
    %p982 = scmp.eq.s32.totalorder %s92, 0
    %p983 = por %p981, %p982
    %s984 = ssub.s32 %s86, %s93
    %p985 = scmp.eq.s32.totalorder %s984, 0
    %s987 = sadd.s32 %s986, 1
    %s988 = scalar_select %p985, %s986, %s987
    %p991 = pneg %p985
    %p992 = scmp.eq.s32.totalorder %s86, 1
    %p993 = por %p991, %p992
    %p994 = scmp.ne.s32.totalorder %s986, %s989
    %p995 = scmp.eq.s32.totalorder %s86, 0
    %p996 = por %p994, %p995
    %p997 = scmp.ne.s32.totalorder %s986, %s989
    %p998 = scmp.eq.s32.totalorder %s91, 1
    %p999 = por %p997, %p998
    %p1000 = scmp.ne.s32.totalorder %s989, %s990
    %p1001 = scmp.eq.s32.totalorder %s91, 0
    %p1002 = por %p1000, %p1001
    %p1003 = scmp.ne.s32.totalorder %s989, %s990
    %p1004 = scmp.eq.s32.totalorder %s92, 1
    %p1005 = por %p1003, %p1004
    %p1007 = scmp.ne.s32.totalorder %s990, %s1006
    %p1008 = scmp.eq.s32.totalorder %s92, 0
    %p1009 = por %p1007, %p1008
    %s1010 = ssub.s32 %s86, %s93
    %p1011 = scmp.eq.s32.totalorder %s1010, 0
    %s1013 = sadd.s32 %s1012, 1
    %s1014 = scalar_select %p1011, %s1012, %s1013
    %p1017 = pneg %p1011
    %p1018 = scmp.eq.s32.totalorder %s86, 1
    %p1019 = por %p1017, %p1018
    %p1020 = scmp.ne.s32.totalorder %s1012, %s1015
    %p1021 = scmp.eq.s32.totalorder %s86, 0
    %p1022 = por %p1020, %p1021
    %p1023 = scmp.ne.s32.totalorder %s1012, %s1015
    %p1024 = scmp.eq.s32.totalorder %s91, 1
    %p1025 = por %p1023, %p1024
    %p1026 = scmp.ne.s32.totalorder %s1015, %s1016
    %p1027 = scmp.eq.s32.totalorder %s91, 0
    %p1028 = por %p1026, %p1027
    %p1029 = scmp.ne.s32.totalorder %s1015, %s1016
    %p1030 = scmp.eq.s32.totalorder %s92, 1
    %p1031 = por %p1029, %p1030
    %p1033 = scmp.ne.s32.totalorder %s1016, %s1032
    %p1034 = scmp.eq.s32.totalorder %s92, 0
    %p1035 = por %p1033, %p1034
    %s1036 = ssub.s32 %s86, %s93
    %p1037 = scmp.eq.s32.totalorder %s1036, 0
    %s1039 = sadd.s32 %s1038, 1
    %s1040 = scalar_select %p1037, %s1038, %s1039
    %p1043 = pneg %p1037
    %p1044 = scmp.eq.s32.totalorder %s86, 1
    %p1045 = por %p1043, %p1044
    %p1046 = scmp.ne.s32.totalorder %s1038, %s1041
    %p1047 = scmp.eq.s32.totalorder %s86, 0
    %p1048 = por %p1046, %p1047
    %p1049 = scmp.ne.s32.totalorder %s1038, %s1041
    %p1050 = scmp.eq.s32.totalorder %s91, 1
    %p1051 = por %p1049, %p1050
    %p1052 = scmp.ne.s32.totalorder %s1041, %s1042
    %p1053 = scmp.eq.s32.totalorder %s91, 0
    %p1054 = por %p1052, %p1053
    %p1055 = scmp.ne.s32.totalorder %s1041, %s1042
    %p1056 = scmp.eq.s32.totalorder %s92, 1
    %p1057 = por %p1055, %p1056
    %p1059 = scmp.ne.s32.totalorder %s1042, %s1058
    %p1060 = scmp.eq.s32.totalorder %s92, 0
    %p1061 = por %p1059, %p1060
    %s1062 = ssub.s32 %s86, %s93
    %p1063 = scmp.eq.s32.totalorder %s1062, 0
    %s1065 = sadd.s32 %s1064, 1
    %s1066 = scalar_select %p1063, %s1064, %s1065
    %p1069 = pneg %p1063
    %p1070 = scmp.eq.s32.totalorder %s86, 1
    %p1071 = por %p1069, %p1070
    %p1072 = scmp.ne.s32.totalorder %s1064, %s1067
    %p1073 = scmp.eq.s32.totalorder %s86, 0
    %p1074 = por %p1072, %p1073
    %p1075 = scmp.ne.s32.totalorder %s1064, %s1067
    %p1076 = scmp.eq.s32.totalorder %s91, 1
    %p1077 = por %p1075, %p1076
    %p1078 = scmp.ne.s32.totalorder %s1067, %s1068
    %p1079 = scmp.eq.s32.totalorder %s91, 0
    %p1080 = por %p1078, %p1079
    %p1081 = scmp.ne.s32.totalorder %s1067, %s1068
    %p1082 = scmp.eq.s32.totalorder %s92, 1
    %p1083 = por %p1081, %p1082
    %p1085 = scmp.ne.s32.totalorder %s1068, %s1084
    %p1086 = scmp.eq.s32.totalorder %s92, 0
    %p1087 = por %p1085, %p1086
    %s1088 = ssub.s32 %s86, %s93
    %p1089 = scmp.eq.s32.totalorder %s1088, 0
    %s1091 = sadd.s32 %s1090, 1
    %s1092 = scalar_select %p1089, %s1090, %s1091
    %p1095 = pneg %p1089
    %p1096 = scmp.eq.s32.totalorder %s86, 1
    %p1097 = por %p1095, %p1096
    %p1098 = scmp.ne.s32.totalorder %s1090, %s1093
    %p1099 = scmp.eq.s32.totalorder %s86, 0
    %p1100 = por %p1098, %p1099
    %p1101 = scmp.ne.s32.totalorder %s1090, %s1093
    %p1102 = scmp.eq.s32.totalorder %s91, 1
    %p1103 = por %p1101, %p1102
    %p1104 = scmp.ne.s32.totalorder %s1093, %s1094
    %p1105 = scmp.eq.s32.totalorder %s91, 0
    %p1106 = por %p1104, %p1105
    %p1107 = scmp.ne.s32.totalorder %s1093, %s1094
    %p1108 = scmp.eq.s32.totalorder %s92, 1
    %p1109 = por %p1107, %p1108
    %p1111 = scmp.ne.s32.totalorder %s1094, %s1110
    %p1112 = scmp.eq.s32.totalorder %s92, 0
    %p1113 = por %p1111, %p1112
    %p1114 = scmp.le.s32.totalorder 1, %s86
    %p1115 = scmp.lt.s32.totalorder %s86, 3
    %p1116 = pnand %p1114, %p1115
    %p1117 = pneg %p1116
    // Predicated region
    $region9: #{transformer_cs_forward.8} parent=5 // pred_check
      _
    $region10: #{transformer_cs_forward.8} parent=5 // pred_check_branch
      %1119 = sbr.rel (%p1116) target = $region12
    $region11: #{transformer_cs_forward.8} parent=5 // pred_region
      %s1120 = ssub.s32 %s86, 1
      // Predicated region
      $region13: #{transformer_cs_forward.8} parent=11 // pred_check
        %p1121 = pneg %p731
      $region14: #{transformer_cs_forward.8} parent=11 // pred_check_branch
        %1123 = sbr.rel (%p1121) target = $region16
      $region15: #{transformer_cs_forward.8} parent=11 // pred_region
        _
      $region16: #{transformer_cs_forward.8} parent=11 // pred_fallthru
        _
      // Predicated region
      $region17: #{transformer_cs_forward.8} parent=11 // pred_check
        %p1124 = pneg %p752
      $region18: #{transformer_cs_forward.8} parent=11 // pred_check_branch
        %1126 = sbr.rel (%p1124) target = $region20
      $region19: #{transformer_cs_forward.8} parent=11 // pred_region
        _
      $region20: #{transformer_cs_forward.8} parent=11 // pred_fallthru
        _
      // Predicated region
      $region21: #{transformer_cs_forward.8} parent=11 // pred_check
        %p1127 = pneg %p773
      $region22: #{transformer_cs_forward.8} parent=11 // pred_check_branch
        %1129 = sbr.rel (%p1127) target = $region24
      $region23: #{transformer_cs_forward.8} parent=11 // pred_region
        _
      $region24: #{transformer_cs_forward.8} parent=11 // pred_fallthru
        _
      // Predicated region
      $region25: #{transformer_cs_forward.8} parent=11 // pred_check
        %p1130 = pneg %p794
      $region26: #{transformer_cs_forward.8} parent=11 // pred_check_branch
        %1132 = sbr.rel (%p1130) target = $region28
      $region27: #{transformer_cs_forward.8} parent=11 // pred_region
        _
      $region28: #{transformer_cs_forward.8} parent=11 // pred_fallthru
        _
    $region12: #{transformer_cs_forward.8} parent=5 // pred_fallthru
      _
    %p1133 = scmp.lt.s32.totalorder %s86, 2
    // Predicated region
    $region29: #{transformer_cs_forward.8} parent=5 // pred_check
      %p1134 = pneg %p1133
    $region30: #{transformer_cs_forward.8} parent=5 // pred_check_branch
      %1136 = sbr.rel (%p1134) target = $region32
    $region31: #{transformer_cs_forward.8} parent=5 // pred_region
      // Predicated region
      $region33: #{transformer_cs_forward.8} parent=31 // pred_check
        %p1137 = pneg %p106
      $region34: #{transformer_cs_forward.8} parent=31 // pred_check_branch
        %1139 = sbr.rel (%p1137) target = $region36
      $region35: #{transformer_cs_forward.8} parent=31 // pred_region
        %p1140 = scmp.lt.s32.totalorder %s86, 1
        %s1141 = scalar_select %p1140, %s86, 1
        %s1142 = smul.addr %s1141, 24
        %s1143 = smul.addr %s1142, 8
        %s1144 = scalar_lea.vmem %s1, %s1143
      $region36: #{transformer_cs_forward.8} parent=31 // pred_fallthru
        _
      // Predicated region
      $region37: #{transformer_cs_forward.8} parent=31 // pred_check
        %p1145 = pneg %p132
      $region38: #{transformer_cs_forward.8} parent=31 // pred_check_branch
        %1147 = sbr.rel (%p1145) target = $region40
      $region39: #{transformer_cs_forward.8} parent=31 // pred_region
        %p1148 = scmp.lt.s32.totalorder %s86, 1
        %s1149 = scalar_select %p1148, %s86, 1
        %s1150 = smul.addr %s1149, 24
        %s1151 = smul.addr %s1150, 8
        %s1152 = scalar_lea.vmem %s3, %s1151
      $region40: #{transformer_cs_forward.8} parent=31 // pred_fallthru
        _
      // Predicated region
      $region41: #{transformer_cs_forward.8} parent=31 // pred_check
        %p1153 = pneg %p158
      $region42: #{transformer_cs_forward.8} parent=31 // pred_check_branch
        %1155 = sbr.rel (%p1153) target = $region44
      $region43: #{transformer_cs_forward.8} parent=31 // pred_region
        %p1156 = scmp.lt.s32.totalorder %s86, 1
        %s1157 = scalar_select %p1156, %s86, 1
        %s1158 = smul.addr %s1157, 24
        %s1159 = smul.addr %s1158, 8
        %s1160 = scalar_lea.vmem %s5, %s1159
      $region44: #{transformer_cs_forward.8} parent=31 // pred_fallthru
        _
      // Predicated region
      $region45: #{transformer_cs_forward.8} parent=31 // pred_check
        %p1161 = pneg %p184
      $region46: #{transformer_cs_forward.8} parent=31 // pred_check_branch
        %1163 = sbr.rel (%p1161) target = $region48
      $region47: #{transformer_cs_forward.8} parent=31 // pred_region
        %p1164 = scmp.lt.s32.totalorder %s86, 1
        %s1165 = scalar_select %p1164, %s86, 1
        %s1166 = smul.addr %s1165, 6
        %s1167 = smul.addr %s1166, 8
        %s1168 = scalar_lea.vmem %s7, %s1167
      $region48: #{transformer_cs_forward.8} parent=31 // pred_fallthru
        _
      // Predicated region
      $region49: #{transformer_cs_forward.8} parent=31 // pred_check
        %p1169 = pneg %p210
      $region50: #{transformer_cs_forward.8} parent=31 // pred_check_branch
        %1171 = sbr.rel (%p1169) target = $region52
      $region51: #{transformer_cs_forward.8} parent=31 // pred_region
        %p1172 = scmp.lt.s32.totalorder %s86, 1
        %s1173 = scalar_select %p1172, %s86, 1
        %s1174 = smul.addr %s1173, 24
        %s1175 = smul.addr %s1174, 8
        %s1176 = scalar_lea.vmem %s9, %s1175
      $region52: #{transformer_cs_forward.8} parent=31 // pred_fallthru
        _
      // Predicated region
      $region53: #{transformer_cs_forward.8} parent=31 // pred_check
        %p1177 = pneg %p236
      $region54: #{transformer_cs_forward.8} parent=31 // pred_check_branch
        %1179 = sbr.rel (%p1177) target = $region56
      $region55: #{transformer_cs_forward.8} parent=31 // pred_region
        %p1180 = scmp.lt.s32.totalorder %s86, 1
        %s1181 = scalar_select %p1180, %s86, 1
        %s1182 = smul.addr %s1181, 24
        %s1183 = smul.addr %s1182, 8
        %s1184 = scalar_lea.vmem %s11, %s1183
      $region56: #{transformer_cs_forward.8} parent=31 // pred_fallthru
        _
      // Predicated region
      $region57: #{transformer_cs_forward.8} parent=31 // pred_check
        %p1185 = pneg %p262
      $region58: #{transformer_cs_forward.8} parent=31 // pred_check_branch
        %1187 = sbr.rel (%p1185) target = $region60
      $region59: #{transformer_cs_forward.8} parent=31 // pred_region
        %p1188 = scmp.lt.s32.totalorder %s86, 1
        %s1189 = scalar_select %p1188, %s86, 1
        %s1190 = smul.addr %s1189, 2
        %s1191 = smul.addr %s1190, 8
        %s1192 = scalar_lea.vmem %s13, %s1191
      $region60: #{transformer_cs_forward.8} parent=31 // pred_fallthru
        _
      // Predicated region
      $region61: #{transformer_cs_forward.8} parent=31 // pred_check
        %p1193 = pneg %p288
      $region62: #{transformer_cs_forward.8} parent=31 // pred_check_branch
        %1195 = sbr.rel (%p1193) target = $region64
      $region63: #{transformer_cs_forward.8} parent=31 // pred_region
        %p1196 = scmp.lt.s32.totalorder %s86, 1
        %s1197 = scalar_select %p1196, %s86, 1
        %s1198 = smul.addr %s1197, 24
        %s1199 = smul.addr %s1198, 8
        %s1200 = scalar_lea.vmem %s15, %s1199
      $region64: #{transformer_cs_forward.8} parent=31 // pred_fallthru
        _
      // Predicated region
      $region65: #{transformer_cs_forward.8} parent=31 // pred_check
        %p1201 = pneg %p314
      $region66: #{transformer_cs_forward.8} parent=31 // pred_check_branch
        %1203 = sbr.rel (%p1201) target = $region68
      $region67: #{transformer_cs_forward.8} parent=31 // pred_region
        %p1204 = scmp.lt.s32.totalorder %s86, 1
        %s1205 = scalar_select %p1204, %s86, 1
        %s1206 = smul.addr %s1205, 24
        %s1207 = smul.addr %s1206, 8
        %s1208 = scalar_lea.vmem %s17, %s1207
      $region68: #{transformer_cs_forward.8} parent=31 // pred_fallthru
        _
      // Predicated region
      $region69: #{transformer_cs_forward.8} parent=31 // pred_check
        %p1209 = pneg %p340
      $region70: #{transformer_cs_forward.8} parent=31 // pred_check_branch
        %1211 = sbr.rel (%p1209) target = $region72
      $region71: #{transformer_cs_forward.8} parent=31 // pred_region
        %p1212 = scmp.lt.s32.totalorder %s86, 1
        %s1213 = scalar_select %p1212, %s86, 1
        %s1214 = smul.addr %s1213, 2
        %s1215 = smul.addr %s1214, 4
        %s1216 = scalar_lea.vmem %s19, %s1215
      $region72: #{transformer_cs_forward.8} parent=31 // pred_fallthru
        _
      // Predicated region
      $region73: #{transformer_cs_forward.8} parent=31 // pred_check
        %p1217 = pneg %p366
      $region74: #{transformer_cs_forward.8} parent=31 // pred_check_branch
        %1219 = sbr.rel (%p1217) target = $region76
      $region75: #{transformer_cs_forward.8} parent=31 // pred_region
        %p1220 = scmp.lt.s32.totalorder %s86, 1
        %s1221 = scalar_select %p1220, %s86, 1
        %s1222 = smul.addr %s1221, 48
        %s1223 = smul.addr %s1222, 8
        %s1224 = scalar_lea.vmem %s21, %s1223
      $region76: #{transformer_cs_forward.8} parent=31 // pred_fallthru
        _
      // Predicated region
      $region77: #{transformer_cs_forward.8} parent=31 // pred_check
        %p1225 = pneg %p392
      $region78: #{transformer_cs_forward.8} parent=31 // pred_check_branch
        %1227 = sbr.rel (%p1225) target = $region80
      $region79: #{transformer_cs_forward.8} parent=31 // pred_region
        %p1228 = scmp.lt.s32.totalorder %s86, 1
        %s1229 = scalar_select %p1228, %s86, 1
        %s1230 = smul.addr %s1229, 48
        %s1231 = smul.addr %s1230, 8
        %s1232 = scalar_lea.vmem %s23, %s1231
      $region80: #{transformer_cs_forward.8} parent=31 // pred_fallthru
        _
      // Predicated region
      $region81: #{transformer_cs_forward.8} parent=31 // pred_check
        %p1233 = pneg %p418
      $region82: #{transformer_cs_forward.8} parent=31 // pred_check_branch
        %1235 = sbr.rel (%p1233) target = $region84
      $region83: #{transformer_cs_forward.8} parent=31 // pred_region
        %p1236 = scmp.lt.s32.totalorder %s86, 1
        %s1237 = scalar_select %p1236, %s86, 1
        %s1238 = smul.addr %s1237, 24
        %s1239 = smul.addr %s1238, 8
        %s1240 = scalar_lea.vmem %s25, %s1239
      $region84: #{transformer_cs_forward.8} parent=31 // pred_fallthru
        _
      // Predicated region
      $region85: #{transformer_cs_forward.8} parent=31 // pred_check
        %p1241 = pneg %p444
      $region86: #{transformer_cs_forward.8} parent=31 // pred_check_branch
        %1243 = sbr.rel (%p1241) target = $region88
      $region87: #{transformer_cs_forward.8} parent=31 // pred_region
        %p1244 = scmp.lt.s32.totalorder %s86, 1
        %s1245 = scalar_select %p1244, %s86, 1
        %s1246 = smul.addr %s1245, 24
        %s1247 = smul.addr %s1246, 8
        %s1248 = scalar_lea.vmem %s27, %s1247
      $region88: #{transformer_cs_forward.8} parent=31 // pred_fallthru
        _
      // Predicated region
      $region89: #{transformer_cs_forward.8} parent=31 // pred_check
        %p1249 = pneg %p470
      $region90: #{transformer_cs_forward.8} parent=31 // pred_check_branch
        %1251 = sbr.rel (%p1249) target = $region92
      $region91: #{transformer_cs_forward.8} parent=31 // pred_region
        %p1252 = scmp.lt.s32.totalorder %s86, 1
        %s1253 = scalar_select %p1252, %s86, 1
        %s1254 = smul.addr %s1253, 24
        %s1255 = smul.addr %s1254, 8
        %s1256 = scalar_lea.vmem %s29, %s1255
      $region92: #{transformer_cs_forward.8} parent=31 // pred_fallthru
        _
      // Predicated region
      $region93: #{transformer_cs_forward.8} parent=31 // pred_check
        %p1257 = pneg %p496
      $region94: #{transformer_cs_forward.8} parent=31 // pred_check_branch
        %1259 = sbr.rel (%p1257) target = $region96
      $region95: #{transformer_cs_forward.8} parent=31 // pred_region
        %p1260 = scmp.lt.s32.totalorder %s86, 1
        %s1261 = scalar_select %p1260, %s86, 1
        %s1262 = smul.addr %s1261, 6
        %s1263 = smul.addr %s1262, 8
        %s1264 = scalar_lea.vmem %s31, %s1263
      $region96: #{transformer_cs_forward.8} parent=31 // pred_fallthru
        _
      // Predicated region
      $region97: #{transformer_cs_forward.8} parent=31 // pred_check
        %p1265 = pneg %p522
      $region98: #{transformer_cs_forward.8} parent=31 // pred_check_branch
        %1267 = sbr.rel (%p1265) target = $region100
      $region99: #{transformer_cs_forward.8} parent=31 // pred_region
        %p1268 = scmp.lt.s32.totalorder %s86, 1
        %s1269 = scalar_select %p1268, %s86, 1
        %s1270 = smul.addr %s1269, 24
        %s1271 = smul.addr %s1270, 8
        %s1272 = scalar_lea.vmem %s33, %s1271
      $region100: #{transformer_cs_forward.8} parent=31 // pred_fallthru
        _
      // Predicated region
      $region101: #{transformer_cs_forward.8} parent=31 // pred_check
        %p1273 = pneg %p548
      $region102: #{transformer_cs_forward.8} parent=31 // pred_check_branch
        %1275 = sbr.rel (%p1273) target = $region104
      $region103: #{transformer_cs_forward.8} parent=31 // pred_region
        %p1276 = scmp.lt.s32.totalorder %s86, 1
        %s1277 = scalar_select %p1276, %s86, 1
        %s1278 = smul.addr %s1277, 24
        %s1279 = smul.addr %s1278, 8
        %s1280 = scalar_lea.vmem %s35, %s1279
      $region104: #{transformer_cs_forward.8} parent=31 // pred_fallthru
        _
      // Predicated region
      $region105: #{transformer_cs_forward.8} parent=31 // pred_check
        %p1281 = pneg %p574
      $region106: #{transformer_cs_forward.8} parent=31 // pred_check_branch
        %1283 = sbr.rel (%p1281) target = $region108
      $region107: #{transformer_cs_forward.8} parent=31 // pred_region
        %p1284 = scmp.lt.s32.totalorder %s86, 1
        %s1285 = scalar_select %p1284, %s86, 1
        %s1286 = smul.addr %s1285, 2
        %s1287 = smul.addr %s1286, 8
        %s1288 = scalar_lea.vmem %s37, %s1287
      $region108: #{transformer_cs_forward.8} parent=31 // pred_fallthru
        _
      // Predicated region
      $region109: #{transformer_cs_forward.8} parent=31 // pred_check
        %p1289 = pneg %p600
      $region110: #{transformer_cs_forward.8} parent=31 // pred_check_branch
        %1291 = sbr.rel (%p1289) target = $region112
      $region111: #{transformer_cs_forward.8} parent=31 // pred_region
        %p1292 = scmp.lt.s32.totalorder %s86, 1
        %s1293 = scalar_select %p1292, %s86, 1
        %s1294 = smul.addr %s1293, 24
        %s1295 = smul.addr %s1294, 8
        %s1296 = scalar_lea.vmem %s39, %s1295
      $region112: #{transformer_cs_forward.8} parent=31 // pred_fallthru
        _
      // Predicated region
      $region113: #{transformer_cs_forward.8} parent=31 // pred_check
        %p1297 = pneg %p626
      $region114: #{transformer_cs_forward.8} parent=31 // pred_check_branch
        %1299 = sbr.rel (%p1297) target = $region116
      $region115: #{transformer_cs_forward.8} parent=31 // pred_region
        %p1300 = scmp.lt.s32.totalorder %s86, 1
        %s1301 = scalar_select %p1300, %s86, 1
        %s1302 = smul.addr %s1301, 24
        %s1303 = smul.addr %s1302, 8
        %s1304 = scalar_lea.vmem %s41, %s1303
      $region116: #{transformer_cs_forward.8} parent=31 // pred_fallthru
        _
      // Predicated region
      $region117: #{transformer_cs_forward.8} parent=31 // pred_check
        %p1305 = pneg %p652
      $region118: #{transformer_cs_forward.8} parent=31 // pred_check_branch
        %1307 = sbr.rel (%p1305) target = $region120
      $region119: #{transformer_cs_forward.8} parent=31 // pred_region
        %p1308 = scmp.lt.s32.totalorder %s86, 1
        %s1309 = scalar_select %p1308, %s86, 1
        %s1310 = smul.addr %s1309, 2
        %s1311 = smul.addr %s1310, 4
        %s1312 = scalar_lea.vmem %s43, %s1311
      $region120: #{transformer_cs_forward.8} parent=31 // pred_fallthru
        _
      // Predicated region
      $region121: #{transformer_cs_forward.8} parent=31 // pred_check
        %p1313 = pneg %p678
      $region122: #{transformer_cs_forward.8} parent=31 // pred_check_branch
        %1315 = sbr.rel (%p1313) target = $region124
      $region123: #{transformer_cs_forward.8} parent=31 // pred_region
        %p1316 = scmp.lt.s32.totalorder %s86, 1
        %s1317 = scalar_select %p1316, %s86, 1
        %s1318 = smul.addr %s1317, 48
        %s1319 = smul.addr %s1318, 8
        %s1320 = scalar_lea.vmem %s45, %s1319
      $region124: #{transformer_cs_forward.8} parent=31 // pred_fallthru
        _
      // Predicated region
      $region125: #{transformer_cs_forward.8} parent=31 // pred_check
        %p1321 = pneg %p704
      $region126: #{transformer_cs_forward.8} parent=31 // pred_check_branch
        %1323 = sbr.rel (%p1321) target = $region128
      $region127: #{transformer_cs_forward.8} parent=31 // pred_region
        %p1324 = scmp.lt.s32.totalorder %s86, 1
        %s1325 = scalar_select %p1324, %s86, 1
        %s1326 = smul.addr %s1325, 48
        %s1327 = smul.addr %s1326, 8
        %s1328 = scalar_lea.vmem %s47, %s1327
      $region128: #{transformer_cs_forward.8} parent=31 // pred_fallthru
        _
      // Predicated region
      $region129: #{transformer_cs_forward.8} parent=31 // pred_check
        %p1329 = pneg %p814
      $region130: #{transformer_cs_forward.8} parent=31 // pred_check_branch
        %1331 = sbr.rel (%p1329) target = $region132
      $region131: #{transformer_cs_forward.8} parent=31 // pred_region
        %p1332 = scmp.lt.s32.totalorder %s86, 1
        %s1333 = scalar_select %p1332, %s86, 1
        %s1334 = smul.addr %s1333, 2
        %s1335 = scalar_lea.vmem %s57, %s1334
      $region132: #{transformer_cs_forward.8} parent=31 // pred_fallthru
        _
      // Predicated region
      $region133: #{transformer_cs_forward.8} parent=31 // pred_check
        %p1336 = pneg %p840
      $region134: #{transformer_cs_forward.8} parent=31 // pred_check_branch
        %1338 = sbr.rel (%p1336) target = $region136
      $region135: #{transformer_cs_forward.8} parent=31 // pred_region
        %p1339 = scmp.lt.s32.totalorder %s86, 1
        %s1340 = scalar_select %p1339, %s86, 1
        %s1341 = smul.addr %s1340, 2
        %s1342 = scalar_lea.vmem %s59, %s1341
      $region136: #{transformer_cs_forward.8} parent=31 // pred_fallthru
        _
      // Predicated region
      $region137: #{transformer_cs_forward.8} parent=31 // pred_check
        %p1343 = pneg %p866
      $region138: #{transformer_cs_forward.8} parent=31 // pred_check_branch
        %1345 = sbr.rel (%p1343) target = $region140
      $region139: #{transformer_cs_forward.8} parent=31 // pred_region
        %p1346 = scmp.lt.s32.totalorder %s86, 1
        %s1347 = scalar_select %p1346, %s86, 1
        %s1348 = smul.addr %s1347, 2
        %s1349 = scalar_lea.vmem %s61, %s1348
      $region140: #{transformer_cs_forward.8} parent=31 // pred_fallthru
        _
      // Predicated region
      $region141: #{transformer_cs_forward.8} parent=31 // pred_check
        %p1350 = pneg %p892
      $region142: #{transformer_cs_forward.8} parent=31 // pred_check_branch
        %1352 = sbr.rel (%p1350) target = $region144
      $region143: #{transformer_cs_forward.8} parent=31 // pred_region
        %p1353 = scmp.lt.s32.totalorder %s86, 1
        %s1354 = scalar_select %p1353, %s86, 1
        %s1355 = smul.addr %s1354, 2
        %s1356 = scalar_lea.vmem %s63, %s1355
      $region144: #{transformer_cs_forward.8} parent=31 // pred_fallthru
        _
    $region32: #{transformer_cs_forward.8} parent=5 // pred_fallthru
      _
    %p1357 = scmp.le.s32.totalorder 1, %s86
    %p1358 = scmp.lt.s32.totalorder %s86, 3
    %p1359 = pnand %p1357, %p1358
    %p1360 = pneg %p1359
    // Predicated region
    $region145: #{transformer_cs_forward.8} parent=5 // pred_check
      _
    $region146: #{transformer_cs_forward.8} parent=5 // pred_check_branch
      %1362 = sbr.rel (%p1359) target = $region148
    $region147: #{transformer_cs_forward.8} parent=5 // pred_region
      %s1363 = ssub.s32 %s86, 1
      %p1364 = scmp.lt.s32.totalorder %s91, 1
      %s1365 = scalar_select %p1364, %s91, 1
      %s1366 = smul.addr %s1365, 24
      %s1367 = smul.addr %s1366, 8
      %s1368 = scalar_lea.vmem %s1, %s1367
      %p1369 = pneg %p112
      %p1370 = pneg %p109
      %p1371 = scmp.lt.s32.totalorder %s91, 1
      %s1372 = scalar_select %p1371, %s91, 1
      %s1373 = smul.addr %s1372, 24
      %s1374 = smul.addr %s1373, 8
      %s1375 = scalar_lea.vmem %s3, %s1374
      %p1376 = pneg %p138
      %p1377 = pneg %p135
      %p1378 = scmp.lt.s32.totalorder %s91, 1
      %s1379 = scalar_select %p1378, %s91, 1
      %s1380 = smul.addr %s1379, 24
      %s1381 = smul.addr %s1380, 8
      %s1382 = scalar_lea.vmem %s5, %s1381
      %p1383 = pneg %p164
      %p1384 = pneg %p161
      %p1385 = scmp.lt.s32.totalorder %s91, 1
      %s1386 = scalar_select %p1385, %s91, 1
      %s1387 = smul.addr %s1386, 6
      %s1388 = smul.addr %s1387, 8
      %s1389 = scalar_lea.vmem %s7, %s1388
      %p1390 = pneg %p190
      %p1391 = pneg %p187
      %p1392 = scmp.lt.s32.totalorder %s91, 1
      %s1393 = scalar_select %p1392, %s91, 1
      %s1394 = smul.addr %s1393, 24
      %s1395 = smul.addr %s1394, 8
      %s1396 = scalar_lea.vmem %s9, %s1395
      %p1397 = pneg %p216
      %p1398 = pneg %p213
      %p1399 = scmp.lt.s32.totalorder %s91, 1
      %s1400 = scalar_select %p1399, %s91, 1
      %s1401 = smul.addr %s1400, 24
      %s1402 = smul.addr %s1401, 8
      %s1403 = scalar_lea.vmem %s11, %s1402
      %p1404 = pneg %p242
      %p1405 = pneg %p239
      %p1406 = scmp.lt.s32.totalorder %s91, 1
      %s1407 = scalar_select %p1406, %s91, 1
      %s1408 = smul.addr %s1407, 2
      %s1409 = smul.addr %s1408, 8
      %s1410 = scalar_lea.vmem %s13, %s1409
      %p1411 = pneg %p268
      %p1412 = pneg %p265
      %p1413 = scmp.lt.s32.totalorder %s91, 1
      %s1414 = scalar_select %p1413, %s91, 1
      %s1415 = smul.addr %s1414, 24
      %s1416 = smul.addr %s1415, 8
      %s1417 = scalar_lea.vmem %s15, %s1416
      %p1418 = pneg %p294
      %p1419 = pneg %p291
      %p1420 = scmp.lt.s32.totalorder %s91, 1
      %s1421 = scalar_select %p1420, %s91, 1
      %s1422 = smul.addr %s1421, 24
      %s1423 = smul.addr %s1422, 8
      %s1424 = scalar_lea.vmem %s17, %s1423
      %p1425 = pneg %p320
      %p1426 = pneg %p317
      %p1427 = scmp.lt.s32.totalorder %s91, 1
      %s1428 = scalar_select %p1427, %s91, 1
      %s1429 = smul.addr %s1428, 2
      %s1430 = smul.addr %s1429, 4
      %s1431 = scalar_lea.vmem %s19, %s1430
      %p1432 = pneg %p346
      %p1433 = pneg %p343
      %p1434 = scmp.lt.s32.totalorder %s91, 1
      %s1435 = scalar_select %p1434, %s91, 1
      %s1436 = smul.addr %s1435, 48
      %s1437 = smul.addr %s1436, 8
      %s1438 = scalar_lea.vmem %s21, %s1437
      %p1439 = pneg %p372
      %p1440 = pneg %p369
      %p1441 = scmp.lt.s32.totalorder %s91, 1
      %s1442 = scalar_select %p1441, %s91, 1
      %s1443 = smul.addr %s1442, 48
      %s1444 = smul.addr %s1443, 8
      %s1445 = scalar_lea.vmem %s23, %s1444
      %p1446 = pneg %p398
      %p1447 = pneg %p395
      %p1448 = scmp.lt.s32.totalorder %s91, 1
      %s1449 = scalar_select %p1448, %s91, 1
      %s1450 = smul.addr %s1449, 24
      %s1451 = smul.addr %s1450, 8
      %s1452 = scalar_lea.vmem %s25, %s1451
      %p1453 = pneg %p424
      %p1454 = pneg %p421
      %p1455 = scmp.lt.s32.totalorder %s91, 1
      %s1456 = scalar_select %p1455, %s91, 1
      %s1457 = smul.addr %s1456, 24
      %s1458 = smul.addr %s1457, 8
      %s1459 = scalar_lea.vmem %s27, %s1458
      %p1460 = pneg %p450
      %p1461 = pneg %p447
      %p1462 = scmp.lt.s32.totalorder %s91, 1
      %s1463 = scalar_select %p1462, %s91, 1
      %s1464 = smul.addr %s1463, 24
      %s1465 = smul.addr %s1464, 8
      %s1466 = scalar_lea.vmem %s29, %s1465
      %p1467 = pneg %p476
      %p1468 = pneg %p473
      %p1469 = scmp.lt.s32.totalorder %s91, 1
      %s1470 = scalar_select %p1469, %s91, 1
      %s1471 = smul.addr %s1470, 6
      %s1472 = smul.addr %s1471, 8
      %s1473 = scalar_lea.vmem %s31, %s1472
      %p1474 = pneg %p502
      %p1475 = pneg %p499
      %p1476 = scmp.lt.s32.totalorder %s91, 1
      %s1477 = scalar_select %p1476, %s91, 1
      %s1478 = smul.addr %s1477, 24
      %s1479 = smul.addr %s1478, 8
      %s1480 = scalar_lea.vmem %s33, %s1479
      %p1481 = pneg %p528
      %p1482 = pneg %p525
      %p1483 = scmp.lt.s32.totalorder %s91, 1
      %s1484 = scalar_select %p1483, %s91, 1
      %s1485 = smul.addr %s1484, 24
      %s1486 = smul.addr %s1485, 8
      %s1487 = scalar_lea.vmem %s35, %s1486
      %p1488 = pneg %p554
      %p1489 = pneg %p551
      %p1490 = scmp.lt.s32.totalorder %s91, 1
      %s1491 = scalar_select %p1490, %s91, 1
      %s1492 = smul.addr %s1491, 2
      %s1493 = smul.addr %s1492, 8
      %s1494 = scalar_lea.vmem %s37, %s1493
      %p1495 = pneg %p580
      %p1496 = pneg %p577
      %p1497 = scmp.lt.s32.totalorder %s91, 1
      %s1498 = scalar_select %p1497, %s91, 1
      %s1499 = smul.addr %s1498, 24
      %s1500 = smul.addr %s1499, 8
      %s1501 = scalar_lea.vmem %s39, %s1500
      %p1502 = pneg %p606
      %p1503 = pneg %p603
      %p1504 = scmp.lt.s32.totalorder %s91, 1
      %s1505 = scalar_select %p1504, %s91, 1
      %s1506 = smul.addr %s1505, 24
      %s1507 = smul.addr %s1506, 8
      %s1508 = scalar_lea.vmem %s41, %s1507
      %p1509 = pneg %p632
      %p1510 = pneg %p629
      %p1511 = scmp.lt.s32.totalorder %s91, 1
      %s1512 = scalar_select %p1511, %s91, 1
      %s1513 = smul.addr %s1512, 2
      %s1514 = smul.addr %s1513, 4
      %s1515 = scalar_lea.vmem %s43, %s1514
      %p1516 = pneg %p658
      %p1517 = pneg %p655
      %p1518 = scmp.lt.s32.totalorder %s91, 1
      %s1519 = scalar_select %p1518, %s91, 1
      %s1520 = smul.addr %s1519, 48
      %s1521 = smul.addr %s1520, 8
      %s1522 = scalar_lea.vmem %s45, %s1521
      %p1523 = pneg %p684
      %p1524 = pneg %p681
      %p1525 = scmp.lt.s32.totalorder %s91, 1
      %s1526 = scalar_select %p1525, %s91, 1
      %s1527 = smul.addr %s1526, 48
      %s1528 = smul.addr %s1527, 8
      %s1529 = scalar_lea.vmem %s47, %s1528
      %p1530 = pneg %p710
      %p1531 = pneg %p707
      %p1532 = pneg %p731
      %p1533 = pneg %p728
      %p1534 = pneg %p752
      %p1535 = pneg %p749
      %p1536 = pneg %p773
      %p1537 = pneg %p770
      %p1538 = pneg %p794
      %p1539 = pneg %p791
      %p1540 = scmp.lt.s32.totalorder %s91, 1
      %s1541 = scalar_select %p1540, %s91, 1
      %s1542 = smul.addr %s1541, 2
      %s1543 = scalar_lea.vmem %s57, %s1542
      %p1544 = pneg %p820
      %p1545 = pneg %p817
      %p1546 = scmp.lt.s32.totalorder %s91, 1
      %s1547 = scalar_select %p1546, %s91, 1
      %s1548 = smul.addr %s1547, 2
      %s1549 = scalar_lea.vmem %s59, %s1548
      %p1550 = pneg %p846
      %p1551 = pneg %p843
      %p1552 = scmp.lt.s32.totalorder %s91, 1
      %s1553 = scalar_select %p1552, %s91, 1
      %s1554 = smul.addr %s1553, 2
      %s1555 = scalar_lea.vmem %s61, %s1554
      %p1556 = pneg %p872
      %p1557 = pneg %p869
      %p1558 = scmp.lt.s32.totalorder %s91, 1
      %s1559 = scalar_select %p1558, %s91, 1
      %s1560 = smul.addr %s1559, 2
      %s1561 = scalar_lea.vmem %s63, %s1560
      %p1562 = pneg %p898
      %p1563 = pneg %p895
      %p1564 = pneg %p924
      %p1565 = pneg %p921
      %p1566 = scmp.lt.s32.totalorder %s91, 1
      %s1567 = scalar_select %p1566, %s91, 1
      %s1568 = smul.addr %s1567, 24
      %s1569 = smul.addr %s1568, 8
      %s1570 = scalar_lea.vmem %s65, %s1569
      %p1571 = pneg %p950
      %p1572 = pneg %p947
      %p1573 = scmp.lt.s32.totalorder %s91, 1
      %s1574 = scalar_select %p1573, %s91, 1
      %s1575 = smul.addr %s1574, 6
      %s1576 = smul.addr %s1575, 8
      %s1577 = scalar_lea.vmem %s67, %s1576
      %p1578 = pneg %p976
      %p1579 = pneg %p973
      %p1580 = scmp.lt.s32.totalorder %s91, 1
      %s1581 = scalar_select %p1580, %s91, 1
      %s1582 = smul.addr %s1581, 2
      %s1583 = smul.addr %s1582, 8
      %s1584 = scalar_lea.vmem %s69, %s1583
      %p1585 = pneg %p1002
      %p1586 = pneg %p999
      %p1587 = scmp.lt.s32.totalorder %s91, 1
      %s1588 = scalar_select %p1587, %s91, 1
      %s1589 = smul.addr %s1588, 2
      %s1590 = smul.addr %s1589, 4
      %s1591 = scalar_lea.vmem %s71, %s1590
      %p1592 = pneg %p1028
      %p1593 = pneg %p1025
      %p1594 = scmp.lt.s32.totalorder %s91, 1
      %s1595 = scalar_select %p1594, %s91, 1
      %s1596 = smul.addr %s1595, 24
      %s1597 = smul.addr %s1596, 8
      %s1598 = scalar_lea.vmem %s73, %s1597
      %p1599 = pneg %p1054
      %p1600 = pneg %p1051
      %p1601 = scmp.lt.s32.totalorder %s91, 1
      %s1602 = scalar_select %p1601, %s91, 1
      %s1603 = smul.addr %s1602, 6
      %s1604 = smul.addr %s1603, 8
      %s1605 = scalar_lea.vmem %s75, %s1604
      %p1606 = pneg %p1080
      %p1607 = pneg %p1077
      %p1608 = scmp.lt.s32.totalorder %s91, 1
      %s1609 = scalar_select %p1608, %s91, 1
      %s1610 = smul.addr %s1609, 2
      %s1611 = smul.addr %s1610, 8
      %s1612 = scalar_lea.vmem %s77, %s1611
      %p1613 = pneg %p1106
      %p1614 = pneg %p1103
      %p1615 = scmp.lt.s32.totalorder %s91, 1
      %s1616 = scalar_select %p1615, %s91, 1
      %s1617 = smul.addr %s1616, 2
      %s1618 = smul.addr %s1617, 4
      %s1619 = scalar_lea.vmem %s79, %s1618
      %p1620 = scmp.lt.s32.totalorder %s91, 1
      %s1621 = scalar_select %p1620, %s91, 1
      %s1622 = smul.addr %s1621, 24
      %s1623 = smul.addr %s1622, 8
      %s1624 = scalar_lea.vmem %s1, %s1623
      %p1625 = scmp.lt.s32.totalorder %s91, 1
      %s1626 = scalar_select %p1625, %s91, 1
      %s1627 = smul.addr %s1626, 24
      %s1628 = smul.addr %s1627, 8
      %s1629 = scalar_lea.vmem %s3, %s1628
      %p1630 = scmp.lt.s32.totalorder %s91, 1
      %s1631 = scalar_select %p1630, %s91, 1
      %s1632 = smul.addr %s1631, 24
      %s1633 = smul.addr %s1632, 8
      %s1634 = scalar_lea.vmem %s5, %s1633
      %p1635 = scmp.lt.s32.totalorder %s91, 1
      %s1636 = scalar_select %p1635, %s91, 1
      %s1637 = smul.addr %s1636, 6
      %s1638 = smul.addr %s1637, 8
      %s1639 = scalar_lea.vmem %s7, %s1638
      %p1640 = scmp.lt.s32.totalorder %s91, 1
      %s1641 = scalar_select %p1640, %s91, 1
      %s1642 = smul.addr %s1641, 24
      %s1643 = smul.addr %s1642, 8
      %s1644 = scalar_lea.vmem %s9, %s1643
      %p1645 = scmp.lt.s32.totalorder %s91, 1
      %s1646 = scalar_select %p1645, %s91, 1
      %s1647 = smul.addr %s1646, 24
      %s1648 = smul.addr %s1647, 8
      %s1649 = scalar_lea.vmem %s11, %s1648
      %p1650 = scmp.lt.s32.totalorder %s91, 1
      %s1651 = scalar_select %p1650, %s91, 1
      %s1652 = smul.addr %s1651, 2
      %s1653 = smul.addr %s1652, 8
      %s1654 = scalar_lea.vmem %s13, %s1653
      %p1655 = scmp.lt.s32.totalorder %s91, 1
      %s1656 = scalar_select %p1655, %s91, 1
      %s1657 = smul.addr %s1656, 24
      %s1658 = smul.addr %s1657, 8
      %s1659 = scalar_lea.vmem %s15, %s1658
      %p1660 = scmp.lt.s32.totalorder %s91, 1
      %s1661 = scalar_select %p1660, %s91, 1
      %s1662 = smul.addr %s1661, 24
      %s1663 = smul.addr %s1662, 8
      %s1664 = scalar_lea.vmem %s17, %s1663
      %p1665 = scmp.lt.s32.totalorder %s91, 1
      %s1666 = scalar_select %p1665, %s91, 1
      %s1667 = smul.addr %s1666, 2
      %s1668 = smul.addr %s1667, 4
      %s1669 = scalar_lea.vmem %s19, %s1668
      %p1670 = scmp.lt.s32.totalorder %s91, 1
      %s1671 = scalar_select %p1670, %s91, 1
      %s1672 = smul.addr %s1671, 48
      %s1673 = smul.addr %s1672, 8
      %s1674 = scalar_lea.vmem %s21, %s1673
      %p1675 = scmp.lt.s32.totalorder %s91, 1
      %s1676 = scalar_select %p1675, %s91, 1
      %s1677 = smul.addr %s1676, 48
      %s1678 = smul.addr %s1677, 8
      %s1679 = scalar_lea.vmem %s23, %s1678
      %p1680 = scmp.lt.s32.totalorder %s91, 1
      %s1681 = scalar_select %p1680, %s91, 1
      %s1682 = smul.addr %s1681, 24
      %s1683 = smul.addr %s1682, 8
      %s1684 = scalar_lea.vmem %s25, %s1683
      %p1685 = scmp.lt.s32.totalorder %s91, 1
      %s1686 = scalar_select %p1685, %s91, 1
      %s1687 = smul.addr %s1686, 24
      %s1688 = smul.addr %s1687, 8
      %s1689 = scalar_lea.vmem %s27, %s1688
      %p1690 = scmp.lt.s32.totalorder %s91, 1
      %s1691 = scalar_select %p1690, %s91, 1
      %s1692 = smul.addr %s1691, 24
      %s1693 = smul.addr %s1692, 8
      %s1694 = scalar_lea.vmem %s29, %s1693
      %p1695 = scmp.lt.s32.totalorder %s91, 1
      %s1696 = scalar_select %p1695, %s91, 1
      %s1697 = smul.addr %s1696, 6
      %s1698 = smul.addr %s1697, 8
      %s1699 = scalar_lea.vmem %s31, %s1698
      %p1700 = scmp.lt.s32.totalorder %s91, 1
      %s1701 = scalar_select %p1700, %s91, 1
      %s1702 = smul.addr %s1701, 24
      %s1703 = smul.addr %s1702, 8
      %s1704 = scalar_lea.vmem %s33, %s1703
      %p1705 = scmp.lt.s32.totalorder %s91, 1
      %s1706 = scalar_select %p1705, %s91, 1
      %s1707 = smul.addr %s1706, 24
      %s1708 = smul.addr %s1707, 8
      %s1709 = scalar_lea.vmem %s35, %s1708
      %p1710 = scmp.lt.s32.totalorder %s91, 1
      %s1711 = scalar_select %p1710, %s91, 1
      %s1712 = smul.addr %s1711, 2
      %s1713 = smul.addr %s1712, 8
      %s1714 = scalar_lea.vmem %s37, %s1713
      %p1715 = scmp.lt.s32.totalorder %s91, 1
      %s1716 = scalar_select %p1715, %s91, 1
      %s1717 = smul.addr %s1716, 24
      %s1718 = smul.addr %s1717, 8
      %s1719 = scalar_lea.vmem %s39, %s1718
      %p1720 = scmp.lt.s32.totalorder %s91, 1
      %s1721 = scalar_select %p1720, %s91, 1
      %s1722 = smul.addr %s1721, 24
      %s1723 = smul.addr %s1722, 8
      %s1724 = scalar_lea.vmem %s41, %s1723
      %p1725 = scmp.lt.s32.totalorder %s91, 1
      %s1726 = scalar_select %p1725, %s91, 1
      %s1727 = smul.addr %s1726, 2
      %s1728 = smul.addr %s1727, 4
      %s1729 = scalar_lea.vmem %s43, %s1728
      %p1730 = scmp.lt.s32.totalorder %s91, 1
      %s1731 = scalar_select %p1730, %s91, 1
      %s1732 = smul.addr %s1731, 48
      %s1733 = smul.addr %s1732, 8
      %s1734 = scalar_lea.vmem %s45, %s1733
      %p1735 = scmp.lt.s32.totalorder %s91, 1
      %s1736 = scalar_select %p1735, %s91, 1
      %s1737 = smul.addr %s1736, 48
      %s1738 = smul.addr %s1737, 8
      %s1739 = scalar_lea.vmem %s47, %s1738
      %p1740 = scmp.lt.s32.totalorder %s91, 1
      %s1741 = scalar_select %p1740, %s91, 1
      %s1742 = smul.addr %s1741, 2
      %s1743 = scalar_lea.vmem %s57, %s1742
      %p1744 = scmp.lt.s32.totalorder %s91, 1
      %s1745 = scalar_select %p1744, %s91, 1
      %s1746 = smul.addr %s1745, 2
      %s1747 = scalar_lea.vmem %s59, %s1746
      %p1748 = scmp.lt.s32.totalorder %s91, 1
      %s1749 = scalar_select %p1748, %s91, 1
      %s1750 = smul.addr %s1749, 2
      %s1751 = scalar_lea.vmem %s61, %s1750
      %p1752 = scmp.lt.s32.totalorder %s91, 1
      %s1753 = scalar_select %p1752, %s91, 1
      %s1754 = smul.addr %s1753, 2
      %s1755 = scalar_lea.vmem %s63, %s1754
      %p1756 = scmp.lt.s32.totalorder %s91, 1
      %s1757 = scalar_select %p1756, %s91, 1
      %s1758 = smul.addr %s1757, 24
      %s1759 = smul.addr %s1758, 8
      %s1760 = scalar_lea.vmem %s65, %s1759
      %p1761 = scmp.lt.s32.totalorder %s91, 1
      %s1762 = scalar_select %p1761, %s91, 1
      %s1763 = smul.addr %s1762, 6
      %s1764 = smul.addr %s1763, 8
      %s1765 = scalar_lea.vmem %s67, %s1764
      %p1766 = scmp.lt.s32.totalorder %s91, 1
      %s1767 = scalar_select %p1766, %s91, 1
      %s1768 = smul.addr %s1767, 2
      %s1769 = smul.addr %s1768, 8
      %s1770 = scalar_lea.vmem %s69, %s1769
      %p1771 = scmp.lt.s32.totalorder %s91, 1
      %s1772 = scalar_select %p1771, %s91, 1
      %s1773 = smul.addr %s1772, 2
      %s1774 = smul.addr %s1773, 4
      %s1775 = scalar_lea.vmem %s71, %s1774
      %p1776 = scmp.lt.s32.totalorder %s91, 1
      %s1777 = scalar_select %p1776, %s91, 1
      %s1778 = smul.addr %s1777, 24
      %s1779 = smul.addr %s1778, 8
      %s1780 = scalar_lea.vmem %s73, %s1779
      %p1781 = scmp.lt.s32.totalorder %s91, 1
      %s1782 = scalar_select %p1781, %s91, 1
      %s1783 = smul.addr %s1782, 6
      %s1784 = smul.addr %s1783, 8
      %s1785 = scalar_lea.vmem %s75, %s1784
      %p1786 = scmp.lt.s32.totalorder %s91, 1
      %s1787 = scalar_select %p1786, %s91, 1
      %s1788 = smul.addr %s1787, 2
      %s1789 = smul.addr %s1788, 8
      %s1790 = scalar_lea.vmem %s77, %s1789
      %p1791 = scmp.lt.s32.totalorder %s91, 1
      %s1792 = scalar_select %p1791, %s91, 1
      %s1793 = smul.addr %s1792, 2
      %s1794 = smul.addr %s1793, 4
      %s1795 = scalar_lea.vmem %s79, %s1794
      %v1797 = vld [vmem:[%s1624] sm:$0xff]
      %v1798 = vld [vmem:[%s1624 + $0x8] sm:$0xff]
      %v1799 = vld [vmem:[%s1624 + $0x10] sm:$0xff]
      %v1800 = vld [vmem:[%s1624 + $0x18] sm:$0xff]
      %v1801 = vld [vmem:[%s1624 + $0x20] sm:$0xff]
      %v1802 = vld [vmem:[%s1624 + $0x28] sm:$0xff]
      %v1803 = vld [vmem:[%s1624 + $0x30] sm:$0xff]
      %v1804 = vld [vmem:[%s1624 + $0x38] sm:$0xff]
      %v1805 = vld [vmem:[%s1624 + $0x40] sm:$0xff]
      %v1806 = vld [vmem:[%s1624 + $0x48] sm:$0xff]
      %v1807 = vld [vmem:[%s1624 + $0x50] sm:$0xff]
      %v1808 = vld [vmem:[%s1624 + $0x58] sm:$0xff]
      %v1809 = vld [vmem:[%s1624 + $0x60] sm:$0xff]
      %v1810 = vld [vmem:[%s1624 + $0x68] sm:$0xff]
      %v1811 = vld [vmem:[%s1624 + $0x70] sm:$0xff]
      %v1812 = vld [vmem:[%s1624 + $0x78] sm:$0xff]
      %v1813 = vld [vmem:[%s1624 + $0x80] sm:$0xff]
      %v1814 = vld [vmem:[%s1624 + $0x88] sm:$0xff]
      %v1815 = vld [vmem:[%s1624 + $0x90] sm:$0xff]
      %v1816 = vld [vmem:[%s1624 + $0x98] sm:$0xff]
      %v1817 = vld [vmem:[%s1624 + $0xa0] sm:$0xff]
      %v1818 = vld [vmem:[%s1624 + $0xa8] sm:$0xff]
      %v1819 = vld [vmem:[%s1624 + $0xb0] sm:$0xff]
      %v1820 = vld [vmem:[%s1624 + $0xb8] sm:$0xff]
      %v1821 = vpack.c.bf16 %v1798, %v1797
      %v1822 = vpack.c.bf16 %v1800, %v1799
      %v1823 = vpack.c.bf16 %v1802, %v1801
      %v1824 = vpack.c.bf16 %v1804, %v1803
      %v1825 = vpack.c.bf16 %v1806, %v1805
      %v1826 = vpack.c.bf16 %v1808, %v1807
      %v1827 = vpack.c.bf16 %v1810, %v1809
      %v1828 = vpack.c.bf16 %v1812, %v1811
      %v1829 = vpack.c.bf16 %v1814, %v1813
      %v1830 = vpack.c.bf16 %v1816, %v1815
      %v1831 = vpack.c.bf16 %v1818, %v1817
      %v1832 = vpack.c.bf16 %v1820, %v1819
      %v1833 = vld [vmem:[%s1629] sm:$0xff]
      %v1834 = vld [vmem:[%s1629 + $0x8] sm:$0xff]
      %v1835 = vld [vmem:[%s1629 + $0x10] sm:$0xff]
      %v1836 = vld [vmem:[%s1629 + $0x18] sm:$0xff]
      %v1837 = vld [vmem:[%s1629 + $0x20] sm:$0xff]
      %v1838 = vld [vmem:[%s1629 + $0x28] sm:$0xff]
      %v1839 = vld [vmem:[%s1629 + $0x30] sm:$0xff]
      %v1840 = vld [vmem:[%s1629 + $0x38] sm:$0xff]
      %v1841 = vld [vmem:[%s1629 + $0x40] sm:$0xff]
      %v1842 = vld [vmem:[%s1629 + $0x48] sm:$0xff]
      %v1843 = vld [vmem:[%s1629 + $0x50] sm:$0xff]
      %v1844 = vld [vmem:[%s1629 + $0x58] sm:$0xff]
      %v1845 = vld [vmem:[%s1629 + $0x60] sm:$0xff]
      %v1846 = vld [vmem:[%s1629 + $0x68] sm:$0xff]
      %v1847 = vld [vmem:[%s1629 + $0x70] sm:$0xff]
      %v1848 = vld [vmem:[%s1629 + $0x78] sm:$0xff]
      %v1849 = vld [vmem:[%s1629 + $0x80] sm:$0xff]
      %v1850 = vld [vmem:[%s1629 + $0x88] sm:$0xff]
      %v1851 = vld [vmem:[%s1629 + $0x90] sm:$0xff]
      %v1852 = vld [vmem:[%s1629 + $0x98] sm:$0xff]
      %v1853 = vld [vmem:[%s1629 + $0xa0] sm:$0xff]
      %v1854 = vld [vmem:[%s1629 + $0xa8] sm:$0xff]
      %v1855 = vld [vmem:[%s1629 + $0xb0] sm:$0xff]
      %v1856 = vld [vmem:[%s1629 + $0xb8] sm:$0xff]
      %v1857 = vpack.c.bf16 %v1834, %v1833
      %v1858 = vpack.c.bf16 %v1836, %v1835
      %v1859 = vpack.c.bf16 %v1838, %v1837
      %v1860 = vpack.c.bf16 %v1840, %v1839
      %v1861 = vpack.c.bf16 %v1842, %v1841
      %v1862 = vpack.c.bf16 %v1844, %v1843
      %v1863 = vpack.c.bf16 %v1846, %v1845
      %v1864 = vpack.c.bf16 %v1848, %v1847
      %v1865 = vpack.c.bf16 %v1850, %v1849
      %v1866 = vpack.c.bf16 %v1852, %v1851
      %v1867 = vpack.c.bf16 %v1854, %v1853
      %v1868 = vpack.c.bf16 %v1856, %v1855
      %v1869 = vld [vmem:[%s1634] sm:$0xff]
      %v1870 = vld [vmem:[%s1634 + $0x8] sm:$0xff]
      %v1871 = vld [vmem:[%s1634 + $0x10] sm:$0xff]
      %v1872 = vld [vmem:[%s1634 + $0x18] sm:$0xff]
      %v1873 = vld [vmem:[%s1634 + $0x20] sm:$0xff]
      %v1874 = vld [vmem:[%s1634 + $0x28] sm:$0xff]
      %v1875 = vld [vmem:[%s1634 + $0x30] sm:$0xff]
      %v1876 = vld [vmem:[%s1634 + $0x38] sm:$0xff]
      %v1877 = vld [vmem:[%s1634 + $0x40] sm:$0xff]
      %v1878 = vld [vmem:[%s1634 + $0x48] sm:$0xff]
      %v1879 = vld [vmem:[%s1634 + $0x50] sm:$0xff]
      %v1880 = vld [vmem:[%s1634 + $0x58] sm:$0xff]
      %v1881 = vld [vmem:[%s1634 + $0x60] sm:$0xff]
      %v1882 = vld [vmem:[%s1634 + $0x68] sm:$0xff]
      %v1883 = vld [vmem:[%s1634 + $0x70] sm:$0xff]
      %v1884 = vld [vmem:[%s1634 + $0x78] sm:$0xff]
      %v1885 = vld [vmem:[%s1634 + $0x80] sm:$0xff]
      %v1886 = vld [vmem:[%s1634 + $0x88] sm:$0xff]
      %v1887 = vld [vmem:[%s1634 + $0x90] sm:$0xff]
      %v1888 = vld [vmem:[%s1634 + $0x98] sm:$0xff]
      %v1889 = vld [vmem:[%s1634 + $0xa0] sm:$0xff]
      %v1890 = vld [vmem:[%s1634 + $0xa8] sm:$0xff]
      %v1891 = vld [vmem:[%s1634 + $0xb0] sm:$0xff]
      %v1892 = vld [vmem:[%s1634 + $0xb8] sm:$0xff]
      %v1893 = vpack.c.bf16 %v1870, %v1869
      %v1894 = vpack.c.bf16 %v1872, %v1871
      %v1895 = vpack.c.bf16 %v1874, %v1873
      %v1896 = vpack.c.bf16 %v1876, %v1875
      %v1897 = vpack.c.bf16 %v1878, %v1877
      %v1898 = vpack.c.bf16 %v1880, %v1879
      %v1899 = vpack.c.bf16 %v1882, %v1881
      %v1900 = vpack.c.bf16 %v1884, %v1883
      %v1901 = vpack.c.bf16 %v1886, %v1885
      %v1902 = vpack.c.bf16 %v1888, %v1887
      %v1903 = vpack.c.bf16 %v1890, %v1889
      %v1904 = vpack.c.bf16 %v1892, %v1891
      %vm1905 = vcmask 31744
      %v1907 = vsel %vm1905, %v1821, 0
      %v1910 = vsel %vm1905, %v1822, 0
      %v1913 = vsel %vm1905, %v1823, 0
      %v1916 = vsel %vm1905, %v1824, 0
      %v1919 = vsel %vm1905, %v1825, 0
      %v1922 = vsel %vm1905, %v1826, 0
      %v1925 = vsel %vm1905, %v1827, 0
      %v1928 = vsel %vm1905, %v1828, 0
      %v1931 = vsel %vm1905, %v1829, 0
      %v1934 = vsel %vm1905, %v1830, 0
      %v1937 = vsel %vm1905, %v1831, 0
      %v1940 = vsel %vm1905, %v1832, 0
      %v1943 = vsel %vm1905, %v1857, 0
      %v1946 = vsel %vm1905, %v1858, 0
      %v1949 = vsel %vm1905, %v1859, 0
      %v1952 = vsel %vm1905, %v1860, 0
      %v1955 = vsel %vm1905, %v1861, 0
      %v1958 = vsel %vm1905, %v1862, 0
      %v1961 = vsel %vm1905, %v1863, 0
      %v1964 = vsel %vm1905, %v1864, 0
      %v1967 = vsel %vm1905, %v1865, 0
      %v1970 = vsel %vm1905, %v1866, 0
      %v1973 = vsel %vm1905, %v1867, 0
      %v1976 = vsel %vm1905, %v1868, 0
      %1978 = vmatpush.bf16.xpose.msra.mxu0 %v1964
      %1979 = vmatpush.bf16.xpose.msra.mxu0 %v1961
      %1980 = vmatpush.bf16.xpose.msra.mxu0 %v1958
      %1981 = vmatpush.bf16.xpose.msra.mxu0 %v1955
      %1982 = vmatpush.bf16.xpose.msra.mxu0 %v1952
      %1983 = vmatpush.bf16.xpose.msra.mxu0 %v1949
      %1984 = vmatpush.bf16.xpose.msra.mxu0 %v1946
      %1985 = vmatpush.bf16.xpose.msra.mxu0 %v1943
      %1986 = vmatmul.bf16.gmra.mxu0 %v1907
      %v1987 = vpop.f32.mrf.mxu0
      %v1988 = vadd.f32 0.0, %v1987
      %v1989 = vpop.f32.mrf.mxu0
      %v1990 = vadd.f32 0.0, %v1989
      %1991 = vmatmul.bf16.gmra.mxu0 %v1910
      %v1992 = vpop.f32.mrf.mxu0
      %v1993 = vadd.f32 0.0, %v1992
      %v1994 = vpop.f32.mrf.mxu0
      %v1995 = vadd.f32 0.0, %v1994
      %1996 = vmatmul.bf16.gmra.mxu0 %v1913
      %v1997 = vpop.f32.mrf.mxu0
      %v1998 = vadd.f32 0.0, %v1997
      %v1999 = vpop.f32.mrf.mxu0
      %v2000 = vadd.f32 0.0, %v1999
      %2001 = vmatmul.bf16.gmra.mxu0 %v1916
      %v2002 = vpop.f32.mrf.mxu0
      %v2003 = vadd.f32 0.0, %v2002
      %v2004 = vpop.f32.mrf.mxu0
      %v2005 = vadd.f32 0.0, %v2004
      %2006 = vmatmul.bf16.gmra.mxu0 %v1919
      %v2007 = vpop.f32.mrf.mxu0
      %v2008 = vadd.f32 0.0, %v2007
      %v2009 = vpop.f32.mrf.mxu0
      %v2010 = vadd.f32 0.0, %v2009
      %2011 = vmatmul.bf16.gmra.mxu0 %v1922
      %v2012 = vpop.f32.mrf.mxu0
      %v2013 = vadd.f32 0.0, %v2012
      %v2014 = vpop.f32.mrf.mxu0
      %v2015 = vadd.f32 0.0, %v2014
      %2016 = vmatmul.bf16.gmra.mxu0 %v1925
      %v2017 = vpop.f32.mrf.mxu0
      %v2018 = vadd.f32 0.0, %v2017
      %v2019 = vpop.f32.mrf.mxu0
      %v2020 = vadd.f32 0.0, %v2019
      %2021 = vmatmul.bf16.gmra.mxu0 %v1928
      %v2022 = vpop.f32.mrf.mxu0
      %v2023 = vadd.f32 0.0, %v2022
      %v2024 = vpop.f32.mrf.mxu0
      %v2025 = vadd.f32 0.0, %v2024
      %2026 = vmatmul.bf16.gmra.mxu0 %v1931
      %v2027 = vpop.f32.mrf.mxu0
      %v2028 = vadd.f32 0.0, %v2027
      %v2029 = vpop.f32.mrf.mxu0
      %v2030 = vadd.f32 0.0, %v2029
      %2031 = vmatmul.bf16.gmra.mxu0 %v1934
      %v2032 = vpop.f32.mrf.mxu0
      %v2033 = vadd.f32 0.0, %v2032
      %v2034 = vpop.f32.mrf.mxu0
      %v2035 = vadd.f32 0.0, %v2034
      %2036 = vmatmul.bf16.gmra.mxu0 %v1937
      %v2037 = vpop.f32.mrf.mxu0
      %v2038 = vadd.f32 0.0, %v2037
      %v2039 = vpop.f32.mrf.mxu0
      %v2040 = vadd.f32 0.0, %v2039
      %2041 = vmatmul.bf16.gmra.mxu0 %v1940
      %v2042 = vpop.f32.mrf.mxu0
      %v2043 = vadd.f32 0.0, %v2042
      %v2044 = vpop.f32.mrf.mxu0
      %v2045 = vadd.f32 0.0, %v2044
      %2046 = vdwg.mxu0
      %2047 = vmatpush.bf16.xpose.msra.mxu0 0
      %2048 = vmatpush.bf16.xpose.msra.mxu0 0
      %2049 = vmatpush.bf16.xpose.msra.mxu0 0
      %2050 = vmatpush.bf16.xpose.msra.mxu0 0
      %2051 = vmatpush.bf16.xpose.msra.mxu0 %v1976
      %2052 = vmatpush.bf16.xpose.msra.mxu0 %v1973
      %2053 = vmatpush.bf16.xpose.msra.mxu0 %v1970
      %2054 = vmatpush.bf16.xpose.msra.mxu0 %v1967
      %2055 = vmatmul.bf16.gmra.mxu0 %v1907
      %v2056 = vpop.f32.mrf.mxu0
      %v2057 = vadd.f32 0.0, %v2056
      %v2058 = vpop.f32.mrf.mxu0
      %v2059 = vadd.f32 0.0, %v2058
      %2060 = vmatmul.bf16.gmra.mxu0 %v1910
      %v2061 = vpop.f32.mrf.mxu0
      %v2062 = vadd.f32 0.0, %v2061
      %v2063 = vpop.f32.mrf.mxu0
      %v2064 = vadd.f32 0.0, %v2063
      %2065 = vmatmul.bf16.gmra.mxu0 %v1913
      %v2066 = vpop.f32.mrf.mxu0
      %v2067 = vadd.f32 0.0, %v2066
      %v2068 = vpop.f32.mrf.mxu0
      %v2069 = vadd.f32 0.0, %v2068
      %2070 = vmatmul.bf16.gmra.mxu0 %v1916
      %v2071 = vpop.f32.mrf.mxu0
      %v2072 = vadd.f32 0.0, %v2071
      %v2073 = vpop.f32.mrf.mxu0
      %v2074 = vadd.f32 0.0, %v2073
      %2075 = vmatmul.bf16.gmra.mxu0 %v1919
      %v2076 = vpop.f32.mrf.mxu0
      %v2077 = vadd.f32 0.0, %v2076
      %v2078 = vpop.f32.mrf.mxu0
      %v2079 = vadd.f32 0.0, %v2078
      %2080 = vmatmul.bf16.gmra.mxu0 %v1922
      %v2081 = vpop.f32.mrf.mxu0
      %v2082 = vadd.f32 0.0, %v2081
      %v2083 = vpop.f32.mrf.mxu0
      %v2084 = vadd.f32 0.0, %v2083
      %2085 = vmatmul.bf16.gmra.mxu0 %v1925
      %v2086 = vpop.f32.mrf.mxu0
      %v2087 = vadd.f32 0.0, %v2086
      %v2088 = vpop.f32.mrf.mxu0
      %v2089 = vadd.f32 0.0, %v2088
      %2090 = vmatmul.bf16.gmra.mxu0 %v1928
      %v2091 = vpop.f32.mrf.mxu0
      %v2092 = vadd.f32 0.0, %v2091
      %v2093 = vpop.f32.mrf.mxu0
      %v2094 = vadd.f32 0.0, %v2093
      %2095 = vmatmul.bf16.gmra.mxu0 %v1931
      %v2096 = vpop.f32.mrf.mxu0
      %v2097 = vadd.f32 0.0, %v2096
      %v2098 = vpop.f32.mrf.mxu0
      %v2099 = vadd.f32 0.0, %v2098
      %2100 = vmatmul.bf16.gmra.mxu0 %v1934
      %v2101 = vpop.f32.mrf.mxu0
      %v2102 = vadd.f32 0.0, %v2101
      %v2103 = vpop.f32.mrf.mxu0
      %v2104 = vadd.f32 0.0, %v2103
      %2105 = vmatmul.bf16.gmra.mxu0 %v1937
      %v2106 = vpop.f32.mrf.mxu0
      %v2107 = vadd.f32 0.0, %v2106
      %v2108 = vpop.f32.mrf.mxu0
      %v2109 = vadd.f32 0.0, %v2108
      %2110 = vmatmul.bf16.gmra.mxu0 %v1940
      %v2111 = vpop.f32.mrf.mxu0
      %v2112 = vadd.f32 0.0, %v2111
      %v2113 = vpop.f32.mrf.mxu0
      %v2114 = vadd.f32 0.0, %v2113
      %2115 = vdwg.mxu0
      %v2116 = vmul.f32 %v1988, 0.5
      %v2117 = vmul.f32 %v2057, 0.5
      %v2118 = vmul.f32 %v1990, 0.5
      %v2119 = vmul.f32 %v2059, 0.5
      %v2120 = vmul.f32 %v1993, 0.5
      %v2121 = vmul.f32 %v2062, 0.5
      %v2122 = vmul.f32 %v1995, 0.5
      %v2123 = vmul.f32 %v2064, 0.5
      %v2124 = vmul.f32 %v1998, 0.5
      %v2125 = vmul.f32 %v2067, 0.5
      %v2126 = vmul.f32 %v2000, 0.5
      %v2127 = vmul.f32 %v2069, 0.5
      %v2128 = vmul.f32 %v2003, 0.5
      %v2129 = vmul.f32 %v2072, 0.5
      %v2130 = vmul.f32 %v2005, 0.5
      %v2131 = vmul.f32 %v2074, 0.5
      %v2132 = vmul.f32 %v2008, 0.5
      %v2133 = vmul.f32 %v2077, 0.5
      %v2134 = vmul.f32 %v2010, 0.5
      %v2135 = vmul.f32 %v2079, 0.5
      %v2136 = vmul.f32 %v2013, 0.5
      %v2137 = vmul.f32 %v2082, 0.5
      %v2138 = vmul.f32 %v2015, 0.5
      %v2139 = vmul.f32 %v2084, 0.5
      %v2140 = vmul.f32 %v2018, 0.5
      %v2141 = vmul.f32 %v2087, 0.5
      %v2142 = vmul.f32 %v2020, 0.5
      %v2143 = vmul.f32 %v2089, 0.5
      %v2144 = vmul.f32 %v2023, 0.5
      %v2145 = vmul.f32 %v2092, 0.5
      %v2146 = vmul.f32 %v2025, 0.5
      %v2147 = vmul.f32 %v2094, 0.5
      %v2148 = vmul.f32 %v2028, 0.5
      %v2149 = vmul.f32 %v2097, 0.5
      %v2150 = vmul.f32 %v2030, 0.5
      %v2151 = vmul.f32 %v2099, 0.5
      %v2152 = vmul.f32 %v2033, 0.5
      %v2153 = vmul.f32 %v2102, 0.5
      %v2154 = vmul.f32 %v2035, 0.5
      %v2155 = vmul.f32 %v2104, 0.5
      %v2156 = vmul.f32 %v2038, 0.5
      %v2157 = vmul.f32 %v2107, 0.5
      %v2158 = vmul.f32 %v2040, 0.5
      %v2159 = vmul.f32 %v2109, 0.5
      %v2160 = vmul.f32 %v2043, 0.5
      %v2161 = vmul.f32 %v2112, 0.5
      %v2162 = vmul.f32 %v2045, 0.5
      %v2163 = vmul.f32 %v2114, 0.5
      %v2164 = vld [vmem:[%s49] sm:$0xff]
      %v2165 = vld [vmem:[%s49 + $0x8] sm:$0xff]
      %v2166 = vld [vmem:[%s49 + $0x10] sm:$0xff]
      %v2167 = vld [vmem:[%s49 + $0x18] sm:$0xff]
      %v2168 = vld [vmem:[%s49 + $0x20] sm:$0xff]
      %v2169 = vld [vmem:[%s49 + $0x28] sm:$0xff]
      %v2170 = vld [vmem:[%s49 + $0x30] sm:$0xff]
      %v2171 = vld [vmem:[%s49 + $0x38] sm:$0xff]
      %v2172 = vld [vmem:[%s49 + $0x40] sm:$0xff]
      %v2173 = vld [vmem:[%s49 + $0x48] sm:$0xff]
      %v2174 = vld [vmem:[%s49 + $0x50] sm:$0xff]
      %v2175 = vld [vmem:[%s49 + $0x58] sm:$0xff]
      %v2176 = vld [vmem:[%s49 + $0x60] sm:$0xff]
      %v2177 = vld [vmem:[%s49 + $0x68] sm:$0xff]
      %v2178 = vld [vmem:[%s49 + $0x70] sm:$0xff]
      %v2179 = vld [vmem:[%s49 + $0x78] sm:$0xff]
      %v2180 = vld [vmem:[%s49 + $0x80] sm:$0xff]
      %v2181 = vld [vmem:[%s49 + $0x88] sm:$0xff]
      %v2182 = vld [vmem:[%s49 + $0x90] sm:$0xff]
      %v2183 = vld [vmem:[%s49 + $0x98] sm:$0xff]
      %v2184 = vld [vmem:[%s49 + $0xa0] sm:$0xff]
      %v2185 = vld [vmem:[%s49 + $0xa8] sm:$0xff]
      %v2186 = vld [vmem:[%s49 + $0xb0] sm:$0xff]
      %v2187 = vld [vmem:[%s49 + $0xb8] sm:$0xff]
      %v2188 = vld [vmem:[%s49 + $0xc0] sm:$0xff]
      %v2189 = vld [vmem:[%s49 + $0xc8] sm:$0xff]
      %v2190 = vld [vmem:[%s49 + $0xd0] sm:$0xff]
      %v2191 = vld [vmem:[%s49 + $0xd8] sm:$0xff]
      %v2192 = vld [vmem:[%s49 + $0xe0] sm:$0xff]
      %v2193 = vld [vmem:[%s49 + $0xe8] sm:$0xff]
      %v2194 = vld [vmem:[%s49 + $0xf0] sm:$0xff]
      %v2195 = vld [vmem:[%s49 + $0xf8] sm:$0xff]
      %v2196 = vld [vmem:[%s49 + $0x100] sm:$0xff]
      %v2197 = vld [vmem:[%s49 + $0x108] sm:$0xff]
      %v2198 = vld [vmem:[%s49 + $0x110] sm:$0xff]
      %v2199 = vld [vmem:[%s49 + $0x118] sm:$0xff]
      %v2200 = vld [vmem:[%s49 + $0x120] sm:$0xff]
      %v2201 = vld [vmem:[%s49 + $0x128] sm:$0xff]
      %v2202 = vld [vmem:[%s49 + $0x130] sm:$0xff]
      %v2203 = vld [vmem:[%s49 + $0x138] sm:$0xff]
      %v2204 = vld [vmem:[%s49 + $0x140] sm:$0xff]
      %v2205 = vld [vmem:[%s49 + $0x148] sm:$0xff]
      %v2206 = vld [vmem:[%s49 + $0x150] sm:$0xff]
      %v2207 = vld [vmem:[%s49 + $0x158] sm:$0xff]
      %v2208 = vld [vmem:[%s49 + $0x160] sm:$0xff]
      %v2209 = vld [vmem:[%s49 + $0x168] sm:$0xff]
      %v2210 = vld [vmem:[%s49 + $0x170] sm:$0xff]
      %v2211 = vld [vmem:[%s49 + $0x178] sm:$0xff]
      %v2212 = vadd.f32 %v2116, %v2164
      %v2213 = vadd.f32 %v2117, %v2165
      %v2214 = vadd.f32 %v2118, %v2166
      %v2215 = vadd.f32 %v2119, %v2167
      %v2216 = vadd.f32 %v2120, %v2168
      %v2217 = vadd.f32 %v2121, %v2169
      %v2218 = vadd.f32 %v2122, %v2170
      %v2219 = vadd.f32 %v2123, %v2171
      %v2220 = vadd.f32 %v2124, %v2172
      %v2221 = vadd.f32 %v2125, %v2173
      %v2222 = vadd.f32 %v2126, %v2174
      %v2223 = vadd.f32 %v2127, %v2175
      %v2224 = vadd.f32 %v2128, %v2176
      %v2225 = vadd.f32 %v2129, %v2177
      %v2226 = vadd.f32 %v2130, %v2178
      %v2227 = vadd.f32 %v2131, %v2179
      %v2228 = vadd.f32 %v2132, %v2180
      %v2229 = vadd.f32 %v2133, %v2181
      %v2230 = vadd.f32 %v2134, %v2182
      %v2231 = vadd.f32 %v2135, %v2183
      %v2232 = vadd.f32 %v2136, %v2184
      %v2233 = vadd.f32 %v2137, %v2185
      %v2234 = vadd.f32 %v2138, %v2186
      %v2235 = vadd.f32 %v2139, %v2187
      %v2236 = vadd.f32 %v2140, %v2188
      %v2237 = vadd.f32 %v2141, %v2189
      %v2238 = vadd.f32 %v2142, %v2190
      %v2239 = vadd.f32 %v2143, %v2191
      %v2240 = vadd.f32 %v2144, %v2192
      %v2241 = vadd.f32 %v2145, %v2193
      %v2242 = vadd.f32 %v2146, %v2194
      %v2243 = vadd.f32 %v2147, %v2195
      %v2244 = vadd.f32 %v2148, %v2196
      %v2245 = vadd.f32 %v2149, %v2197
      %v2246 = vadd.f32 %v2150, %v2198
      %v2247 = vadd.f32 %v2151, %v2199
      %v2248 = vadd.f32 %v2152, %v2200
      %v2249 = vadd.f32 %v2153, %v2201
      %v2250 = vadd.f32 %v2154, %v2202
      %v2251 = vadd.f32 %v2155, %v2203
      %v2252 = vadd.f32 %v2156, %v2204
      %v2253 = vadd.f32 %v2157, %v2205
      %v2254 = vadd.f32 %v2158, %v2206
      %v2255 = vadd.f32 %v2159, %v2207
      %v2256 = vadd.f32 %v2160, %v2208
      %v2257 = vadd.f32 %v2161, %v2209
      %v2258 = vadd.f32 %v2162, %v2210
      %v2259 = vadd.f32 %v2163, %v2211
      %v2260 = vld [vmem:[%s1743] sm:$0x3]
      %v2262 = vperm.slane %v2260, 0
      %v2263 = vperm.slane %v2260, 1
      %v2266 = vadd.f32 %v2212, %v2262
      %v2267 = vadd.f32 %v2213, %v2263
      %v2268 = vadd.f32 %v2214, %v2262
      %v2269 = vadd.f32 %v2215, %v2263
      %v2270 = vadd.f32 %v2216, %v2262
      %v2271 = vadd.f32 %v2217, %v2263
      %v2272 = vadd.f32 %v2218, %v2262
      %v2273 = vadd.f32 %v2219, %v2263
      %v2274 = vadd.f32 %v2220, %v2262
      %v2275 = vadd.f32 %v2221, %v2263
      %v2276 = vadd.f32 %v2222, %v2262
      %v2277 = vadd.f32 %v2223, %v2263
      %v2278 = vadd.f32 %v2224, %v2262
      %v2279 = vadd.f32 %v2225, %v2263
      %v2280 = vadd.f32 %v2226, %v2262
      %v2281 = vadd.f32 %v2227, %v2263
      %v2282 = vadd.f32 %v2228, %v2262
      %v2283 = vadd.f32 %v2229, %v2263
      %v2284 = vadd.f32 %v2230, %v2262
      %v2285 = vadd.f32 %v2231, %v2263
      %v2286 = vadd.f32 %v2232, %v2262
      %v2287 = vadd.f32 %v2233, %v2263
      %v2288 = vadd.f32 %v2234, %v2262
      %v2289 = vadd.f32 %v2235, %v2263
      %v2290 = vadd.f32 %v2236, %v2262
      %v2291 = vadd.f32 %v2237, %v2263
      %v2292 = vadd.f32 %v2238, %v2262
      %v2293 = vadd.f32 %v2239, %v2263
      %v2294 = vadd.f32 %v2240, %v2262
      %v2295 = vadd.f32 %v2241, %v2263
      %v2296 = vadd.f32 %v2242, %v2262
      %v2297 = vadd.f32 %v2243, %v2263
      %v2298 = vadd.f32 %v2244, %v2262
      %v2299 = vadd.f32 %v2245, %v2263
      %v2300 = vadd.f32 %v2246, %v2262
      %v2301 = vadd.f32 %v2247, %v2263
      %v2302 = vadd.f32 %v2248, %v2262
      %v2303 = vadd.f32 %v2249, %v2263
      %v2304 = vadd.f32 %v2250, %v2262
      %v2305 = vadd.f32 %v2251, %v2263
      %v2306 = vadd.f32 %v2252, %v2262
      %v2307 = vadd.f32 %v2253, %v2263
      %v2308 = vadd.f32 %v2254, %v2262
      %v2309 = vadd.f32 %v2255, %v2263
      %v2310 = vadd.f32 %v2256, %v2262
      %v2311 = vadd.f32 %v2257, %v2263
      %v2312 = vadd.f32 %v2258, %v2262
      %v2313 = vadd.f32 %v2259, %v2263
      %vm2314 = vcmask 523264
      %v2315 = vsel %vm2314, %v2267, -inf
      %v2316 = vmax.f32 %v2266, %v2315
      %2317 = vmax.xlane.f32.xlu0 %v2316
      %v2318 = vpop.xlane.xlu0 %2317
      %v2319 = vsel %vm2314, %v2269, -inf
      %v2320 = vmax.f32 %v2268, %v2319
      %2321 = vmax.xlane.f32.xlu0 %v2320
      %v2322 = vpop.xlane.xlu0 %2321
      %v2323 = vsel %vm2314, %v2271, -inf
      %v2324 = vmax.f32 %v2270, %v2323
      %2325 = vmax.xlane.f32.xlu0 %v2324
      %v2326 = vpop.xlane.xlu0 %2325
      %v2327 = vsel %vm2314, %v2273, -inf
      %v2328 = vmax.f32 %v2272, %v2327
      %2329 = vmax.xlane.f32.xlu0 %v2328
      %v2330 = vpop.xlane.xlu0 %2329
      %v2331 = vsel %vm2314, %v2275, -inf
      %v2332 = vmax.f32 %v2274, %v2331
      %2333 = vmax.xlane.f32.xlu0 %v2332
      %v2334 = vpop.xlane.xlu0 %2333
      %v2335 = vsel %vm2314, %v2277, -inf
      %v2336 = vmax.f32 %v2276, %v2335
      %2337 = vmax.xlane.f32.xlu0 %v2336
      %v2338 = vpop.xlane.xlu0 %2337
      %v2339 = vsel %vm2314, %v2279, -inf
      %v2340 = vmax.f32 %v2278, %v2339
      %2341 = vmax.xlane.f32.xlu0 %v2340
      %v2342 = vpop.xlane.xlu0 %2341
      %v2343 = vsel %vm2314, %v2281, -inf
      %v2344 = vmax.f32 %v2280, %v2343
      %2345 = vmax.xlane.f32.xlu0 %v2344
      %v2346 = vpop.xlane.xlu0 %2345
      %v2347 = vsel %vm2314, %v2283, -inf
      %v2348 = vmax.f32 %v2282, %v2347
      %2349 = vmax.xlane.f32.xlu0 %v2348
      %v2350 = vpop.xlane.xlu0 %2349
      %v2351 = vsel %vm2314, %v2285, -inf
      %v2352 = vmax.f32 %v2284, %v2351
      %2353 = vmax.xlane.f32.xlu0 %v2352
      %v2354 = vpop.xlane.xlu0 %2353
      %v2355 = vsel %vm2314, %v2287, -inf
      %v2356 = vmax.f32 %v2286, %v2355
      %2357 = vmax.xlane.f32.xlu0 %v2356
      %v2358 = vpop.xlane.xlu0 %2357
      %v2359 = vsel %vm2314, %v2289, -inf
      %v2360 = vmax.f32 %v2288, %v2359
      %2361 = vmax.xlane.f32.xlu0 %v2360
      %v2362 = vpop.xlane.xlu0 %2361
      %v2363 = vsel %vm2314, %v2291, -inf
      %v2364 = vmax.f32 %v2290, %v2363
      %2365 = vmax.xlane.f32.xlu0 %v2364
      %v2366 = vpop.xlane.xlu0 %2365
      %v2367 = vsel %vm2314, %v2293, -inf
      %v2368 = vmax.f32 %v2292, %v2367
      %2369 = vmax.xlane.f32.xlu0 %v2368
      %v2370 = vpop.xlane.xlu0 %2369
      %v2371 = vsel %vm2314, %v2295, -inf
      %v2372 = vmax.f32 %v2294, %v2371
      %2373 = vmax.xlane.f32.xlu0 %v2372
      %v2374 = vpop.xlane.xlu0 %2373
      %v2375 = vsel %vm2314, %v2297, -inf
      %v2376 = vmax.f32 %v2296, %v2375
      %2377 = vmax.xlane.f32.xlu0 %v2376
      %v2378 = vpop.xlane.xlu0 %2377
      %v2379 = vsel %vm2314, %v2299, -inf
      %v2380 = vmax.f32 %v2298, %v2379
      %2381 = vmax.xlane.f32.xlu0 %v2380
      %v2382 = vpop.xlane.xlu0 %2381
      %v2383 = vsel %vm2314, %v2301, -inf
      %v2384 = vmax.f32 %v2300, %v2383
      %2385 = vmax.xlane.f32.xlu0 %v2384
      %v2386 = vpop.xlane.xlu0 %2385
      %v2387 = vsel %vm2314, %v2303, -inf
      %v2388 = vmax.f32 %v2302, %v2387
      %2389 = vmax.xlane.f32.xlu0 %v2388
      %v2390 = vpop.xlane.xlu0 %2389
      %v2391 = vsel %vm2314, %v2305, -inf
      %v2392 = vmax.f32 %v2304, %v2391
      %2393 = vmax.xlane.f32.xlu0 %v2392
      %v2394 = vpop.xlane.xlu0 %2393
      %v2395 = vsel %vm2314, %v2307, -inf
      %v2396 = vmax.f32 %v2306, %v2395
      %2397 = vmax.xlane.f32.xlu0 %v2396
      %v2398 = vpop.xlane.xlu0 %2397
      %v2399 = vsel %vm2314, %v2309, -inf
      %v2400 = vmax.f32 %v2308, %v2399
      %2401 = vmax.xlane.f32.xlu0 %v2400
      %v2402 = vpop.xlane.xlu0 %2401
      %v2403 = vsel %vm2314, %v2311, -inf
      %v2404 = vmax.f32 %v2310, %v2403
      %2405 = vmax.xlane.f32.xlu0 %v2404
      %v2406 = vpop.xlane.xlu0 %2405
      %v2407 = vsel %vm2314, %v2313, -inf
      %v2408 = vmax.f32 %v2312, %v2407
      %2409 = vmax.xlane.f32.xlu0 %v2408
      %v2410 = vpop.xlane.xlu0 %2409
      %v2411 = vsub.f32 %v2266, %v2318
      %v2412 = vsub.f32 %v2267, %v2318
      %v2413 = vsub.f32 %v2268, %v2322
      %v2414 = vsub.f32 %v2269, %v2322
      %v2415 = vsub.f32 %v2270, %v2326
      %v2416 = vsub.f32 %v2271, %v2326
      %v2417 = vsub.f32 %v2272, %v2330
      %v2418 = vsub.f32 %v2273, %v2330
      %v2419 = vsub.f32 %v2274, %v2334
      %v2420 = vsub.f32 %v2275, %v2334
      %v2421 = vsub.f32 %v2276, %v2338
      %v2422 = vsub.f32 %v2277, %v2338
      %v2423 = vsub.f32 %v2278, %v2342
      %v2424 = vsub.f32 %v2279, %v2342
      %v2425 = vsub.f32 %v2280, %v2346
      %v2426 = vsub.f32 %v2281, %v2346
      %v2427 = vsub.f32 %v2282, %v2350
      %v2428 = vsub.f32 %v2283, %v2350
      %v2429 = vsub.f32 %v2284, %v2354
      %v2430 = vsub.f32 %v2285, %v2354
      %v2431 = vsub.f32 %v2286, %v2358
      %v2432 = vsub.f32 %v2287, %v2358
      %v2433 = vsub.f32 %v2288, %v2362
      %v2434 = vsub.f32 %v2289, %v2362
      %v2435 = vsub.f32 %v2290, %v2366
      %v2436 = vsub.f32 %v2291, %v2366
      %v2437 = vsub.f32 %v2292, %v2370
      %v2438 = vsub.f32 %v2293, %v2370
      %v2439 = vsub.f32 %v2294, %v2374
      %v2440 = vsub.f32 %v2295, %v2374
      %v2441 = vsub.f32 %v2296, %v2378
      %v2442 = vsub.f32 %v2297, %v2378
      %v2443 = vsub.f32 %v2298, %v2382
      %v2444 = vsub.f32 %v2299, %v2382
      %v2445 = vsub.f32 %v2300, %v2386
      %v2446 = vsub.f32 %v2301, %v2386
      %v2447 = vsub.f32 %v2302, %v2390
      %v2448 = vsub.f32 %v2303, %v2390
      %v2449 = vsub.f32 %v2304, %v2394
      %v2450 = vsub.f32 %v2305, %v2394
      %v2451 = vsub.f32 %v2306, %v2398
      %v2452 = vsub.f32 %v2307, %v2398
      %v2453 = vsub.f32 %v2308, %v2402
      %v2454 = vsub.f32 %v2309, %v2402
      %v2455 = vsub.f32 %v2310, %v2406
      %v2456 = vsub.f32 %v2311, %v2406
      %v2457 = vsub.f32 %v2312, %v2410
      %v2458 = vsub.f32 %v2313, %v2410
      %v2459 = vmul.f32 %v2411, 1.442695
      %v2460 = vpow.pop %v2459
      %v2461 = vmul.f32 %v2412, 1.442695
      %v2462 = vpow.pop %v2461
      %v2463 = vmul.f32 %v2413, 1.442695
      %v2464 = vpow.pop %v2463
      %v2465 = vmul.f32 %v2414, 1.442695
      %v2466 = vpow.pop %v2465
      %v2467 = vmul.f32 %v2415, 1.442695
      %v2468 = vpow.pop %v2467
      %v2469 = vmul.f32 %v2416, 1.442695
      %v2470 = vpow.pop %v2469
      %v2471 = vmul.f32 %v2417, 1.442695
      %v2472 = vpow.pop %v2471
      %v2473 = vmul.f32 %v2418, 1.442695
      %v2474 = vpow.pop %v2473
      %v2475 = vmul.f32 %v2419, 1.442695
      %v2476 = vpow.pop %v2475
      %v2477 = vmul.f32 %v2420, 1.442695
      %v2478 = vpow.pop %v2477
      %v2479 = vmul.f32 %v2421, 1.442695
      %v2480 = vpow.pop %v2479
      %v2481 = vmul.f32 %v2422, 1.442695
      %v2482 = vpow.pop %v2481
      %v2483 = vmul.f32 %v2423, 1.442695
      %v2484 = vpow.pop %v2483
      %v2485 = vmul.f32 %v2424, 1.442695
      %v2486 = vpow.pop %v2485
      %v2487 = vmul.f32 %v2425, 1.442695
      %v2488 = vpow.pop %v2487
      %v2489 = vmul.f32 %v2426, 1.442695
      %v2490 = vpow.pop %v2489
      %v2491 = vmul.f32 %v2427, 1.442695
      %v2492 = vpow.pop %v2491
      %v2493 = vmul.f32 %v2428, 1.442695
      %v2494 = vpow.pop %v2493
      %v2495 = vmul.f32 %v2429, 1.442695
      %v2496 = vpow.pop %v2495
      %v2497 = vmul.f32 %v2430, 1.442695
      %v2498 = vpow.pop %v2497
      %v2499 = vmul.f32 %v2431, 1.442695
      %v2500 = vpow.pop %v2499
      %v2501 = vmul.f32 %v2432, 1.442695
      %v2502 = vpow.pop %v2501
      %v2503 = vmul.f32 %v2433, 1.442695
      %v2504 = vpow.pop %v2503
      %v2505 = vmul.f32 %v2434, 1.442695
      %v2506 = vpow.pop %v2505
      %v2507 = vmul.f32 %v2435, 1.442695
      %v2508 = vpow.pop %v2507
      %v2509 = vmul.f32 %v2436, 1.442695
      %v2510 = vpow.pop %v2509
      %v2511 = vmul.f32 %v2437, 1.442695
      %v2512 = vpow.pop %v2511
      %v2513 = vmul.f32 %v2438, 1.442695
      %v2514 = vpow.pop %v2513
      %v2515 = vmul.f32 %v2439, 1.442695
      %v2516 = vpow.pop %v2515
      %v2517 = vmul.f32 %v2440, 1.442695
      %v2518 = vpow.pop %v2517
      %v2519 = vmul.f32 %v2441, 1.442695
      %v2520 = vpow.pop %v2519
      %v2521 = vmul.f32 %v2442, 1.442695
      %v2522 = vpow.pop %v2521
      %v2523 = vmul.f32 %v2443, 1.442695
      %v2524 = vpow.pop %v2523
      %v2525 = vmul.f32 %v2444, 1.442695
      %v2526 = vpow.pop %v2525
      %v2527 = vmul.f32 %v2445, 1.442695
      %v2528 = vpow.pop %v2527
      %v2529 = vmul.f32 %v2446, 1.442695
      %v2530 = vpow.pop %v2529
      %v2531 = vmul.f32 %v2447, 1.442695
      %v2532 = vpow.pop %v2531
      %v2533 = vmul.f32 %v2448, 1.442695
      %v2534 = vpow.pop %v2533
      %v2535 = vmul.f32 %v2449, 1.442695
      %v2536 = vpow.pop %v2535
      %v2537 = vmul.f32 %v2450, 1.442695
      %v2538 = vpow.pop %v2537
      %v2539 = vmul.f32 %v2451, 1.442695
      %v2540 = vpow.pop %v2539
      %v2541 = vmul.f32 %v2452, 1.442695
      %v2542 = vpow.pop %v2541
      %v2543 = vmul.f32 %v2453, 1.442695
      %v2544 = vpow.pop %v2543
      %v2545 = vmul.f32 %v2454, 1.442695
      %v2546 = vpow.pop %v2545
      %v2547 = vmul.f32 %v2455, 1.442695
      %v2548 = vpow.pop %v2547
      %v2549 = vmul.f32 %v2456, 1.442695
      %v2550 = vpow.pop %v2549
      %v2551 = vmul.f32 %v2457, 1.442695
      %v2552 = vpow.pop %v2551
      %v2553 = vmul.f32 %v2458, 1.442695
      %v2554 = vpow.pop %v2553
      %v2555 = vsel %vm2314, %v2462, 0.0
      %v2556 = vadd.f32 %v2460, %v2555
      %2557 = vadd.xlane.f32.xlu0 %v2556
      %v2558 = vpop.xlane.xlu0 %2557
      %v2559 = vsel %vm2314, %v2466, 0.0
      %v2560 = vadd.f32 %v2464, %v2559
      %2561 = vadd.xlane.f32.xlu0 %v2560
      %v2562 = vpop.xlane.xlu0 %2561
      %v2563 = vsel %vm2314, %v2470, 0.0
      %v2564 = vadd.f32 %v2468, %v2563
      %2565 = vadd.xlane.f32.xlu0 %v2564
      %v2566 = vpop.xlane.xlu0 %2565
      %v2567 = vsel %vm2314, %v2474, 0.0
      %v2568 = vadd.f32 %v2472, %v2567
      %2569 = vadd.xlane.f32.xlu0 %v2568
      %v2570 = vpop.xlane.xlu0 %2569
      %v2571 = vsel %vm2314, %v2478, 0.0
      %v2572 = vadd.f32 %v2476, %v2571
      %2573 = vadd.xlane.f32.xlu0 %v2572
      %v2574 = vpop.xlane.xlu0 %2573
      %v2575 = vsel %vm2314, %v2482, 0.0
      %v2576 = vadd.f32 %v2480, %v2575
      %2577 = vadd.xlane.f32.xlu0 %v2576
      %v2578 = vpop.xlane.xlu0 %2577
      %v2579 = vsel %vm2314, %v2486, 0.0
      %v2580 = vadd.f32 %v2484, %v2579
      %2581 = vadd.xlane.f32.xlu0 %v2580
      %v2582 = vpop.xlane.xlu0 %2581
      %v2583 = vsel %vm2314, %v2490, 0.0
      %v2584 = vadd.f32 %v2488, %v2583
      %2585 = vadd.xlane.f32.xlu0 %v2584
      %v2586 = vpop.xlane.xlu0 %2585
      %v2587 = vsel %vm2314, %v2494, 0.0
      %v2588 = vadd.f32 %v2492, %v2587
      %2589 = vadd.xlane.f32.xlu0 %v2588
      %v2590 = vpop.xlane.xlu0 %2589
      %v2591 = vsel %vm2314, %v2498, 0.0
      %v2592 = vadd.f32 %v2496, %v2591
      %2593 = vadd.xlane.f32.xlu0 %v2592
      %v2594 = vpop.xlane.xlu0 %2593
      %v2595 = vsel %vm2314, %v2502, 0.0
      %v2596 = vadd.f32 %v2500, %v2595
      %2597 = vadd.xlane.f32.xlu0 %v2596
      %v2598 = vpop.xlane.xlu0 %2597
      %v2599 = vsel %vm2314, %v2506, 0.0
      %v2600 = vadd.f32 %v2504, %v2599
      %2601 = vadd.xlane.f32.xlu0 %v2600
      %v2602 = vpop.xlane.xlu0 %2601
      %v2603 = vsel %vm2314, %v2510, 0.0
      %v2604 = vadd.f32 %v2508, %v2603
      %2605 = vadd.xlane.f32.xlu0 %v2604
      %v2606 = vpop.xlane.xlu0 %2605
      %v2607 = vsel %vm2314, %v2514, 0.0
      %v2608 = vadd.f32 %v2512, %v2607
      %2609 = vadd.xlane.f32.xlu0 %v2608
      %v2610 = vpop.xlane.xlu0 %2609
      %v2611 = vsel %vm2314, %v2518, 0.0
      %v2612 = vadd.f32 %v2516, %v2611
      %2613 = vadd.xlane.f32.xlu0 %v2612
      %v2614 = vpop.xlane.xlu0 %2613
      %v2615 = vsel %vm2314, %v2522, 0.0
      %v2616 = vadd.f32 %v2520, %v2615
      %2617 = vadd.xlane.f32.xlu0 %v2616
      %v2618 = vpop.xlane.xlu0 %2617
      %v2619 = vsel %vm2314, %v2526, 0.0
      %v2620 = vadd.f32 %v2524, %v2619
      %2621 = vadd.xlane.f32.xlu0 %v2620
      %v2622 = vpop.xlane.xlu0 %2621
      %v2623 = vsel %vm2314, %v2530, 0.0
      %v2624 = vadd.f32 %v2528, %v2623
      %2625 = vadd.xlane.f32.xlu0 %v2624
      %v2626 = vpop.xlane.xlu0 %2625
      %v2627 = vsel %vm2314, %v2534, 0.0
      %v2628 = vadd.f32 %v2532, %v2627
      %2629 = vadd.xlane.f32.xlu0 %v2628
      %v2630 = vpop.xlane.xlu0 %2629
      %v2631 = vsel %vm2314, %v2538, 0.0
      %v2632 = vadd.f32 %v2536, %v2631
      %2633 = vadd.xlane.f32.xlu0 %v2632
      %v2634 = vpop.xlane.xlu0 %2633
      %v2635 = vsel %vm2314, %v2542, 0.0
      %v2636 = vadd.f32 %v2540, %v2635
      %2637 = vadd.xlane.f32.xlu0 %v2636
      %v2638 = vpop.xlane.xlu0 %2637
      %v2639 = vsel %vm2314, %v2546, 0.0
      %v2640 = vadd.f32 %v2544, %v2639
      %2641 = vadd.xlane.f32.xlu0 %v2640
      %v2642 = vpop.xlane.xlu0 %2641
      %v2643 = vsel %vm2314, %v2550, 0.0
      %v2644 = vadd.f32 %v2548, %v2643
      %2645 = vadd.xlane.f32.xlu0 %v2644
      %v2646 = vpop.xlane.xlu0 %2645
      %v2647 = vsel %vm2314, %v2554, 0.0
      %v2648 = vadd.f32 %v2552, %v2647
      %2649 = vadd.xlane.f32.xlu0 %v2648
      %v2650 = vpop.xlane.xlu0 %2649
      %v2651 = vrcp.pop %v2558
      %v2652 = vrcp.pop %v2562
      %v2653 = vrcp.pop %v2566
      %v2654 = vrcp.pop %v2570
      %v2655 = vrcp.pop %v2574
      %v2656 = vrcp.pop %v2578
      %v2657 = vrcp.pop %v2582
      %v2658 = vrcp.pop %v2586
      %v2659 = vrcp.pop %v2590
      %v2660 = vrcp.pop %v2594
      %v2661 = vrcp.pop %v2598
      %v2662 = vrcp.pop %v2602
      %v2663 = vrcp.pop %v2606
      %v2664 = vrcp.pop %v2610
      %v2665 = vrcp.pop %v2614
      %v2666 = vrcp.pop %v2618
      %v2667 = vrcp.pop %v2622
      %v2668 = vrcp.pop %v2626
      %v2669 = vrcp.pop %v2630
      %v2670 = vrcp.pop %v2634
      %v2671 = vrcp.pop %v2638
      %v2672 = vrcp.pop %v2642
      %v2673 = vrcp.pop %v2646
      %v2674 = vrcp.pop %v2650
      %v2675 = vmul.f32 %v2460, %v2651
      %v2676 = vmul.f32 %v2462, %v2651
      %v2677 = vmul.f32 %v2464, %v2652
      %v2678 = vmul.f32 %v2466, %v2652
      %v2679 = vmul.f32 %v2468, %v2653
      %v2680 = vmul.f32 %v2470, %v2653
      %v2681 = vmul.f32 %v2472, %v2654
      %v2682 = vmul.f32 %v2474, %v2654
      %v2683 = vmul.f32 %v2476, %v2655
      %v2684 = vmul.f32 %v2478, %v2655
      %v2685 = vmul.f32 %v2480, %v2656
      %v2686 = vmul.f32 %v2482, %v2656
      %v2687 = vmul.f32 %v2484, %v2657
      %v2688 = vmul.f32 %v2486, %v2657
      %v2689 = vmul.f32 %v2488, %v2658
      %v2690 = vmul.f32 %v2490, %v2658
      %v2691 = vmul.f32 %v2492, %v2659
      %v2692 = vmul.f32 %v2494, %v2659
      %v2693 = vmul.f32 %v2496, %v2660
      %v2694 = vmul.f32 %v2498, %v2660
      %v2695 = vmul.f32 %v2500, %v2661
      %v2696 = vmul.f32 %v2502, %v2661
      %v2697 = vmul.f32 %v2504, %v2662
      %v2698 = vmul.f32 %v2506, %v2662
      %v2699 = vmul.f32 %v2508, %v2663
      %v2700 = vmul.f32 %v2510, %v2663
      %v2701 = vmul.f32 %v2512, %v2664
      %v2702 = vmul.f32 %v2514, %v2664
      %v2703 = vmul.f32 %v2516, %v2665
      %v2704 = vmul.f32 %v2518, %v2665
      %v2705 = vmul.f32 %v2520, %v2666
      %v2706 = vmul.f32 %v2522, %v2666
      %v2707 = vmul.f32 %v2524, %v2667
      %v2708 = vmul.f32 %v2526, %v2667
      %v2709 = vmul.f32 %v2528, %v2668
      %v2710 = vmul.f32 %v2530, %v2668
      %v2711 = vmul.f32 %v2532, %v2669
      %v2712 = vmul.f32 %v2534, %v2669
      %v2713 = vmul.f32 %v2536, %v2670
      %v2714 = vmul.f32 %v2538, %v2670
      %v2715 = vmul.f32 %v2540, %v2671
      %v2716 = vmul.f32 %v2542, %v2671
      %v2717 = vmul.f32 %v2544, %v2672
      %v2718 = vmul.f32 %v2546, %v2672
      %v2719 = vmul.f32 %v2548, %v2673
      %v2720 = vmul.f32 %v2550, %v2673
      %v2721 = vmul.f32 %v2552, %v2674
      %v2722 = vmul.f32 %v2554, %v2674
      %v2723 = vpack.c.bf16 %v2677, %v2675
      %v2724 = vpack.c.bf16 %v2678, %v2676
      %v2725 = vpack.c.bf16 %v2681, %v2679
      %v2726 = vpack.c.bf16 %v2682, %v2680
      %v2727 = vpack.c.bf16 %v2685, %v2683
      %v2728 = vpack.c.bf16 %v2686, %v2684
      %v2729 = vpack.c.bf16 %v2689, %v2687
      %v2730 = vpack.c.bf16 %v2690, %v2688
      %v2731 = vpack.c.bf16 %v2693, %v2691
      %v2732 = vpack.c.bf16 %v2694, %v2692
      %v2733 = vpack.c.bf16 %v2697, %v2695
      %v2734 = vpack.c.bf16 %v2698, %v2696
      %v2735 = vpack.c.bf16 %v2701, %v2699
      %v2736 = vpack.c.bf16 %v2702, %v2700
      %v2737 = vpack.c.bf16 %v2705, %v2703
      %v2738 = vpack.c.bf16 %v2706, %v2704
      %v2739 = vpack.c.bf16 %v2709, %v2707
      %v2740 = vpack.c.bf16 %v2710, %v2708
      %v2741 = vpack.c.bf16 %v2713, %v2711
      %v2742 = vpack.c.bf16 %v2714, %v2712
      %v2743 = vpack.c.bf16 %v2717, %v2715
      %v2744 = vpack.c.bf16 %v2718, %v2716
      %v2745 = vpack.c.bf16 %v2721, %v2719
      %v2746 = vpack.c.bf16 %v2722, %v2720
      %v2748 = vsel %vm2314, %v2724, 0
      %v2751 = vsel %vm2314, %v2726, 0
      %v2754 = vsel %vm2314, %v2728, 0
      %v2757 = vsel %vm2314, %v2730, 0
      %v2760 = vsel %vm2314, %v2732, 0
      %v2763 = vsel %vm2314, %v2734, 0
      %v2766 = vsel %vm2314, %v2736, 0
      %v2769 = vsel %vm2314, %v2738, 0
      %v2772 = vsel %vm2314, %v2740, 0
      %v2775 = vsel %vm2314, %v2742, 0
      %v2778 = vsel %vm2314, %v2744, 0
      %v2781 = vsel %vm2314, %v2746, 0
      %2783 = vmatpush.bf16.msra.mxu0 %v1900
      %2784 = vmatpush.bf16.msra.mxu0 %v1899
      %2785 = vmatpush.bf16.msra.mxu0 %v1898
      %2786 = vmatpush.bf16.msra.mxu0 %v1897
      %2787 = vmatpush.bf16.msra.mxu0 %v1896
      %2788 = vmatpush.bf16.msra.mxu0 %v1895
      %2789 = vmatpush.bf16.msra.mxu0 %v1894
      %2790 = vmatpush.bf16.msra.mxu0 %v1893
      %2791 = vmatmul.bf16.gmra.mxu0 %v2723
      %v2792 = vpop.f32.mrf.mxu0
      %v2793 = vadd.f32 0.0, %v2792
      %v2794 = vpop.f32.mrf.mxu0
      %v2795 = vadd.f32 0.0, %v2794
      %2796 = vmatmul.bf16.gmra.mxu0 %v2725
      %v2797 = vpop.f32.mrf.mxu0
      %v2798 = vadd.f32 0.0, %v2797
      %v2799 = vpop.f32.mrf.mxu0
      %v2800 = vadd.f32 0.0, %v2799
      %2801 = vmatmul.bf16.gmra.mxu0 %v2727
      %v2802 = vpop.f32.mrf.mxu0
      %v2803 = vadd.f32 0.0, %v2802
      %v2804 = vpop.f32.mrf.mxu0
      %v2805 = vadd.f32 0.0, %v2804
      %2806 = vmatmul.bf16.gmra.mxu0 %v2729
      %v2807 = vpop.f32.mrf.mxu0
      %v2808 = vadd.f32 0.0, %v2807
      %v2809 = vpop.f32.mrf.mxu0
      %v2810 = vadd.f32 0.0, %v2809
      %2811 = vmatmul.bf16.gmra.mxu0 %v2731
      %v2812 = vpop.f32.mrf.mxu0
      %v2813 = vadd.f32 0.0, %v2812
      %v2814 = vpop.f32.mrf.mxu0
      %v2815 = vadd.f32 0.0, %v2814
      %2816 = vmatmul.bf16.gmra.mxu0 %v2733
      %v2817 = vpop.f32.mrf.mxu0
      %v2818 = vadd.f32 0.0, %v2817
      %v2819 = vpop.f32.mrf.mxu0
      %v2820 = vadd.f32 0.0, %v2819
      %2821 = vmatmul.bf16.gmra.mxu0 %v2735
      %v2822 = vpop.f32.mrf.mxu0
      %v2823 = vadd.f32 0.0, %v2822
      %v2824 = vpop.f32.mrf.mxu0
      %v2825 = vadd.f32 0.0, %v2824
      %2826 = vmatmul.bf16.gmra.mxu0 %v2737
      %v2827 = vpop.f32.mrf.mxu0
      %v2828 = vadd.f32 0.0, %v2827
      %v2829 = vpop.f32.mrf.mxu0
      %v2830 = vadd.f32 0.0, %v2829
      %2831 = vmatmul.bf16.gmra.mxu0 %v2739
      %v2832 = vpop.f32.mrf.mxu0
      %v2833 = vadd.f32 0.0, %v2832
      %v2834 = vpop.f32.mrf.mxu0
      %v2835 = vadd.f32 0.0, %v2834
      %2836 = vmatmul.bf16.gmra.mxu0 %v2741
      %v2837 = vpop.f32.mrf.mxu0
      %v2838 = vadd.f32 0.0, %v2837
      %v2839 = vpop.f32.mrf.mxu0
      %v2840 = vadd.f32 0.0, %v2839
      %2841 = vmatmul.bf16.gmra.mxu0 %v2743
      %v2842 = vpop.f32.mrf.mxu0
      %v2843 = vadd.f32 0.0, %v2842
      %v2844 = vpop.f32.mrf.mxu0
      %v2845 = vadd.f32 0.0, %v2844
      %2846 = vmatmul.bf16.gmra.mxu0 %v2745
      %v2847 = vpop.f32.mrf.mxu0
      %v2848 = vadd.f32 0.0, %v2847
      %v2849 = vpop.f32.mrf.mxu0
      %v2850 = vadd.f32 0.0, %v2849
      %2851 = vdwg.mxu0
      %2852 = vmatpush.bf16.msra.mxu0 0
      %2853 = vmatpush.bf16.msra.mxu0 0
      %2854 = vmatpush.bf16.msra.mxu0 0
      %2855 = vmatpush.bf16.msra.mxu0 0
      %2856 = vmatpush.bf16.msra.mxu0 %v1904
      %2857 = vmatpush.bf16.msra.mxu0 %v1903
      %2858 = vmatpush.bf16.msra.mxu0 %v1902
      %2859 = vmatpush.bf16.msra.mxu0 %v1901
      %2860 = vmatmul.bf16.gmra.mxu0 %v2748
      %v2861 = vpop.f32.mrf.mxu0
      %v2862 = vadd.f32 %v2793, %v2861
      %v2863 = vpop.f32.mrf.mxu0
      %v2864 = vadd.f32 %v2795, %v2863
      %2865 = vmatmul.bf16.gmra.mxu0 %v2751
      %v2866 = vpop.f32.mrf.mxu0
      %v2867 = vadd.f32 %v2798, %v2866
      %v2868 = vpop.f32.mrf.mxu0
      %v2869 = vadd.f32 %v2800, %v2868
      %2870 = vmatmul.bf16.gmra.mxu0 %v2754
      %v2871 = vpop.f32.mrf.mxu0
      %v2872 = vadd.f32 %v2803, %v2871
      %v2873 = vpop.f32.mrf.mxu0
      %v2874 = vadd.f32 %v2805, %v2873
      %2875 = vmatmul.bf16.gmra.mxu0 %v2757
      %v2876 = vpop.f32.mrf.mxu0
      %v2877 = vadd.f32 %v2808, %v2876
      %v2878 = vpop.f32.mrf.mxu0
      %v2879 = vadd.f32 %v2810, %v2878
      %2880 = vmatmul.bf16.gmra.mxu0 %v2760
      %v2881 = vpop.f32.mrf.mxu0
      %v2882 = vadd.f32 %v2813, %v2881
      %v2883 = vpop.f32.mrf.mxu0
      %v2884 = vadd.f32 %v2815, %v2883
      %2885 = vmatmul.bf16.gmra.mxu0 %v2763
      %v2886 = vpop.f32.mrf.mxu0
      %v2887 = vadd.f32 %v2818, %v2886
      %v2888 = vpop.f32.mrf.mxu0
      %v2889 = vadd.f32 %v2820, %v2888
      %2890 = vmatmul.bf16.gmra.mxu0 %v2766
      %v2891 = vpop.f32.mrf.mxu0
      %v2892 = vadd.f32 %v2823, %v2891
      %v2893 = vpop.f32.mrf.mxu0
      %v2894 = vadd.f32 %v2825, %v2893
      %2895 = vmatmul.bf16.gmra.mxu0 %v2769
      %v2896 = vpop.f32.mrf.mxu0
      %v2897 = vadd.f32 %v2828, %v2896
      %v2898 = vpop.f32.mrf.mxu0
      %v2899 = vadd.f32 %v2830, %v2898
      %2900 = vmatmul.bf16.gmra.mxu0 %v2772
      %v2901 = vpop.f32.mrf.mxu0
      %v2902 = vadd.f32 %v2833, %v2901
      %v2903 = vpop.f32.mrf.mxu0
      %v2904 = vadd.f32 %v2835, %v2903
      %2905 = vmatmul.bf16.gmra.mxu0 %v2775
      %v2906 = vpop.f32.mrf.mxu0
      %v2907 = vadd.f32 %v2838, %v2906
      %v2908 = vpop.f32.mrf.mxu0
      %v2909 = vadd.f32 %v2840, %v2908
      %2910 = vmatmul.bf16.gmra.mxu0 %v2778
      %v2911 = vpop.f32.mrf.mxu0
      %v2912 = vadd.f32 %v2843, %v2911
      %v2913 = vpop.f32.mrf.mxu0
      %v2914 = vadd.f32 %v2845, %v2913
      %2915 = vmatmul.bf16.gmra.mxu0 %v2781
      %v2916 = vpop.f32.mrf.mxu0
      %v2917 = vadd.f32 %v2848, %v2916
      %v2918 = vpop.f32.mrf.mxu0
      %v2919 = vadd.f32 %v2850, %v2918
      %2920 = vdwg.mxu0
      %2921 = vst.msk [vmem:[%s1760] sm:$0xff] %vm1905, %v2862
      %2922 = vst.msk [vmem:[%s1760 + $0x8] sm:$0xff] %vm1905, %v2864
      %2923 = vst.msk [vmem:[%s1760 + $0x10] sm:$0xff] %vm1905, %v2867
      %2924 = vst.msk [vmem:[%s1760 + $0x18] sm:$0xff] %vm1905, %v2869
      %2925 = vst.msk [vmem:[%s1760 + $0x20] sm:$0xff] %vm1905, %v2872
      %2926 = vst.msk [vmem:[%s1760 + $0x28] sm:$0xff] %vm1905, %v2874
      %2927 = vst.msk [vmem:[%s1760 + $0x30] sm:$0xff] %vm1905, %v2877
      %2928 = vst.msk [vmem:[%s1760 + $0x38] sm:$0xff] %vm1905, %v2879
      %2929 = vst.msk [vmem:[%s1760 + $0x40] sm:$0xff] %vm1905, %v2882
      %2930 = vst.msk [vmem:[%s1760 + $0x48] sm:$0xff] %vm1905, %v2884
      %2931 = vst.msk [vmem:[%s1760 + $0x50] sm:$0xff] %vm1905, %v2887
      %2932 = vst.msk [vmem:[%s1760 + $0x58] sm:$0xff] %vm1905, %v2889
      %2933 = vst.msk [vmem:[%s1760 + $0x60] sm:$0xff] %vm1905, %v2892
      %2934 = vst.msk [vmem:[%s1760 + $0x68] sm:$0xff] %vm1905, %v2894
      %2935 = vst.msk [vmem:[%s1760 + $0x70] sm:$0xff] %vm1905, %v2897
      %2936 = vst.msk [vmem:[%s1760 + $0x78] sm:$0xff] %vm1905, %v2899
      %2937 = vst.msk [vmem:[%s1760 + $0x80] sm:$0xff] %vm1905, %v2902
      %2938 = vst.msk [vmem:[%s1760 + $0x88] sm:$0xff] %vm1905, %v2904
      %2939 = vst.msk [vmem:[%s1760 + $0x90] sm:$0xff] %vm1905, %v2907
      %2940 = vst.msk [vmem:[%s1760 + $0x98] sm:$0xff] %vm1905, %v2909
      %2941 = vst.msk [vmem:[%s1760 + $0xa0] sm:$0xff] %vm1905, %v2912
      %2942 = vst.msk [vmem:[%s1760 + $0xa8] sm:$0xff] %vm1905, %v2914
      %2943 = vst.msk [vmem:[%s1760 + $0xb0] sm:$0xff] %vm1905, %v2917
      %2944 = vst.msk [vmem:[%s1760 + $0xb8] sm:$0xff] %vm1905, %v2919
      %v2945 = vld [vmem:[%s1639] sm:$0xff]
      %v2946 = vld [vmem:[%s1639 + $0x8] sm:$0xff]
      %v2947 = vld [vmem:[%s1639 + $0x10] sm:$0xff]
      %v2948 = vld [vmem:[%s1639 + $0x18] sm:$0xff]
      %v2949 = vld [vmem:[%s1639 + $0x20] sm:$0xff]
      %v2950 = vld [vmem:[%s1639 + $0x28] sm:$0xff]
      %v2951 = vpack.c.bf16 %v2946, %v2945
      %v2952 = vpack.c.bf16 %v2948, %v2947
      %v2953 = vpack.c.bf16 %v2950, %v2949
      %v2954 = vld [vmem:[%s1644] sm:$0xff]
      %v2955 = vld [vmem:[%s1644 + $0x8] sm:$0xff]
      %v2956 = vld [vmem:[%s1644 + $0x10] sm:$0xff]
      %v2957 = vld [vmem:[%s1644 + $0x18] sm:$0xff]
      %v2958 = vld [vmem:[%s1644 + $0x20] sm:$0xff]
      %v2959 = vld [vmem:[%s1644 + $0x28] sm:$0xff]
      %v2960 = vld [vmem:[%s1644 + $0x30] sm:$0xff]
      %v2961 = vld [vmem:[%s1644 + $0x38] sm:$0xff]
      %v2962 = vld [vmem:[%s1644 + $0x40] sm:$0xff]
      %v2963 = vld [vmem:[%s1644 + $0x48] sm:$0xff]
      %v2964 = vld [vmem:[%s1644 + $0x50] sm:$0xff]
      %v2965 = vld [vmem:[%s1644 + $0x58] sm:$0xff]
      %v2966 = vld [vmem:[%s1644 + $0x60] sm:$0xff]
      %v2967 = vld [vmem:[%s1644 + $0x68] sm:$0xff]
      %v2968 = vld [vmem:[%s1644 + $0x70] sm:$0xff]
      %v2969 = vld [vmem:[%s1644 + $0x78] sm:$0xff]
      %v2970 = vld [vmem:[%s1644 + $0x80] sm:$0xff]
      %v2971 = vld [vmem:[%s1644 + $0x88] sm:$0xff]
      %v2972 = vld [vmem:[%s1644 + $0x90] sm:$0xff]
      %v2973 = vld [vmem:[%s1644 + $0x98] sm:$0xff]
      %v2974 = vld [vmem:[%s1644 + $0xa0] sm:$0xff]
      %v2975 = vld [vmem:[%s1644 + $0xa8] sm:$0xff]
      %v2976 = vld [vmem:[%s1644 + $0xb0] sm:$0xff]
      %v2977 = vld [vmem:[%s1644 + $0xb8] sm:$0xff]
      %v2978 = vpack.c.bf16 %v2955, %v2954
      %v2979 = vpack.c.bf16 %v2957, %v2956
      %v2980 = vpack.c.bf16 %v2959, %v2958
      %v2981 = vpack.c.bf16 %v2961, %v2960
      %v2982 = vpack.c.bf16 %v2963, %v2962
      %v2983 = vpack.c.bf16 %v2965, %v2964
      %v2984 = vpack.c.bf16 %v2967, %v2966
      %v2985 = vpack.c.bf16 %v2969, %v2968
      %v2986 = vpack.c.bf16 %v2971, %v2970
      %v2987 = vpack.c.bf16 %v2973, %v2972
      %v2988 = vpack.c.bf16 %v2975, %v2974
      %v2989 = vpack.c.bf16 %v2977, %v2976
      %v2990 = vld [vmem:[%s1649] sm:$0xff]
      %v2991 = vld [vmem:[%s1649 + $0x8] sm:$0xff]
      %v2992 = vld [vmem:[%s1649 + $0x10] sm:$0xff]
      %v2993 = vld [vmem:[%s1649 + $0x18] sm:$0xff]
      %v2994 = vld [vmem:[%s1649 + $0x20] sm:$0xff]
      %v2995 = vld [vmem:[%s1649 + $0x28] sm:$0xff]
      %v2996 = vld [vmem:[%s1649 + $0x30] sm:$0xff]
      %v2997 = vld [vmem:[%s1649 + $0x38] sm:$0xff]
      %v2998 = vld [vmem:[%s1649 + $0x40] sm:$0xff]
      %v2999 = vld [vmem:[%s1649 + $0x48] sm:$0xff]
      %v3000 = vld [vmem:[%s1649 + $0x50] sm:$0xff]
      %v3001 = vld [vmem:[%s1649 + $0x58] sm:$0xff]
      %v3002 = vld [vmem:[%s1649 + $0x60] sm:$0xff]
      %v3003 = vld [vmem:[%s1649 + $0x68] sm:$0xff]
      %v3004 = vld [vmem:[%s1649 + $0x70] sm:$0xff]
      %v3005 = vld [vmem:[%s1649 + $0x78] sm:$0xff]
      %v3006 = vld [vmem:[%s1649 + $0x80] sm:$0xff]
      %v3007 = vld [vmem:[%s1649 + $0x88] sm:$0xff]
      %v3008 = vld [vmem:[%s1649 + $0x90] sm:$0xff]
      %v3009 = vld [vmem:[%s1649 + $0x98] sm:$0xff]
      %v3010 = vld [vmem:[%s1649 + $0xa0] sm:$0xff]
      %v3011 = vld [vmem:[%s1649 + $0xa8] sm:$0xff]
      %v3012 = vld [vmem:[%s1649 + $0xb0] sm:$0xff]
      %v3013 = vld [vmem:[%s1649 + $0xb8] sm:$0xff]
      %v3014 = vpack.c.bf16 %v2991, %v2990
      %v3015 = vpack.c.bf16 %v2993, %v2992
      %v3016 = vpack.c.bf16 %v2995, %v2994
      %v3017 = vpack.c.bf16 %v2997, %v2996
      %v3018 = vpack.c.bf16 %v2999, %v2998
      %v3019 = vpack.c.bf16 %v3001, %v3000
      %v3020 = vpack.c.bf16 %v3003, %v3002
      %v3021 = vpack.c.bf16 %v3005, %v3004
      %v3022 = vpack.c.bf16 %v3007, %v3006
      %v3023 = vpack.c.bf16 %v3009, %v3008
      %v3024 = vpack.c.bf16 %v3011, %v3010
      %v3025 = vpack.c.bf16 %v3013, %v3012
      %vm3026 = vcmask 130048
      %v3028 = vsel %vm3026, %v2951, 0
      %v3031 = vsel %vm3026, %v2952, 0
      %v3034 = vsel %vm3026, %v2953, 0
      %v3037 = vsel %vm3026, %v2978, 0
      %v3040 = vsel %vm3026, %v2979, 0
      %v3043 = vsel %vm3026, %v2980, 0
      %v3046 = vsel %vm3026, %v2981, 0
      %v3049 = vsel %vm3026, %v2982, 0
      %v3052 = vsel %vm3026, %v2983, 0
      %v3055 = vsel %vm3026, %v2984, 0
      %v3058 = vsel %vm3026, %v2985, 0
      %v3061 = vsel %vm3026, %v2986, 0
      %v3064 = vsel %vm3026, %v2987, 0
      %v3067 = vsel %vm3026, %v2988, 0
      %v3070 = vsel %vm3026, %v2989, 0
      %3072 = vmatpush.bf16.xpose.msra.mxu0 %v3058
      %3073 = vmatpush.bf16.xpose.msra.mxu0 %v3055
      %3074 = vmatpush.bf16.xpose.msra.mxu0 %v3052
      %3075 = vmatpush.bf16.xpose.msra.mxu0 %v3049
      %3076 = vmatpush.bf16.xpose.msra.mxu0 %v3046
      %3077 = vmatpush.bf16.xpose.msra.mxu0 %v3043
      %3078 = vmatpush.bf16.xpose.msra.mxu0 %v3040
      %3079 = vmatpush.bf16.xpose.msra.mxu0 %v3037
      %3080 = vmatmul.bf16.gmra.mxu0 %v3028
      %v3081 = vpop.f32.mrf.mxu0
      %v3082 = vadd.f32 0.0, %v3081
      %v3083 = vpop.f32.mrf.mxu0
      %v3084 = vadd.f32 0.0, %v3083
      %3085 = vmatmul.bf16.gmra.mxu0 %v3031
      %v3086 = vpop.f32.mrf.mxu0
      %v3087 = vadd.f32 0.0, %v3086
      %v3088 = vpop.f32.mrf.mxu0
      %v3089 = vadd.f32 0.0, %v3088
      %3090 = vmatmul.bf16.gmra.mxu0 %v3034
      %v3091 = vpop.f32.mrf.mxu0
      %v3092 = vadd.f32 0.0, %v3091
      %v3093 = vpop.f32.mrf.mxu0
      %v3094 = vadd.f32 0.0, %v3093
      %3095 = vdwg.mxu0
      %3096 = vmatpush.bf16.xpose.msra.mxu0 0
      %3097 = vmatpush.bf16.xpose.msra.mxu0 0
      %3098 = vmatpush.bf16.xpose.msra.mxu0 0
      %3099 = vmatpush.bf16.xpose.msra.mxu0 0
      %3100 = vmatpush.bf16.xpose.msra.mxu0 %v3070
      %3101 = vmatpush.bf16.xpose.msra.mxu0 %v3067
      %3102 = vmatpush.bf16.xpose.msra.mxu0 %v3064
      %3103 = vmatpush.bf16.xpose.msra.mxu0 %v3061
      %3104 = vmatmul.bf16.gmra.mxu0 %v3028
      %v3105 = vpop.f32.mrf.mxu0
      %v3106 = vadd.f32 0.0, %v3105
      %v3107 = vpop.f32.mrf.mxu0
      %v3108 = vadd.f32 0.0, %v3107
      %3109 = vmatmul.bf16.gmra.mxu0 %v3031
      %v3110 = vpop.f32.mrf.mxu0
      %v3111 = vadd.f32 0.0, %v3110
      %v3112 = vpop.f32.mrf.mxu0
      %v3113 = vadd.f32 0.0, %v3112
      %3114 = vmatmul.bf16.gmra.mxu0 %v3034
      %v3115 = vpop.f32.mrf.mxu0
      %v3116 = vadd.f32 0.0, %v3115
      %v3117 = vpop.f32.mrf.mxu0
      %v3118 = vadd.f32 0.0, %v3117
      %3119 = vdwg.mxu0
      %v3120 = vmul.f32 %v3082, 0.125
      %v3121 = vmul.f32 %v3106, 0.125
      %v3122 = vmul.f32 %v3084, 0.125
      %v3123 = vmul.f32 %v3108, 0.125
      %v3124 = vmul.f32 %v3087, 0.125
      %v3125 = vmul.f32 %v3111, 0.125
      %v3126 = vmul.f32 %v3089, 0.125
      %v3127 = vmul.f32 %v3113, 0.125
      %v3128 = vmul.f32 %v3092, 0.125
      %v3129 = vmul.f32 %v3116, 0.125
      %v3130 = vmul.f32 %v3094, 0.125
      %v3131 = vmul.f32 %v3118, 0.125
      %v3132 = vld [vmem:[%s51] sm:$0xff]
      %v3133 = vld [vmem:[%s51 + $0x8] sm:$0xff]
      %v3134 = vld [vmem:[%s51 + $0x10] sm:$0xff]
      %v3135 = vld [vmem:[%s51 + $0x18] sm:$0xff]
      %v3136 = vld [vmem:[%s51 + $0x20] sm:$0xff]
      %v3137 = vld [vmem:[%s51 + $0x28] sm:$0xff]
      %v3138 = vld [vmem:[%s51 + $0x30] sm:$0xff]
      %v3139 = vld [vmem:[%s51 + $0x38] sm:$0xff]
      %v3140 = vld [vmem:[%s51 + $0x40] sm:$0xff]
      %v3141 = vld [vmem:[%s51 + $0x48] sm:$0xff]
      %v3142 = vld [vmem:[%s51 + $0x50] sm:$0xff]
      %v3143 = vld [vmem:[%s51 + $0x58] sm:$0xff]
      %v3144 = vadd.f32 %v3120, %v3132
      %v3145 = vadd.f32 %v3121, %v3133
      %v3146 = vadd.f32 %v3122, %v3134
      %v3147 = vadd.f32 %v3123, %v3135
      %v3148 = vadd.f32 %v3124, %v3136
      %v3149 = vadd.f32 %v3125, %v3137
      %v3150 = vadd.f32 %v3126, %v3138
      %v3151 = vadd.f32 %v3127, %v3139
      %v3152 = vadd.f32 %v3128, %v3140
      %v3153 = vadd.f32 %v3129, %v3141
      %v3154 = vadd.f32 %v3130, %v3142
      %v3155 = vadd.f32 %v3131, %v3143
      %v3156 = vld [vmem:[%s1747] sm:$0x3]
      %v3158 = vperm.slane %v3156, 0
      %v3159 = vperm.slane %v3156, 1
      %v3162 = vadd.f32 %v3144, %v3158
      %v3163 = vadd.f32 %v3145, %v3159
      %v3164 = vadd.f32 %v3146, %v3158
      %v3165 = vadd.f32 %v3147, %v3159
      %v3166 = vadd.f32 %v3148, %v3158
      %v3167 = vadd.f32 %v3149, %v3159
      %v3168 = vadd.f32 %v3150, %v3158
      %v3169 = vadd.f32 %v3151, %v3159
      %v3170 = vadd.f32 %v3152, %v3158
      %v3171 = vadd.f32 %v3153, %v3159
      %v3172 = vadd.f32 %v3154, %v3158
      %v3173 = vadd.f32 %v3155, %v3159
      %v3174 = vsel %vm2314, %v3163, -inf
      %v3175 = vmax.f32 %v3162, %v3174
      %3176 = vmax.xlane.f32.xlu0 %v3175
      %v3177 = vpop.xlane.xlu0 %3176
      %v3178 = vsel %vm2314, %v3165, -inf
      %v3179 = vmax.f32 %v3164, %v3178
      %3180 = vmax.xlane.f32.xlu0 %v3179
      %v3181 = vpop.xlane.xlu0 %3180
      %v3182 = vsel %vm2314, %v3167, -inf
      %v3183 = vmax.f32 %v3166, %v3182
      %3184 = vmax.xlane.f32.xlu0 %v3183
      %v3185 = vpop.xlane.xlu0 %3184
      %v3186 = vsel %vm2314, %v3169, -inf
      %v3187 = vmax.f32 %v3168, %v3186
      %3188 = vmax.xlane.f32.xlu0 %v3187
      %v3189 = vpop.xlane.xlu0 %3188
      %v3190 = vsel %vm2314, %v3171, -inf
      %v3191 = vmax.f32 %v3170, %v3190
      %3192 = vmax.xlane.f32.xlu0 %v3191
      %v3193 = vpop.xlane.xlu0 %3192
      %v3194 = vsel %vm2314, %v3173, -inf
      %v3195 = vmax.f32 %v3172, %v3194
      %3196 = vmax.xlane.f32.xlu0 %v3195
      %v3197 = vpop.xlane.xlu0 %3196
      %v3198 = vsub.f32 %v3162, %v3177
      %v3199 = vsub.f32 %v3163, %v3177
      %v3200 = vsub.f32 %v3164, %v3181
      %v3201 = vsub.f32 %v3165, %v3181
      %v3202 = vsub.f32 %v3166, %v3185
      %v3203 = vsub.f32 %v3167, %v3185
      %v3204 = vsub.f32 %v3168, %v3189
      %v3205 = vsub.f32 %v3169, %v3189
      %v3206 = vsub.f32 %v3170, %v3193
      %v3207 = vsub.f32 %v3171, %v3193
      %v3208 = vsub.f32 %v3172, %v3197
      %v3209 = vsub.f32 %v3173, %v3197
      %v3210 = vmul.f32 %v3198, 1.442695
      %v3211 = vpow.pop %v3210
      %v3212 = vmul.f32 %v3199, 1.442695
      %v3213 = vpow.pop %v3212
      %v3214 = vmul.f32 %v3200, 1.442695
      %v3215 = vpow.pop %v3214
      %v3216 = vmul.f32 %v3201, 1.442695
      %v3217 = vpow.pop %v3216
      %v3218 = vmul.f32 %v3202, 1.442695
      %v3219 = vpow.pop %v3218
      %v3220 = vmul.f32 %v3203, 1.442695
      %v3221 = vpow.pop %v3220
      %v3222 = vmul.f32 %v3204, 1.442695
      %v3223 = vpow.pop %v3222
      %v3224 = vmul.f32 %v3205, 1.442695
      %v3225 = vpow.pop %v3224
      %v3226 = vmul.f32 %v3206, 1.442695
      %v3227 = vpow.pop %v3226
      %v3228 = vmul.f32 %v3207, 1.442695
      %v3229 = vpow.pop %v3228
      %v3230 = vmul.f32 %v3208, 1.442695
      %v3231 = vpow.pop %v3230
      %v3232 = vmul.f32 %v3209, 1.442695
      %v3233 = vpow.pop %v3232
      %v3234 = vsel %vm2314, %v3213, 0.0
      %v3235 = vadd.f32 %v3211, %v3234
      %3236 = vadd.xlane.f32.xlu0 %v3235
      %v3237 = vpop.xlane.xlu0 %3236
      %v3238 = vsel %vm2314, %v3217, 0.0
      %v3239 = vadd.f32 %v3215, %v3238
      %3240 = vadd.xlane.f32.xlu0 %v3239
      %v3241 = vpop.xlane.xlu0 %3240
      %v3242 = vsel %vm2314, %v3221, 0.0
      %v3243 = vadd.f32 %v3219, %v3242
      %3244 = vadd.xlane.f32.xlu0 %v3243
      %v3245 = vpop.xlane.xlu0 %3244
      %v3246 = vsel %vm2314, %v3225, 0.0
      %v3247 = vadd.f32 %v3223, %v3246
      %3248 = vadd.xlane.f32.xlu0 %v3247
      %v3249 = vpop.xlane.xlu0 %3248
      %v3250 = vsel %vm2314, %v3229, 0.0
      %v3251 = vadd.f32 %v3227, %v3250
      %3252 = vadd.xlane.f32.xlu0 %v3251
      %v3253 = vpop.xlane.xlu0 %3252
      %v3254 = vsel %vm2314, %v3233, 0.0
      %v3255 = vadd.f32 %v3231, %v3254
      %3256 = vadd.xlane.f32.xlu0 %v3255
      %v3257 = vpop.xlane.xlu0 %3256
      %v3258 = vrcp.pop %v3237
      %v3259 = vrcp.pop %v3241
      %v3260 = vrcp.pop %v3245
      %v3261 = vrcp.pop %v3249
      %v3262 = vrcp.pop %v3253
      %v3263 = vrcp.pop %v3257
      %v3264 = vmul.f32 %v3211, %v3258
      %v3265 = vmul.f32 %v3213, %v3258
      %v3266 = vmul.f32 %v3215, %v3259
      %v3267 = vmul.f32 %v3217, %v3259
      %v3268 = vmul.f32 %v3219, %v3260
      %v3269 = vmul.f32 %v3221, %v3260
      %v3270 = vmul.f32 %v3223, %v3261
      %v3271 = vmul.f32 %v3225, %v3261
      %v3272 = vmul.f32 %v3227, %v3262
      %v3273 = vmul.f32 %v3229, %v3262
      %v3274 = vmul.f32 %v3231, %v3263
      %v3275 = vmul.f32 %v3233, %v3263
      %v3276 = vpack.c.bf16 %v3266, %v3264
      %v3277 = vpack.c.bf16 %v3267, %v3265
      %v3278 = vpack.c.bf16 %v3270, %v3268
      %v3279 = vpack.c.bf16 %v3271, %v3269
      %v3280 = vpack.c.bf16 %v3274, %v3272
      %v3281 = vpack.c.bf16 %v3275, %v3273
      %v3283 = vsel %vm2314, %v3277, 0
      %v3286 = vsel %vm2314, %v3279, 0
      %v3289 = vsel %vm2314, %v3281, 0
      %3291 = vmatpush.bf16.msra.mxu0 %v3021
      %3292 = vmatpush.bf16.msra.mxu0 %v3020
      %3293 = vmatpush.bf16.msra.mxu0 %v3019
      %3294 = vmatpush.bf16.msra.mxu0 %v3018
      %3295 = vmatpush.bf16.msra.mxu0 %v3017
      %3296 = vmatpush.bf16.msra.mxu0 %v3016
      %3297 = vmatpush.bf16.msra.mxu0 %v3015
      %3298 = vmatpush.bf16.msra.mxu0 %v3014
      %3299 = vmatmul.bf16.gmra.mxu0 %v3276
      %v3300 = vpop.f32.mrf.mxu0
      %v3301 = vadd.f32 0.0, %v3300
      %v3302 = vpop.f32.mrf.mxu0
      %v3303 = vadd.f32 0.0, %v3302
      %3304 = vmatmul.bf16.gmra.mxu0 %v3278
      %v3305 = vpop.f32.mrf.mxu0
      %v3306 = vadd.f32 0.0, %v3305
      %v3307 = vpop.f32.mrf.mxu0
      %v3308 = vadd.f32 0.0, %v3307
      %3309 = vmatmul.bf16.gmra.mxu0 %v3280
      %v3310 = vpop.f32.mrf.mxu0
      %v3311 = vadd.f32 0.0, %v3310
      %v3312 = vpop.f32.mrf.mxu0
      %v3313 = vadd.f32 0.0, %v3312
      %3314 = vdwg.mxu0
      %3315 = vmatpush.bf16.msra.mxu0 0
      %3316 = vmatpush.bf16.msra.mxu0 0
      %3317 = vmatpush.bf16.msra.mxu0 0
      %3318 = vmatpush.bf16.msra.mxu0 0
      %3319 = vmatpush.bf16.msra.mxu0 %v3025
      %3320 = vmatpush.bf16.msra.mxu0 %v3024
      %3321 = vmatpush.bf16.msra.mxu0 %v3023
      %3322 = vmatpush.bf16.msra.mxu0 %v3022
      %3323 = vmatmul.bf16.gmra.mxu0 %v3283
      %v3324 = vpop.f32.mrf.mxu0
      %v3325 = vadd.f32 %v3301, %v3324
      %v3326 = vpop.f32.mrf.mxu0
      %v3327 = vadd.f32 %v3303, %v3326
      %3328 = vmatmul.bf16.gmra.mxu0 %v3286
      %v3329 = vpop.f32.mrf.mxu0
      %v3330 = vadd.f32 %v3306, %v3329
      %v3331 = vpop.f32.mrf.mxu0
      %v3332 = vadd.f32 %v3308, %v3331
      %3333 = vmatmul.bf16.gmra.mxu0 %v3289
      %v3334 = vpop.f32.mrf.mxu0
      %v3335 = vadd.f32 %v3311, %v3334
      %v3336 = vpop.f32.mrf.mxu0
      %v3337 = vadd.f32 %v3313, %v3336
      %3338 = vdwg.mxu0
      %3339 = vst.msk [vmem:[%s1765] sm:$0xff] %vm3026, %v3325
      %3340 = vst.msk [vmem:[%s1765 + $0x8] sm:$0xff] %vm3026, %v3327
      %3341 = vst.msk [vmem:[%s1765 + $0x10] sm:$0xff] %vm3026, %v3330
      %3342 = vst.msk [vmem:[%s1765 + $0x18] sm:$0xff] %vm3026, %v3332
      %3343 = vst.msk [vmem:[%s1765 + $0x20] sm:$0xff] %vm3026, %v3335
      %3344 = vst.msk [vmem:[%s1765 + $0x28] sm:$0xff] %vm3026, %v3337
      %v3345 = vld [vmem:[%s1654] sm:$0xff]
      %v3346 = vld [vmem:[%s1654 + $0x8] sm:$0xf]
      %v3347 = vpack.c.bf16 %v3346, %v3345
      %v3348 = vld [vmem:[%s1659] sm:$0xff]
      %v3349 = vld [vmem:[%s1659 + $0x8] sm:$0xff]
      %v3350 = vld [vmem:[%s1659 + $0x10] sm:$0xff]
      %v3351 = vld [vmem:[%s1659 + $0x18] sm:$0xff]
      %v3352 = vld [vmem:[%s1659 + $0x20] sm:$0xff]
      %v3353 = vld [vmem:[%s1659 + $0x28] sm:$0xff]
      %v3354 = vld [vmem:[%s1659 + $0x30] sm:$0xff]
      %v3355 = vld [vmem:[%s1659 + $0x38] sm:$0xff]
      %v3356 = vld [vmem:[%s1659 + $0x40] sm:$0xff]
      %v3357 = vld [vmem:[%s1659 + $0x48] sm:$0xff]
      %v3358 = vld [vmem:[%s1659 + $0x50] sm:$0xff]
      %v3359 = vld [vmem:[%s1659 + $0x58] sm:$0xff]
      %v3360 = vld [vmem:[%s1659 + $0x60] sm:$0xff]
      %v3361 = vld [vmem:[%s1659 + $0x68] sm:$0xff]
      %v3362 = vld [vmem:[%s1659 + $0x70] sm:$0xff]
      %v3363 = vld [vmem:[%s1659 + $0x78] sm:$0xff]
      %v3364 = vld [vmem:[%s1659 + $0x80] sm:$0xff]
      %v3365 = vld [vmem:[%s1659 + $0x88] sm:$0xff]
      %v3366 = vld [vmem:[%s1659 + $0x90] sm:$0xff]
      %v3367 = vld [vmem:[%s1659 + $0x98] sm:$0xff]
      %v3368 = vld [vmem:[%s1659 + $0xa0] sm:$0xff]
      %v3369 = vld [vmem:[%s1659 + $0xa8] sm:$0xff]
      %v3370 = vld [vmem:[%s1659 + $0xb0] sm:$0xff]
      %v3371 = vld [vmem:[%s1659 + $0xb8] sm:$0xff]
      %v3372 = vpack.c.bf16 %v3349, %v3348
      %v3373 = vpack.c.bf16 %v3351, %v3350
      %v3374 = vpack.c.bf16 %v3353, %v3352
      %v3375 = vpack.c.bf16 %v3355, %v3354
      %v3376 = vpack.c.bf16 %v3357, %v3356
      %v3377 = vpack.c.bf16 %v3359, %v3358
      %v3378 = vpack.c.bf16 %v3361, %v3360
      %v3379 = vpack.c.bf16 %v3363, %v3362
      %v3380 = vpack.c.bf16 %v3365, %v3364
      %v3381 = vpack.c.bf16 %v3367, %v3366
      %v3382 = vpack.c.bf16 %v3369, %v3368
      %v3383 = vpack.c.bf16 %v3371, %v3370
      %v3384 = vld [vmem:[%s1664] sm:$0xff]
      %v3385 = vld [vmem:[%s1664 + $0x8] sm:$0xff]
      %v3386 = vld [vmem:[%s1664 + $0x10] sm:$0xff]
      %v3387 = vld [vmem:[%s1664 + $0x18] sm:$0xff]
      %v3388 = vld [vmem:[%s1664 + $0x20] sm:$0xff]
      %v3389 = vld [vmem:[%s1664 + $0x28] sm:$0xff]
      %v3390 = vld [vmem:[%s1664 + $0x30] sm:$0xff]
      %v3391 = vld [vmem:[%s1664 + $0x38] sm:$0xff]
      %v3392 = vld [vmem:[%s1664 + $0x40] sm:$0xff]
      %v3393 = vld [vmem:[%s1664 + $0x48] sm:$0xff]
      %v3394 = vld [vmem:[%s1664 + $0x50] sm:$0xff]
      %v3395 = vld [vmem:[%s1664 + $0x58] sm:$0xff]
      %v3396 = vld [vmem:[%s1664 + $0x60] sm:$0xff]
      %v3397 = vld [vmem:[%s1664 + $0x68] sm:$0xff]
      %v3398 = vld [vmem:[%s1664 + $0x70] sm:$0xff]
      %v3399 = vld [vmem:[%s1664 + $0x78] sm:$0xff]
      %v3400 = vld [vmem:[%s1664 + $0x80] sm:$0xff]
      %v3401 = vld [vmem:[%s1664 + $0x88] sm:$0xff]
      %v3402 = vld [vmem:[%s1664 + $0x90] sm:$0xff]
      %v3403 = vld [vmem:[%s1664 + $0x98] sm:$0xff]
      %v3404 = vld [vmem:[%s1664 + $0xa0] sm:$0xff]
      %v3405 = vld [vmem:[%s1664 + $0xa8] sm:$0xff]
      %v3406 = vld [vmem:[%s1664 + $0xb0] sm:$0xff]
      %v3407 = vld [vmem:[%s1664 + $0xb8] sm:$0xff]
      %v3408 = vpack.c.bf16 %v3385, %v3384
      %v3409 = vpack.c.bf16 %v3387, %v3386
      %v3410 = vpack.c.bf16 %v3389, %v3388
      %v3411 = vpack.c.bf16 %v3391, %v3390
      %v3412 = vpack.c.bf16 %v3393, %v3392
      %v3413 = vpack.c.bf16 %v3395, %v3394
      %v3414 = vpack.c.bf16 %v3397, %v3396
      %v3415 = vpack.c.bf16 %v3399, %v3398
      %v3416 = vpack.c.bf16 %v3401, %v3400
      %v3417 = vpack.c.bf16 %v3403, %v3402
      %v3418 = vpack.c.bf16 %v3405, %v3404
      %v3419 = vpack.c.bf16 %v3407, %v3406
      %v3421 = vsel %vm2314, %v3347, 0
      %v3424 = vsel %vm2314, %v3372, 0
      %v3427 = vsel %vm2314, %v3373, 0
      %v3430 = vsel %vm2314, %v3374, 0
      %v3433 = vsel %vm2314, %v3375, 0
      %v3436 = vsel %vm2314, %v3376, 0
      %v3439 = vsel %vm2314, %v3377, 0
      %v3442 = vsel %vm2314, %v3378, 0
      %v3445 = vsel %vm2314, %v3379, 0
      %v3448 = vsel %vm2314, %v3380, 0
      %v3451 = vsel %vm2314, %v3381, 0
      %v3454 = vsel %vm2314, %v3382, 0
      %v3457 = vsel %vm2314, %v3383, 0
      %3459 = vmatpush.bf16.xpose.msra.mxu0 %v3445
      %3460 = vmatpush.bf16.xpose.msra.mxu0 %v3442
      %3461 = vmatpush.bf16.xpose.msra.mxu0 %v3439
      %3462 = vmatpush.bf16.xpose.msra.mxu0 %v3436
      %3463 = vmatpush.bf16.xpose.msra.mxu0 %v3433
      %3464 = vmatpush.bf16.xpose.msra.mxu0 %v3430
      %3465 = vmatpush.bf16.xpose.msra.mxu0 %v3427
      %3466 = vmatpush.bf16.xpose.msra.mxu0 %v3424
      %3467 = vmatmul.bf16.gmra.mxu0 %v3421
      %v3468 = vpop.f32.mrf.mxu0
      %v3469 = vadd.f32 0.0, %v3468
      %v3470 = vpop.f32.mrf.mxu0
      %v3471 = vadd.f32 0.0, %v3470
      %3472 = vdwg.mxu0
      %3473 = vmatpush.bf16.xpose.msra.mxu0 0
      %3474 = vmatpush.bf16.xpose.msra.mxu0 0
      %3475 = vmatpush.bf16.xpose.msra.mxu0 0
      %3476 = vmatpush.bf16.xpose.msra.mxu0 0
      %3477 = vmatpush.bf16.xpose.msra.mxu0 %v3457
      %3478 = vmatpush.bf16.xpose.msra.mxu0 %v3454
      %3479 = vmatpush.bf16.xpose.msra.mxu0 %v3451
      %3480 = vmatpush.bf16.xpose.msra.mxu0 %v3448
      %3481 = vmatmul.bf16.gmra.mxu0 %v3421
      %v3482 = vpop.f32.mrf.mxu0
      %v3483 = vadd.f32 0.0, %v3482
      %v3484 = vpop.f32.mrf.mxu0
      %v3485 = vadd.f32 0.0, %v3484
      %3486 = vdwg.mxu0
      %v3487 = vmul.f32 %v3469, 0.03125
      %v3488 = vmul.f32 %v3483, 0.03125
      %v3489 = vmul.f32 %v3471, 0.03125
      %v3490 = vmul.f32 %v3485, 0.03125
      %v3491 = vld [vmem:[%s53] sm:$0xff]
      %v3492 = vld [vmem:[%s53 + $0x8] sm:$0xff]
      %v3493 = vld [vmem:[%s53 + $0x10] sm:$0xf]
      %v3494 = vld [vmem:[%s53 + $0x18] sm:$0xf]
      %v3495 = vadd.f32 %v3487, %v3491
      %v3496 = vadd.f32 %v3488, %v3492
      %v3497 = vadd.f32 %v3489, %v3493
      %v3498 = vadd.f32 %v3490, %v3494
      %v3499 = vld [vmem:[%s1751] sm:$0x3]
      %v3501 = vperm.slane %v3499, 0
      %v3502 = vperm.slane %v3499, 1
      %v3505 = vadd.f32 %v3495, %v3501
      %v3506 = vadd.f32 %v3496, %v3502
      %v3507 = vadd.f32 %v3497, %v3501
      %v3508 = vadd.f32 %v3498, %v3502
      %v3509 = vsel %vm2314, %v3506, -inf
      %v3510 = vmax.f32 %v3505, %v3509
      %3511 = vmax.xlane.f32.xlu0 %v3510
      %v3512 = vpop.xlane.xlu0 %3511
      %vm3513 = vcmask 1043456
      %v3514 = vsel %vm3513, %v3507, -inf
      %vm3515 = vcmask 519168
      %v3516 = vsel %vm3515, %v3508, -inf
      %v3517 = vmax.f32 %v3514, %v3516
      %3518 = vmax.xlane.f32.xlu0 %v3517
      %v3519 = vpop.xlane.xlu0 %3518
      %v3520 = vsub.f32 %v3505, %v3512
      %v3521 = vsub.f32 %v3506, %v3512
      %v3522 = vsub.f32 %v3507, %v3519
      %v3523 = vsub.f32 %v3508, %v3519
      %v3524 = vmul.f32 %v3520, 1.442695
      %v3525 = vpow.pop %v3524
      %v3526 = vmul.f32 %v3521, 1.442695
      %v3527 = vpow.pop %v3526
      %v3528 = vmul.f32 %v3522, 1.442695
      %v3529 = vpow.pop %v3528
      %v3530 = vmul.f32 %v3523, 1.442695
      %v3531 = vpow.pop %v3530
      %v3532 = vsel %vm2314, %v3527, 0.0
      %v3533 = vadd.f32 %v3525, %v3532
      %3534 = vadd.xlane.f32.xlu0 %v3533
      %v3535 = vpop.xlane.xlu0 %3534
      %v3536 = vsel %vm3513, %v3529, 0.0
      %v3537 = vsel %vm3515, %v3531, 0.0
      %v3538 = vadd.f32 %v3536, %v3537
      %3539 = vadd.xlane.f32.xlu0 %v3538
      %v3540 = vpop.xlane.xlu0 %3539
      %v3541 = vrcp.pop %v3535
      %v3542 = vrcp.pop %v3540
      %v3543 = vmul.f32 %v3525, %v3541
      %v3544 = vmul.f32 %v3527, %v3541
      %v3545 = vmul.f32 %v3529, %v3542
      %v3546 = vmul.f32 %v3531, %v3542
      %v3547 = vpack.c.bf16 %v3545, %v3543
      %v3548 = vpack.c.bf16 %v3546, %v3544
      %v3550 = vsel %vm2314, %v3548, 0
      %3552 = vmatpush.bf16.msra.mxu0 %v3415
      %3553 = vmatpush.bf16.msra.mxu0 %v3414
      %3554 = vmatpush.bf16.msra.mxu0 %v3413
      %3555 = vmatpush.bf16.msra.mxu0 %v3412
      %3556 = vmatpush.bf16.msra.mxu0 %v3411
      %3557 = vmatpush.bf16.msra.mxu0 %v3410
      %3558 = vmatpush.bf16.msra.mxu0 %v3409
      %3559 = vmatpush.bf16.msra.mxu0 %v3408
      %3560 = vmatmul.bf16.gmra.mxu0 %v3547
      %v3561 = vpop.f32.mrf.mxu0
      %v3562 = vadd.f32 0.0, %v3561
      %v3563 = vpop.f32.mrf.mxu0
      %v3564 = vadd.f32 0.0, %v3563
      %3565 = vdwg.mxu0
      %3566 = vmatpush.bf16.msra.mxu0 0
      %3567 = vmatpush.bf16.msra.mxu0 0
      %3568 = vmatpush.bf16.msra.mxu0 0
      %3569 = vmatpush.bf16.msra.mxu0 0
      %3570 = vmatpush.bf16.msra.mxu0 %v3419
      %3571 = vmatpush.bf16.msra.mxu0 %v3418
      %3572 = vmatpush.bf16.msra.mxu0 %v3417
      %3573 = vmatpush.bf16.msra.mxu0 %v3416
      %3574 = vmatmul.bf16.gmra.mxu0 %v3550
      %v3575 = vpop.f32.mrf.mxu0
      %v3576 = vadd.f32 %v3562, %v3575
      %v3577 = vpop.f32.mrf.mxu0
      %v3578 = vadd.f32 %v3564, %v3577
      %3579 = vdwg.mxu0
      %3580 = vst.msk [vmem:[%s1770] sm:$0xff] %vm2314, %v3576
      %3581 = vst.msk [vmem:[%s1770 + $0x8] sm:$0xf] %vm3515, %v3578
      %v3582 = vld [vmem:[%s1669] sm:$0x77]
      %3584 = vst [vmem:[#allocation1] ss:$2 sm:$0xff] %v3582
      %v3585 = vld.sshfl [vmem:[#allocation1] sm:$0xff pattern:$0x75316420]
      %v3586 = vld.sshfl [vmem:[#allocation1 + $0x8] sm:$0xff pattern:$0x75316420]
      %v3589 = vpack.c.bf16 %v3585, %v3585
      %v3590 = vpack.c.bf16 %v3586, %v3586
      %v3591 = vld [vmem:[%s1674] sm:$0xff]
      %v3592 = vld [vmem:[%s1674 + $0x8] sm:$0xff]
      %v3593 = vld [vmem:[%s1674 + $0x10] sm:$0xff]
      %v3594 = vld [vmem:[%s1674 + $0x18] sm:$0xff]
      %v3595 = vld [vmem:[%s1674 + $0x20] sm:$0xff]
      %v3596 = vld [vmem:[%s1674 + $0x28] sm:$0xff]
      %v3597 = vld [vmem:[%s1674 + $0x30] sm:$0xff]
      %v3598 = vld [vmem:[%s1674 + $0x38] sm:$0xff]
      %v3599 = vld [vmem:[%s1674 + $0x40] sm:$0xff]
      %v3600 = vld [vmem:[%s1674 + $0x48] sm:$0xff]
      %v3601 = vld [vmem:[%s1674 + $0x50] sm:$0xff]
      %v3602 = vld [vmem:[%s1674 + $0x58] sm:$0xff]
      %v3603 = vld [vmem:[%s1674 + $0x60] sm:$0xff]
      %v3604 = vld [vmem:[%s1674 + $0x68] sm:$0xff]
      %v3605 = vld [vmem:[%s1674 + $0x70] sm:$0xff]
      %v3606 = vld [vmem:[%s1674 + $0x78] sm:$0xff]
      %v3607 = vld [vmem:[%s1674 + $0x80] sm:$0xff]
      %v3608 = vld [vmem:[%s1674 + $0x88] sm:$0xff]
      %v3609 = vld [vmem:[%s1674 + $0x90] sm:$0xff]
      %v3610 = vld [vmem:[%s1674 + $0x98] sm:$0xff]
      %v3611 = vld [vmem:[%s1674 + $0xa0] sm:$0xff]
      %v3612 = vld [vmem:[%s1674 + $0xa8] sm:$0xff]
      %v3613 = vld [vmem:[%s1674 + $0xb0] sm:$0xff]
      %v3614 = vld [vmem:[%s1674 + $0xb8] sm:$0xff]
      %v3615 = vld [vmem:[%s1674 + $0xc0] sm:$0xff]
      %v3616 = vld [vmem:[%s1674 + $0xc8] sm:$0xff]
      %v3617 = vld [vmem:[%s1674 + $0xd0] sm:$0xff]
      %v3618 = vld [vmem:[%s1674 + $0xd8] sm:$0xff]
      %v3619 = vld [vmem:[%s1674 + $0xe0] sm:$0xff]
      %v3620 = vld [vmem:[%s1674 + $0xe8] sm:$0xff]
      %v3621 = vld [vmem:[%s1674 + $0xf0] sm:$0xff]
      %v3622 = vld [vmem:[%s1674 + $0xf8] sm:$0xff]
      %v3623 = vld [vmem:[%s1674 + $0x100] sm:$0xff]
      %v3624 = vld [vmem:[%s1674 + $0x108] sm:$0xff]
      %v3625 = vld [vmem:[%s1674 + $0x110] sm:$0xff]
      %v3626 = vld [vmem:[%s1674 + $0x118] sm:$0xff]
      %v3627 = vld [vmem:[%s1674 + $0x120] sm:$0xff]
      %v3628 = vld [vmem:[%s1674 + $0x128] sm:$0xff]
      %v3629 = vld [vmem:[%s1674 + $0x130] sm:$0xff]
      %v3630 = vld [vmem:[%s1674 + $0x138] sm:$0xff]
      %v3631 = vld [vmem:[%s1674 + $0x140] sm:$0xff]
      %v3632 = vld [vmem:[%s1674 + $0x148] sm:$0xff]
      %v3633 = vld [vmem:[%s1674 + $0x150] sm:$0xff]
      %v3634 = vld [vmem:[%s1674 + $0x158] sm:$0xff]
      %v3635 = vld [vmem:[%s1674 + $0x160] sm:$0xff]
      %v3636 = vld [vmem:[%s1674 + $0x168] sm:$0xff]
      %v3637 = vld [vmem:[%s1674 + $0x170] sm:$0xff]
      %v3638 = vld [vmem:[%s1674 + $0x178] sm:$0xff]
      %v3639 = vpack.c.bf16 %v3593, %v3591
      %v3640 = vpack.c.bf16 %v3594, %v3592
      %v3641 = vpack.c.bf16 %v3597, %v3595
      %v3642 = vpack.c.bf16 %v3598, %v3596
      %v3643 = vpack.c.bf16 %v3601, %v3599
      %v3644 = vpack.c.bf16 %v3602, %v3600
      %v3645 = vpack.c.bf16 %v3605, %v3603
      %v3646 = vpack.c.bf16 %v3606, %v3604
      %v3647 = vpack.c.bf16 %v3609, %v3607
      %v3648 = vpack.c.bf16 %v3610, %v3608
      %v3649 = vpack.c.bf16 %v3613, %v3611
      %v3650 = vpack.c.bf16 %v3614, %v3612
      %v3651 = vpack.c.bf16 %v3617, %v3615
      %v3652 = vpack.c.bf16 %v3618, %v3616
      %v3653 = vpack.c.bf16 %v3621, %v3619
      %v3654 = vpack.c.bf16 %v3622, %v3620
      %v3655 = vpack.c.bf16 %v3625, %v3623
      %v3656 = vpack.c.bf16 %v3626, %v3624
      %v3657 = vpack.c.bf16 %v3629, %v3627
      %v3658 = vpack.c.bf16 %v3630, %v3628
      %v3659 = vpack.c.bf16 %v3633, %v3631
      %v3660 = vpack.c.bf16 %v3634, %v3632
      %v3661 = vpack.c.bf16 %v3637, %v3635
      %v3662 = vpack.c.bf16 %v3638, %v3636
      %v3663 = vld [vmem:[%s1679] sm:$0xff]
      %v3664 = vld [vmem:[%s1679 + $0x8] sm:$0xff]
      %v3665 = vld [vmem:[%s1679 + $0x10] sm:$0xff]
      %v3666 = vld [vmem:[%s1679 + $0x18] sm:$0xff]
      %v3667 = vld [vmem:[%s1679 + $0x20] sm:$0xff]
      %v3668 = vld [vmem:[%s1679 + $0x28] sm:$0xff]
      %v3669 = vld [vmem:[%s1679 + $0x30] sm:$0xff]
      %v3670 = vld [vmem:[%s1679 + $0x38] sm:$0xff]
      %v3671 = vld [vmem:[%s1679 + $0x40] sm:$0xff]
      %v3672 = vld [vmem:[%s1679 + $0x48] sm:$0xff]
      %v3673 = vld [vmem:[%s1679 + $0x50] sm:$0xff]
      %v3674 = vld [vmem:[%s1679 + $0x58] sm:$0xff]
      %v3675 = vld [vmem:[%s1679 + $0x60] sm:$0xff]
      %v3676 = vld [vmem:[%s1679 + $0x68] sm:$0xff]
      %v3677 = vld [vmem:[%s1679 + $0x70] sm:$0xff]
      %v3678 = vld [vmem:[%s1679 + $0x78] sm:$0xff]
      %v3679 = vld [vmem:[%s1679 + $0x80] sm:$0xff]
      %v3680 = vld [vmem:[%s1679 + $0x88] sm:$0xff]
      %v3681 = vld [vmem:[%s1679 + $0x90] sm:$0xff]
      %v3682 = vld [vmem:[%s1679 + $0x98] sm:$0xff]
      %v3683 = vld [vmem:[%s1679 + $0xa0] sm:$0xff]
      %v3684 = vld [vmem:[%s1679 + $0xa8] sm:$0xff]
      %v3685 = vld [vmem:[%s1679 + $0xb0] sm:$0xff]
      %v3686 = vld [vmem:[%s1679 + $0xb8] sm:$0xff]
      %v3687 = vld [vmem:[%s1679 + $0xc0] sm:$0xff]
      %v3688 = vld [vmem:[%s1679 + $0xc8] sm:$0xff]
      %v3689 = vld [vmem:[%s1679 + $0xd0] sm:$0xff]
      %v3690 = vld [vmem:[%s1679 + $0xd8] sm:$0xff]
      %v3691 = vld [vmem:[%s1679 + $0xe0] sm:$0xff]
      %v3692 = vld [vmem:[%s1679 + $0xe8] sm:$0xff]
      %v3693 = vld [vmem:[%s1679 + $0xf0] sm:$0xff]
      %v3694 = vld [vmem:[%s1679 + $0xf8] sm:$0xff]
      %v3695 = vld [vmem:[%s1679 + $0x100] sm:$0xff]
      %v3696 = vld [vmem:[%s1679 + $0x108] sm:$0xff]
      %v3697 = vld [vmem:[%s1679 + $0x110] sm:$0xff]
      %v3698 = vld [vmem:[%s1679 + $0x118] sm:$0xff]
      %v3699 = vld [vmem:[%s1679 + $0x120] sm:$0xff]
      %v3700 = vld [vmem:[%s1679 + $0x128] sm:$0xff]
      %v3701 = vld [vmem:[%s1679 + $0x130] sm:$0xff]
      %v3702 = vld [vmem:[%s1679 + $0x138] sm:$0xff]
      %v3703 = vld [vmem:[%s1679 + $0x140] sm:$0xff]
      %v3704 = vld [vmem:[%s1679 + $0x148] sm:$0xff]
      %v3705 = vld [vmem:[%s1679 + $0x150] sm:$0xff]
      %v3706 = vld [vmem:[%s1679 + $0x158] sm:$0xff]
      %v3707 = vld [vmem:[%s1679 + $0x160] sm:$0xff]
      %v3708 = vld [vmem:[%s1679 + $0x168] sm:$0xff]
      %v3709 = vld [vmem:[%s1679 + $0x170] sm:$0xff]
      %v3710 = vld [vmem:[%s1679 + $0x178] sm:$0xff]
      %v3711 = vpack.c.bf16 %v3665, %v3663
      %v3712 = vpack.c.bf16 %v3666, %v3664
      %v3713 = vpack.c.bf16 %v3669, %v3667
      %v3714 = vpack.c.bf16 %v3670, %v3668
      %v3715 = vpack.c.bf16 %v3673, %v3671
      %v3716 = vpack.c.bf16 %v3674, %v3672
      %v3717 = vpack.c.bf16 %v3677, %v3675
      %v3718 = vpack.c.bf16 %v3678, %v3676
      %v3719 = vpack.c.bf16 %v3681, %v3679
      %v3720 = vpack.c.bf16 %v3682, %v3680
      %v3721 = vpack.c.bf16 %v3685, %v3683
      %v3722 = vpack.c.bf16 %v3686, %v3684
      %v3723 = vpack.c.bf16 %v3689, %v3687
      %v3724 = vpack.c.bf16 %v3690, %v3688
      %v3725 = vpack.c.bf16 %v3693, %v3691
      %v3726 = vpack.c.bf16 %v3694, %v3692
      %v3727 = vpack.c.bf16 %v3697, %v3695
      %v3728 = vpack.c.bf16 %v3698, %v3696
      %v3729 = vpack.c.bf16 %v3701, %v3699
      %v3730 = vpack.c.bf16 %v3702, %v3700
      %v3731 = vpack.c.bf16 %v3705, %v3703
      %v3732 = vpack.c.bf16 %v3706, %v3704
      %v3733 = vpack.c.bf16 %v3709, %v3707
      %v3734 = vpack.c.bf16 %v3710, %v3708
      %3735 = vmatpush.bf16.xpose.msra.mxu0 %v3653
      %3736 = vmatpush.bf16.xpose.msra.mxu0 %v3651
      %3737 = vmatpush.bf16.xpose.msra.mxu0 %v3649
      %3738 = vmatpush.bf16.xpose.msra.mxu0 %v3647
      %3739 = vmatpush.bf16.xpose.msra.mxu0 %v3645
      %3740 = vmatpush.bf16.xpose.msra.mxu0 %v3643
      %3741 = vmatpush.bf16.xpose.msra.mxu0 %v3641
      %3742 = vmatpush.bf16.xpose.msra.mxu0 %v3639
      %3743 = vmatmul.bf16.gmra.mxu0 %v3589
      %v3744 = vpop.f32.mrf.mxu0
      %v3745 = vadd.f32 0.0, %v3744
      %v3746 = vpop.f32.mrf.mxu0
      %3747 = vdwg.mxu0
      %3748 = vmatpush.bf16.xpose.msra.mxu0 %v3654
      %3749 = vmatpush.bf16.xpose.msra.mxu0 %v3652
      %3750 = vmatpush.bf16.xpose.msra.mxu0 %v3650
      %3751 = vmatpush.bf16.xpose.msra.mxu0 %v3648
      %3752 = vmatpush.bf16.xpose.msra.mxu0 %v3646
      %3753 = vmatpush.bf16.xpose.msra.mxu0 %v3644
      %3754 = vmatpush.bf16.xpose.msra.mxu0 %v3642
      %3755 = vmatpush.bf16.xpose.msra.mxu0 %v3640
      %3756 = vmatmul.bf16.gmra.mxu0 %v3590
      %v3757 = vpop.f32.mrf.mxu0
      %v3758 = vadd.f32 %v3745, %v3757
      %v3759 = vpop.f32.mrf.mxu0
      %3760 = vdwg.mxu0
      %3761 = vmatpush.bf16.xpose.msra.mxu0 0
      %3762 = vmatpush.bf16.xpose.msra.mxu0 0
      %3763 = vmatpush.bf16.xpose.msra.mxu0 0
      %3764 = vmatpush.bf16.xpose.msra.mxu0 0
      %3765 = vmatpush.bf16.xpose.msra.mxu0 %v3661
      %3766 = vmatpush.bf16.xpose.msra.mxu0 %v3659
      %3767 = vmatpush.bf16.xpose.msra.mxu0 %v3657
      %3768 = vmatpush.bf16.xpose.msra.mxu0 %v3655
      %3769 = vmatmul.bf16.gmra.mxu0 %v3589
      %v3770 = vpop.f32.mrf.mxu0
      %v3771 = vadd.f32 0.0, %v3770
      %v3772 = vpop.f32.mrf.mxu0
      %3773 = vdwg.mxu0
      %3774 = vmatpush.bf16.xpose.msra.mxu0 0
      %3775 = vmatpush.bf16.xpose.msra.mxu0 0
      %3776 = vmatpush.bf16.xpose.msra.mxu0 0
      %3777 = vmatpush.bf16.xpose.msra.mxu0 0
      %3778 = vmatpush.bf16.xpose.msra.mxu0 %v3662
      %3779 = vmatpush.bf16.xpose.msra.mxu0 %v3660
      %3780 = vmatpush.bf16.xpose.msra.mxu0 %v3658
      %3781 = vmatpush.bf16.xpose.msra.mxu0 %v3656
      %3782 = vmatmul.bf16.gmra.mxu0 %v3590
      %v3783 = vpop.f32.mrf.mxu0
      %v3784 = vadd.f32 %v3771, %v3783
      %v3785 = vpop.f32.mrf.mxu0
      %3786 = vdwg.mxu0
      %v3787 = vmul.f32 %v3758, 0.0078125
      %v3788 = vmul.f32 %v3784, 0.0078125
      %v3789 = vld [vmem:[%s55] sm:$0x77]
      %3791 = vst [vmem:[#allocation1] ss:$2 sm:$0xff] %v3789
      %v3792 = vld.sshfl [vmem:[#allocation1] sm:$0xff pattern:$0x75316420]
      %v3793 = vld.sshfl [vmem:[#allocation1 + $0x8] sm:$0xff pattern:$0x75316420]
      %v3796 = vadd.f32 %v3787, %v3792
      %v3797 = vadd.f32 %v3788, %v3793
      %v3798 = vld [vmem:[%s1755] sm:$0x3]
      %v3800 = vperm.slane %v3798, 0
      %v3801 = vperm.slane %v3798, 1
      %v3804 = vadd.f32 %v3796, %v3800
      %v3805 = vadd.f32 %v3797, %v3801
      %vm3806 = vcmask 1042432
      %v3807 = vsel %vm3806, %v3804, -inf
      %vm3808 = vcmask 518144
      %v3809 = vsel %vm3808, %v3805, -inf
      %v3810 = vmax.f32 %v3807, %v3809
      %3811 = vmax.xlane.f32.xlu0 %v3810
      %v3812 = vpop.xlane.xlu0 %3811
      %v3813 = vsub.f32 %v3804, %v3812
      %v3814 = vsub.f32 %v3805, %v3812
      %v3815 = vmul.f32 %v3813, 1.442695
      %v3816 = vpow.pop %v3815
      %v3817 = vmul.f32 %v3814, 1.442695
      %v3818 = vpow.pop %v3817
      %v3819 = vsel %vm3806, %v3816, 0.0
      %v3820 = vsel %vm3808, %v3818, 0.0
      %v3821 = vadd.f32 %v3819, %v3820
      %3822 = vadd.xlane.f32.xlu0 %v3821
      %v3823 = vpop.xlane.xlu0 %3822
      %v3824 = vrcp.pop %v3823
      %v3825 = vmul.f32 %v3816, %v3824
      %v3826 = vmul.f32 %v3818, %v3824
      %v3827 = vpack.c.bf16 %v3825, %v3825
      %v3828 = vpack.c.bf16 %v3826, %v3826
      %v3830 = vsel %vm2314, %v3828, 0
      %3832 = vmatpush.bf16.msra.mxu0 %v3725
      %3833 = vmatpush.bf16.msra.mxu0 %v3723
      %3834 = vmatpush.bf16.msra.mxu0 %v3721
      %3835 = vmatpush.bf16.msra.mxu0 %v3719
      %3836 = vmatpush.bf16.msra.mxu0 %v3717
      %3837 = vmatpush.bf16.msra.mxu0 %v3715
      %3838 = vmatpush.bf16.msra.mxu0 %v3713
      %3839 = vmatpush.bf16.msra.mxu0 %v3711
      %3840 = vmatmul.bf16.gmra.mxu0 %v3827
      %v3841 = vpop.f32.mrf.mxu0
      %v3842 = vadd.f32 0.0, %v3841
      %v3843 = vpop.f32.mrf.mxu0
      %3844 = vdwg.mxu0
      %3845 = vmatpush.bf16.msra.mxu0 0
      %3846 = vmatpush.bf16.msra.mxu0 0
      %3847 = vmatpush.bf16.msra.mxu0 0
      %3848 = vmatpush.bf16.msra.mxu0 0
      %3849 = vmatpush.bf16.msra.mxu0 %v3733
      %3850 = vmatpush.bf16.msra.mxu0 %v3731
      %3851 = vmatpush.bf16.msra.mxu0 %v3729
      %3852 = vmatpush.bf16.msra.mxu0 %v3727
      %3853 = vmatmul.bf16.gmra.mxu0 %v3830
      %v3854 = vpop.f32.mrf.mxu0
      %v3855 = vadd.f32 %v3842, %v3854
      %v3856 = vpop.f32.mrf.mxu0
      %3857 = vdwg.mxu0
      %3858 = vmatpush.bf16.msra.mxu0 %v3726
      %3859 = vmatpush.bf16.msra.mxu0 %v3724
      %3860 = vmatpush.bf16.msra.mxu0 %v3722
      %3861 = vmatpush.bf16.msra.mxu0 %v3720
      %3862 = vmatpush.bf16.msra.mxu0 %v3718
      %3863 = vmatpush.bf16.msra.mxu0 %v3716
      %3864 = vmatpush.bf16.msra.mxu0 %v3714
      %3865 = vmatpush.bf16.msra.mxu0 %v3712
      %3866 = vmatmul.bf16.gmra.mxu0 %v3827
      %v3867 = vpop.f32.mrf.mxu0
      %v3868 = vadd.f32 0.0, %v3867
      %v3869 = vpop.f32.mrf.mxu0
      %3870 = vdwg.mxu0
      %3871 = vmatpush.bf16.msra.mxu0 0
      %3872 = vmatpush.bf16.msra.mxu0 0
      %3873 = vmatpush.bf16.msra.mxu0 0
      %3874 = vmatpush.bf16.msra.mxu0 0
      %3875 = vmatpush.bf16.msra.mxu0 %v3734
      %3876 = vmatpush.bf16.msra.mxu0 %v3732
      %3877 = vmatpush.bf16.msra.mxu0 %v3730
      %3878 = vmatpush.bf16.msra.mxu0 %v3728
      %3879 = vmatmul.bf16.gmra.mxu0 %v3830
      %v3880 = vpop.f32.mrf.mxu0
      %v3881 = vadd.f32 %v3868, %v3880
      %v3882 = vpop.f32.mrf.mxu0
      %3883 = vdwg.mxu0
      %v3886 = vrot.slane %v3881, 4
      %v3887 = vsel %vm3513, %v3855, %v3886
      %3889 = vst [vmem:[%s1775] sm:$0x77] %v3887
      %v3890 = vld [vmem:[%s1684] sm:$0xff]
      %v3891 = vld [vmem:[%s1684 + $0x8] sm:$0xff]
      %v3892 = vld [vmem:[%s1684 + $0x10] sm:$0xff]
      %v3893 = vld [vmem:[%s1684 + $0x18] sm:$0xff]
      %v3894 = vld [vmem:[%s1684 + $0x20] sm:$0xff]
      %v3895 = vld [vmem:[%s1684 + $0x28] sm:$0xff]
      %v3896 = vld [vmem:[%s1684 + $0x30] sm:$0xff]
      %v3897 = vld [vmem:[%s1684 + $0x38] sm:$0xff]
      %v3898 = vld [vmem:[%s1684 + $0x40] sm:$0xff]
      %v3899 = vld [vmem:[%s1684 + $0x48] sm:$0xff]
      %v3900 = vld [vmem:[%s1684 + $0x50] sm:$0xff]
      %v3901 = vld [vmem:[%s1684 + $0x58] sm:$0xff]
      %v3902 = vld [vmem:[%s1684 + $0x60] sm:$0xff]
      %v3903 = vld [vmem:[%s1684 + $0x68] sm:$0xff]
      %v3904 = vld [vmem:[%s1684 + $0x70] sm:$0xff]
      %v3905 = vld [vmem:[%s1684 + $0x78] sm:$0xff]
      %v3906 = vld [vmem:[%s1684 + $0x80] sm:$0xff]
      %v3907 = vld [vmem:[%s1684 + $0x88] sm:$0xff]
      %v3908 = vld [vmem:[%s1684 + $0x90] sm:$0xff]
      %v3909 = vld [vmem:[%s1684 + $0x98] sm:$0xff]
      %v3910 = vld [vmem:[%s1684 + $0xa0] sm:$0xff]
      %v3911 = vld [vmem:[%s1684 + $0xa8] sm:$0xff]
      %v3912 = vld [vmem:[%s1684 + $0xb0] sm:$0xff]
      %v3913 = vld [vmem:[%s1684 + $0xb8] sm:$0xff]
      %v3914 = vpack.c.bf16 %v3891, %v3890
      %v3915 = vpack.c.bf16 %v3893, %v3892
      %v3916 = vpack.c.bf16 %v3895, %v3894
      %v3917 = vpack.c.bf16 %v3897, %v3896
      %v3918 = vpack.c.bf16 %v3899, %v3898
      %v3919 = vpack.c.bf16 %v3901, %v3900
      %v3920 = vpack.c.bf16 %v3903, %v3902
      %v3921 = vpack.c.bf16 %v3905, %v3904
      %v3922 = vpack.c.bf16 %v3907, %v3906
      %v3923 = vpack.c.bf16 %v3909, %v3908
      %v3924 = vpack.c.bf16 %v3911, %v3910
      %v3925 = vpack.c.bf16 %v3913, %v3912
      %v3926 = vld [vmem:[%s1689] sm:$0xff]
      %v3927 = vld [vmem:[%s1689 + $0x8] sm:$0xff]
      %v3928 = vld [vmem:[%s1689 + $0x10] sm:$0xff]
      %v3929 = vld [vmem:[%s1689 + $0x18] sm:$0xff]
      %v3930 = vld [vmem:[%s1689 + $0x20] sm:$0xff]
      %v3931 = vld [vmem:[%s1689 + $0x28] sm:$0xff]
      %v3932 = vld [vmem:[%s1689 + $0x30] sm:$0xff]
      %v3933 = vld [vmem:[%s1689 + $0x38] sm:$0xff]
      %v3934 = vld [vmem:[%s1689 + $0x40] sm:$0xff]
      %v3935 = vld [vmem:[%s1689 + $0x48] sm:$0xff]
      %v3936 = vld [vmem:[%s1689 + $0x50] sm:$0xff]
      %v3937 = vld [vmem:[%s1689 + $0x58] sm:$0xff]
      %v3938 = vld [vmem:[%s1689 + $0x60] sm:$0xff]
      %v3939 = vld [vmem:[%s1689 + $0x68] sm:$0xff]
      %v3940 = vld [vmem:[%s1689 + $0x70] sm:$0xff]
      %v3941 = vld [vmem:[%s1689 + $0x78] sm:$0xff]
      %v3942 = vld [vmem:[%s1689 + $0x80] sm:$0xff]
      %v3943 = vld [vmem:[%s1689 + $0x88] sm:$0xff]
      %v3944 = vld [vmem:[%s1689 + $0x90] sm:$0xff]
      %v3945 = vld [vmem:[%s1689 + $0x98] sm:$0xff]
      %v3946 = vld [vmem:[%s1689 + $0xa0] sm:$0xff]
      %v3947 = vld [vmem:[%s1689 + $0xa8] sm:$0xff]
      %v3948 = vld [vmem:[%s1689 + $0xb0] sm:$0xff]
      %v3949 = vld [vmem:[%s1689 + $0xb8] sm:$0xff]
      %v3950 = vpack.c.bf16 %v3927, %v3926
      %v3951 = vpack.c.bf16 %v3929, %v3928
      %v3952 = vpack.c.bf16 %v3931, %v3930
      %v3953 = vpack.c.bf16 %v3933, %v3932
      %v3954 = vpack.c.bf16 %v3935, %v3934
      %v3955 = vpack.c.bf16 %v3937, %v3936
      %v3956 = vpack.c.bf16 %v3939, %v3938
      %v3957 = vpack.c.bf16 %v3941, %v3940
      %v3958 = vpack.c.bf16 %v3943, %v3942
      %v3959 = vpack.c.bf16 %v3945, %v3944
      %v3960 = vpack.c.bf16 %v3947, %v3946
      %v3961 = vpack.c.bf16 %v3949, %v3948
      %v3962 = vld [vmem:[%s1694] sm:$0xff]
      %v3963 = vld [vmem:[%s1694 + $0x8] sm:$0xff]
      %v3964 = vld [vmem:[%s1694 + $0x10] sm:$0xff]
      %v3965 = vld [vmem:[%s1694 + $0x18] sm:$0xff]
      %v3966 = vld [vmem:[%s1694 + $0x20] sm:$0xff]
      %v3967 = vld [vmem:[%s1694 + $0x28] sm:$0xff]
      %v3968 = vld [vmem:[%s1694 + $0x30] sm:$0xff]
      %v3969 = vld [vmem:[%s1694 + $0x38] sm:$0xff]
      %v3970 = vld [vmem:[%s1694 + $0x40] sm:$0xff]
      %v3971 = vld [vmem:[%s1694 + $0x48] sm:$0xff]
      %v3972 = vld [vmem:[%s1694 + $0x50] sm:$0xff]
      %v3973 = vld [vmem:[%s1694 + $0x58] sm:$0xff]
      %v3974 = vld [vmem:[%s1694 + $0x60] sm:$0xff]
      %v3975 = vld [vmem:[%s1694 + $0x68] sm:$0xff]
      %v3976 = vld [vmem:[%s1694 + $0x70] sm:$0xff]
      %v3977 = vld [vmem:[%s1694 + $0x78] sm:$0xff]
      %v3978 = vld [vmem:[%s1694 + $0x80] sm:$0xff]
      %v3979 = vld [vmem:[%s1694 + $0x88] sm:$0xff]
      %v3980 = vld [vmem:[%s1694 + $0x90] sm:$0xff]
      %v3981 = vld [vmem:[%s1694 + $0x98] sm:$0xff]
      %v3982 = vld [vmem:[%s1694 + $0xa0] sm:$0xff]
      %v3983 = vld [vmem:[%s1694 + $0xa8] sm:$0xff]
      %v3984 = vld [vmem:[%s1694 + $0xb0] sm:$0xff]
      %v3985 = vld [vmem:[%s1694 + $0xb8] sm:$0xff]
      %v3986 = vpack.c.bf16 %v3963, %v3962
      %v3987 = vpack.c.bf16 %v3965, %v3964
      %v3988 = vpack.c.bf16 %v3967, %v3966
      %v3989 = vpack.c.bf16 %v3969, %v3968
      %v3990 = vpack.c.bf16 %v3971, %v3970
      %v3991 = vpack.c.bf16 %v3973, %v3972
      %v3992 = vpack.c.bf16 %v3975, %v3974
      %v3993 = vpack.c.bf16 %v3977, %v3976
      %v3994 = vpack.c.bf16 %v3979, %v3978
      %v3995 = vpack.c.bf16 %v3981, %v3980
      %v3996 = vpack.c.bf16 %v3983, %v3982
      %v3997 = vpack.c.bf16 %v3985, %v3984
      %v3999 = vsel %vm1905, %v3914, 0
      %v4002 = vsel %vm1905, %v3915, 0
      %v4005 = vsel %vm1905, %v3916, 0
      %v4008 = vsel %vm1905, %v3917, 0
      %v4011 = vsel %vm1905, %v3918, 0
      %v4014 = vsel %vm1905, %v3919, 0
      %v4017 = vsel %vm1905, %v3920, 0
      %v4020 = vsel %vm1905, %v3921, 0
      %v4023 = vsel %vm1905, %v3922, 0
      %v4026 = vsel %vm1905, %v3923, 0
      %v4029 = vsel %vm1905, %v3924, 0
      %v4032 = vsel %vm1905, %v3925, 0
      %v4035 = vsel %vm1905, %v3950, 0
      %v4038 = vsel %vm1905, %v3951, 0
      %v4041 = vsel %vm1905, %v3952, 0
      %v4044 = vsel %vm1905, %v3953, 0
      %v4047 = vsel %vm1905, %v3954, 0
      %v4050 = vsel %vm1905, %v3955, 0
      %v4053 = vsel %vm1905, %v3956, 0
      %v4056 = vsel %vm1905, %v3957, 0
      %v4059 = vsel %vm1905, %v3958, 0
      %v4062 = vsel %vm1905, %v3959, 0
      %v4065 = vsel %vm1905, %v3960, 0
      %v4068 = vsel %vm1905, %v3961, 0
      %4070 = vmatpush.bf16.xpose.msra.mxu0 %v4056
      %4071 = vmatpush.bf16.xpose.msra.mxu0 %v4053
      %4072 = vmatpush.bf16.xpose.msra.mxu0 %v4050
      %4073 = vmatpush.bf16.xpose.msra.mxu0 %v4047
      %4074 = vmatpush.bf16.xpose.msra.mxu0 %v4044
      %4075 = vmatpush.bf16.xpose.msra.mxu0 %v4041
      %4076 = vmatpush.bf16.xpose.msra.mxu0 %v4038
      %4077 = vmatpush.bf16.xpose.msra.mxu0 %v4035
      %4078 = vmatmul.bf16.gmra.mxu0 %v3999
      %v4079 = vpop.f32.mrf.mxu0
      %v4080 = vadd.f32 0.0, %v4079
      %v4081 = vpop.f32.mrf.mxu0
      %v4082 = vadd.f32 0.0, %v4081
      %4083 = vmatmul.bf16.gmra.mxu0 %v4002
      %v4084 = vpop.f32.mrf.mxu0
      %v4085 = vadd.f32 0.0, %v4084
      %v4086 = vpop.f32.mrf.mxu0
      %v4087 = vadd.f32 0.0, %v4086
      %4088 = vmatmul.bf16.gmra.mxu0 %v4005
      %v4089 = vpop.f32.mrf.mxu0
      %v4090 = vadd.f32 0.0, %v4089
      %v4091 = vpop.f32.mrf.mxu0
      %v4092 = vadd.f32 0.0, %v4091
      %4093 = vmatmul.bf16.gmra.mxu0 %v4008
      %v4094 = vpop.f32.mrf.mxu0
      %v4095 = vadd.f32 0.0, %v4094
      %v4096 = vpop.f32.mrf.mxu0
      %v4097 = vadd.f32 0.0, %v4096
      %4098 = vmatmul.bf16.gmra.mxu0 %v4011
      %v4099 = vpop.f32.mrf.mxu0
      %v4100 = vadd.f32 0.0, %v4099
      %v4101 = vpop.f32.mrf.mxu0
      %v4102 = vadd.f32 0.0, %v4101
      %4103 = vmatmul.bf16.gmra.mxu0 %v4014
      %v4104 = vpop.f32.mrf.mxu0
      %v4105 = vadd.f32 0.0, %v4104
      %v4106 = vpop.f32.mrf.mxu0
      %v4107 = vadd.f32 0.0, %v4106
      %4108 = vmatmul.bf16.gmra.mxu0 %v4017
      %v4109 = vpop.f32.mrf.mxu0
      %v4110 = vadd.f32 0.0, %v4109
      %v4111 = vpop.f32.mrf.mxu0
      %v4112 = vadd.f32 0.0, %v4111
      %4113 = vmatmul.bf16.gmra.mxu0 %v4020
      %v4114 = vpop.f32.mrf.mxu0
      %v4115 = vadd.f32 0.0, %v4114
      %v4116 = vpop.f32.mrf.mxu0
      %v4117 = vadd.f32 0.0, %v4116
      %4118 = vmatmul.bf16.gmra.mxu0 %v4023
      %v4119 = vpop.f32.mrf.mxu0
      %v4120 = vadd.f32 0.0, %v4119
      %v4121 = vpop.f32.mrf.mxu0
      %v4122 = vadd.f32 0.0, %v4121
      %4123 = vmatmul.bf16.gmra.mxu0 %v4026
      %v4124 = vpop.f32.mrf.mxu0
      %v4125 = vadd.f32 0.0, %v4124
      %v4126 = vpop.f32.mrf.mxu0
      %v4127 = vadd.f32 0.0, %v4126
      %4128 = vmatmul.bf16.gmra.mxu0 %v4029
      %v4129 = vpop.f32.mrf.mxu0
      %v4130 = vadd.f32 0.0, %v4129
      %v4131 = vpop.f32.mrf.mxu0
      %v4132 = vadd.f32 0.0, %v4131
      %4133 = vmatmul.bf16.gmra.mxu0 %v4032
      %v4134 = vpop.f32.mrf.mxu0
      %v4135 = vadd.f32 0.0, %v4134
      %v4136 = vpop.f32.mrf.mxu0
      %v4137 = vadd.f32 0.0, %v4136
      %4138 = vdwg.mxu0
      %4139 = vmatpush.bf16.xpose.msra.mxu0 0
      %4140 = vmatpush.bf16.xpose.msra.mxu0 0
      %4141 = vmatpush.bf16.xpose.msra.mxu0 0
      %4142 = vmatpush.bf16.xpose.msra.mxu0 0
      %4143 = vmatpush.bf16.xpose.msra.mxu0 %v4068
      %4144 = vmatpush.bf16.xpose.msra.mxu0 %v4065
      %4145 = vmatpush.bf16.xpose.msra.mxu0 %v4062
      %4146 = vmatpush.bf16.xpose.msra.mxu0 %v4059
      %4147 = vmatmul.bf16.gmra.mxu0 %v3999
      %v4148 = vpop.f32.mrf.mxu0
      %v4149 = vadd.f32 0.0, %v4148
      %v4150 = vpop.f32.mrf.mxu0
      %v4151 = vadd.f32 0.0, %v4150
      %4152 = vmatmul.bf16.gmra.mxu0 %v4002
      %v4153 = vpop.f32.mrf.mxu0
      %v4154 = vadd.f32 0.0, %v4153
      %v4155 = vpop.f32.mrf.mxu0
      %v4156 = vadd.f32 0.0, %v4155
      %4157 = vmatmul.bf16.gmra.mxu0 %v4005
      %v4158 = vpop.f32.mrf.mxu0
      %v4159 = vadd.f32 0.0, %v4158
      %v4160 = vpop.f32.mrf.mxu0
      %v4161 = vadd.f32 0.0, %v4160
      %4162 = vmatmul.bf16.gmra.mxu0 %v4008
      %v4163 = vpop.f32.mrf.mxu0
      %v4164 = vadd.f32 0.0, %v4163
      %v4165 = vpop.f32.mrf.mxu0
      %v4166 = vadd.f32 0.0, %v4165
      %4167 = vmatmul.bf16.gmra.mxu0 %v4011
      %v4168 = vpop.f32.mrf.mxu0
      %v4169 = vadd.f32 0.0, %v4168
      %v4170 = vpop.f32.mrf.mxu0
      %v4171 = vadd.f32 0.0, %v4170
      %4172 = vmatmul.bf16.gmra.mxu0 %v4014
      %v4173 = vpop.f32.mrf.mxu0
      %v4174 = vadd.f32 0.0, %v4173
      %v4175 = vpop.f32.mrf.mxu0
      %v4176 = vadd.f32 0.0, %v4175
      %4177 = vmatmul.bf16.gmra.mxu0 %v4017
      %v4178 = vpop.f32.mrf.mxu0
      %v4179 = vadd.f32 0.0, %v4178
      %v4180 = vpop.f32.mrf.mxu0
      %v4181 = vadd.f32 0.0, %v4180
      %4182 = vmatmul.bf16.gmra.mxu0 %v4020
      %v4183 = vpop.f32.mrf.mxu0
      %v4184 = vadd.f32 0.0, %v4183
      %v4185 = vpop.f32.mrf.mxu0
      %v4186 = vadd.f32 0.0, %v4185
      %4187 = vmatmul.bf16.gmra.mxu0 %v4023
      %v4188 = vpop.f32.mrf.mxu0
      %v4189 = vadd.f32 0.0, %v4188
      %v4190 = vpop.f32.mrf.mxu0
      %v4191 = vadd.f32 0.0, %v4190
      %4192 = vmatmul.bf16.gmra.mxu0 %v4026
      %v4193 = vpop.f32.mrf.mxu0
      %v4194 = vadd.f32 0.0, %v4193
      %v4195 = vpop.f32.mrf.mxu0
      %v4196 = vadd.f32 0.0, %v4195
      %4197 = vmatmul.bf16.gmra.mxu0 %v4029
      %v4198 = vpop.f32.mrf.mxu0
      %v4199 = vadd.f32 0.0, %v4198
      %v4200 = vpop.f32.mrf.mxu0
      %v4201 = vadd.f32 0.0, %v4200
      %4202 = vmatmul.bf16.gmra.mxu0 %v4032
      %v4203 = vpop.f32.mrf.mxu0
      %v4204 = vadd.f32 0.0, %v4203
      %v4205 = vpop.f32.mrf.mxu0
      %v4206 = vadd.f32 0.0, %v4205
      %4207 = vdwg.mxu0
      %v4208 = vmul.f32 %v4080, 0.5
      %v4209 = vmul.f32 %v4149, 0.5
      %v4210 = vmul.f32 %v4082, 0.5
      %v4211 = vmul.f32 %v4151, 0.5
      %v4212 = vmul.f32 %v4085, 0.5
      %v4213 = vmul.f32 %v4154, 0.5
      %v4214 = vmul.f32 %v4087, 0.5
      %v4215 = vmul.f32 %v4156, 0.5
      %v4216 = vmul.f32 %v4090, 0.5
      %v4217 = vmul.f32 %v4159, 0.5
      %v4218 = vmul.f32 %v4092, 0.5
      %v4219 = vmul.f32 %v4161, 0.5
      %v4220 = vmul.f32 %v4095, 0.5
      %v4221 = vmul.f32 %v4164, 0.5
      %v4222 = vmul.f32 %v4097, 0.5
      %v4223 = vmul.f32 %v4166, 0.5
      %v4224 = vmul.f32 %v4100, 0.5
      %v4225 = vmul.f32 %v4169, 0.5
      %v4226 = vmul.f32 %v4102, 0.5
      %v4227 = vmul.f32 %v4171, 0.5
      %v4228 = vmul.f32 %v4105, 0.5
      %v4229 = vmul.f32 %v4174, 0.5
      %v4230 = vmul.f32 %v4107, 0.5
      %v4231 = vmul.f32 %v4176, 0.5
      %v4232 = vmul.f32 %v4110, 0.5
      %v4233 = vmul.f32 %v4179, 0.5
      %v4234 = vmul.f32 %v4112, 0.5
      %v4235 = vmul.f32 %v4181, 0.5
      %v4236 = vmul.f32 %v4115, 0.5
      %v4237 = vmul.f32 %v4184, 0.5
      %v4238 = vmul.f32 %v4117, 0.5
      %v4239 = vmul.f32 %v4186, 0.5
      %v4240 = vmul.f32 %v4120, 0.5
      %v4241 = vmul.f32 %v4189, 0.5
      %v4242 = vmul.f32 %v4122, 0.5
      %v4243 = vmul.f32 %v4191, 0.5
      %v4244 = vmul.f32 %v4125, 0.5
      %v4245 = vmul.f32 %v4194, 0.5
      %v4246 = vmul.f32 %v4127, 0.5
      %v4247 = vmul.f32 %v4196, 0.5
      %v4248 = vmul.f32 %v4130, 0.5
      %v4249 = vmul.f32 %v4199, 0.5
      %v4250 = vmul.f32 %v4132, 0.5
      %v4251 = vmul.f32 %v4201, 0.5
      %v4252 = vmul.f32 %v4135, 0.5
      %v4253 = vmul.f32 %v4204, 0.5
      %v4254 = vmul.f32 %v4137, 0.5
      %v4255 = vmul.f32 %v4206, 0.5
      %v4256 = vld [vmem:[%s49] sm:$0xff]
      %v4257 = vld [vmem:[%s49 + $0x8] sm:$0xff]
      %v4258 = vld [vmem:[%s49 + $0x10] sm:$0xff]
      %v4259 = vld [vmem:[%s49 + $0x18] sm:$0xff]
      %v4260 = vld [vmem:[%s49 + $0x20] sm:$0xff]
      %v4261 = vld [vmem:[%s49 + $0x28] sm:$0xff]
      %v4262 = vld [vmem:[%s49 + $0x30] sm:$0xff]
      %v4263 = vld [vmem:[%s49 + $0x38] sm:$0xff]
      %v4264 = vld [vmem:[%s49 + $0x40] sm:$0xff]
      %v4265 = vld [vmem:[%s49 + $0x48] sm:$0xff]
      %v4266 = vld [vmem:[%s49 + $0x50] sm:$0xff]
      %v4267 = vld [vmem:[%s49 + $0x58] sm:$0xff]
      %v4268 = vld [vmem:[%s49 + $0x60] sm:$0xff]
      %v4269 = vld [vmem:[%s49 + $0x68] sm:$0xff]
      %v4270 = vld [vmem:[%s49 + $0x70] sm:$0xff]
      %v4271 = vld [vmem:[%s49 + $0x78] sm:$0xff]
      %v4272 = vld [vmem:[%s49 + $0x80] sm:$0xff]
      %v4273 = vld [vmem:[%s49 + $0x88] sm:$0xff]
      %v4274 = vld [vmem:[%s49 + $0x90] sm:$0xff]
      %v4275 = vld [vmem:[%s49 + $0x98] sm:$0xff]
      %v4276 = vld [vmem:[%s49 + $0xa0] sm:$0xff]
      %v4277 = vld [vmem:[%s49 + $0xa8] sm:$0xff]
      %v4278 = vld [vmem:[%s49 + $0xb0] sm:$0xff]
      %v4279 = vld [vmem:[%s49 + $0xb8] sm:$0xff]
      %v4280 = vld [vmem:[%s49 + $0xc0] sm:$0xff]
      %v4281 = vld [vmem:[%s49 + $0xc8] sm:$0xff]
      %v4282 = vld [vmem:[%s49 + $0xd0] sm:$0xff]
      %v4283 = vld [vmem:[%s49 + $0xd8] sm:$0xff]
      %v4284 = vld [vmem:[%s49 + $0xe0] sm:$0xff]
      %v4285 = vld [vmem:[%s49 + $0xe8] sm:$0xff]
      %v4286 = vld [vmem:[%s49 + $0xf0] sm:$0xff]
      %v4287 = vld [vmem:[%s49 + $0xf8] sm:$0xff]
      %v4288 = vld [vmem:[%s49 + $0x100] sm:$0xff]
      %v4289 = vld [vmem:[%s49 + $0x108] sm:$0xff]
      %v4290 = vld [vmem:[%s49 + $0x110] sm:$0xff]
      %v4291 = vld [vmem:[%s49 + $0x118] sm:$0xff]
      %v4292 = vld [vmem:[%s49 + $0x120] sm:$0xff]
      %v4293 = vld [vmem:[%s49 + $0x128] sm:$0xff]
      %v4294 = vld [vmem:[%s49 + $0x130] sm:$0xff]
      %v4295 = vld [vmem:[%s49 + $0x138] sm:$0xff]
      %v4296 = vld [vmem:[%s49 + $0x140] sm:$0xff]
      %v4297 = vld [vmem:[%s49 + $0x148] sm:$0xff]
      %v4298 = vld [vmem:[%s49 + $0x150] sm:$0xff]
      %v4299 = vld [vmem:[%s49 + $0x158] sm:$0xff]
      %v4300 = vld [vmem:[%s49 + $0x160] sm:$0xff]
      %v4301 = vld [vmem:[%s49 + $0x168] sm:$0xff]
      %v4302 = vld [vmem:[%s49 + $0x170] sm:$0xff]
      %v4303 = vld [vmem:[%s49 + $0x178] sm:$0xff]
      %v4304 = vadd.f32 %v4208, %v4256
      %v4305 = vadd.f32 %v4209, %v4257
      %v4306 = vadd.f32 %v4210, %v4258
      %v4307 = vadd.f32 %v4211, %v4259
      %v4308 = vadd.f32 %v4212, %v4260
      %v4309 = vadd.f32 %v4213, %v4261
      %v4310 = vadd.f32 %v4214, %v4262
      %v4311 = vadd.f32 %v4215, %v4263
      %v4312 = vadd.f32 %v4216, %v4264
      %v4313 = vadd.f32 %v4217, %v4265
      %v4314 = vadd.f32 %v4218, %v4266
      %v4315 = vadd.f32 %v4219, %v4267
      %v4316 = vadd.f32 %v4220, %v4268
      %v4317 = vadd.f32 %v4221, %v4269
      %v4318 = vadd.f32 %v4222, %v4270
      %v4319 = vadd.f32 %v4223, %v4271
      %v4320 = vadd.f32 %v4224, %v4272
      %v4321 = vadd.f32 %v4225, %v4273
      %v4322 = vadd.f32 %v4226, %v4274
      %v4323 = vadd.f32 %v4227, %v4275
      %v4324 = vadd.f32 %v4228, %v4276
      %v4325 = vadd.f32 %v4229, %v4277
      %v4326 = vadd.f32 %v4230, %v4278
      %v4327 = vadd.f32 %v4231, %v4279
      %v4328 = vadd.f32 %v4232, %v4280
      %v4329 = vadd.f32 %v4233, %v4281
      %v4330 = vadd.f32 %v4234, %v4282
      %v4331 = vadd.f32 %v4235, %v4283
      %v4332 = vadd.f32 %v4236, %v4284
      %v4333 = vadd.f32 %v4237, %v4285
      %v4334 = vadd.f32 %v4238, %v4286
      %v4335 = vadd.f32 %v4239, %v4287
      %v4336 = vadd.f32 %v4240, %v4288
      %v4337 = vadd.f32 %v4241, %v4289
      %v4338 = vadd.f32 %v4242, %v4290
      %v4339 = vadd.f32 %v4243, %v4291
      %v4340 = vadd.f32 %v4244, %v4292
      %v4341 = vadd.f32 %v4245, %v4293
      %v4342 = vadd.f32 %v4246, %v4294
      %v4343 = vadd.f32 %v4247, %v4295
      %v4344 = vadd.f32 %v4248, %v4296
      %v4345 = vadd.f32 %v4249, %v4297
      %v4346 = vadd.f32 %v4250, %v4298
      %v4347 = vadd.f32 %v4251, %v4299
      %v4348 = vadd.f32 %v4252, %v4300
      %v4349 = vadd.f32 %v4253, %v4301
      %v4350 = vadd.f32 %v4254, %v4302
      %v4351 = vadd.f32 %v4255, %v4303
      %v4352 = vld [vmem:[%s1743] sm:$0x3]
      %v4354 = vperm.slane %v4352, 0
      %v4355 = vperm.slane %v4352, 1
      %v4358 = vadd.f32 %v4304, %v4354
      %v4359 = vadd.f32 %v4305, %v4355
      %v4360 = vadd.f32 %v4306, %v4354
      %v4361 = vadd.f32 %v4307, %v4355
      %v4362 = vadd.f32 %v4308, %v4354
      %v4363 = vadd.f32 %v4309, %v4355
      %v4364 = vadd.f32 %v4310, %v4354
      %v4365 = vadd.f32 %v4311, %v4355
      %v4366 = vadd.f32 %v4312, %v4354
      %v4367 = vadd.f32 %v4313, %v4355
      %v4368 = vadd.f32 %v4314, %v4354
      %v4369 = vadd.f32 %v4315, %v4355
      %v4370 = vadd.f32 %v4316, %v4354
      %v4371 = vadd.f32 %v4317, %v4355
      %v4372 = vadd.f32 %v4318, %v4354
      %v4373 = vadd.f32 %v4319, %v4355
      %v4374 = vadd.f32 %v4320, %v4354
      %v4375 = vadd.f32 %v4321, %v4355
      %v4376 = vadd.f32 %v4322, %v4354
      %v4377 = vadd.f32 %v4323, %v4355
      %v4378 = vadd.f32 %v4324, %v4354
      %v4379 = vadd.f32 %v4325, %v4355
      %v4380 = vadd.f32 %v4326, %v4354
      %v4381 = vadd.f32 %v4327, %v4355
      %v4382 = vadd.f32 %v4328, %v4354
      %v4383 = vadd.f32 %v4329, %v4355
      %v4384 = vadd.f32 %v4330, %v4354
      %v4385 = vadd.f32 %v4331, %v4355
      %v4386 = vadd.f32 %v4332, %v4354
      %v4387 = vadd.f32 %v4333, %v4355
      %v4388 = vadd.f32 %v4334, %v4354
      %v4389 = vadd.f32 %v4335, %v4355
      %v4390 = vadd.f32 %v4336, %v4354
      %v4391 = vadd.f32 %v4337, %v4355
      %v4392 = vadd.f32 %v4338, %v4354
      %v4393 = vadd.f32 %v4339, %v4355
      %v4394 = vadd.f32 %v4340, %v4354
      %v4395 = vadd.f32 %v4341, %v4355
      %v4396 = vadd.f32 %v4342, %v4354
      %v4397 = vadd.f32 %v4343, %v4355
      %v4398 = vadd.f32 %v4344, %v4354
      %v4399 = vadd.f32 %v4345, %v4355
      %v4400 = vadd.f32 %v4346, %v4354
      %v4401 = vadd.f32 %v4347, %v4355
      %v4402 = vadd.f32 %v4348, %v4354
      %v4403 = vadd.f32 %v4349, %v4355
      %v4404 = vadd.f32 %v4350, %v4354
      %v4405 = vadd.f32 %v4351, %v4355
      %v4406 = vsel %vm2314, %v4359, -inf
      %v4407 = vmax.f32 %v4358, %v4406
      %4408 = vmax.xlane.f32.xlu0 %v4407
      %v4409 = vpop.xlane.xlu0 %4408
      %v4410 = vsel %vm2314, %v4361, -inf
      %v4411 = vmax.f32 %v4360, %v4410
      %4412 = vmax.xlane.f32.xlu0 %v4411
      %v4413 = vpop.xlane.xlu0 %4412
      %v4414 = vsel %vm2314, %v4363, -inf
      %v4415 = vmax.f32 %v4362, %v4414
      %4416 = vmax.xlane.f32.xlu0 %v4415
      %v4417 = vpop.xlane.xlu0 %4416
      %v4418 = vsel %vm2314, %v4365, -inf
      %v4419 = vmax.f32 %v4364, %v4418
      %4420 = vmax.xlane.f32.xlu0 %v4419
      %v4421 = vpop.xlane.xlu0 %4420
      %v4422 = vsel %vm2314, %v4367, -inf
      %v4423 = vmax.f32 %v4366, %v4422
      %4424 = vmax.xlane.f32.xlu0 %v4423
      %v4425 = vpop.xlane.xlu0 %4424
      %v4426 = vsel %vm2314, %v4369, -inf
      %v4427 = vmax.f32 %v4368, %v4426
      %4428 = vmax.xlane.f32.xlu0 %v4427
      %v4429 = vpop.xlane.xlu0 %4428
      %v4430 = vsel %vm2314, %v4371, -inf
      %v4431 = vmax.f32 %v4370, %v4430
      %4432 = vmax.xlane.f32.xlu0 %v4431
      %v4433 = vpop.xlane.xlu0 %4432
      %v4434 = vsel %vm2314, %v4373, -inf
      %v4435 = vmax.f32 %v4372, %v4434
      %4436 = vmax.xlane.f32.xlu0 %v4435
      %v4437 = vpop.xlane.xlu0 %4436
      %v4438 = vsel %vm2314, %v4375, -inf
      %v4439 = vmax.f32 %v4374, %v4438
      %4440 = vmax.xlane.f32.xlu0 %v4439
      %v4441 = vpop.xlane.xlu0 %4440
      %v4442 = vsel %vm2314, %v4377, -inf
      %v4443 = vmax.f32 %v4376, %v4442
      %4444 = vmax.xlane.f32.xlu0 %v4443
      %v4445 = vpop.xlane.xlu0 %4444
      %v4446 = vsel %vm2314, %v4379, -inf
      %v4447 = vmax.f32 %v4378, %v4446
      %4448 = vmax.xlane.f32.xlu0 %v4447
      %v4449 = vpop.xlane.xlu0 %4448
      %v4450 = vsel %vm2314, %v4381, -inf
      %v4451 = vmax.f32 %v4380, %v4450
      %4452 = vmax.xlane.f32.xlu0 %v4451
      %v4453 = vpop.xlane.xlu0 %4452
      %v4454 = vsel %vm2314, %v4383, -inf
      %v4455 = vmax.f32 %v4382, %v4454
      %4456 = vmax.xlane.f32.xlu0 %v4455
      %v4457 = vpop.xlane.xlu0 %4456
      %v4458 = vsel %vm2314, %v4385, -inf
      %v4459 = vmax.f32 %v4384, %v4458
      %4460 = vmax.xlane.f32.xlu0 %v4459
      %v4461 = vpop.xlane.xlu0 %4460
      %v4462 = vsel %vm2314, %v4387, -inf
      %v4463 = vmax.f32 %v4386, %v4462
      %4464 = vmax.xlane.f32.xlu0 %v4463
      %v4465 = vpop.xlane.xlu0 %4464
      %v4466 = vsel %vm2314, %v4389, -inf
      %v4467 = vmax.f32 %v4388, %v4466
      %4468 = vmax.xlane.f32.xlu0 %v4467
      %v4469 = vpop.xlane.xlu0 %4468
      %v4470 = vsel %vm2314, %v4391, -inf
      %v4471 = vmax.f32 %v4390, %v4470
      %4472 = vmax.xlane.f32.xlu0 %v4471
      %v4473 = vpop.xlane.xlu0 %4472
      %v4474 = vsel %vm2314, %v4393, -inf
      %v4475 = vmax.f32 %v4392, %v4474
      %4476 = vmax.xlane.f32.xlu0 %v4475
      %v4477 = vpop.xlane.xlu0 %4476
      %v4478 = vsel %vm2314, %v4395, -inf
      %v4479 = vmax.f32 %v4394, %v4478
      %4480 = vmax.xlane.f32.xlu0 %v4479
      %v4481 = vpop.xlane.xlu0 %4480
      %v4482 = vsel %vm2314, %v4397, -inf
      %v4483 = vmax.f32 %v4396, %v4482
      %4484 = vmax.xlane.f32.xlu0 %v4483
      %v4485 = vpop.xlane.xlu0 %4484
      %v4486 = vsel %vm2314, %v4399, -inf
      %v4487 = vmax.f32 %v4398, %v4486
      %4488 = vmax.xlane.f32.xlu0 %v4487
      %v4489 = vpop.xlane.xlu0 %4488
      %v4490 = vsel %vm2314, %v4401, -inf
      %v4491 = vmax.f32 %v4400, %v4490
      %4492 = vmax.xlane.f32.xlu0 %v4491
      %v4493 = vpop.xlane.xlu0 %4492
      %v4494 = vsel %vm2314, %v4403, -inf
      %v4495 = vmax.f32 %v4402, %v4494
      %4496 = vmax.xlane.f32.xlu0 %v4495
      %v4497 = vpop.xlane.xlu0 %4496
      %v4498 = vsel %vm2314, %v4405, -inf
      %v4499 = vmax.f32 %v4404, %v4498
      %4500 = vmax.xlane.f32.xlu0 %v4499
      %v4501 = vpop.xlane.xlu0 %4500
      %v4502 = vsub.f32 %v4358, %v4409
      %v4503 = vsub.f32 %v4359, %v4409
      %v4504 = vsub.f32 %v4360, %v4413
      %v4505 = vsub.f32 %v4361, %v4413
      %v4506 = vsub.f32 %v4362, %v4417
      %v4507 = vsub.f32 %v4363, %v4417
      %v4508 = vsub.f32 %v4364, %v4421
      %v4509 = vsub.f32 %v4365, %v4421
      %v4510 = vsub.f32 %v4366, %v4425
      %v4511 = vsub.f32 %v4367, %v4425
      %v4512 = vsub.f32 %v4368, %v4429
      %v4513 = vsub.f32 %v4369, %v4429
      %v4514 = vsub.f32 %v4370, %v4433
      %v4515 = vsub.f32 %v4371, %v4433
      %v4516 = vsub.f32 %v4372, %v4437
      %v4517 = vsub.f32 %v4373, %v4437
      %v4518 = vsub.f32 %v4374, %v4441
      %v4519 = vsub.f32 %v4375, %v4441
      %v4520 = vsub.f32 %v4376, %v4445
      %v4521 = vsub.f32 %v4377, %v4445
      %v4522 = vsub.f32 %v4378, %v4449
      %v4523 = vsub.f32 %v4379, %v4449
      %v4524 = vsub.f32 %v4380, %v4453
      %v4525 = vsub.f32 %v4381, %v4453
      %v4526 = vsub.f32 %v4382, %v4457
      %v4527 = vsub.f32 %v4383, %v4457
      %v4528 = vsub.f32 %v4384, %v4461
      %v4529 = vsub.f32 %v4385, %v4461
      %v4530 = vsub.f32 %v4386, %v4465
      %v4531 = vsub.f32 %v4387, %v4465
      %v4532 = vsub.f32 %v4388, %v4469
      %v4533 = vsub.f32 %v4389, %v4469
      %v4534 = vsub.f32 %v4390, %v4473
      %v4535 = vsub.f32 %v4391, %v4473
      %v4536 = vsub.f32 %v4392, %v4477
      %v4537 = vsub.f32 %v4393, %v4477
      %v4538 = vsub.f32 %v4394, %v4481
      %v4539 = vsub.f32 %v4395, %v4481
      %v4540 = vsub.f32 %v4396, %v4485
      %v4541 = vsub.f32 %v4397, %v4485
      %v4542 = vsub.f32 %v4398, %v4489
      %v4543 = vsub.f32 %v4399, %v4489
      %v4544 = vsub.f32 %v4400, %v4493
      %v4545 = vsub.f32 %v4401, %v4493
      %v4546 = vsub.f32 %v4402, %v4497
      %v4547 = vsub.f32 %v4403, %v4497
      %v4548 = vsub.f32 %v4404, %v4501
      %v4549 = vsub.f32 %v4405, %v4501
      %v4550 = vmul.f32 %v4502, 1.442695
      %v4551 = vpow.pop %v4550
      %v4552 = vmul.f32 %v4503, 1.442695
      %v4553 = vpow.pop %v4552
      %v4554 = vmul.f32 %v4504, 1.442695
      %v4555 = vpow.pop %v4554
      %v4556 = vmul.f32 %v4505, 1.442695
      %v4557 = vpow.pop %v4556
      %v4558 = vmul.f32 %v4506, 1.442695
      %v4559 = vpow.pop %v4558
      %v4560 = vmul.f32 %v4507, 1.442695
      %v4561 = vpow.pop %v4560
      %v4562 = vmul.f32 %v4508, 1.442695
      %v4563 = vpow.pop %v4562
      %v4564 = vmul.f32 %v4509, 1.442695
      %v4565 = vpow.pop %v4564
      %v4566 = vmul.f32 %v4510, 1.442695
      %v4567 = vpow.pop %v4566
      %v4568 = vmul.f32 %v4511, 1.442695
      %v4569 = vpow.pop %v4568
      %v4570 = vmul.f32 %v4512, 1.442695
      %v4571 = vpow.pop %v4570
      %v4572 = vmul.f32 %v4513, 1.442695
      %v4573 = vpow.pop %v4572
      %v4574 = vmul.f32 %v4514, 1.442695
      %v4575 = vpow.pop %v4574
      %v4576 = vmul.f32 %v4515, 1.442695
      %v4577 = vpow.pop %v4576
      %v4578 = vmul.f32 %v4516, 1.442695
      %v4579 = vpow.pop %v4578
      %v4580 = vmul.f32 %v4517, 1.442695
      %v4581 = vpow.pop %v4580
      %v4582 = vmul.f32 %v4518, 1.442695
      %v4583 = vpow.pop %v4582
      %v4584 = vmul.f32 %v4519, 1.442695
      %v4585 = vpow.pop %v4584
      %v4586 = vmul.f32 %v4520, 1.442695
      %v4587 = vpow.pop %v4586
      %v4588 = vmul.f32 %v4521, 1.442695
      %v4589 = vpow.pop %v4588
      %v4590 = vmul.f32 %v4522, 1.442695
      %v4591 = vpow.pop %v4590
      %v4592 = vmul.f32 %v4523, 1.442695
      %v4593 = vpow.pop %v4592
      %v4594 = vmul.f32 %v4524, 1.442695
      %v4595 = vpow.pop %v4594
      %v4596 = vmul.f32 %v4525, 1.442695
      %v4597 = vpow.pop %v4596
      %v4598 = vmul.f32 %v4526, 1.442695
      %v4599 = vpow.pop %v4598
      %v4600 = vmul.f32 %v4527, 1.442695
      %v4601 = vpow.pop %v4600
      %v4602 = vmul.f32 %v4528, 1.442695
      %v4603 = vpow.pop %v4602
      %v4604 = vmul.f32 %v4529, 1.442695
      %v4605 = vpow.pop %v4604
      %v4606 = vmul.f32 %v4530, 1.442695
      %v4607 = vpow.pop %v4606
      %v4608 = vmul.f32 %v4531, 1.442695
      %v4609 = vpow.pop %v4608
      %v4610 = vmul.f32 %v4532, 1.442695
      %v4611 = vpow.pop %v4610
      %v4612 = vmul.f32 %v4533, 1.442695
      %v4613 = vpow.pop %v4612
      %v4614 = vmul.f32 %v4534, 1.442695
      %v4615 = vpow.pop %v4614
      %v4616 = vmul.f32 %v4535, 1.442695
      %v4617 = vpow.pop %v4616
      %v4618 = vmul.f32 %v4536, 1.442695
      %v4619 = vpow.pop %v4618
      %v4620 = vmul.f32 %v4537, 1.442695
      %v4621 = vpow.pop %v4620
      %v4622 = vmul.f32 %v4538, 1.442695
      %v4623 = vpow.pop %v4622
      %v4624 = vmul.f32 %v4539, 1.442695
      %v4625 = vpow.pop %v4624
      %v4626 = vmul.f32 %v4540, 1.442695
      %v4627 = vpow.pop %v4626
      %v4628 = vmul.f32 %v4541, 1.442695
      %v4629 = vpow.pop %v4628
      %v4630 = vmul.f32 %v4542, 1.442695
      %v4631 = vpow.pop %v4630
      %v4632 = vmul.f32 %v4543, 1.442695
      %v4633 = vpow.pop %v4632
      %v4634 = vmul.f32 %v4544, 1.442695
      %v4635 = vpow.pop %v4634
      %v4636 = vmul.f32 %v4545, 1.442695
      %v4637 = vpow.pop %v4636
      %v4638 = vmul.f32 %v4546, 1.442695
      %v4639 = vpow.pop %v4638
      %v4640 = vmul.f32 %v4547, 1.442695
      %v4641 = vpow.pop %v4640
      %v4642 = vmul.f32 %v4548, 1.442695
      %v4643 = vpow.pop %v4642
      %v4644 = vmul.f32 %v4549, 1.442695
      %v4645 = vpow.pop %v4644
      %v4646 = vsel %vm2314, %v4553, 0.0
      %v4647 = vadd.f32 %v4551, %v4646
      %4648 = vadd.xlane.f32.xlu0 %v4647
      %v4649 = vpop.xlane.xlu0 %4648
      %v4650 = vsel %vm2314, %v4557, 0.0
      %v4651 = vadd.f32 %v4555, %v4650
      %4652 = vadd.xlane.f32.xlu0 %v4651
      %v4653 = vpop.xlane.xlu0 %4652
      %v4654 = vsel %vm2314, %v4561, 0.0
      %v4655 = vadd.f32 %v4559, %v4654
      %4656 = vadd.xlane.f32.xlu0 %v4655
      %v4657 = vpop.xlane.xlu0 %4656
      %v4658 = vsel %vm2314, %v4565, 0.0
      %v4659 = vadd.f32 %v4563, %v4658
      %4660 = vadd.xlane.f32.xlu0 %v4659
      %v4661 = vpop.xlane.xlu0 %4660
      %v4662 = vsel %vm2314, %v4569, 0.0
      %v4663 = vadd.f32 %v4567, %v4662
      %4664 = vadd.xlane.f32.xlu0 %v4663
      %v4665 = vpop.xlane.xlu0 %4664
      %v4666 = vsel %vm2314, %v4573, 0.0
      %v4667 = vadd.f32 %v4571, %v4666
      %4668 = vadd.xlane.f32.xlu0 %v4667
      %v4669 = vpop.xlane.xlu0 %4668
      %v4670 = vsel %vm2314, %v4577, 0.0
      %v4671 = vadd.f32 %v4575, %v4670
      %4672 = vadd.xlane.f32.xlu0 %v4671
      %v4673 = vpop.xlane.xlu0 %4672
      %v4674 = vsel %vm2314, %v4581, 0.0
      %v4675 = vadd.f32 %v4579, %v4674
      %4676 = vadd.xlane.f32.xlu0 %v4675
      %v4677 = vpop.xlane.xlu0 %4676
      %v4678 = vsel %vm2314, %v4585, 0.0
      %v4679 = vadd.f32 %v4583, %v4678
      %4680 = vadd.xlane.f32.xlu0 %v4679
      %v4681 = vpop.xlane.xlu0 %4680
      %v4682 = vsel %vm2314, %v4589, 0.0
      %v4683 = vadd.f32 %v4587, %v4682
      %4684 = vadd.xlane.f32.xlu0 %v4683
      %v4685 = vpop.xlane.xlu0 %4684
      %v4686 = vsel %vm2314, %v4593, 0.0
      %v4687 = vadd.f32 %v4591, %v4686
      %4688 = vadd.xlane.f32.xlu0 %v4687
      %v4689 = vpop.xlane.xlu0 %4688
      %v4690 = vsel %vm2314, %v4597, 0.0
      %v4691 = vadd.f32 %v4595, %v4690
      %4692 = vadd.xlane.f32.xlu0 %v4691
      %v4693 = vpop.xlane.xlu0 %4692
      %v4694 = vsel %vm2314, %v4601, 0.0
      %v4695 = vadd.f32 %v4599, %v4694
      %4696 = vadd.xlane.f32.xlu0 %v4695
      %v4697 = vpop.xlane.xlu0 %4696
      %v4698 = vsel %vm2314, %v4605, 0.0
      %v4699 = vadd.f32 %v4603, %v4698
      %4700 = vadd.xlane.f32.xlu0 %v4699
      %v4701 = vpop.xlane.xlu0 %4700
      %v4702 = vsel %vm2314, %v4609, 0.0
      %v4703 = vadd.f32 %v4607, %v4702
      %4704 = vadd.xlane.f32.xlu0 %v4703
      %v4705 = vpop.xlane.xlu0 %4704
      %v4706 = vsel %vm2314, %v4613, 0.0
      %v4707 = vadd.f32 %v4611, %v4706
      %4708 = vadd.xlane.f32.xlu0 %v4707
      %v4709 = vpop.xlane.xlu0 %4708
      %v4710 = vsel %vm2314, %v4617, 0.0
      %v4711 = vadd.f32 %v4615, %v4710
      %4712 = vadd.xlane.f32.xlu0 %v4711
      %v4713 = vpop.xlane.xlu0 %4712
      %v4714 = vsel %vm2314, %v4621, 0.0
      %v4715 = vadd.f32 %v4619, %v4714
      %4716 = vadd.xlane.f32.xlu0 %v4715
      %v4717 = vpop.xlane.xlu0 %4716
      %v4718 = vsel %vm2314, %v4625, 0.0
      %v4719 = vadd.f32 %v4623, %v4718
      %4720 = vadd.xlane.f32.xlu0 %v4719
      %v4721 = vpop.xlane.xlu0 %4720
      %v4722 = vsel %vm2314, %v4629, 0.0
      %v4723 = vadd.f32 %v4627, %v4722
      %4724 = vadd.xlane.f32.xlu0 %v4723
      %v4725 = vpop.xlane.xlu0 %4724
      %v4726 = vsel %vm2314, %v4633, 0.0
      %v4727 = vadd.f32 %v4631, %v4726
      %4728 = vadd.xlane.f32.xlu0 %v4727
      %v4729 = vpop.xlane.xlu0 %4728
      %v4730 = vsel %vm2314, %v4637, 0.0
      %v4731 = vadd.f32 %v4635, %v4730
      %4732 = vadd.xlane.f32.xlu0 %v4731
      %v4733 = vpop.xlane.xlu0 %4732
      %v4734 = vsel %vm2314, %v4641, 0.0
      %v4735 = vadd.f32 %v4639, %v4734
      %4736 = vadd.xlane.f32.xlu0 %v4735
      %v4737 = vpop.xlane.xlu0 %4736
      %v4738 = vsel %vm2314, %v4645, 0.0
      %v4739 = vadd.f32 %v4643, %v4738
      %4740 = vadd.xlane.f32.xlu0 %v4739
      %v4741 = vpop.xlane.xlu0 %4740
      %v4742 = vrcp.pop %v4649
      %v4743 = vrcp.pop %v4653
      %v4744 = vrcp.pop %v4657
      %v4745 = vrcp.pop %v4661
      %v4746 = vrcp.pop %v4665
      %v4747 = vrcp.pop %v4669
      %v4748 = vrcp.pop %v4673
      %v4749 = vrcp.pop %v4677
      %v4750 = vrcp.pop %v4681
      %v4751 = vrcp.pop %v4685
      %v4752 = vrcp.pop %v4689
      %v4753 = vrcp.pop %v4693
      %v4754 = vrcp.pop %v4697
      %v4755 = vrcp.pop %v4701
      %v4756 = vrcp.pop %v4705
      %v4757 = vrcp.pop %v4709
      %v4758 = vrcp.pop %v4713
      %v4759 = vrcp.pop %v4717
      %v4760 = vrcp.pop %v4721
      %v4761 = vrcp.pop %v4725
      %v4762 = vrcp.pop %v4729
      %v4763 = vrcp.pop %v4733
      %v4764 = vrcp.pop %v4737
      %v4765 = vrcp.pop %v4741
      %v4766 = vmul.f32 %v4551, %v4742
      %v4767 = vmul.f32 %v4553, %v4742
      %v4768 = vmul.f32 %v4555, %v4743
      %v4769 = vmul.f32 %v4557, %v4743
      %v4770 = vmul.f32 %v4559, %v4744
      %v4771 = vmul.f32 %v4561, %v4744
      %v4772 = vmul.f32 %v4563, %v4745
      %v4773 = vmul.f32 %v4565, %v4745
      %v4774 = vmul.f32 %v4567, %v4746
      %v4775 = vmul.f32 %v4569, %v4746
      %v4776 = vmul.f32 %v4571, %v4747
      %v4777 = vmul.f32 %v4573, %v4747
      %v4778 = vmul.f32 %v4575, %v4748
      %v4779 = vmul.f32 %v4577, %v4748
      %v4780 = vmul.f32 %v4579, %v4749
      %v4781 = vmul.f32 %v4581, %v4749
      %v4782 = vmul.f32 %v4583, %v4750
      %v4783 = vmul.f32 %v4585, %v4750
      %v4784 = vmul.f32 %v4587, %v4751
      %v4785 = vmul.f32 %v4589, %v4751
      %v4786 = vmul.f32 %v4591, %v4752
      %v4787 = vmul.f32 %v4593, %v4752
      %v4788 = vmul.f32 %v4595, %v4753
      %v4789 = vmul.f32 %v4597, %v4753
      %v4790 = vmul.f32 %v4599, %v4754
      %v4791 = vmul.f32 %v4601, %v4754
      %v4792 = vmul.f32 %v4603, %v4755
      %v4793 = vmul.f32 %v4605, %v4755
      %v4794 = vmul.f32 %v4607, %v4756
      %v4795 = vmul.f32 %v4609, %v4756
      %v4796 = vmul.f32 %v4611, %v4757
      %v4797 = vmul.f32 %v4613, %v4757
      %v4798 = vmul.f32 %v4615, %v4758
      %v4799 = vmul.f32 %v4617, %v4758
      %v4800 = vmul.f32 %v4619, %v4759
      %v4801 = vmul.f32 %v4621, %v4759
      %v4802 = vmul.f32 %v4623, %v4760
      %v4803 = vmul.f32 %v4625, %v4760
      %v4804 = vmul.f32 %v4627, %v4761
      %v4805 = vmul.f32 %v4629, %v4761
      %v4806 = vmul.f32 %v4631, %v4762
      %v4807 = vmul.f32 %v4633, %v4762
      %v4808 = vmul.f32 %v4635, %v4763
      %v4809 = vmul.f32 %v4637, %v4763
      %v4810 = vmul.f32 %v4639, %v4764
      %v4811 = vmul.f32 %v4641, %v4764
      %v4812 = vmul.f32 %v4643, %v4765
      %v4813 = vmul.f32 %v4645, %v4765
      %v4814 = vpack.c.bf16 %v4768, %v4766
      %v4815 = vpack.c.bf16 %v4769, %v4767
      %v4816 = vpack.c.bf16 %v4772, %v4770
      %v4817 = vpack.c.bf16 %v4773, %v4771
      %v4818 = vpack.c.bf16 %v4776, %v4774
      %v4819 = vpack.c.bf16 %v4777, %v4775
      %v4820 = vpack.c.bf16 %v4780, %v4778
      %v4821 = vpack.c.bf16 %v4781, %v4779
      %v4822 = vpack.c.bf16 %v4784, %v4782
      %v4823 = vpack.c.bf16 %v4785, %v4783
      %v4824 = vpack.c.bf16 %v4788, %v4786
      %v4825 = vpack.c.bf16 %v4789, %v4787
      %v4826 = vpack.c.bf16 %v4792, %v4790
      %v4827 = vpack.c.bf16 %v4793, %v4791
      %v4828 = vpack.c.bf16 %v4796, %v4794
      %v4829 = vpack.c.bf16 %v4797, %v4795
      %v4830 = vpack.c.bf16 %v4800, %v4798
      %v4831 = vpack.c.bf16 %v4801, %v4799
      %v4832 = vpack.c.bf16 %v4804, %v4802
      %v4833 = vpack.c.bf16 %v4805, %v4803
      %v4834 = vpack.c.bf16 %v4808, %v4806
      %v4835 = vpack.c.bf16 %v4809, %v4807
      %v4836 = vpack.c.bf16 %v4812, %v4810
      %v4837 = vpack.c.bf16 %v4813, %v4811
      %v4839 = vsel %vm2314, %v4815, 0
      %v4842 = vsel %vm2314, %v4817, 0
      %v4845 = vsel %vm2314, %v4819, 0
      %v4848 = vsel %vm2314, %v4821, 0
      %v4851 = vsel %vm2314, %v4823, 0
      %v4854 = vsel %vm2314, %v4825, 0
      %v4857 = vsel %vm2314, %v4827, 0
      %v4860 = vsel %vm2314, %v4829, 0
      %v4863 = vsel %vm2314, %v4831, 0
      %v4866 = vsel %vm2314, %v4833, 0
      %v4869 = vsel %vm2314, %v4835, 0
      %v4872 = vsel %vm2314, %v4837, 0
      %4874 = vmatpush.bf16.msra.mxu0 %v3993
      %4875 = vmatpush.bf16.msra.mxu0 %v3992
      %4876 = vmatpush.bf16.msra.mxu0 %v3991
      %4877 = vmatpush.bf16.msra.mxu0 %v3990
      %4878 = vmatpush.bf16.msra.mxu0 %v3989
      %4879 = vmatpush.bf16.msra.mxu0 %v3988
      %4880 = vmatpush.bf16.msra.mxu0 %v3987
      %4881 = vmatpush.bf16.msra.mxu0 %v3986
      %4882 = vmatmul.bf16.gmra.mxu0 %v4814
      %v4883 = vpop.f32.mrf.mxu0
      %v4884 = vadd.f32 0.0, %v4883
      %v4885 = vpop.f32.mrf.mxu0
      %v4886 = vadd.f32 0.0, %v4885
      %4887 = vmatmul.bf16.gmra.mxu0 %v4816
      %v4888 = vpop.f32.mrf.mxu0
      %v4889 = vadd.f32 0.0, %v4888
      %v4890 = vpop.f32.mrf.mxu0
      %v4891 = vadd.f32 0.0, %v4890
      %4892 = vmatmul.bf16.gmra.mxu0 %v4818
      %v4893 = vpop.f32.mrf.mxu0
      %v4894 = vadd.f32 0.0, %v4893
      %v4895 = vpop.f32.mrf.mxu0
      %v4896 = vadd.f32 0.0, %v4895
      %4897 = vmatmul.bf16.gmra.mxu0 %v4820
      %v4898 = vpop.f32.mrf.mxu0
      %v4899 = vadd.f32 0.0, %v4898
      %v4900 = vpop.f32.mrf.mxu0
      %v4901 = vadd.f32 0.0, %v4900
      %4902 = vmatmul.bf16.gmra.mxu0 %v4822
      %v4903 = vpop.f32.mrf.mxu0
      %v4904 = vadd.f32 0.0, %v4903
      %v4905 = vpop.f32.mrf.mxu0
      %v4906 = vadd.f32 0.0, %v4905
      %4907 = vmatmul.bf16.gmra.mxu0 %v4824
      %v4908 = vpop.f32.mrf.mxu0
      %v4909 = vadd.f32 0.0, %v4908
      %v4910 = vpop.f32.mrf.mxu0
      %v4911 = vadd.f32 0.0, %v4910
      %4912 = vmatmul.bf16.gmra.mxu0 %v4826
      %v4913 = vpop.f32.mrf.mxu0
      %v4914 = vadd.f32 0.0, %v4913
      %v4915 = vpop.f32.mrf.mxu0
      %v4916 = vadd.f32 0.0, %v4915
      %4917 = vmatmul.bf16.gmra.mxu0 %v4828
      %v4918 = vpop.f32.mrf.mxu0
      %v4919 = vadd.f32 0.0, %v4918
      %v4920 = vpop.f32.mrf.mxu0
      %v4921 = vadd.f32 0.0, %v4920
      %4922 = vmatmul.bf16.gmra.mxu0 %v4830
      %v4923 = vpop.f32.mrf.mxu0
      %v4924 = vadd.f32 0.0, %v4923
      %v4925 = vpop.f32.mrf.mxu0
      %v4926 = vadd.f32 0.0, %v4925
      %4927 = vmatmul.bf16.gmra.mxu0 %v4832
      %v4928 = vpop.f32.mrf.mxu0
      %v4929 = vadd.f32 0.0, %v4928
      %v4930 = vpop.f32.mrf.mxu0
      %v4931 = vadd.f32 0.0, %v4930
      %4932 = vmatmul.bf16.gmra.mxu0 %v4834
      %v4933 = vpop.f32.mrf.mxu0
      %v4934 = vadd.f32 0.0, %v4933
      %v4935 = vpop.f32.mrf.mxu0
      %v4936 = vadd.f32 0.0, %v4935
      %4937 = vmatmul.bf16.gmra.mxu0 %v4836
      %v4938 = vpop.f32.mrf.mxu0
      %v4939 = vadd.f32 0.0, %v4938
      %v4940 = vpop.f32.mrf.mxu0
      %v4941 = vadd.f32 0.0, %v4940
      %4942 = vdwg.mxu0
      %4943 = vmatpush.bf16.msra.mxu0 0
      %4944 = vmatpush.bf16.msra.mxu0 0
      %4945 = vmatpush.bf16.msra.mxu0 0
      %4946 = vmatpush.bf16.msra.mxu0 0
      %4947 = vmatpush.bf16.msra.mxu0 %v3997
      %4948 = vmatpush.bf16.msra.mxu0 %v3996
      %4949 = vmatpush.bf16.msra.mxu0 %v3995
      %4950 = vmatpush.bf16.msra.mxu0 %v3994
      %4951 = vmatmul.bf16.gmra.mxu0 %v4839
      %v4952 = vpop.f32.mrf.mxu0
      %v4953 = vadd.f32 %v4884, %v4952
      %v4954 = vpop.f32.mrf.mxu0
      %v4955 = vadd.f32 %v4886, %v4954
      %4956 = vmatmul.bf16.gmra.mxu0 %v4842
      %v4957 = vpop.f32.mrf.mxu0
      %v4958 = vadd.f32 %v4889, %v4957
      %v4959 = vpop.f32.mrf.mxu0
      %v4960 = vadd.f32 %v4891, %v4959
      %4961 = vmatmul.bf16.gmra.mxu0 %v4845
      %v4962 = vpop.f32.mrf.mxu0
      %v4963 = vadd.f32 %v4894, %v4962
      %v4964 = vpop.f32.mrf.mxu0
      %v4965 = vadd.f32 %v4896, %v4964
      %4966 = vmatmul.bf16.gmra.mxu0 %v4848
      %v4967 = vpop.f32.mrf.mxu0
      %v4968 = vadd.f32 %v4899, %v4967
      %v4969 = vpop.f32.mrf.mxu0
      %v4970 = vadd.f32 %v4901, %v4969
      %4971 = vmatmul.bf16.gmra.mxu0 %v4851
      %v4972 = vpop.f32.mrf.mxu0
      %v4973 = vadd.f32 %v4904, %v4972
      %v4974 = vpop.f32.mrf.mxu0
      %v4975 = vadd.f32 %v4906, %v4974
      %4976 = vmatmul.bf16.gmra.mxu0 %v4854
      %v4977 = vpop.f32.mrf.mxu0
      %v4978 = vadd.f32 %v4909, %v4977
      %v4979 = vpop.f32.mrf.mxu0
      %v4980 = vadd.f32 %v4911, %v4979
      %4981 = vmatmul.bf16.gmra.mxu0 %v4857
      %v4982 = vpop.f32.mrf.mxu0
      %v4983 = vadd.f32 %v4914, %v4982
      %v4984 = vpop.f32.mrf.mxu0
      %v4985 = vadd.f32 %v4916, %v4984
      %4986 = vmatmul.bf16.gmra.mxu0 %v4860
      %v4987 = vpop.f32.mrf.mxu0
      %v4988 = vadd.f32 %v4919, %v4987
      %v4989 = vpop.f32.mrf.mxu0
      %v4990 = vadd.f32 %v4921, %v4989
      %4991 = vmatmul.bf16.gmra.mxu0 %v4863
      %v4992 = vpop.f32.mrf.mxu0
      %v4993 = vadd.f32 %v4924, %v4992
      %v4994 = vpop.f32.mrf.mxu0
      %v4995 = vadd.f32 %v4926, %v4994
      %4996 = vmatmul.bf16.gmra.mxu0 %v4866
      %v4997 = vpop.f32.mrf.mxu0
      %v4998 = vadd.f32 %v4929, %v4997
      %v4999 = vpop.f32.mrf.mxu0
      %v5000 = vadd.f32 %v4931, %v4999
      %5001 = vmatmul.bf16.gmra.mxu0 %v4869
      %v5002 = vpop.f32.mrf.mxu0
      %v5003 = vadd.f32 %v4934, %v5002
      %v5004 = vpop.f32.mrf.mxu0
      %v5005 = vadd.f32 %v4936, %v5004
      %5006 = vmatmul.bf16.gmra.mxu0 %v4872
      %v5007 = vpop.f32.mrf.mxu0
      %v5008 = vadd.f32 %v4939, %v5007
      %v5009 = vpop.f32.mrf.mxu0
      %v5010 = vadd.f32 %v4941, %v5009
      %5011 = vdwg.mxu0
      %5012 = vst.msk [vmem:[%s1780] sm:$0xff] %vm1905, %v4953
      %5013 = vst.msk [vmem:[%s1780 + $0x8] sm:$0xff] %vm1905, %v4955
      %5014 = vst.msk [vmem:[%s1780 + $0x10] sm:$0xff] %vm1905, %v4958
      %5015 = vst.msk [vmem:[%s1780 + $0x18] sm:$0xff] %vm1905, %v4960
      %5016 = vst.msk [vmem:[%s1780 + $0x20] sm:$0xff] %vm1905, %v4963
      %5017 = vst.msk [vmem:[%s1780 + $0x28] sm:$0xff] %vm1905, %v4965
      %5018 = vst.msk [vmem:[%s1780 + $0x30] sm:$0xff] %vm1905, %v4968
      %5019 = vst.msk [vmem:[%s1780 + $0x38] sm:$0xff] %vm1905, %v4970
      %5020 = vst.msk [vmem:[%s1780 + $0x40] sm:$0xff] %vm1905, %v4973
      %5021 = vst.msk [vmem:[%s1780 + $0x48] sm:$0xff] %vm1905, %v4975
      %5022 = vst.msk [vmem:[%s1780 + $0x50] sm:$0xff] %vm1905, %v4978
      %5023 = vst.msk [vmem:[%s1780 + $0x58] sm:$0xff] %vm1905, %v4980
      %5024 = vst.msk [vmem:[%s1780 + $0x60] sm:$0xff] %vm1905, %v4983
      %5025 = vst.msk [vmem:[%s1780 + $0x68] sm:$0xff] %vm1905, %v4985
      %5026 = vst.msk [vmem:[%s1780 + $0x70] sm:$0xff] %vm1905, %v4988
      %5027 = vst.msk [vmem:[%s1780 + $0x78] sm:$0xff] %vm1905, %v4990
      %5028 = vst.msk [vmem:[%s1780 + $0x80] sm:$0xff] %vm1905, %v4993
      %5029 = vst.msk [vmem:[%s1780 + $0x88] sm:$0xff] %vm1905, %v4995
      %5030 = vst.msk [vmem:[%s1780 + $0x90] sm:$0xff] %vm1905, %v4998
      %5031 = vst.msk [vmem:[%s1780 + $0x98] sm:$0xff] %vm1905, %v5000
      %5032 = vst.msk [vmem:[%s1780 + $0xa0] sm:$0xff] %vm1905, %v5003
      %5033 = vst.msk [vmem:[%s1780 + $0xa8] sm:$0xff] %vm1905, %v5005
      %5034 = vst.msk [vmem:[%s1780 + $0xb0] sm:$0xff] %vm1905, %v5008
      %5035 = vst.msk [vmem:[%s1780 + $0xb8] sm:$0xff] %vm1905, %v5010
      %v5036 = vld [vmem:[%s1699] sm:$0xff]
      %v5037 = vld [vmem:[%s1699 + $0x8] sm:$0xff]
      %v5038 = vld [vmem:[%s1699 + $0x10] sm:$0xff]
      %v5039 = vld [vmem:[%s1699 + $0x18] sm:$0xff]
      %v5040 = vld [vmem:[%s1699 + $0x20] sm:$0xff]
      %v5041 = vld [vmem:[%s1699 + $0x28] sm:$0xff]
      %v5042 = vpack.c.bf16 %v5037, %v5036
      %v5043 = vpack.c.bf16 %v5039, %v5038
      %v5044 = vpack.c.bf16 %v5041, %v5040
      %v5045 = vld [vmem:[%s1704] sm:$0xff]
      %v5046 = vld [vmem:[%s1704 + $0x8] sm:$0xff]
      %v5047 = vld [vmem:[%s1704 + $0x10] sm:$0xff]
      %v5048 = vld [vmem:[%s1704 + $0x18] sm:$0xff]
      %v5049 = vld [vmem:[%s1704 + $0x20] sm:$0xff]
      %v5050 = vld [vmem:[%s1704 + $0x28] sm:$0xff]
      %v5051 = vld [vmem:[%s1704 + $0x30] sm:$0xff]
      %v5052 = vld [vmem:[%s1704 + $0x38] sm:$0xff]
      %v5053 = vld [vmem:[%s1704 + $0x40] sm:$0xff]
      %v5054 = vld [vmem:[%s1704 + $0x48] sm:$0xff]
      %v5055 = vld [vmem:[%s1704 + $0x50] sm:$0xff]
      %v5056 = vld [vmem:[%s1704 + $0x58] sm:$0xff]
      %v5057 = vld [vmem:[%s1704 + $0x60] sm:$0xff]
      %v5058 = vld [vmem:[%s1704 + $0x68] sm:$0xff]
      %v5059 = vld [vmem:[%s1704 + $0x70] sm:$0xff]
      %v5060 = vld [vmem:[%s1704 + $0x78] sm:$0xff]
      %v5061 = vld [vmem:[%s1704 + $0x80] sm:$0xff]
      %v5062 = vld [vmem:[%s1704 + $0x88] sm:$0xff]
      %v5063 = vld [vmem:[%s1704 + $0x90] sm:$0xff]
      %v5064 = vld [vmem:[%s1704 + $0x98] sm:$0xff]
      %v5065 = vld [vmem:[%s1704 + $0xa0] sm:$0xff]
      %v5066 = vld [vmem:[%s1704 + $0xa8] sm:$0xff]
      %v5067 = vld [vmem:[%s1704 + $0xb0] sm:$0xff]
      %v5068 = vld [vmem:[%s1704 + $0xb8] sm:$0xff]
      %v5069 = vpack.c.bf16 %v5046, %v5045
      %v5070 = vpack.c.bf16 %v5048, %v5047
      %v5071 = vpack.c.bf16 %v5050, %v5049
      %v5072 = vpack.c.bf16 %v5052, %v5051
      %v5073 = vpack.c.bf16 %v5054, %v5053
      %v5074 = vpack.c.bf16 %v5056, %v5055
      %v5075 = vpack.c.bf16 %v5058, %v5057
      %v5076 = vpack.c.bf16 %v5060, %v5059
      %v5077 = vpack.c.bf16 %v5062, %v5061
      %v5078 = vpack.c.bf16 %v5064, %v5063
      %v5079 = vpack.c.bf16 %v5066, %v5065
      %v5080 = vpack.c.bf16 %v5068, %v5067
      %v5081 = vld [vmem:[%s1709] sm:$0xff]
      %v5082 = vld [vmem:[%s1709 + $0x8] sm:$0xff]
      %v5083 = vld [vmem:[%s1709 + $0x10] sm:$0xff]
      %v5084 = vld [vmem:[%s1709 + $0x18] sm:$0xff]
      %v5085 = vld [vmem:[%s1709 + $0x20] sm:$0xff]
      %v5086 = vld [vmem:[%s1709 + $0x28] sm:$0xff]
      %v5087 = vld [vmem:[%s1709 + $0x30] sm:$0xff]
      %v5088 = vld [vmem:[%s1709 + $0x38] sm:$0xff]
      %v5089 = vld [vmem:[%s1709 + $0x40] sm:$0xff]
      %v5090 = vld [vmem:[%s1709 + $0x48] sm:$0xff]
      %v5091 = vld [vmem:[%s1709 + $0x50] sm:$0xff]
      %v5092 = vld [vmem:[%s1709 + $0x58] sm:$0xff]
      %v5093 = vld [vmem:[%s1709 + $0x60] sm:$0xff]
      %v5094 = vld [vmem:[%s1709 + $0x68] sm:$0xff]
      %v5095 = vld [vmem:[%s1709 + $0x70] sm:$0xff]
      %v5096 = vld [vmem:[%s1709 + $0x78] sm:$0xff]
      %v5097 = vld [vmem:[%s1709 + $0x80] sm:$0xff]
      %v5098 = vld [vmem:[%s1709 + $0x88] sm:$0xff]
      %v5099 = vld [vmem:[%s1709 + $0x90] sm:$0xff]
      %v5100 = vld [vmem:[%s1709 + $0x98] sm:$0xff]
      %v5101 = vld [vmem:[%s1709 + $0xa0] sm:$0xff]
      %v5102 = vld [vmem:[%s1709 + $0xa8] sm:$0xff]
      %v5103 = vld [vmem:[%s1709 + $0xb0] sm:$0xff]
      %v5104 = vld [vmem:[%s1709 + $0xb8] sm:$0xff]
      %v5105 = vpack.c.bf16 %v5082, %v5081
      %v5106 = vpack.c.bf16 %v5084, %v5083
      %v5107 = vpack.c.bf16 %v5086, %v5085
      %v5108 = vpack.c.bf16 %v5088, %v5087
      %v5109 = vpack.c.bf16 %v5090, %v5089
      %v5110 = vpack.c.bf16 %v5092, %v5091
      %v5111 = vpack.c.bf16 %v5094, %v5093
      %v5112 = vpack.c.bf16 %v5096, %v5095
      %v5113 = vpack.c.bf16 %v5098, %v5097
      %v5114 = vpack.c.bf16 %v5100, %v5099
      %v5115 = vpack.c.bf16 %v5102, %v5101
      %v5116 = vpack.c.bf16 %v5104, %v5103
      %v5118 = vsel %vm3026, %v5042, 0
      %v5121 = vsel %vm3026, %v5043, 0
      %v5124 = vsel %vm3026, %v5044, 0
      %v5127 = vsel %vm3026, %v5069, 0
      %v5130 = vsel %vm3026, %v5070, 0
      %v5133 = vsel %vm3026, %v5071, 0
      %v5136 = vsel %vm3026, %v5072, 0
      %v5139 = vsel %vm3026, %v5073, 0
      %v5142 = vsel %vm3026, %v5074, 0
      %v5145 = vsel %vm3026, %v5075, 0
      %v5148 = vsel %vm3026, %v5076, 0
      %v5151 = vsel %vm3026, %v5077, 0
      %v5154 = vsel %vm3026, %v5078, 0
      %v5157 = vsel %vm3026, %v5079, 0
      %v5160 = vsel %vm3026, %v5080, 0
      %5162 = vmatpush.bf16.xpose.msra.mxu0 %v5148
      %5163 = vmatpush.bf16.xpose.msra.mxu0 %v5145
      %5164 = vmatpush.bf16.xpose.msra.mxu0 %v5142
      %5165 = vmatpush.bf16.xpose.msra.mxu0 %v5139
      %5166 = vmatpush.bf16.xpose.msra.mxu0 %v5136
      %5167 = vmatpush.bf16.xpose.msra.mxu0 %v5133
      %5168 = vmatpush.bf16.xpose.msra.mxu0 %v5130
      %5169 = vmatpush.bf16.xpose.msra.mxu0 %v5127
      %5170 = vmatmul.bf16.gmra.mxu0 %v5118
      %v5171 = vpop.f32.mrf.mxu0
      %v5172 = vadd.f32 0.0, %v5171
      %v5173 = vpop.f32.mrf.mxu0
      %v5174 = vadd.f32 0.0, %v5173
      %5175 = vmatmul.bf16.gmra.mxu0 %v5121
      %v5176 = vpop.f32.mrf.mxu0
      %v5177 = vadd.f32 0.0, %v5176
      %v5178 = vpop.f32.mrf.mxu0
      %v5179 = vadd.f32 0.0, %v5178
      %5180 = vmatmul.bf16.gmra.mxu0 %v5124
      %v5181 = vpop.f32.mrf.mxu0
      %v5182 = vadd.f32 0.0, %v5181
      %v5183 = vpop.f32.mrf.mxu0
      %v5184 = vadd.f32 0.0, %v5183
      %5185 = vdwg.mxu0
      %5186 = vmatpush.bf16.xpose.msra.mxu0 0
      %5187 = vmatpush.bf16.xpose.msra.mxu0 0
      %5188 = vmatpush.bf16.xpose.msra.mxu0 0
      %5189 = vmatpush.bf16.xpose.msra.mxu0 0
      %5190 = vmatpush.bf16.xpose.msra.mxu0 %v5160
      %5191 = vmatpush.bf16.xpose.msra.mxu0 %v5157
      %5192 = vmatpush.bf16.xpose.msra.mxu0 %v5154
      %5193 = vmatpush.bf16.xpose.msra.mxu0 %v5151
      %5194 = vmatmul.bf16.gmra.mxu0 %v5118
      %v5195 = vpop.f32.mrf.mxu0
      %v5196 = vadd.f32 0.0, %v5195
      %v5197 = vpop.f32.mrf.mxu0
      %v5198 = vadd.f32 0.0, %v5197
      %5199 = vmatmul.bf16.gmra.mxu0 %v5121
      %v5200 = vpop.f32.mrf.mxu0
      %v5201 = vadd.f32 0.0, %v5200
      %v5202 = vpop.f32.mrf.mxu0
      %v5203 = vadd.f32 0.0, %v5202
      %5204 = vmatmul.bf16.gmra.mxu0 %v5124
      %v5205 = vpop.f32.mrf.mxu0
      %v5206 = vadd.f32 0.0, %v5205
      %v5207 = vpop.f32.mrf.mxu0
      %v5208 = vadd.f32 0.0, %v5207
      %5209 = vdwg.mxu0
      %v5210 = vmul.f32 %v5172, 0.125
      %v5211 = vmul.f32 %v5196, 0.125
      %v5212 = vmul.f32 %v5174, 0.125
      %v5213 = vmul.f32 %v5198, 0.125
      %v5214 = vmul.f32 %v5177, 0.125
      %v5215 = vmul.f32 %v5201, 0.125
      %v5216 = vmul.f32 %v5179, 0.125
      %v5217 = vmul.f32 %v5203, 0.125
      %v5218 = vmul.f32 %v5182, 0.125
      %v5219 = vmul.f32 %v5206, 0.125
      %v5220 = vmul.f32 %v5184, 0.125
      %v5221 = vmul.f32 %v5208, 0.125
      %v5222 = vld [vmem:[%s51] sm:$0xff]
      %v5223 = vld [vmem:[%s51 + $0x8] sm:$0xff]
      %v5224 = vld [vmem:[%s51 + $0x10] sm:$0xff]
      %v5225 = vld [vmem:[%s51 + $0x18] sm:$0xff]
      %v5226 = vld [vmem:[%s51 + $0x20] sm:$0xff]
      %v5227 = vld [vmem:[%s51 + $0x28] sm:$0xff]
      %v5228 = vld [vmem:[%s51 + $0x30] sm:$0xff]
      %v5229 = vld [vmem:[%s51 + $0x38] sm:$0xff]
      %v5230 = vld [vmem:[%s51 + $0x40] sm:$0xff]
      %v5231 = vld [vmem:[%s51 + $0x48] sm:$0xff]
      %v5232 = vld [vmem:[%s51 + $0x50] sm:$0xff]
      %v5233 = vld [vmem:[%s51 + $0x58] sm:$0xff]
      %v5234 = vadd.f32 %v5210, %v5222
      %v5235 = vadd.f32 %v5211, %v5223
      %v5236 = vadd.f32 %v5212, %v5224
      %v5237 = vadd.f32 %v5213, %v5225
      %v5238 = vadd.f32 %v5214, %v5226
      %v5239 = vadd.f32 %v5215, %v5227
      %v5240 = vadd.f32 %v5216, %v5228
      %v5241 = vadd.f32 %v5217, %v5229
      %v5242 = vadd.f32 %v5218, %v5230
      %v5243 = vadd.f32 %v5219, %v5231
      %v5244 = vadd.f32 %v5220, %v5232
      %v5245 = vadd.f32 %v5221, %v5233
      %v5246 = vld [vmem:[%s1747] sm:$0x3]
      %v5248 = vperm.slane %v5246, 0
      %v5249 = vperm.slane %v5246, 1
      %v5252 = vadd.f32 %v5234, %v5248
      %v5253 = vadd.f32 %v5235, %v5249
      %v5254 = vadd.f32 %v5236, %v5248
      %v5255 = vadd.f32 %v5237, %v5249
      %v5256 = vadd.f32 %v5238, %v5248
      %v5257 = vadd.f32 %v5239, %v5249
      %v5258 = vadd.f32 %v5240, %v5248
      %v5259 = vadd.f32 %v5241, %v5249
      %v5260 = vadd.f32 %v5242, %v5248
      %v5261 = vadd.f32 %v5243, %v5249
      %v5262 = vadd.f32 %v5244, %v5248
      %v5263 = vadd.f32 %v5245, %v5249
      %v5264 = vsel %vm2314, %v5253, -inf
      %v5265 = vmax.f32 %v5252, %v5264
      %5266 = vmax.xlane.f32.xlu0 %v5265
      %v5267 = vpop.xlane.xlu0 %5266
      %v5268 = vsel %vm2314, %v5255, -inf
      %v5269 = vmax.f32 %v5254, %v5268
      %5270 = vmax.xlane.f32.xlu0 %v5269
      %v5271 = vpop.xlane.xlu0 %5270
      %v5272 = vsel %vm2314, %v5257, -inf
      %v5273 = vmax.f32 %v5256, %v5272
      %5274 = vmax.xlane.f32.xlu0 %v5273
      %v5275 = vpop.xlane.xlu0 %5274
      %v5276 = vsel %vm2314, %v5259, -inf
      %v5277 = vmax.f32 %v5258, %v5276
      %5278 = vmax.xlane.f32.xlu0 %v5277
      %v5279 = vpop.xlane.xlu0 %5278
      %v5280 = vsel %vm2314, %v5261, -inf
      %v5281 = vmax.f32 %v5260, %v5280
      %5282 = vmax.xlane.f32.xlu0 %v5281
      %v5283 = vpop.xlane.xlu0 %5282
      %v5284 = vsel %vm2314, %v5263, -inf
      %v5285 = vmax.f32 %v5262, %v5284
      %5286 = vmax.xlane.f32.xlu0 %v5285
      %v5287 = vpop.xlane.xlu0 %5286
      %v5288 = vsub.f32 %v5252, %v5267
      %v5289 = vsub.f32 %v5253, %v5267
      %v5290 = vsub.f32 %v5254, %v5271
      %v5291 = vsub.f32 %v5255, %v5271
      %v5292 = vsub.f32 %v5256, %v5275
      %v5293 = vsub.f32 %v5257, %v5275
      %v5294 = vsub.f32 %v5258, %v5279
      %v5295 = vsub.f32 %v5259, %v5279
      %v5296 = vsub.f32 %v5260, %v5283
      %v5297 = vsub.f32 %v5261, %v5283
      %v5298 = vsub.f32 %v5262, %v5287
      %v5299 = vsub.f32 %v5263, %v5287
      %v5300 = vmul.f32 %v5288, 1.442695
      %v5301 = vpow.pop %v5300
      %v5302 = vmul.f32 %v5289, 1.442695
      %v5303 = vpow.pop %v5302
      %v5304 = vmul.f32 %v5290, 1.442695
      %v5305 = vpow.pop %v5304
      %v5306 = vmul.f32 %v5291, 1.442695
      %v5307 = vpow.pop %v5306
      %v5308 = vmul.f32 %v5292, 1.442695
      %v5309 = vpow.pop %v5308
      %v5310 = vmul.f32 %v5293, 1.442695
      %v5311 = vpow.pop %v5310
      %v5312 = vmul.f32 %v5294, 1.442695
      %v5313 = vpow.pop %v5312
      %v5314 = vmul.f32 %v5295, 1.442695
      %v5315 = vpow.pop %v5314
      %v5316 = vmul.f32 %v5296, 1.442695
      %v5317 = vpow.pop %v5316
      %v5318 = vmul.f32 %v5297, 1.442695
      %v5319 = vpow.pop %v5318
      %v5320 = vmul.f32 %v5298, 1.442695
      %v5321 = vpow.pop %v5320
      %v5322 = vmul.f32 %v5299, 1.442695
      %v5323 = vpow.pop %v5322
      %v5324 = vsel %vm2314, %v5303, 0.0
      %v5325 = vadd.f32 %v5301, %v5324
      %5326 = vadd.xlane.f32.xlu0 %v5325
      %v5327 = vpop.xlane.xlu0 %5326
      %v5328 = vsel %vm2314, %v5307, 0.0
      %v5329 = vadd.f32 %v5305, %v5328
      %5330 = vadd.xlane.f32.xlu0 %v5329
      %v5331 = vpop.xlane.xlu0 %5330
      %v5332 = vsel %vm2314, %v5311, 0.0
      %v5333 = vadd.f32 %v5309, %v5332
      %5334 = vadd.xlane.f32.xlu0 %v5333
      %v5335 = vpop.xlane.xlu0 %5334
      %v5336 = vsel %vm2314, %v5315, 0.0
      %v5337 = vadd.f32 %v5313, %v5336
      %5338 = vadd.xlane.f32.xlu0 %v5337
      %v5339 = vpop.xlane.xlu0 %5338
      %v5340 = vsel %vm2314, %v5319, 0.0
      %v5341 = vadd.f32 %v5317, %v5340
      %5342 = vadd.xlane.f32.xlu0 %v5341
      %v5343 = vpop.xlane.xlu0 %5342
      %v5344 = vsel %vm2314, %v5323, 0.0
      %v5345 = vadd.f32 %v5321, %v5344
      %5346 = vadd.xlane.f32.xlu0 %v5345
      %v5347 = vpop.xlane.xlu0 %5346
      %v5348 = vrcp.pop %v5327
      %v5349 = vrcp.pop %v5331
      %v5350 = vrcp.pop %v5335
      %v5351 = vrcp.pop %v5339
      %v5352 = vrcp.pop %v5343
      %v5353 = vrcp.pop %v5347
      %v5354 = vmul.f32 %v5301, %v5348
      %v5355 = vmul.f32 %v5303, %v5348
      %v5356 = vmul.f32 %v5305, %v5349
      %v5357 = vmul.f32 %v5307, %v5349
      %v5358 = vmul.f32 %v5309, %v5350
      %v5359 = vmul.f32 %v5311, %v5350
      %v5360 = vmul.f32 %v5313, %v5351
      %v5361 = vmul.f32 %v5315, %v5351
      %v5362 = vmul.f32 %v5317, %v5352
      %v5363 = vmul.f32 %v5319, %v5352
      %v5364 = vmul.f32 %v5321, %v5353
      %v5365 = vmul.f32 %v5323, %v5353
      %v5366 = vpack.c.bf16 %v5356, %v5354
      %v5367 = vpack.c.bf16 %v5357, %v5355
      %v5368 = vpack.c.bf16 %v5360, %v5358
      %v5369 = vpack.c.bf16 %v5361, %v5359
      %v5370 = vpack.c.bf16 %v5364, %v5362
      %v5371 = vpack.c.bf16 %v5365, %v5363
      %v5373 = vsel %vm2314, %v5367, 0
      %v5376 = vsel %vm2314, %v5369, 0
      %v5379 = vsel %vm2314, %v5371, 0
      %5381 = vmatpush.bf16.msra.mxu0 %v5112
      %5382 = vmatpush.bf16.msra.mxu0 %v5111
      %5383 = vmatpush.bf16.msra.mxu0 %v5110
      %5384 = vmatpush.bf16.msra.mxu0 %v5109
      %5385 = vmatpush.bf16.msra.mxu0 %v5108
      %5386 = vmatpush.bf16.msra.mxu0 %v5107
      %5387 = vmatpush.bf16.msra.mxu0 %v5106
      %5388 = vmatpush.bf16.msra.mxu0 %v5105
      %5389 = vmatmul.bf16.gmra.mxu0 %v5366
      %v5390 = vpop.f32.mrf.mxu0
      %v5391 = vadd.f32 0.0, %v5390
      %v5392 = vpop.f32.mrf.mxu0
      %v5393 = vadd.f32 0.0, %v5392
      %5394 = vmatmul.bf16.gmra.mxu0 %v5368
      %v5395 = vpop.f32.mrf.mxu0
      %v5396 = vadd.f32 0.0, %v5395
      %v5397 = vpop.f32.mrf.mxu0
      %v5398 = vadd.f32 0.0, %v5397
      %5399 = vmatmul.bf16.gmra.mxu0 %v5370
      %v5400 = vpop.f32.mrf.mxu0
      %v5401 = vadd.f32 0.0, %v5400
      %v5402 = vpop.f32.mrf.mxu0
      %v5403 = vadd.f32 0.0, %v5402
      %5404 = vdwg.mxu0
      %5405 = vmatpush.bf16.msra.mxu0 0
      %5406 = vmatpush.bf16.msra.mxu0 0
      %5407 = vmatpush.bf16.msra.mxu0 0
      %5408 = vmatpush.bf16.msra.mxu0 0
      %5409 = vmatpush.bf16.msra.mxu0 %v5116
      %5410 = vmatpush.bf16.msra.mxu0 %v5115
      %5411 = vmatpush.bf16.msra.mxu0 %v5114
      %5412 = vmatpush.bf16.msra.mxu0 %v5113
      %5413 = vmatmul.bf16.gmra.mxu0 %v5373
      %v5414 = vpop.f32.mrf.mxu0
      %v5415 = vadd.f32 %v5391, %v5414
      %v5416 = vpop.f32.mrf.mxu0
      %v5417 = vadd.f32 %v5393, %v5416
      %5418 = vmatmul.bf16.gmra.mxu0 %v5376
      %v5419 = vpop.f32.mrf.mxu0
      %v5420 = vadd.f32 %v5396, %v5419
      %v5421 = vpop.f32.mrf.mxu0
      %v5422 = vadd.f32 %v5398, %v5421
      %5423 = vmatmul.bf16.gmra.mxu0 %v5379
      %v5424 = vpop.f32.mrf.mxu0
      %v5425 = vadd.f32 %v5401, %v5424
      %v5426 = vpop.f32.mrf.mxu0
      %v5427 = vadd.f32 %v5403, %v5426
      %5428 = vdwg.mxu0
      %5429 = vst.msk [vmem:[%s1785] sm:$0xff] %vm3026, %v5415
      %5430 = vst.msk [vmem:[%s1785 + $0x8] sm:$0xff] %vm3026, %v5417
      %5431 = vst.msk [vmem:[%s1785 + $0x10] sm:$0xff] %vm3026, %v5420
      %5432 = vst.msk [vmem:[%s1785 + $0x18] sm:$0xff] %vm3026, %v5422
      %5433 = vst.msk [vmem:[%s1785 + $0x20] sm:$0xff] %vm3026, %v5425
      %5434 = vst.msk [vmem:[%s1785 + $0x28] sm:$0xff] %vm3026, %v5427
      %v5435 = vld [vmem:[%s1714] sm:$0xff]
      %v5436 = vld [vmem:[%s1714 + $0x8] sm:$0xf]
      %v5437 = vpack.c.bf16 %v5436, %v5435
      %v5438 = vld [vmem:[%s1719] sm:$0xff]
      %v5439 = vld [vmem:[%s1719 + $0x8] sm:$0xff]
      %v5440 = vld [vmem:[%s1719 + $0x10] sm:$0xff]
      %v5441 = vld [vmem:[%s1719 + $0x18] sm:$0xff]
      %v5442 = vld [vmem:[%s1719 + $0x20] sm:$0xff]
      %v5443 = vld [vmem:[%s1719 + $0x28] sm:$0xff]
      %v5444 = vld [vmem:[%s1719 + $0x30] sm:$0xff]
      %v5445 = vld [vmem:[%s1719 + $0x38] sm:$0xff]
      %v5446 = vld [vmem:[%s1719 + $0x40] sm:$0xff]
      %v5447 = vld [vmem:[%s1719 + $0x48] sm:$0xff]
      %v5448 = vld [vmem:[%s1719 + $0x50] sm:$0xff]
      %v5449 = vld [vmem:[%s1719 + $0x58] sm:$0xff]
      %v5450 = vld [vmem:[%s1719 + $0x60] sm:$0xff]
      %v5451 = vld [vmem:[%s1719 + $0x68] sm:$0xff]
      %v5452 = vld [vmem:[%s1719 + $0x70] sm:$0xff]
      %v5453 = vld [vmem:[%s1719 + $0x78] sm:$0xff]
      %v5454 = vld [vmem:[%s1719 + $0x80] sm:$0xff]
      %v5455 = vld [vmem:[%s1719 + $0x88] sm:$0xff]
      %v5456 = vld [vmem:[%s1719 + $0x90] sm:$0xff]
      %v5457 = vld [vmem:[%s1719 + $0x98] sm:$0xff]
      %v5458 = vld [vmem:[%s1719 + $0xa0] sm:$0xff]
      %v5459 = vld [vmem:[%s1719 + $0xa8] sm:$0xff]
      %v5460 = vld [vmem:[%s1719 + $0xb0] sm:$0xff]
      %v5461 = vld [vmem:[%s1719 + $0xb8] sm:$0xff]
      %v5462 = vpack.c.bf16 %v5439, %v5438
      %v5463 = vpack.c.bf16 %v5441, %v5440
      %v5464 = vpack.c.bf16 %v5443, %v5442
      %v5465 = vpack.c.bf16 %v5445, %v5444
      %v5466 = vpack.c.bf16 %v5447, %v5446
      %v5467 = vpack.c.bf16 %v5449, %v5448
      %v5468 = vpack.c.bf16 %v5451, %v5450
      %v5469 = vpack.c.bf16 %v5453, %v5452
      %v5470 = vpack.c.bf16 %v5455, %v5454
      %v5471 = vpack.c.bf16 %v5457, %v5456
      %v5472 = vpack.c.bf16 %v5459, %v5458
      %v5473 = vpack.c.bf16 %v5461, %v5460
      %v5474 = vld [vmem:[%s1724] sm:$0xff]
      %v5475 = vld [vmem:[%s1724 + $0x8] sm:$0xff]
      %v5476 = vld [vmem:[%s1724 + $0x10] sm:$0xff]
      %v5477 = vld [vmem:[%s1724 + $0x18] sm:$0xff]
      %v5478 = vld [vmem:[%s1724 + $0x20] sm:$0xff]
      %v5479 = vld [vmem:[%s1724 + $0x28] sm:$0xff]
      %v5480 = vld [vmem:[%s1724 + $0x30] sm:$0xff]
      %v5481 = vld [vmem:[%s1724 + $0x38] sm:$0xff]
      %v5482 = vld [vmem:[%s1724 + $0x40] sm:$0xff]
      %v5483 = vld [vmem:[%s1724 + $0x48] sm:$0xff]
      %v5484 = vld [vmem:[%s1724 + $0x50] sm:$0xff]
      %v5485 = vld [vmem:[%s1724 + $0x58] sm:$0xff]
      %v5486 = vld [vmem:[%s1724 + $0x60] sm:$0xff]
      %v5487 = vld [vmem:[%s1724 + $0x68] sm:$0xff]
      %v5488 = vld [vmem:[%s1724 + $0x70] sm:$0xff]
      %v5489 = vld [vmem:[%s1724 + $0x78] sm:$0xff]
      %v5490 = vld [vmem:[%s1724 + $0x80] sm:$0xff]
      %v5491 = vld [vmem:[%s1724 + $0x88] sm:$0xff]
      %v5492 = vld [vmem:[%s1724 + $0x90] sm:$0xff]
      %v5493 = vld [vmem:[%s1724 + $0x98] sm:$0xff]
      %v5494 = vld [vmem:[%s1724 + $0xa0] sm:$0xff]
      %v5495 = vld [vmem:[%s1724 + $0xa8] sm:$0xff]
      %v5496 = vld [vmem:[%s1724 + $0xb0] sm:$0xff]
      %v5497 = vld [vmem:[%s1724 + $0xb8] sm:$0xff]
      %v5498 = vpack.c.bf16 %v5475, %v5474
      %v5499 = vpack.c.bf16 %v5477, %v5476
      %v5500 = vpack.c.bf16 %v5479, %v5478
      %v5501 = vpack.c.bf16 %v5481, %v5480
      %v5502 = vpack.c.bf16 %v5483, %v5482
      %v5503 = vpack.c.bf16 %v5485, %v5484
      %v5504 = vpack.c.bf16 %v5487, %v5486
      %v5505 = vpack.c.bf16 %v5489, %v5488
      %v5506 = vpack.c.bf16 %v5491, %v5490
      %v5507 = vpack.c.bf16 %v5493, %v5492
      %v5508 = vpack.c.bf16 %v5495, %v5494
      %v5509 = vpack.c.bf16 %v5497, %v5496
      %v5511 = vsel %vm2314, %v5437, 0
      %v5514 = vsel %vm2314, %v5462, 0
      %v5517 = vsel %vm2314, %v5463, 0
      %v5520 = vsel %vm2314, %v5464, 0
      %v5523 = vsel %vm2314, %v5465, 0
      %v5526 = vsel %vm2314, %v5466, 0
      %v5529 = vsel %vm2314, %v5467, 0
      %v5532 = vsel %vm2314, %v5468, 0
      %v5535 = vsel %vm2314, %v5469, 0
      %v5538 = vsel %vm2314, %v5470, 0
      %v5541 = vsel %vm2314, %v5471, 0
      %v5544 = vsel %vm2314, %v5472, 0
      %v5547 = vsel %vm2314, %v5473, 0
      %5549 = vmatpush.bf16.xpose.msra.mxu0 %v5535
      %5550 = vmatpush.bf16.xpose.msra.mxu0 %v5532
      %5551 = vmatpush.bf16.xpose.msra.mxu0 %v5529
      %5552 = vmatpush.bf16.xpose.msra.mxu0 %v5526
      %5553 = vmatpush.bf16.xpose.msra.mxu0 %v5523
      %5554 = vmatpush.bf16.xpose.msra.mxu0 %v5520
      %5555 = vmatpush.bf16.xpose.msra.mxu0 %v5517
      %5556 = vmatpush.bf16.xpose.msra.mxu0 %v5514
      %5557 = vmatmul.bf16.gmra.mxu0 %v5511
      %v5558 = vpop.f32.mrf.mxu0
      %v5559 = vadd.f32 0.0, %v5558
      %v5560 = vpop.f32.mrf.mxu0
      %v5561 = vadd.f32 0.0, %v5560
      %5562 = vdwg.mxu0
      %5563 = vmatpush.bf16.xpose.msra.mxu0 0
      %5564 = vmatpush.bf16.xpose.msra.mxu0 0
      %5565 = vmatpush.bf16.xpose.msra.mxu0 0
      %5566 = vmatpush.bf16.xpose.msra.mxu0 0
      %5567 = vmatpush.bf16.xpose.msra.mxu0 %v5547
      %5568 = vmatpush.bf16.xpose.msra.mxu0 %v5544
      %5569 = vmatpush.bf16.xpose.msra.mxu0 %v5541
      %5570 = vmatpush.bf16.xpose.msra.mxu0 %v5538
      %5571 = vmatmul.bf16.gmra.mxu0 %v5511
      %v5572 = vpop.f32.mrf.mxu0
      %v5573 = vadd.f32 0.0, %v5572
      %v5574 = vpop.f32.mrf.mxu0
      %v5575 = vadd.f32 0.0, %v5574
      %5576 = vdwg.mxu0
      %v5577 = vmul.f32 %v5559, 0.03125
      %v5578 = vmul.f32 %v5573, 0.03125
      %v5579 = vmul.f32 %v5561, 0.03125
      %v5580 = vmul.f32 %v5575, 0.03125
      %v5581 = vld [vmem:[%s53] sm:$0xff]
      %v5582 = vld [vmem:[%s53 + $0x8] sm:$0xff]
      %v5583 = vld [vmem:[%s53 + $0x10] sm:$0xf]
      %v5584 = vld [vmem:[%s53 + $0x18] sm:$0xf]
      %v5585 = vadd.f32 %v5577, %v5581
      %v5586 = vadd.f32 %v5578, %v5582
      %v5587 = vadd.f32 %v5579, %v5583
      %v5588 = vadd.f32 %v5580, %v5584
      %v5589 = vld [vmem:[%s1751] sm:$0x3]
      %v5591 = vperm.slane %v5589, 0
      %v5592 = vperm.slane %v5589, 1
      %v5595 = vadd.f32 %v5585, %v5591
      %v5596 = vadd.f32 %v5586, %v5592
      %v5597 = vadd.f32 %v5587, %v5591
      %v5598 = vadd.f32 %v5588, %v5592
      %v5599 = vsel %vm2314, %v5596, -inf
      %v5600 = vmax.f32 %v5595, %v5599
      %5601 = vmax.xlane.f32.xlu0 %v5600
      %v5602 = vpop.xlane.xlu0 %5601
      %v5603 = vsel %vm3513, %v5597, -inf
      %v5604 = vsel %vm3515, %v5598, -inf
      %v5605 = vmax.f32 %v5603, %v5604
      %5606 = vmax.xlane.f32.xlu0 %v5605
      %v5607 = vpop.xlane.xlu0 %5606
      %v5608 = vsub.f32 %v5595, %v5602
      %v5609 = vsub.f32 %v5596, %v5602
      %v5610 = vsub.f32 %v5597, %v5607
      %v5611 = vsub.f32 %v5598, %v5607
      %v5612 = vmul.f32 %v5608, 1.442695
      %v5613 = vpow.pop %v5612
      %v5614 = vmul.f32 %v5609, 1.442695
      %v5615 = vpow.pop %v5614
      %v5616 = vmul.f32 %v5610, 1.442695
      %v5617 = vpow.pop %v5616
      %v5618 = vmul.f32 %v5611, 1.442695
      %v5619 = vpow.pop %v5618
      %v5620 = vsel %vm2314, %v5615, 0.0
      %v5621 = vadd.f32 %v5613, %v5620
      %5622 = vadd.xlane.f32.xlu0 %v5621
      %v5623 = vpop.xlane.xlu0 %5622
      %v5624 = vsel %vm3513, %v5617, 0.0
      %v5625 = vsel %vm3515, %v5619, 0.0
      %v5626 = vadd.f32 %v5624, %v5625
      %5627 = vadd.xlane.f32.xlu0 %v5626
      %v5628 = vpop.xlane.xlu0 %5627
      %v5629 = vrcp.pop %v5623
      %v5630 = vrcp.pop %v5628
      %v5631 = vmul.f32 %v5613, %v5629
      %v5632 = vmul.f32 %v5615, %v5629
      %v5633 = vmul.f32 %v5617, %v5630
      %v5634 = vmul.f32 %v5619, %v5630
      %v5635 = vpack.c.bf16 %v5633, %v5631
      %v5636 = vpack.c.bf16 %v5634, %v5632
      %v5638 = vsel %vm2314, %v5636, 0
      %5640 = vmatpush.bf16.msra.mxu0 %v5505
      %5641 = vmatpush.bf16.msra.mxu0 %v5504
      %5642 = vmatpush.bf16.msra.mxu0 %v5503
      %5643 = vmatpush.bf16.msra.mxu0 %v5502
      %5644 = vmatpush.bf16.msra.mxu0 %v5501
      %5645 = vmatpush.bf16.msra.mxu0 %v5500
      %5646 = vmatpush.bf16.msra.mxu0 %v5499
      %5647 = vmatpush.bf16.msra.mxu0 %v5498
      %5648 = vmatmul.bf16.gmra.mxu0 %v5635
      %v5649 = vpop.f32.mrf.mxu0
      %v5650 = vadd.f32 0.0, %v5649
      %v5651 = vpop.f32.mrf.mxu0
      %v5652 = vadd.f32 0.0, %v5651
      %5653 = vdwg.mxu0
      %5654 = vmatpush.bf16.msra.mxu0 0
      %5655 = vmatpush.bf16.msra.mxu0 0
      %5656 = vmatpush.bf16.msra.mxu0 0
      %5657 = vmatpush.bf16.msra.mxu0 0
      %5658 = vmatpush.bf16.msra.mxu0 %v5509
      %5659 = vmatpush.bf16.msra.mxu0 %v5508
      %5660 = vmatpush.bf16.msra.mxu0 %v5507
      %5661 = vmatpush.bf16.msra.mxu0 %v5506
      %5662 = vmatmul.bf16.gmra.mxu0 %v5638
      %v5663 = vpop.f32.mrf.mxu0
      %v5664 = vadd.f32 %v5650, %v5663
      %v5665 = vpop.f32.mrf.mxu0
      %v5666 = vadd.f32 %v5652, %v5665
      %5667 = vdwg.mxu0
      %5668 = vst.msk [vmem:[%s1790] sm:$0xff] %vm2314, %v5664
      %5669 = vst.msk [vmem:[%s1790 + $0x8] sm:$0xf] %vm3515, %v5666
      %v5670 = vld [vmem:[%s1729] sm:$0x77]
      %5672 = vst [vmem:[#allocation1] ss:$2 sm:$0xff] %v5670
      %v5673 = vld.sshfl [vmem:[#allocation1] sm:$0xff pattern:$0x75316420]
      %v5674 = vld.sshfl [vmem:[#allocation1 + $0x8] sm:$0xff pattern:$0x75316420]
      %v5677 = vpack.c.bf16 %v5673, %v5673
      %v5678 = vpack.c.bf16 %v5674, %v5674
      %v5679 = vld [vmem:[%s1734] sm:$0xff]
      %v5680 = vld [vmem:[%s1734 + $0x8] sm:$0xff]
      %v5681 = vld [vmem:[%s1734 + $0x10] sm:$0xff]
      %v5682 = vld [vmem:[%s1734 + $0x18] sm:$0xff]
      %v5683 = vld [vmem:[%s1734 + $0x20] sm:$0xff]
      %v5684 = vld [vmem:[%s1734 + $0x28] sm:$0xff]
      %v5685 = vld [vmem:[%s1734 + $0x30] sm:$0xff]
      %v5686 = vld [vmem:[%s1734 + $0x38] sm:$0xff]
      %v5687 = vld [vmem:[%s1734 + $0x40] sm:$0xff]
      %v5688 = vld [vmem:[%s1734 + $0x48] sm:$0xff]
      %v5689 = vld [vmem:[%s1734 + $0x50] sm:$0xff]
      %v5690 = vld [vmem:[%s1734 + $0x58] sm:$0xff]
      %v5691 = vld [vmem:[%s1734 + $0x60] sm:$0xff]
      %v5692 = vld [vmem:[%s1734 + $0x68] sm:$0xff]
      %v5693 = vld [vmem:[%s1734 + $0x70] sm:$0xff]
      %v5694 = vld [vmem:[%s1734 + $0x78] sm:$0xff]
      %v5695 = vld [vmem:[%s1734 + $0x80] sm:$0xff]
      %v5696 = vld [vmem:[%s1734 + $0x88] sm:$0xff]
      %v5697 = vld [vmem:[%s1734 + $0x90] sm:$0xff]
      %v5698 = vld [vmem:[%s1734 + $0x98] sm:$0xff]
      %v5699 = vld [vmem:[%s1734 + $0xa0] sm:$0xff]
      %v5700 = vld [vmem:[%s1734 + $0xa8] sm:$0xff]
      %v5701 = vld [vmem:[%s1734 + $0xb0] sm:$0xff]
      %v5702 = vld [vmem:[%s1734 + $0xb8] sm:$0xff]
      %v5703 = vld [vmem:[%s1734 + $0xc0] sm:$0xff]
      %v5704 = vld [vmem:[%s1734 + $0xc8] sm:$0xff]
      %v5705 = vld [vmem:[%s1734 + $0xd0] sm:$0xff]
      %v5706 = vld [vmem:[%s1734 + $0xd8] sm:$0xff]
      %v5707 = vld [vmem:[%s1734 + $0xe0] sm:$0xff]
      %v5708 = vld [vmem:[%s1734 + $0xe8] sm:$0xff]
      %v5709 = vld [vmem:[%s1734 + $0xf0] sm:$0xff]
      %v5710 = vld [vmem:[%s1734 + $0xf8] sm:$0xff]
      %v5711 = vld [vmem:[%s1734 + $0x100] sm:$0xff]
      %v5712 = vld [vmem:[%s1734 + $0x108] sm:$0xff]
      %v5713 = vld [vmem:[%s1734 + $0x110] sm:$0xff]
      %v5714 = vld [vmem:[%s1734 + $0x118] sm:$0xff]
      %v5715 = vld [vmem:[%s1734 + $0x120] sm:$0xff]
      %v5716 = vld [vmem:[%s1734 + $0x128] sm:$0xff]
      %v5717 = vld [vmem:[%s1734 + $0x130] sm:$0xff]
      %v5718 = vld [vmem:[%s1734 + $0x138] sm:$0xff]
      %v5719 = vld [vmem:[%s1734 + $0x140] sm:$0xff]
      %v5720 = vld [vmem:[%s1734 + $0x148] sm:$0xff]
      %v5721 = vld [vmem:[%s1734 + $0x150] sm:$0xff]
      %v5722 = vld [vmem:[%s1734 + $0x158] sm:$0xff]
      %v5723 = vld [vmem:[%s1734 + $0x160] sm:$0xff]
      %v5724 = vld [vmem:[%s1734 + $0x168] sm:$0xff]
      %v5725 = vld [vmem:[%s1734 + $0x170] sm:$0xff]
      %v5726 = vld [vmem:[%s1734 + $0x178] sm:$0xff]
      %v5727 = vpack.c.bf16 %v5681, %v5679
      %v5728 = vpack.c.bf16 %v5682, %v5680
      %v5729 = vpack.c.bf16 %v5685, %v5683
      %v5730 = vpack.c.bf16 %v5686, %v5684
      %v5731 = vpack.c.bf16 %v5689, %v5687
      %v5732 = vpack.c.bf16 %v5690, %v5688
      %v5733 = vpack.c.bf16 %v5693, %v5691
      %v5734 = vpack.c.bf16 %v5694, %v5692
      %v5735 = vpack.c.bf16 %v5697, %v5695
      %v5736 = vpack.c.bf16 %v5698, %v5696
      %v5737 = vpack.c.bf16 %v5701, %v5699
      %v5738 = vpack.c.bf16 %v5702, %v5700
      %v5739 = vpack.c.bf16 %v5705, %v5703
      %v5740 = vpack.c.bf16 %v5706, %v5704
      %v5741 = vpack.c.bf16 %v5709, %v5707
      %v5742 = vpack.c.bf16 %v5710, %v5708
      %v5743 = vpack.c.bf16 %v5713, %v5711
      %v5744 = vpack.c.bf16 %v5714, %v5712
      %v5745 = vpack.c.bf16 %v5717, %v5715
      %v5746 = vpack.c.bf16 %v5718, %v5716
      %v5747 = vpack.c.bf16 %v5721, %v5719
      %v5748 = vpack.c.bf16 %v5722, %v5720
      %v5749 = vpack.c.bf16 %v5725, %v5723
      %v5750 = vpack.c.bf16 %v5726, %v5724
      %v5751 = vld [vmem:[%s1739] sm:$0xff]
      %v5752 = vld [vmem:[%s1739 + $0x8] sm:$0xff]
      %v5753 = vld [vmem:[%s1739 + $0x10] sm:$0xff]
      %v5754 = vld [vmem:[%s1739 + $0x18] sm:$0xff]
      %v5755 = vld [vmem:[%s1739 + $0x20] sm:$0xff]
      %v5756 = vld [vmem:[%s1739 + $0x28] sm:$0xff]
      %v5757 = vld [vmem:[%s1739 + $0x30] sm:$0xff]
      %v5758 = vld [vmem:[%s1739 + $0x38] sm:$0xff]
      %v5759 = vld [vmem:[%s1739 + $0x40] sm:$0xff]
      %v5760 = vld [vmem:[%s1739 + $0x48] sm:$0xff]
      %v5761 = vld [vmem:[%s1739 + $0x50] sm:$0xff]
      %v5762 = vld [vmem:[%s1739 + $0x58] sm:$0xff]
      %v5763 = vld [vmem:[%s1739 + $0x60] sm:$0xff]
      %v5764 = vld [vmem:[%s1739 + $0x68] sm:$0xff]
      %v5765 = vld [vmem:[%s1739 + $0x70] sm:$0xff]
      %v5766 = vld [vmem:[%s1739 + $0x78] sm:$0xff]
      %v5767 = vld [vmem:[%s1739 + $0x80] sm:$0xff]
      %v5768 = vld [vmem:[%s1739 + $0x88] sm:$0xff]
      %v5769 = vld [vmem:[%s1739 + $0x90] sm:$0xff]
      %v5770 = vld [vmem:[%s1739 + $0x98] sm:$0xff]
      %v5771 = vld [vmem:[%s1739 + $0xa0] sm:$0xff]
      %v5772 = vld [vmem:[%s1739 + $0xa8] sm:$0xff]
      %v5773 = vld [vmem:[%s1739 + $0xb0] sm:$0xff]
      %v5774 = vld [vmem:[%s1739 + $0xb8] sm:$0xff]
      %v5775 = vld [vmem:[%s1739 + $0xc0] sm:$0xff]
      %v5776 = vld [vmem:[%s1739 + $0xc8] sm:$0xff]
      %v5777 = vld [vmem:[%s1739 + $0xd0] sm:$0xff]
      %v5778 = vld [vmem:[%s1739 + $0xd8] sm:$0xff]
      %v5779 = vld [vmem:[%s1739 + $0xe0] sm:$0xff]
      %v5780 = vld [vmem:[%s1739 + $0xe8] sm:$0xff]
      %v5781 = vld [vmem:[%s1739 + $0xf0] sm:$0xff]
      %v5782 = vld [vmem:[%s1739 + $0xf8] sm:$0xff]
      %v5783 = vld [vmem:[%s1739 + $0x100] sm:$0xff]
      %v5784 = vld [vmem:[%s1739 + $0x108] sm:$0xff]
      %v5785 = vld [vmem:[%s1739 + $0x110] sm:$0xff]
      %v5786 = vld [vmem:[%s1739 + $0x118] sm:$0xff]
      %v5787 = vld [vmem:[%s1739 + $0x120] sm:$0xff]
      %v5788 = vld [vmem:[%s1739 + $0x128] sm:$0xff]
      %v5789 = vld [vmem:[%s1739 + $0x130] sm:$0xff]
      %v5790 = vld [vmem:[%s1739 + $0x138] sm:$0xff]
      %v5791 = vld [vmem:[%s1739 + $0x140] sm:$0xff]
      %v5792 = vld [vmem:[%s1739 + $0x148] sm:$0xff]
      %v5793 = vld [vmem:[%s1739 + $0x150] sm:$0xff]
      %v5794 = vld [vmem:[%s1739 + $0x158] sm:$0xff]
      %v5795 = vld [vmem:[%s1739 + $0x160] sm:$0xff]
      %v5796 = vld [vmem:[%s1739 + $0x168] sm:$0xff]
      %v5797 = vld [vmem:[%s1739 + $0x170] sm:$0xff]
      %v5798 = vld [vmem:[%s1739 + $0x178] sm:$0xff]
      %v5799 = vpack.c.bf16 %v5753, %v5751
      %v5800 = vpack.c.bf16 %v5754, %v5752
      %v5801 = vpack.c.bf16 %v5757, %v5755
      %v5802 = vpack.c.bf16 %v5758, %v5756
      %v5803 = vpack.c.bf16 %v5761, %v5759
      %v5804 = vpack.c.bf16 %v5762, %v5760
      %v5805 = vpack.c.bf16 %v5765, %v5763
      %v5806 = vpack.c.bf16 %v5766, %v5764
      %v5807 = vpack.c.bf16 %v5769, %v5767
      %v5808 = vpack.c.bf16 %v5770, %v5768
      %v5809 = vpack.c.bf16 %v5773, %v5771
      %v5810 = vpack.c.bf16 %v5774, %v5772
      %v5811 = vpack.c.bf16 %v5777, %v5775
      %v5812 = vpack.c.bf16 %v5778, %v5776
      %v5813 = vpack.c.bf16 %v5781, %v5779
      %v5814 = vpack.c.bf16 %v5782, %v5780
      %v5815 = vpack.c.bf16 %v5785, %v5783
      %v5816 = vpack.c.bf16 %v5786, %v5784
      %v5817 = vpack.c.bf16 %v5789, %v5787
      %v5818 = vpack.c.bf16 %v5790, %v5788
      %v5819 = vpack.c.bf16 %v5793, %v5791
      %v5820 = vpack.c.bf16 %v5794, %v5792
      %v5821 = vpack.c.bf16 %v5797, %v5795
      %v5822 = vpack.c.bf16 %v5798, %v5796
      %5823 = vmatpush.bf16.xpose.msra.mxu0 %v5741
      %5824 = vmatpush.bf16.xpose.msra.mxu0 %v5739
      %5825 = vmatpush.bf16.xpose.msra.mxu0 %v5737
      %5826 = vmatpush.bf16.xpose.msra.mxu0 %v5735
      %5827 = vmatpush.bf16.xpose.msra.mxu0 %v5733
      %5828 = vmatpush.bf16.xpose.msra.mxu0 %v5731
      %5829 = vmatpush.bf16.xpose.msra.mxu0 %v5729
      %5830 = vmatpush.bf16.xpose.msra.mxu0 %v5727
      %5831 = vmatmul.bf16.gmra.mxu0 %v5677
      %v5832 = vpop.f32.mrf.mxu0
      %v5833 = vadd.f32 0.0, %v5832
      %v5834 = vpop.f32.mrf.mxu0
      %5835 = vdwg.mxu0
      %5836 = vmatpush.bf16.xpose.msra.mxu0 %v5742
      %5837 = vmatpush.bf16.xpose.msra.mxu0 %v5740
      %5838 = vmatpush.bf16.xpose.msra.mxu0 %v5738
      %5839 = vmatpush.bf16.xpose.msra.mxu0 %v5736
      %5840 = vmatpush.bf16.xpose.msra.mxu0 %v5734
      %5841 = vmatpush.bf16.xpose.msra.mxu0 %v5732
      %5842 = vmatpush.bf16.xpose.msra.mxu0 %v5730
      %5843 = vmatpush.bf16.xpose.msra.mxu0 %v5728
      %5844 = vmatmul.bf16.gmra.mxu0 %v5678
      %v5845 = vpop.f32.mrf.mxu0
      %v5846 = vadd.f32 %v5833, %v5845
      %v5847 = vpop.f32.mrf.mxu0
      %5848 = vdwg.mxu0
      %5849 = vmatpush.bf16.xpose.msra.mxu0 0
      %5850 = vmatpush.bf16.xpose.msra.mxu0 0
      %5851 = vmatpush.bf16.xpose.msra.mxu0 0
      %5852 = vmatpush.bf16.xpose.msra.mxu0 0
      %5853 = vmatpush.bf16.xpose.msra.mxu0 %v5749
      %5854 = vmatpush.bf16.xpose.msra.mxu0 %v5747
      %5855 = vmatpush.bf16.xpose.msra.mxu0 %v5745
      %5856 = vmatpush.bf16.xpose.msra.mxu0 %v5743
      %5857 = vmatmul.bf16.gmra.mxu0 %v5677
      %v5858 = vpop.f32.mrf.mxu0
      %v5859 = vadd.f32 0.0, %v5858
      %v5860 = vpop.f32.mrf.mxu0
      %5861 = vdwg.mxu0
      %5862 = vmatpush.bf16.xpose.msra.mxu0 0
      %5863 = vmatpush.bf16.xpose.msra.mxu0 0
      %5864 = vmatpush.bf16.xpose.msra.mxu0 0
      %5865 = vmatpush.bf16.xpose.msra.mxu0 0
      %5866 = vmatpush.bf16.xpose.msra.mxu0 %v5750
      %5867 = vmatpush.bf16.xpose.msra.mxu0 %v5748
      %5868 = vmatpush.bf16.xpose.msra.mxu0 %v5746
      %5869 = vmatpush.bf16.xpose.msra.mxu0 %v5744
      %5870 = vmatmul.bf16.gmra.mxu0 %v5678
      %v5871 = vpop.f32.mrf.mxu0
      %v5872 = vadd.f32 %v5859, %v5871
      %v5873 = vpop.f32.mrf.mxu0
      %5874 = vdwg.mxu0
      %v5875 = vmul.f32 %v5846, 0.0078125
      %v5876 = vmul.f32 %v5872, 0.0078125
      %v5877 = vld [vmem:[%s55] sm:$0x77]
      %5879 = vst [vmem:[#allocation1] ss:$2 sm:$0xff] %v5877
      %v5880 = vld.sshfl [vmem:[#allocation1] sm:$0xff pattern:$0x75316420]
      %v5881 = vld.sshfl [vmem:[#allocation1 + $0x8] sm:$0xff pattern:$0x75316420]
      %v5884 = vadd.f32 %v5875, %v5880
      %v5885 = vadd.f32 %v5876, %v5881
      %v5886 = vld [vmem:[%s1755] sm:$0x3]
      %v5888 = vperm.slane %v5886, 0
      %v5889 = vperm.slane %v5886, 1
      %v5892 = vadd.f32 %v5884, %v5888
      %v5893 = vadd.f32 %v5885, %v5889
      %v5894 = vsel %vm3806, %v5892, -inf
      %v5895 = vsel %vm3808, %v5893, -inf
      %v5896 = vmax.f32 %v5894, %v5895
      %5897 = vmax.xlane.f32.xlu0 %v5896
      %v5898 = vpop.xlane.xlu0 %5897
      %v5899 = vsub.f32 %v5892, %v5898
      %v5900 = vsub.f32 %v5893, %v5898
      %v5901 = vmul.f32 %v5899, 1.442695
      %v5902 = vpow.pop %v5901
      %v5903 = vmul.f32 %v5900, 1.442695
      %v5904 = vpow.pop %v5903
      %v5905 = vsel %vm3806, %v5902, 0.0
      %v5906 = vsel %vm3808, %v5904, 0.0
      %v5907 = vadd.f32 %v5905, %v5906
      %5908 = vadd.xlane.f32.xlu0 %v5907
      %v5909 = vpop.xlane.xlu0 %5908
      %v5910 = vrcp.pop %v5909
      %v5911 = vmul.f32 %v5902, %v5910
      %v5912 = vmul.f32 %v5904, %v5910
      %v5913 = vpack.c.bf16 %v5911, %v5911
      %v5914 = vpack.c.bf16 %v5912, %v5912
      %v5916 = vsel %vm2314, %v5914, 0
      %5918 = vmatpush.bf16.msra.mxu0 %v5813
      %5919 = vmatpush.bf16.msra.mxu0 %v5811
      %5920 = vmatpush.bf16.msra.mxu0 %v5809
      %5921 = vmatpush.bf16.msra.mxu0 %v5807
      %5922 = vmatpush.bf16.msra.mxu0 %v5805
      %5923 = vmatpush.bf16.msra.mxu0 %v5803
      %5924 = vmatpush.bf16.msra.mxu0 %v5801
      %5925 = vmatpush.bf16.msra.mxu0 %v5799
      %5926 = vmatmul.bf16.gmra.mxu0 %v5913
      %v5927 = vpop.f32.mrf.mxu0
      %v5928 = vadd.f32 0.0, %v5927
      %v5929 = vpop.f32.mrf.mxu0
      %5930 = vdwg.mxu0
      %5931 = vmatpush.bf16.msra.mxu0 0
      %5932 = vmatpush.bf16.msra.mxu0 0
      %5933 = vmatpush.bf16.msra.mxu0 0
      %5934 = vmatpush.bf16.msra.mxu0 0
      %5935 = vmatpush.bf16.msra.mxu0 %v5821
      %5936 = vmatpush.bf16.msra.mxu0 %v5819
      %5937 = vmatpush.bf16.msra.mxu0 %v5817
      %5938 = vmatpush.bf16.msra.mxu0 %v5815
      %5939 = vmatmul.bf16.gmra.mxu0 %v5916
      %v5940 = vpop.f32.mrf.mxu0
      %v5941 = vadd.f32 %v5928, %v5940
      %v5942 = vpop.f32.mrf.mxu0
      %5943 = vdwg.mxu0
      %5944 = vmatpush.bf16.msra.mxu0 %v5814
      %5945 = vmatpush.bf16.msra.mxu0 %v5812
      %5946 = vmatpush.bf16.msra.mxu0 %v5810
      %5947 = vmatpush.bf16.msra.mxu0 %v5808
      %5948 = vmatpush.bf16.msra.mxu0 %v5806
      %5949 = vmatpush.bf16.msra.mxu0 %v5804
      %5950 = vmatpush.bf16.msra.mxu0 %v5802
      %5951 = vmatpush.bf16.msra.mxu0 %v5800
      %5952 = vmatmul.bf16.gmra.mxu0 %v5913
      %v5953 = vpop.f32.mrf.mxu0
      %v5954 = vadd.f32 0.0, %v5953
      %v5955 = vpop.f32.mrf.mxu0
      %5956 = vdwg.mxu0
      %5957 = vmatpush.bf16.msra.mxu0 0
      %5958 = vmatpush.bf16.msra.mxu0 0
      %5959 = vmatpush.bf16.msra.mxu0 0
      %5960 = vmatpush.bf16.msra.mxu0 0
      %5961 = vmatpush.bf16.msra.mxu0 %v5822
      %5962 = vmatpush.bf16.msra.mxu0 %v5820
      %5963 = vmatpush.bf16.msra.mxu0 %v5818
      %5964 = vmatpush.bf16.msra.mxu0 %v5816
      %5965 = vmatmul.bf16.gmra.mxu0 %v5916
      %v5966 = vpop.f32.mrf.mxu0
      %v5967 = vadd.f32 %v5954, %v5966
      %v5968 = vpop.f32.mrf.mxu0
      %5969 = vdwg.mxu0
      %v5972 = vrot.slane %v5967, 4
      %v5973 = vsel %vm3513, %v5941, %v5972
      %5975 = vst [vmem:[%s1795] sm:$0x77] %v5973
      %p5976 = scmp.lt.s32.totalorder %s91, 1
      %s5977 = scalar_select %p5976, %s91, 1
      %s5978 = smul.addr %s5977, 24
      %s5979 = smul.addr %s5978, 8
      %s5980 = scalar_lea.vmem %s65, %s5979
      %p5981 = scmp.lt.s32.totalorder %s91, 1
      %s5982 = scalar_select %p5981, %s91, 1
      %s5983 = smul.addr %s5982, 6
      %s5984 = smul.addr %s5983, 8
      %s5985 = scalar_lea.vmem %s67, %s5984
      %p5986 = scmp.lt.s32.totalorder %s91, 1
      %s5987 = scalar_select %p5986, %s91, 1
      %s5988 = smul.addr %s5987, 2
      %s5989 = smul.addr %s5988, 8
      %s5990 = scalar_lea.vmem %s69, %s5989
      %p5991 = scmp.lt.s32.totalorder %s91, 1
      %s5992 = scalar_select %p5991, %s91, 1
      %s5993 = smul.addr %s5992, 2
      %s5994 = smul.addr %s5993, 4
      %s5995 = scalar_lea.vmem %s71, %s5994
      %p5996 = scmp.lt.s32.totalorder %s91, 1
      %s5997 = scalar_select %p5996, %s91, 1
      %s5998 = smul.addr %s5997, 24
      %s5999 = smul.addr %s5998, 8
      %s6000 = scalar_lea.vmem %s73, %s5999
      %p6001 = scmp.lt.s32.totalorder %s91, 1
      %s6002 = scalar_select %p6001, %s91, 1
      %s6003 = smul.addr %s6002, 6
      %s6004 = smul.addr %s6003, 8
      %s6005 = scalar_lea.vmem %s75, %s6004
      %p6006 = scmp.lt.s32.totalorder %s91, 1
      %s6007 = scalar_select %p6006, %s91, 1
      %s6008 = smul.addr %s6007, 2
      %s6009 = smul.addr %s6008, 8
      %s6010 = scalar_lea.vmem %s77, %s6009
      %p6011 = scmp.lt.s32.totalorder %s91, 1
      %s6012 = scalar_select %p6011, %s91, 1
      %s6013 = smul.addr %s6012, 2
      %s6014 = smul.addr %s6013, 4
      %s6015 = scalar_lea.vmem %s79, %s6014
      // Predicated region
      $region149: #{transformer_cs_forward.8} parent=147 // pred_check
        %p6016 = pneg %p921
      $region150: #{transformer_cs_forward.8} parent=147 // pred_check_branch
        %6018 = sbr.rel (%p6016) target = $region152
      $region151: #{transformer_cs_forward.8} parent=147 // pred_region
        _
      $region152: #{transformer_cs_forward.8} parent=147 // pred_fallthru
        _
      // Predicated region
      $region153: #{transformer_cs_forward.8} parent=147 // pred_check
        %p6019 = pneg %p947
      $region154: #{transformer_cs_forward.8} parent=147 // pred_check_branch
        %6021 = sbr.rel (%p6019) target = $region156
      $region155: #{transformer_cs_forward.8} parent=147 // pred_region
        _
      $region156: #{transformer_cs_forward.8} parent=147 // pred_fallthru
        _
      // Predicated region
      $region157: #{transformer_cs_forward.8} parent=147 // pred_check
        %p6022 = pneg %p973
      $region158: #{transformer_cs_forward.8} parent=147 // pred_check_branch
        %6024 = sbr.rel (%p6022) target = $region160
      $region159: #{transformer_cs_forward.8} parent=147 // pred_region
        _
      $region160: #{transformer_cs_forward.8} parent=147 // pred_fallthru
        _
      // Predicated region
      $region161: #{transformer_cs_forward.8} parent=147 // pred_check
        %p6025 = pneg %p999
      $region162: #{transformer_cs_forward.8} parent=147 // pred_check_branch
        %6027 = sbr.rel (%p6025) target = $region164
      $region163: #{transformer_cs_forward.8} parent=147 // pred_region
        _
      $region164: #{transformer_cs_forward.8} parent=147 // pred_fallthru
        _
      // Predicated region
      $region165: #{transformer_cs_forward.8} parent=147 // pred_check
        %p6028 = pneg %p1025
      $region166: #{transformer_cs_forward.8} parent=147 // pred_check_branch
        %6030 = sbr.rel (%p6028) target = $region168
      $region167: #{transformer_cs_forward.8} parent=147 // pred_region
        _
      $region168: #{transformer_cs_forward.8} parent=147 // pred_fallthru
        _
      // Predicated region
      $region169: #{transformer_cs_forward.8} parent=147 // pred_check
        %p6031 = pneg %p1051
      $region170: #{transformer_cs_forward.8} parent=147 // pred_check_branch
        %6033 = sbr.rel (%p6031) target = $region172
      $region171: #{transformer_cs_forward.8} parent=147 // pred_region
        _
      $region172: #{transformer_cs_forward.8} parent=147 // pred_fallthru
        _
      // Predicated region
      $region173: #{transformer_cs_forward.8} parent=147 // pred_check
        %p6034 = pneg %p1077
      $region174: #{transformer_cs_forward.8} parent=147 // pred_check_branch
        %6036 = sbr.rel (%p6034) target = $region176
      $region175: #{transformer_cs_forward.8} parent=147 // pred_region
        _
      $region176: #{transformer_cs_forward.8} parent=147 // pred_fallthru
        _
      // Predicated region
      $region177: #{transformer_cs_forward.8} parent=147 // pred_check
        %p6037 = pneg %p1103
      $region178: #{transformer_cs_forward.8} parent=147 // pred_check_branch
        %6039 = sbr.rel (%p6037) target = $region180
      $region179: #{transformer_cs_forward.8} parent=147 // pred_region
        _
      $region180: #{transformer_cs_forward.8} parent=147 // pred_fallthru
        _
    $region148: #{transformer_cs_forward.8} parent=5 // pred_fallthru
      _
    %p6040 = scmp.le.s32.totalorder 2, %s86
    // Predicated region
    $region181: #{transformer_cs_forward.8} parent=5 // pred_check
      %p6041 = pneg %p6040
    $region182: #{transformer_cs_forward.8} parent=5 // pred_check_branch
      %6043 = sbr.rel (%p6041) target = $region184
    $region183: #{transformer_cs_forward.8} parent=5 // pred_region
      %s6044 = ssub.s32 %s86, 2
      // Predicated region
      $region185: #{transformer_cs_forward.8} parent=183 // pred_check
        %p6045 = pneg %p927
      $region186: #{transformer_cs_forward.8} parent=183 // pred_check_branch
        %6047 = sbr.rel (%p6045) target = $region188
      $region187: #{transformer_cs_forward.8} parent=183 // pred_region
        %p6048 = scmp.lt.s32.totalorder %s92, 1
        %s6049 = scalar_select %p6048, %s92, 1
        %s6050 = smul.addr %s6049, 24
        %s6051 = smul.addr %s6050, 8
        %s6052 = scalar_lea.vmem %s65, %s6051
      $region188: #{transformer_cs_forward.8} parent=183 // pred_fallthru
        _
      // Predicated region
      $region189: #{transformer_cs_forward.8} parent=183 // pred_check
        %p6053 = pneg %p953
      $region190: #{transformer_cs_forward.8} parent=183 // pred_check_branch
        %6055 = sbr.rel (%p6053) target = $region192
      $region191: #{transformer_cs_forward.8} parent=183 // pred_region
        %p6056 = scmp.lt.s32.totalorder %s92, 1
        %s6057 = scalar_select %p6056, %s92, 1
        %s6058 = smul.addr %s6057, 6
        %s6059 = smul.addr %s6058, 8
        %s6060 = scalar_lea.vmem %s67, %s6059
      $region192: #{transformer_cs_forward.8} parent=183 // pred_fallthru
        _
      // Predicated region
      $region193: #{transformer_cs_forward.8} parent=183 // pred_check
        %p6061 = pneg %p979
      $region194: #{transformer_cs_forward.8} parent=183 // pred_check_branch
        %6063 = sbr.rel (%p6061) target = $region196
      $region195: #{transformer_cs_forward.8} parent=183 // pred_region
        %p6064 = scmp.lt.s32.totalorder %s92, 1
        %s6065 = scalar_select %p6064, %s92, 1
        %s6066 = smul.addr %s6065, 2
        %s6067 = smul.addr %s6066, 8
        %s6068 = scalar_lea.vmem %s69, %s6067
      $region196: #{transformer_cs_forward.8} parent=183 // pred_fallthru
        _
      // Predicated region
      $region197: #{transformer_cs_forward.8} parent=183 // pred_check
        %p6069 = pneg %p1005
      $region198: #{transformer_cs_forward.8} parent=183 // pred_check_branch
        %6071 = sbr.rel (%p6069) target = $region200
      $region199: #{transformer_cs_forward.8} parent=183 // pred_region
        %p6072 = scmp.lt.s32.totalorder %s92, 1
        %s6073 = scalar_select %p6072, %s92, 1
        %s6074 = smul.addr %s6073, 2
        %s6075 = smul.addr %s6074, 4
        %s6076 = scalar_lea.vmem %s71, %s6075
      $region200: #{transformer_cs_forward.8} parent=183 // pred_fallthru
        _
      // Predicated region
      $region201: #{transformer_cs_forward.8} parent=183 // pred_check
        %p6077 = pneg %p1031
      $region202: #{transformer_cs_forward.8} parent=183 // pred_check_branch
        %6079 = sbr.rel (%p6077) target = $region204
      $region203: #{transformer_cs_forward.8} parent=183 // pred_region
        %p6080 = scmp.lt.s32.totalorder %s92, 1
        %s6081 = scalar_select %p6080, %s92, 1
        %s6082 = smul.addr %s6081, 24
        %s6083 = smul.addr %s6082, 8
        %s6084 = scalar_lea.vmem %s73, %s6083
      $region204: #{transformer_cs_forward.8} parent=183 // pred_fallthru
        _
      // Predicated region
      $region205: #{transformer_cs_forward.8} parent=183 // pred_check
        %p6085 = pneg %p1057
      $region206: #{transformer_cs_forward.8} parent=183 // pred_check_branch
        %6087 = sbr.rel (%p6085) target = $region208
      $region207: #{transformer_cs_forward.8} parent=183 // pred_region
        %p6088 = scmp.lt.s32.totalorder %s92, 1
        %s6089 = scalar_select %p6088, %s92, 1
        %s6090 = smul.addr %s6089, 6
        %s6091 = smul.addr %s6090, 8
        %s6092 = scalar_lea.vmem %s75, %s6091
      $region208: #{transformer_cs_forward.8} parent=183 // pred_fallthru
        _
      // Predicated region
      $region209: #{transformer_cs_forward.8} parent=183 // pred_check
        %p6093 = pneg %p1083
      $region210: #{transformer_cs_forward.8} parent=183 // pred_check_branch
        %6095 = sbr.rel (%p6093) target = $region212
      $region211: #{transformer_cs_forward.8} parent=183 // pred_region
        %p6096 = scmp.lt.s32.totalorder %s92, 1
        %s6097 = scalar_select %p6096, %s92, 1
        %s6098 = smul.addr %s6097, 2
        %s6099 = smul.addr %s6098, 8
        %s6100 = scalar_lea.vmem %s77, %s6099
      $region212: #{transformer_cs_forward.8} parent=183 // pred_fallthru
        _
      // Predicated region
      $region213: #{transformer_cs_forward.8} parent=183 // pred_check
        %p6101 = pneg %p1109
      $region214: #{transformer_cs_forward.8} parent=183 // pred_check_branch
        %6103 = sbr.rel (%p6101) target = $region216
      $region215: #{transformer_cs_forward.8} parent=183 // pred_region
        %p6104 = scmp.lt.s32.totalorder %s92, 1
        %s6105 = scalar_select %p6104, %s92, 1
        %s6106 = smul.addr %s6105, 2
        %s6107 = smul.addr %s6106, 4
        %s6108 = scalar_lea.vmem %s79, %s6107
      $region216: #{transformer_cs_forward.8} parent=183 // pred_fallthru
        _
    $region184: #{transformer_cs_forward.8} parent=5 // pred_fallthru
      _
  $region6: #{transformer_cs_forward.8} parent=0 // loop_footer
    %s90 = sadd.s32 1, %s86
  $region7: #{transformer_cs_forward.8} parent=0 // loop_footer_branch
    %85 = sbr.rel target = $region3
  $region8: #{transformer_cs_forward.8} parent=0 // loop_exit
    _

// kernel: transformer_cs_forward.9
$region0: #{transformer_cs_forward.9}
  #allocation0 [shape = 'u32[]', space=smem, size = 0x4, offset = 0x4, fixed_abs, tag = 'smem constant byte address 0x4 - core index']
  #allocation1 [shape = 'u32[72,128]{1,0:T(1,128)}', space=vmem, size = 0x9000, scoped, tag = 'internal scratch']
  %s0 = inlined_call_operand.vmem [shape: f32[384,32], index: 0, kind: input, shape index: {}]
  %s1 = inlined_call_operand.vmem [shape: f32[384,32], index: 1, kind: input, shape index: {}]
  %s2 = inlined_call_operand.vmem [shape: bf16[32,32], index: 2, kind: input, shape index: {}]
  %s3 = inlined_call_operand.vmem [shape: f32[1,32], index: 3, kind: input, shape index: {}]
  %s4 = inlined_call_operand.vmem [shape: f32[1,32], index: 4, kind: input, shape index: {}]
  %s5 = inlined_call_operand.vmem [shape: f32[1,32], index: 5, kind: input, shape index: {}]
  %s6 = inlined_call_operand.vmem [shape: bf16[32,64], index: 6, kind: input, shape index: {}]
  %s7 = inlined_call_operand.vmem [shape: f32[1,64], index: 7, kind: input, shape index: {}]
  %s8 = inlined_call_operand.vmem [shape: bf16[64,32], index: 8, kind: input, shape index: {}]
  %s9 = inlined_call_operand.vmem [shape: f32[1,32], index: 9, kind: input, shape index: {}]
  %s10 = inlined_call_operand.vmem [shape: f32[1,32], index: 10, kind: input, shape index: {}]
  %s11 = inlined_call_operand.vmem [shape: f32[1,32], index: 11, kind: input, shape index: {}]
  %s12 = inlined_call_operand.vmem [shape: f32[384,32], index: 12, kind: output, shape index: {}]
  %s13 = sld [smem:[#allocation0]]
  $region58: #{transformer_cs_forward.9} parent=0
    _
  %s15 = ssub.s32 1, %s13
  %s16 = scalar_select 0, %s15, %s13
  // Predicated region
  $region2: #{transformer_cs_forward.9} parent=0 // pred_check
    _
  $region3: #{transformer_cs_forward.9} parent=0 // pred_check_branch
    %18 = sbr.rel (0) target = $region5
  $region4: #{transformer_cs_forward.9} parent=0 // pred_region
    _
  $region5: #{transformer_cs_forward.9} parent=0 // pred_fallthru
    _
  // Predicated region
  $region6: #{transformer_cs_forward.9} parent=0 // pred_check
    _
  $region7: #{transformer_cs_forward.9} parent=0 // pred_check_branch
    %20 = sbr.rel (0) target = $region9
  $region8: #{transformer_cs_forward.9} parent=0 // pred_region
    _
  $region9: #{transformer_cs_forward.9} parent=0 // pred_fallthru
    _
  // Predicated region
  $region10: #{transformer_cs_forward.9} parent=0 // pred_check
    _
  $region11: #{transformer_cs_forward.9} parent=0 // pred_check_branch
    %22 = sbr.rel (0) target = $region13
  $region12: #{transformer_cs_forward.9} parent=0 // pred_region
    _
  $region13: #{transformer_cs_forward.9} parent=0 // pred_fallthru
    _
  // Predicated region
  $region14: #{transformer_cs_forward.9} parent=0 // pred_check
    _
  $region15: #{transformer_cs_forward.9} parent=0 // pred_check_branch
    %24 = sbr.rel (0) target = $region17
  $region16: #{transformer_cs_forward.9} parent=0 // pred_region
    _
  $region17: #{transformer_cs_forward.9} parent=0 // pred_fallthru
    _
  // Predicated region
  $region18: #{transformer_cs_forward.9} parent=0 // pred_check
    _
  $region19: #{transformer_cs_forward.9} parent=0 // pred_check_branch
    %26 = sbr.rel (0) target = $region21
  $region20: #{transformer_cs_forward.9} parent=0 // pred_region
    _
  $region21: #{transformer_cs_forward.9} parent=0 // pred_fallthru
    _
  // Predicated region
  $region22: #{transformer_cs_forward.9} parent=0 // pred_check
    _
  $region23: #{transformer_cs_forward.9} parent=0 // pred_check_branch
    %28 = sbr.rel (0) target = $region25
  $region24: #{transformer_cs_forward.9} parent=0 // pred_region
    _
  $region25: #{transformer_cs_forward.9} parent=0 // pred_fallthru
    _
  // Predicated region
  $region26: #{transformer_cs_forward.9} parent=0 // pred_check
    _
  $region27: #{transformer_cs_forward.9} parent=0 // pred_check_branch
    %30 = sbr.rel (0) target = $region29
  $region28: #{transformer_cs_forward.9} parent=0 // pred_region
    _
  $region29: #{transformer_cs_forward.9} parent=0 // pred_fallthru
    _
  // Predicated region
  $region30: #{transformer_cs_forward.9} parent=0 // pred_check
    _
  $region31: #{transformer_cs_forward.9} parent=0 // pred_check_branch
    %32 = sbr.rel (0) target = $region33
  $region32: #{transformer_cs_forward.9} parent=0 // pred_region
    _
  $region33: #{transformer_cs_forward.9} parent=0 // pred_fallthru
    _
  // Predicated region
  $region34: #{transformer_cs_forward.9} parent=0 // pred_check
    _
  $region35: #{transformer_cs_forward.9} parent=0 // pred_check_branch
    %34 = sbr.rel (0) target = $region37
  $region36: #{transformer_cs_forward.9} parent=0 // pred_region
    _
  $region37: #{transformer_cs_forward.9} parent=0 // pred_fallthru
    _
  // Predicated region
  $region38: #{transformer_cs_forward.9} parent=0 // pred_check
    _
  $region39: #{transformer_cs_forward.9} parent=0 // pred_check_branch
    %36 = sbr.rel (0) target = $region41
  $region40: #{transformer_cs_forward.9} parent=0 // pred_region
    _
  $region41: #{transformer_cs_forward.9} parent=0 // pred_fallthru
    _
  // Predicated region
  $region42: #{transformer_cs_forward.9} parent=0 // pred_check
    _
  $region43: #{transformer_cs_forward.9} parent=0 // pred_check_branch
    %38 = sbr.rel (0) target = $region45
  $region44: #{transformer_cs_forward.9} parent=0 // pred_region
    _
  $region45: #{transformer_cs_forward.9} parent=0 // pred_fallthru
    _
  // Predicated region
  $region46: #{transformer_cs_forward.9} parent=0 // pred_check
    _
  $region47: #{transformer_cs_forward.9} parent=0 // pred_check_branch
    %40 = sbr.rel (0) target = $region49
  $region48: #{transformer_cs_forward.9} parent=0 // pred_region
    _
  $region49: #{transformer_cs_forward.9} parent=0 // pred_fallthru
    _
  %v42 = vld [vmem:[%s1] sm:$0xff]
  %v43 = vld [vmem:[%s1 + $0x8] sm:$0xff]
  %v44 = vld [vmem:[%s1 + $0x10] sm:$0xff]
  %v45 = vld [vmem:[%s1 + $0x18] sm:$0xff]
  %v46 = vld [vmem:[%s1 + $0x20] sm:$0xff]
  %v47 = vld [vmem:[%s1 + $0x28] sm:$0xff]
  %v48 = vld [vmem:[%s1 + $0x30] sm:$0xff]
  %v49 = vld [vmem:[%s1 + $0x38] sm:$0xff]
  %v50 = vld [vmem:[%s1 + $0x40] sm:$0xff]
  %v51 = vld [vmem:[%s1 + $0x48] sm:$0xff]
  %v52 = vld [vmem:[%s1 + $0x50] sm:$0xff]
  %v53 = vld [vmem:[%s1 + $0x58] sm:$0xff]
  %v54 = vld [vmem:[%s1 + $0x60] sm:$0xff]
  %v55 = vld [vmem:[%s1 + $0x68] sm:$0xff]
  %v56 = vld [vmem:[%s1 + $0x70] sm:$0xff]
  %v57 = vld [vmem:[%s1 + $0x78] sm:$0xff]
  %v58 = vld [vmem:[%s1 + $0x80] sm:$0xff]
  %v59 = vld [vmem:[%s1 + $0x88] sm:$0xff]
  %v60 = vld [vmem:[%s1 + $0x90] sm:$0xff]
  %v61 = vld [vmem:[%s1 + $0x98] sm:$0xff]
  %v62 = vld [vmem:[%s1 + $0xa0] sm:$0xff]
  %v63 = vld [vmem:[%s1 + $0xa8] sm:$0xff]
  %v64 = vld [vmem:[%s1 + $0xb0] sm:$0xff]
  %v65 = vld [vmem:[%s1 + $0xb8] sm:$0xff]
  %v66 = vld [vmem:[%s1 + $0xc0] sm:$0xff]
  %v67 = vld [vmem:[%s1 + $0xc8] sm:$0xff]
  %v68 = vld [vmem:[%s1 + $0xd0] sm:$0xff]
  %v69 = vld [vmem:[%s1 + $0xd8] sm:$0xff]
  %v70 = vld [vmem:[%s1 + $0xe0] sm:$0xff]
  %v71 = vld [vmem:[%s1 + $0xe8] sm:$0xff]
  %v72 = vld [vmem:[%s1 + $0xf0] sm:$0xff]
  %v73 = vld [vmem:[%s1 + $0xf8] sm:$0xff]
  %v74 = vld [vmem:[%s1 + $0x100] sm:$0xff]
  %v75 = vld [vmem:[%s1 + $0x108] sm:$0xff]
  %v76 = vld [vmem:[%s1 + $0x110] sm:$0xff]
  %v77 = vld [vmem:[%s1 + $0x118] sm:$0xff]
  %v78 = vld [vmem:[%s1 + $0x120] sm:$0xff]
  %v79 = vld [vmem:[%s1 + $0x128] sm:$0xff]
  %v80 = vld [vmem:[%s1 + $0x130] sm:$0xff]
  %v81 = vld [vmem:[%s1 + $0x138] sm:$0xff]
  %v82 = vld [vmem:[%s1 + $0x140] sm:$0xff]
  %v83 = vld [vmem:[%s1 + $0x148] sm:$0xff]
  %v84 = vld [vmem:[%s1 + $0x150] sm:$0xff]
  %v85 = vld [vmem:[%s1 + $0x158] sm:$0xff]
  %v86 = vld [vmem:[%s1 + $0x160] sm:$0xff]
  %v87 = vld [vmem:[%s1 + $0x168] sm:$0xff]
  %v88 = vld [vmem:[%s1 + $0x170] sm:$0xff]
  %v89 = vld [vmem:[%s1 + $0x178] sm:$0xff]
  %v90 = vpack.c.bf16 %v43, %v42
  %v91 = vpack.c.bf16 %v45, %v44
  %v92 = vpack.c.bf16 %v47, %v46
  %v93 = vpack.c.bf16 %v49, %v48
  %v94 = vpack.c.bf16 %v51, %v50
  %v95 = vpack.c.bf16 %v53, %v52
  %v96 = vpack.c.bf16 %v55, %v54
  %v97 = vpack.c.bf16 %v57, %v56
  %v98 = vpack.c.bf16 %v59, %v58
  %v99 = vpack.c.bf16 %v61, %v60
  %v100 = vpack.c.bf16 %v63, %v62
  %v101 = vpack.c.bf16 %v65, %v64
  %v102 = vpack.c.bf16 %v67, %v66
  %v103 = vpack.c.bf16 %v69, %v68
  %v104 = vpack.c.bf16 %v71, %v70
  %v105 = vpack.c.bf16 %v73, %v72
  %v106 = vpack.c.bf16 %v75, %v74
  %v107 = vpack.c.bf16 %v77, %v76
  %v108 = vpack.c.bf16 %v79, %v78
  %v109 = vpack.c.bf16 %v81, %v80
  %v110 = vpack.c.bf16 %v83, %v82
  %v111 = vpack.c.bf16 %v85, %v84
  %v112 = vpack.c.bf16 %v87, %v86
  %v113 = vpack.c.bf16 %v89, %v88
  %v114 = vld [vmem:[%s2] sm:$0xf]
  %v115 = vld [vmem:[%s2 + $0x4] sm:$0xf]
  %v116 = vld [vmem:[%s2 + $0x8] sm:$0xf]
  %v117 = vld [vmem:[%s2 + $0xc] sm:$0xf]
  %v118 = vld [vmem:[%s3] sm:$0x1]
  %v120 = vperm.slane %v118, 0
  %v126 = vunpack.c.l.b16 %v114
  %v127 = vunpack.c.l.b16 %v115
  %v128 = vunpack.c.l.b16 %v116
  %v129 = vunpack.c.l.b16 %v117
  %v130 = vpack.c.b16 %v127, %v126
  %v131 = vpack.c.b16 %v129, %v128
  %vm134 = vcmask 261120
  %v136 = vsel %vm134, %v90, 0
  %v139 = vsel %vm134, %v91, 0
  %v142 = vsel %vm134, %v92, 0
  %v145 = vsel %vm134, %v93, 0
  %v148 = vsel %vm134, %v94, 0
  %v151 = vsel %vm134, %v95, 0
  %v154 = vsel %vm134, %v96, 0
  %v157 = vsel %vm134, %v97, 0
  %v160 = vsel %vm134, %v98, 0
  %v163 = vsel %vm134, %v99, 0
  %v166 = vsel %vm134, %v100, 0
  %v169 = vsel %vm134, %v101, 0
  %v172 = vsel %vm134, %v102, 0
  %v175 = vsel %vm134, %v103, 0
  %v178 = vsel %vm134, %v104, 0
  %v181 = vsel %vm134, %v105, 0
  %v184 = vsel %vm134, %v106, 0
  %v187 = vsel %vm134, %v107, 0
  %v190 = vsel %vm134, %v108, 0
  %v193 = vsel %vm134, %v109, 0
  %v196 = vsel %vm134, %v110, 0
  %v199 = vsel %vm134, %v111, 0
  %v202 = vsel %vm134, %v112, 0
  %v205 = vsel %vm134, %v113, 0
  %207 = vmatpush.bf16.msra.mxu0 0
  %208 = vmatpush.bf16.msra.mxu0 0
  %209 = vmatpush.bf16.msra.mxu0 0
  %210 = vmatpush.bf16.msra.mxu0 0
  %211 = vmatpush.bf16.msra.mxu0 0
  %212 = vmatpush.bf16.msra.mxu0 0
  %213 = vmatpush.bf16.msra.mxu0 %v131
  %214 = vmatpush.bf16.msra.mxu0 %v130
  %215 = vmatmul.bf16.gmra.mxu0 %v136
  %v216 = vpop.f32.mrf.mxu0
  %v217 = vadd.f32 %v120, %v216
  %v218 = vpop.f32.mrf.mxu0
  %v219 = vadd.f32 %v120, %v218
  %220 = vmatmul.bf16.gmra.mxu0 %v139
  %v221 = vpop.f32.mrf.mxu0
  %v222 = vadd.f32 %v120, %v221
  %v223 = vpop.f32.mrf.mxu0
  %v224 = vadd.f32 %v120, %v223
  %225 = vmatmul.bf16.gmra.mxu0 %v142
  %v226 = vpop.f32.mrf.mxu0
  %v227 = vadd.f32 %v120, %v226
  %v228 = vpop.f32.mrf.mxu0
  %v229 = vadd.f32 %v120, %v228
  %230 = vmatmul.bf16.gmra.mxu0 %v145
  %v231 = vpop.f32.mrf.mxu0
  %v232 = vadd.f32 %v120, %v231
  %v233 = vpop.f32.mrf.mxu0
  %v234 = vadd.f32 %v120, %v233
  %235 = vmatmul.bf16.gmra.mxu0 %v148
  %v236 = vpop.f32.mrf.mxu0
  %v237 = vadd.f32 %v120, %v236
  %v238 = vpop.f32.mrf.mxu0
  %v239 = vadd.f32 %v120, %v238
  %240 = vmatmul.bf16.gmra.mxu0 %v151
  %v241 = vpop.f32.mrf.mxu0
  %v242 = vadd.f32 %v120, %v241
  %v243 = vpop.f32.mrf.mxu0
  %v244 = vadd.f32 %v120, %v243
  %245 = vmatmul.bf16.gmra.mxu0 %v154
  %v246 = vpop.f32.mrf.mxu0
  %v247 = vadd.f32 %v120, %v246
  %v248 = vpop.f32.mrf.mxu0
  %v249 = vadd.f32 %v120, %v248
  %250 = vmatmul.bf16.gmra.mxu0 %v157
  %v251 = vpop.f32.mrf.mxu0
  %v252 = vadd.f32 %v120, %v251
  %v253 = vpop.f32.mrf.mxu0
  %v254 = vadd.f32 %v120, %v253
  %255 = vmatmul.bf16.gmra.mxu0 %v160
  %v256 = vpop.f32.mrf.mxu0
  %v257 = vadd.f32 %v120, %v256
  %v258 = vpop.f32.mrf.mxu0
  %v259 = vadd.f32 %v120, %v258
  %260 = vmatmul.bf16.gmra.mxu0 %v163
  %v261 = vpop.f32.mrf.mxu0
  %v262 = vadd.f32 %v120, %v261
  %v263 = vpop.f32.mrf.mxu0
  %v264 = vadd.f32 %v120, %v263
  %265 = vmatmul.bf16.gmra.mxu0 %v166
  %v266 = vpop.f32.mrf.mxu0
  %v267 = vadd.f32 %v120, %v266
  %v268 = vpop.f32.mrf.mxu0
  %v269 = vadd.f32 %v120, %v268
  %270 = vmatmul.bf16.gmra.mxu0 %v169
  %v271 = vpop.f32.mrf.mxu0
  %v272 = vadd.f32 %v120, %v271
  %v273 = vpop.f32.mrf.mxu0
  %v274 = vadd.f32 %v120, %v273
  %275 = vmatmul.bf16.gmra.mxu0 %v172
  %v276 = vpop.f32.mrf.mxu0
  %v277 = vadd.f32 %v120, %v276
  %v278 = vpop.f32.mrf.mxu0
  %v279 = vadd.f32 %v120, %v278
  %280 = vmatmul.bf16.gmra.mxu0 %v175
  %v281 = vpop.f32.mrf.mxu0
  %v282 = vadd.f32 %v120, %v281
  %v283 = vpop.f32.mrf.mxu0
  %v284 = vadd.f32 %v120, %v283
  %285 = vmatmul.bf16.gmra.mxu0 %v178
  %v286 = vpop.f32.mrf.mxu0
  %v287 = vadd.f32 %v120, %v286
  %v288 = vpop.f32.mrf.mxu0
  %v289 = vadd.f32 %v120, %v288
  %290 = vmatmul.bf16.gmra.mxu0 %v181
  %v291 = vpop.f32.mrf.mxu0
  %v292 = vadd.f32 %v120, %v291
  %v293 = vpop.f32.mrf.mxu0
  %v294 = vadd.f32 %v120, %v293
  %295 = vmatmul.bf16.gmra.mxu0 %v184
  %v296 = vpop.f32.mrf.mxu0
  %v297 = vadd.f32 %v120, %v296
  %v298 = vpop.f32.mrf.mxu0
  %v299 = vadd.f32 %v120, %v298
  %300 = vmatmul.bf16.gmra.mxu0 %v187
  %v301 = vpop.f32.mrf.mxu0
  %v302 = vadd.f32 %v120, %v301
  %v303 = vpop.f32.mrf.mxu0
  %v304 = vadd.f32 %v120, %v303
  %305 = vmatmul.bf16.gmra.mxu0 %v190
  %v306 = vpop.f32.mrf.mxu0
  %v307 = vadd.f32 %v120, %v306
  %v308 = vpop.f32.mrf.mxu0
  %v309 = vadd.f32 %v120, %v308
  %310 = vmatmul.bf16.gmra.mxu0 %v193
  %v311 = vpop.f32.mrf.mxu0
  %v312 = vadd.f32 %v120, %v311
  %v313 = vpop.f32.mrf.mxu0
  %v314 = vadd.f32 %v120, %v313
  %315 = vmatmul.bf16.gmra.mxu0 %v196
  %v316 = vpop.f32.mrf.mxu0
  %v317 = vadd.f32 %v120, %v316
  %v318 = vpop.f32.mrf.mxu0
  %v319 = vadd.f32 %v120, %v318
  %320 = vmatmul.bf16.gmra.mxu0 %v199
  %v321 = vpop.f32.mrf.mxu0
  %v322 = vadd.f32 %v120, %v321
  %v323 = vpop.f32.mrf.mxu0
  %v324 = vadd.f32 %v120, %v323
  %325 = vmatmul.bf16.gmra.mxu0 %v202
  %v326 = vpop.f32.mrf.mxu0
  %v327 = vadd.f32 %v120, %v326
  %v328 = vpop.f32.mrf.mxu0
  %v329 = vadd.f32 %v120, %v328
  %330 = vmatmul.bf16.gmra.mxu0 %v205
  %v331 = vpop.f32.mrf.mxu0
  %v332 = vadd.f32 %v120, %v331
  %v333 = vpop.f32.mrf.mxu0
  %v334 = vadd.f32 %v120, %v333
  %335 = vdwg.mxu0
  %v336 = vld [vmem:[%s0] sm:$0xff]
  %v337 = vld [vmem:[%s0 + $0x8] sm:$0xff]
  %v338 = vld [vmem:[%s0 + $0x10] sm:$0xff]
  %v339 = vld [vmem:[%s0 + $0x18] sm:$0xff]
  %v340 = vld [vmem:[%s0 + $0x20] sm:$0xff]
  %v341 = vld [vmem:[%s0 + $0x28] sm:$0xff]
  %v342 = vld [vmem:[%s0 + $0x30] sm:$0xff]
  %v343 = vld [vmem:[%s0 + $0x38] sm:$0xff]
  %v344 = vld [vmem:[%s0 + $0x40] sm:$0xff]
  %v345 = vld [vmem:[%s0 + $0x48] sm:$0xff]
  %v346 = vld [vmem:[%s0 + $0x50] sm:$0xff]
  %v347 = vld [vmem:[%s0 + $0x58] sm:$0xff]
  %v348 = vld [vmem:[%s0 + $0x60] sm:$0xff]
  %v349 = vld [vmem:[%s0 + $0x68] sm:$0xff]
  %v350 = vld [vmem:[%s0 + $0x70] sm:$0xff]
  %v351 = vld [vmem:[%s0 + $0x78] sm:$0xff]
  %v352 = vld [vmem:[%s0 + $0x80] sm:$0xff]
  %v353 = vld [vmem:[%s0 + $0x88] sm:$0xff]
  %v354 = vld [vmem:[%s0 + $0x90] sm:$0xff]
  %v355 = vld [vmem:[%s0 + $0x98] sm:$0xff]
  %v356 = vld [vmem:[%s0 + $0xa0] sm:$0xff]
  %v357 = vld [vmem:[%s0 + $0xa8] sm:$0xff]
  %v358 = vld [vmem:[%s0 + $0xb0] sm:$0xff]
  %v359 = vld [vmem:[%s0 + $0xb8] sm:$0xff]
  %v360 = vld [vmem:[%s0 + $0xc0] sm:$0xff]
  %v361 = vld [vmem:[%s0 + $0xc8] sm:$0xff]
  %v362 = vld [vmem:[%s0 + $0xd0] sm:$0xff]
  %v363 = vld [vmem:[%s0 + $0xd8] sm:$0xff]
  %v364 = vld [vmem:[%s0 + $0xe0] sm:$0xff]
  %v365 = vld [vmem:[%s0 + $0xe8] sm:$0xff]
  %v366 = vld [vmem:[%s0 + $0xf0] sm:$0xff]
  %v367 = vld [vmem:[%s0 + $0xf8] sm:$0xff]
  %v368 = vld [vmem:[%s0 + $0x100] sm:$0xff]
  %v369 = vld [vmem:[%s0 + $0x108] sm:$0xff]
  %v370 = vld [vmem:[%s0 + $0x110] sm:$0xff]
  %v371 = vld [vmem:[%s0 + $0x118] sm:$0xff]
  %v372 = vld [vmem:[%s0 + $0x120] sm:$0xff]
  %v373 = vld [vmem:[%s0 + $0x128] sm:$0xff]
  %v374 = vld [vmem:[%s0 + $0x130] sm:$0xff]
  %v375 = vld [vmem:[%s0 + $0x138] sm:$0xff]
  %v376 = vld [vmem:[%s0 + $0x140] sm:$0xff]
  %v377 = vld [vmem:[%s0 + $0x148] sm:$0xff]
  %v378 = vld [vmem:[%s0 + $0x150] sm:$0xff]
  %v379 = vld [vmem:[%s0 + $0x158] sm:$0xff]
  %v380 = vld [vmem:[%s0 + $0x160] sm:$0xff]
  %v381 = vld [vmem:[%s0 + $0x168] sm:$0xff]
  %v382 = vld [vmem:[%s0 + $0x170] sm:$0xff]
  %v383 = vld [vmem:[%s0 + $0x178] sm:$0xff]
  %v384 = vadd.f32 %v336, %v217
  %v385 = vadd.f32 %v337, %v219
  %v386 = vadd.f32 %v338, %v222
  %v387 = vadd.f32 %v339, %v224
  %v388 = vadd.f32 %v340, %v227
  %v389 = vadd.f32 %v341, %v229
  %v390 = vadd.f32 %v342, %v232
  %v391 = vadd.f32 %v343, %v234
  %v392 = vadd.f32 %v344, %v237
  %v393 = vadd.f32 %v345, %v239
  %v394 = vadd.f32 %v346, %v242
  %v395 = vadd.f32 %v347, %v244
  %v396 = vadd.f32 %v348, %v247
  %v397 = vadd.f32 %v349, %v249
  %v398 = vadd.f32 %v350, %v252
  %v399 = vadd.f32 %v351, %v254
  %v400 = vadd.f32 %v352, %v257
  %v401 = vadd.f32 %v353, %v259
  %v402 = vadd.f32 %v354, %v262
  %v403 = vadd.f32 %v355, %v264
  %v404 = vadd.f32 %v356, %v267
  %v405 = vadd.f32 %v357, %v269
  %v406 = vadd.f32 %v358, %v272
  %v407 = vadd.f32 %v359, %v274
  %v408 = vadd.f32 %v360, %v277
  %v409 = vadd.f32 %v361, %v279
  %v410 = vadd.f32 %v362, %v282
  %v411 = vadd.f32 %v363, %v284
  %v412 = vadd.f32 %v364, %v287
  %v413 = vadd.f32 %v365, %v289
  %v414 = vadd.f32 %v366, %v292
  %v415 = vadd.f32 %v367, %v294
  %v416 = vadd.f32 %v368, %v297
  %v417 = vadd.f32 %v369, %v299
  %v418 = vadd.f32 %v370, %v302
  %v419 = vadd.f32 %v371, %v304
  %v420 = vadd.f32 %v372, %v307
  %v421 = vadd.f32 %v373, %v309
  %v422 = vadd.f32 %v374, %v312
  %v423 = vadd.f32 %v375, %v314
  %v424 = vadd.f32 %v376, %v317
  %v425 = vadd.f32 %v377, %v319
  %v426 = vadd.f32 %v378, %v322
  %v427 = vadd.f32 %v379, %v324
  %v428 = vadd.f32 %v380, %v327
  %v429 = vadd.f32 %v381, %v329
  %v430 = vadd.f32 %v382, %v332
  %v431 = vadd.f32 %v383, %v334
  %v432 = vld [vmem:[%s4] sm:$0x1]
  %v433 = vld [vmem:[%s5] sm:$0x1]
  %v434 = vsel %vm134, %v384, 0.0
  %435 = vadd.xlane.f32.xlu0 %v434
  %v436 = vpop.xlane.xlu0 %435
  %v437 = vsel %vm134, %v385, 0.0
  %438 = vadd.xlane.f32.xlu0 %v437
  %v439 = vpop.xlane.xlu0 %438
  %v440 = vsel %vm134, %v386, 0.0
  %441 = vadd.xlane.f32.xlu0 %v440
  %v442 = vpop.xlane.xlu0 %441
  %v443 = vsel %vm134, %v387, 0.0
  %444 = vadd.xlane.f32.xlu0 %v443
  %v445 = vpop.xlane.xlu0 %444
  %v446 = vsel %vm134, %v388, 0.0
  %447 = vadd.xlane.f32.xlu0 %v446
  %v448 = vpop.xlane.xlu0 %447
  %v449 = vsel %vm134, %v389, 0.0
  %450 = vadd.xlane.f32.xlu0 %v449
  %v451 = vpop.xlane.xlu0 %450
  %v452 = vsel %vm134, %v390, 0.0
  %453 = vadd.xlane.f32.xlu0 %v452
  %v454 = vpop.xlane.xlu0 %453
  %v455 = vsel %vm134, %v391, 0.0
  %456 = vadd.xlane.f32.xlu0 %v455
  %v457 = vpop.xlane.xlu0 %456
  %v458 = vsel %vm134, %v392, 0.0
  %459 = vadd.xlane.f32.xlu0 %v458
  %v460 = vpop.xlane.xlu0 %459
  %v461 = vsel %vm134, %v393, 0.0
  %462 = vadd.xlane.f32.xlu0 %v461
  %v463 = vpop.xlane.xlu0 %462
  %v464 = vsel %vm134, %v394, 0.0
  %465 = vadd.xlane.f32.xlu0 %v464
  %v466 = vpop.xlane.xlu0 %465
  %v467 = vsel %vm134, %v395, 0.0
  %468 = vadd.xlane.f32.xlu0 %v467
  %v469 = vpop.xlane.xlu0 %468
  %v470 = vsel %vm134, %v396, 0.0
  %471 = vadd.xlane.f32.xlu0 %v470
  %v472 = vpop.xlane.xlu0 %471
  %v473 = vsel %vm134, %v397, 0.0
  %474 = vadd.xlane.f32.xlu0 %v473
  %v475 = vpop.xlane.xlu0 %474
  %v476 = vsel %vm134, %v398, 0.0
  %477 = vadd.xlane.f32.xlu0 %v476
  %v478 = vpop.xlane.xlu0 %477
  %v479 = vsel %vm134, %v399, 0.0
  %480 = vadd.xlane.f32.xlu0 %v479
  %v481 = vpop.xlane.xlu0 %480
  %v482 = vsel %vm134, %v400, 0.0
  %483 = vadd.xlane.f32.xlu0 %v482
  %v484 = vpop.xlane.xlu0 %483
  %v485 = vsel %vm134, %v401, 0.0
  %486 = vadd.xlane.f32.xlu0 %v485
  %v487 = vpop.xlane.xlu0 %486
  %v488 = vsel %vm134, %v402, 0.0
  %489 = vadd.xlane.f32.xlu0 %v488
  %v490 = vpop.xlane.xlu0 %489
  %v491 = vsel %vm134, %v403, 0.0
  %492 = vadd.xlane.f32.xlu0 %v491
  %v493 = vpop.xlane.xlu0 %492
  %v494 = vsel %vm134, %v404, 0.0
  %495 = vadd.xlane.f32.xlu0 %v494
  %v496 = vpop.xlane.xlu0 %495
  %v497 = vsel %vm134, %v405, 0.0
  %498 = vadd.xlane.f32.xlu0 %v497
  %v499 = vpop.xlane.xlu0 %498
  %v500 = vsel %vm134, %v406, 0.0
  %501 = vadd.xlane.f32.xlu0 %v500
  %v502 = vpop.xlane.xlu0 %501
  %v503 = vsel %vm134, %v407, 0.0
  %504 = vadd.xlane.f32.xlu0 %v503
  %v505 = vpop.xlane.xlu0 %504
  %v506 = vsel %vm134, %v408, 0.0
  %507 = vadd.xlane.f32.xlu0 %v506
  %v508 = vpop.xlane.xlu0 %507
  %v509 = vsel %vm134, %v409, 0.0
  %510 = vadd.xlane.f32.xlu0 %v509
  %v511 = vpop.xlane.xlu0 %510
  %v512 = vsel %vm134, %v410, 0.0
  %513 = vadd.xlane.f32.xlu0 %v512
  %v514 = vpop.xlane.xlu0 %513
  %v515 = vsel %vm134, %v411, 0.0
  %516 = vadd.xlane.f32.xlu0 %v515
  %v517 = vpop.xlane.xlu0 %516
  %v518 = vsel %vm134, %v412, 0.0
  %519 = vadd.xlane.f32.xlu0 %v518
  %v520 = vpop.xlane.xlu0 %519
  %v521 = vsel %vm134, %v413, 0.0
  %522 = vadd.xlane.f32.xlu0 %v521
  %v523 = vpop.xlane.xlu0 %522
  %v524 = vsel %vm134, %v414, 0.0
  %525 = vadd.xlane.f32.xlu0 %v524
  %v526 = vpop.xlane.xlu0 %525
  %v527 = vsel %vm134, %v415, 0.0
  %528 = vadd.xlane.f32.xlu0 %v527
  %v529 = vpop.xlane.xlu0 %528
  %v530 = vsel %vm134, %v416, 0.0
  %531 = vadd.xlane.f32.xlu0 %v530
  %v532 = vpop.xlane.xlu0 %531
  %v533 = vsel %vm134, %v417, 0.0
  %534 = vadd.xlane.f32.xlu0 %v533
  %v535 = vpop.xlane.xlu0 %534
  %v536 = vsel %vm134, %v418, 0.0
  %537 = vadd.xlane.f32.xlu0 %v536
  %v538 = vpop.xlane.xlu0 %537
  %v539 = vsel %vm134, %v419, 0.0
  %540 = vadd.xlane.f32.xlu0 %v539
  %v541 = vpop.xlane.xlu0 %540
  %v542 = vsel %vm134, %v420, 0.0
  %543 = vadd.xlane.f32.xlu0 %v542
  %v544 = vpop.xlane.xlu0 %543
  %v545 = vsel %vm134, %v421, 0.0
  %546 = vadd.xlane.f32.xlu0 %v545
  %v547 = vpop.xlane.xlu0 %546
  %v548 = vsel %vm134, %v422, 0.0
  %549 = vadd.xlane.f32.xlu0 %v548
  %v550 = vpop.xlane.xlu0 %549
  %v551 = vsel %vm134, %v423, 0.0
  %552 = vadd.xlane.f32.xlu0 %v551
  %v553 = vpop.xlane.xlu0 %552
  %v554 = vsel %vm134, %v424, 0.0
  %555 = vadd.xlane.f32.xlu0 %v554
  %v556 = vpop.xlane.xlu0 %555
  %v557 = vsel %vm134, %v425, 0.0
  %558 = vadd.xlane.f32.xlu0 %v557
  %v559 = vpop.xlane.xlu0 %558
  %v560 = vsel %vm134, %v426, 0.0
  %561 = vadd.xlane.f32.xlu0 %v560
  %v562 = vpop.xlane.xlu0 %561
  %v563 = vsel %vm134, %v427, 0.0
  %564 = vadd.xlane.f32.xlu0 %v563
  %v565 = vpop.xlane.xlu0 %564
  %v566 = vsel %vm134, %v428, 0.0
  %567 = vadd.xlane.f32.xlu0 %v566
  %v568 = vpop.xlane.xlu0 %567
  %v569 = vsel %vm134, %v429, 0.0
  %570 = vadd.xlane.f32.xlu0 %v569
  %v571 = vpop.xlane.xlu0 %570
  %v572 = vsel %vm134, %v430, 0.0
  %573 = vadd.xlane.f32.xlu0 %v572
  %v574 = vpop.xlane.xlu0 %573
  %v575 = vsel %vm134, %v431, 0.0
  %576 = vadd.xlane.f32.xlu0 %v575
  %v577 = vpop.xlane.xlu0 %576
  %v578 = vrcp.pop 32.0
  %v579 = vmul.f32 32.0, %v578
  %v580 = vsub.f32 1.0, %v579
  %v581 = vmul.f32 %v578, %v580
  %v582 = vadd.f32 %v578, %v581
  %vm583 = vweird.f32 %v578
  %v584 = vsel %vm583, %v578, %v582
  %v585 = vmul.f32 %v436, %v584
  %v586 = vmul.f32 %v439, %v584
  %v587 = vmul.f32 %v442, %v584
  %v588 = vmul.f32 %v445, %v584
  %v589 = vmul.f32 %v448, %v584
  %v590 = vmul.f32 %v451, %v584
  %v591 = vmul.f32 %v454, %v584
  %v592 = vmul.f32 %v457, %v584
  %v593 = vmul.f32 %v460, %v584
  %v594 = vmul.f32 %v463, %v584
  %v595 = vmul.f32 %v466, %v584
  %v596 = vmul.f32 %v469, %v584
  %v597 = vmul.f32 %v472, %v584
  %v598 = vmul.f32 %v475, %v584
  %v599 = vmul.f32 %v478, %v584
  %v600 = vmul.f32 %v481, %v584
  %v601 = vmul.f32 %v484, %v584
  %v602 = vmul.f32 %v487, %v584
  %v603 = vmul.f32 %v490, %v584
  %v604 = vmul.f32 %v493, %v584
  %v605 = vmul.f32 %v496, %v584
  %v606 = vmul.f32 %v499, %v584
  %v607 = vmul.f32 %v502, %v584
  %v608 = vmul.f32 %v505, %v584
  %v609 = vmul.f32 %v508, %v584
  %v610 = vmul.f32 %v511, %v584
  %v611 = vmul.f32 %v514, %v584
  %v612 = vmul.f32 %v517, %v584
  %v613 = vmul.f32 %v520, %v584
  %v614 = vmul.f32 %v523, %v584
  %v615 = vmul.f32 %v526, %v584
  %v616 = vmul.f32 %v529, %v584
  %v617 = vmul.f32 %v532, %v584
  %v618 = vmul.f32 %v535, %v584
  %v619 = vmul.f32 %v538, %v584
  %v620 = vmul.f32 %v541, %v584
  %v621 = vmul.f32 %v544, %v584
  %v622 = vmul.f32 %v547, %v584
  %v623 = vmul.f32 %v550, %v584
  %v624 = vmul.f32 %v553, %v584
  %v625 = vmul.f32 %v556, %v584
  %v626 = vmul.f32 %v559, %v584
  %v627 = vmul.f32 %v562, %v584
  %v628 = vmul.f32 %v565, %v584
  %v629 = vmul.f32 %v568, %v584
  %v630 = vmul.f32 %v571, %v584
  %v631 = vmul.f32 %v574, %v584
  %v632 = vmul.f32 %v577, %v584
  %v633 = vsub.f32 %v384, %v585
  %v634 = vsub.f32 %v385, %v586
  %v635 = vsub.f32 %v386, %v587
  %v636 = vsub.f32 %v387, %v588
  %v637 = vsub.f32 %v388, %v589
  %v638 = vsub.f32 %v389, %v590
  %v639 = vsub.f32 %v390, %v591
  %v640 = vsub.f32 %v391, %v592
  %v641 = vsub.f32 %v392, %v593
  %v642 = vsub.f32 %v393, %v594
  %v643 = vsub.f32 %v394, %v595
  %v644 = vsub.f32 %v395, %v596
  %v645 = vsub.f32 %v396, %v597
  %v646 = vsub.f32 %v397, %v598
  %v647 = vsub.f32 %v398, %v599
  %v648 = vsub.f32 %v399, %v600
  %v649 = vsub.f32 %v400, %v601
  %v650 = vsub.f32 %v401, %v602
  %v651 = vsub.f32 %v402, %v603
  %v652 = vsub.f32 %v403, %v604
  %v653 = vsub.f32 %v404, %v605
  %v654 = vsub.f32 %v405, %v606
  %v655 = vsub.f32 %v406, %v607
  %v656 = vsub.f32 %v407, %v608
  %v657 = vsub.f32 %v408, %v609
  %v658 = vsub.f32 %v409, %v610
  %v659 = vsub.f32 %v410, %v611
  %v660 = vsub.f32 %v411, %v612
  %v661 = vsub.f32 %v412, %v613
  %v662 = vsub.f32 %v413, %v614
  %v663 = vsub.f32 %v414, %v615
  %v664 = vsub.f32 %v415, %v616
  %v665 = vsub.f32 %v416, %v617
  %v666 = vsub.f32 %v417, %v618
  %v667 = vsub.f32 %v418, %v619
  %v668 = vsub.f32 %v419, %v620
  %v669 = vsub.f32 %v420, %v621
  %v670 = vsub.f32 %v421, %v622
  %v671 = vsub.f32 %v422, %v623
  %v672 = vsub.f32 %v423, %v624
  %v673 = vsub.f32 %v424, %v625
  %v674 = vsub.f32 %v425, %v626
  %v675 = vsub.f32 %v426, %v627
  %v676 = vsub.f32 %v427, %v628
  %v677 = vsub.f32 %v428, %v629
  %v678 = vsub.f32 %v429, %v630
  %v679 = vsub.f32 %v430, %v631
  %v680 = vsub.f32 %v431, %v632
  %v681 = vmul.f32 %v633, %v633
  %v682 = vmul.f32 %v634, %v634
  %v683 = vmul.f32 %v635, %v635
  %v684 = vmul.f32 %v636, %v636
  %v685 = vmul.f32 %v637, %v637
  %v686 = vmul.f32 %v638, %v638
  %v687 = vmul.f32 %v639, %v639
  %v688 = vmul.f32 %v640, %v640
  %v689 = vmul.f32 %v641, %v641
  %v690 = vmul.f32 %v642, %v642
  %v691 = vmul.f32 %v643, %v643
  %v692 = vmul.f32 %v644, %v644
  %v693 = vmul.f32 %v645, %v645
  %v694 = vmul.f32 %v646, %v646
  %v695 = vmul.f32 %v647, %v647
  %v696 = vmul.f32 %v648, %v648
  %v697 = vmul.f32 %v649, %v649
  %v698 = vmul.f32 %v650, %v650
  %v699 = vmul.f32 %v651, %v651
  %v700 = vmul.f32 %v652, %v652
  %v701 = vmul.f32 %v653, %v653
  %v702 = vmul.f32 %v654, %v654
  %v703 = vmul.f32 %v655, %v655
  %v704 = vmul.f32 %v656, %v656
  %v705 = vmul.f32 %v657, %v657
  %v706 = vmul.f32 %v658, %v658
  %v707 = vmul.f32 %v659, %v659
  %v708 = vmul.f32 %v660, %v660
  %v709 = vmul.f32 %v661, %v661
  %v710 = vmul.f32 %v662, %v662
  %v711 = vmul.f32 %v663, %v663
  %v712 = vmul.f32 %v664, %v664
  %v713 = vmul.f32 %v665, %v665
  %v714 = vmul.f32 %v666, %v666
  %v715 = vmul.f32 %v667, %v667
  %v716 = vmul.f32 %v668, %v668
  %v717 = vmul.f32 %v669, %v669
  %v718 = vmul.f32 %v670, %v670
  %v719 = vmul.f32 %v671, %v671
  %v720 = vmul.f32 %v672, %v672
  %v721 = vmul.f32 %v673, %v673
  %v722 = vmul.f32 %v674, %v674
  %v723 = vmul.f32 %v675, %v675
  %v724 = vmul.f32 %v676, %v676
  %v725 = vmul.f32 %v677, %v677
  %v726 = vmul.f32 %v678, %v678
  %v727 = vmul.f32 %v679, %v679
  %v728 = vmul.f32 %v680, %v680
  %v729 = vsel %vm134, %v681, 0.0
  %730 = vadd.xlane.f32.xlu0 %v729
  %v731 = vpop.xlane.xlu0 %730
  %v732 = vsel %vm134, %v682, 0.0
  %733 = vadd.xlane.f32.xlu0 %v732
  %v734 = vpop.xlane.xlu0 %733
  %v735 = vsel %vm134, %v683, 0.0
  %736 = vadd.xlane.f32.xlu0 %v735
  %v737 = vpop.xlane.xlu0 %736
  %v738 = vsel %vm134, %v684, 0.0
  %739 = vadd.xlane.f32.xlu0 %v738
  %v740 = vpop.xlane.xlu0 %739
  %v741 = vsel %vm134, %v685, 0.0
  %742 = vadd.xlane.f32.xlu0 %v741
  %v743 = vpop.xlane.xlu0 %742
  %v744 = vsel %vm134, %v686, 0.0
  %745 = vadd.xlane.f32.xlu0 %v744
  %v746 = vpop.xlane.xlu0 %745
  %v747 = vsel %vm134, %v687, 0.0
  %748 = vadd.xlane.f32.xlu0 %v747
  %v749 = vpop.xlane.xlu0 %748
  %v750 = vsel %vm134, %v688, 0.0
  %751 = vadd.xlane.f32.xlu0 %v750
  %v752 = vpop.xlane.xlu0 %751
  %v753 = vsel %vm134, %v689, 0.0
  %754 = vadd.xlane.f32.xlu0 %v753
  %v755 = vpop.xlane.xlu0 %754
  %v756 = vsel %vm134, %v690, 0.0
  %757 = vadd.xlane.f32.xlu0 %v756
  %v758 = vpop.xlane.xlu0 %757
  %v759 = vsel %vm134, %v691, 0.0
  %760 = vadd.xlane.f32.xlu0 %v759
  %v761 = vpop.xlane.xlu0 %760
  %v762 = vsel %vm134, %v692, 0.0
  %763 = vadd.xlane.f32.xlu0 %v762
  %v764 = vpop.xlane.xlu0 %763
  %v765 = vsel %vm134, %v693, 0.0
  %766 = vadd.xlane.f32.xlu0 %v765
  %v767 = vpop.xlane.xlu0 %766
  %v768 = vsel %vm134, %v694, 0.0
  %769 = vadd.xlane.f32.xlu0 %v768
  %v770 = vpop.xlane.xlu0 %769
  %v771 = vsel %vm134, %v695, 0.0
  %772 = vadd.xlane.f32.xlu0 %v771
  %v773 = vpop.xlane.xlu0 %772
  %v774 = vsel %vm134, %v696, 0.0
  %775 = vadd.xlane.f32.xlu0 %v774
  %v776 = vpop.xlane.xlu0 %775
  %v777 = vsel %vm134, %v697, 0.0
  %778 = vadd.xlane.f32.xlu0 %v777
  %v779 = vpop.xlane.xlu0 %778
  %v780 = vsel %vm134, %v698, 0.0
  %781 = vadd.xlane.f32.xlu0 %v780
  %v782 = vpop.xlane.xlu0 %781
  %v783 = vsel %vm134, %v699, 0.0
  %784 = vadd.xlane.f32.xlu0 %v783
  %v785 = vpop.xlane.xlu0 %784
  %v786 = vsel %vm134, %v700, 0.0
  %787 = vadd.xlane.f32.xlu0 %v786
  %v788 = vpop.xlane.xlu0 %787
  %v789 = vsel %vm134, %v701, 0.0
  %790 = vadd.xlane.f32.xlu0 %v789
  %v791 = vpop.xlane.xlu0 %790
  %v792 = vsel %vm134, %v702, 0.0
  %793 = vadd.xlane.f32.xlu0 %v792
  %v794 = vpop.xlane.xlu0 %793
  %v795 = vsel %vm134, %v703, 0.0
  %796 = vadd.xlane.f32.xlu0 %v795
  %v797 = vpop.xlane.xlu0 %796
  %v798 = vsel %vm134, %v704, 0.0
  %799 = vadd.xlane.f32.xlu0 %v798
  %v800 = vpop.xlane.xlu0 %799
  %v801 = vsel %vm134, %v705, 0.0
  %802 = vadd.xlane.f32.xlu0 %v801
  %v803 = vpop.xlane.xlu0 %802
  %v804 = vsel %vm134, %v706, 0.0
  %805 = vadd.xlane.f32.xlu0 %v804
  %v806 = vpop.xlane.xlu0 %805
  %v807 = vsel %vm134, %v707, 0.0
  %808 = vadd.xlane.f32.xlu0 %v807
  %v809 = vpop.xlane.xlu0 %808
  %v810 = vsel %vm134, %v708, 0.0
  %811 = vadd.xlane.f32.xlu0 %v810
  %v812 = vpop.xlane.xlu0 %811
  %v813 = vsel %vm134, %v709, 0.0
  %814 = vadd.xlane.f32.xlu0 %v813
  %v815 = vpop.xlane.xlu0 %814
  %v816 = vsel %vm134, %v710, 0.0
  %817 = vadd.xlane.f32.xlu0 %v816
  %v818 = vpop.xlane.xlu0 %817
  %v819 = vsel %vm134, %v711, 0.0
  %820 = vadd.xlane.f32.xlu0 %v819
  %v821 = vpop.xlane.xlu0 %820
  %v822 = vsel %vm134, %v712, 0.0
  %823 = vadd.xlane.f32.xlu0 %v822
  %v824 = vpop.xlane.xlu0 %823
  %v825 = vsel %vm134, %v713, 0.0
  %826 = vadd.xlane.f32.xlu0 %v825
  %v827 = vpop.xlane.xlu0 %826
  %v828 = vsel %vm134, %v714, 0.0
  %829 = vadd.xlane.f32.xlu0 %v828
  %v830 = vpop.xlane.xlu0 %829
  %v831 = vsel %vm134, %v715, 0.0
  %832 = vadd.xlane.f32.xlu0 %v831
  %v833 = vpop.xlane.xlu0 %832
  %v834 = vsel %vm134, %v716, 0.0
  %835 = vadd.xlane.f32.xlu0 %v834
  %v836 = vpop.xlane.xlu0 %835
  %v837 = vsel %vm134, %v717, 0.0
  %838 = vadd.xlane.f32.xlu0 %v837
  %v839 = vpop.xlane.xlu0 %838
  %v840 = vsel %vm134, %v718, 0.0
  %841 = vadd.xlane.f32.xlu0 %v840
  %v842 = vpop.xlane.xlu0 %841
  %v843 = vsel %vm134, %v719, 0.0
  %844 = vadd.xlane.f32.xlu0 %v843
  %v845 = vpop.xlane.xlu0 %844
  %v846 = vsel %vm134, %v720, 0.0
  %847 = vadd.xlane.f32.xlu0 %v846
  %v848 = vpop.xlane.xlu0 %847
  %v849 = vsel %vm134, %v721, 0.0
  %850 = vadd.xlane.f32.xlu0 %v849
  %v851 = vpop.xlane.xlu0 %850
  %v852 = vsel %vm134, %v722, 0.0
  %853 = vadd.xlane.f32.xlu0 %v852
  %v854 = vpop.xlane.xlu0 %853
  %v855 = vsel %vm134, %v723, 0.0
  %856 = vadd.xlane.f32.xlu0 %v855
  %v857 = vpop.xlane.xlu0 %856
  %v858 = vsel %vm134, %v724, 0.0
  %859 = vadd.xlane.f32.xlu0 %v858
  %v860 = vpop.xlane.xlu0 %859
  %v861 = vsel %vm134, %v725, 0.0
  %862 = vadd.xlane.f32.xlu0 %v861
  %v863 = vpop.xlane.xlu0 %862
  %v864 = vsel %vm134, %v726, 0.0
  %865 = vadd.xlane.f32.xlu0 %v864
  %v866 = vpop.xlane.xlu0 %865
  %v867 = vsel %vm134, %v727, 0.0
  %868 = vadd.xlane.f32.xlu0 %v867
  %v869 = vpop.xlane.xlu0 %868
  %v870 = vsel %vm134, %v728, 0.0
  %871 = vadd.xlane.f32.xlu0 %v870
  %v872 = vpop.xlane.xlu0 %871
  %v873 = vmul.f32 %v731, %v584
  %v874 = vmul.f32 %v734, %v584
  %v875 = vmul.f32 %v737, %v584
  %v876 = vmul.f32 %v740, %v584
  %v877 = vmul.f32 %v743, %v584
  %v878 = vmul.f32 %v746, %v584
  %v879 = vmul.f32 %v749, %v584
  %v880 = vmul.f32 %v752, %v584
  %v881 = vmul.f32 %v755, %v584
  %v882 = vmul.f32 %v758, %v584
  %v883 = vmul.f32 %v761, %v584
  %v884 = vmul.f32 %v764, %v584
  %v885 = vmul.f32 %v767, %v584
  %v886 = vmul.f32 %v770, %v584
  %v887 = vmul.f32 %v773, %v584
  %v888 = vmul.f32 %v776, %v584
  %v889 = vmul.f32 %v779, %v584
  %v890 = vmul.f32 %v782, %v584
  %v891 = vmul.f32 %v785, %v584
  %v892 = vmul.f32 %v788, %v584
  %v893 = vmul.f32 %v791, %v584
  %v894 = vmul.f32 %v794, %v584
  %v895 = vmul.f32 %v797, %v584
  %v896 = vmul.f32 %v800, %v584
  %v897 = vmul.f32 %v803, %v584
  %v898 = vmul.f32 %v806, %v584
  %v899 = vmul.f32 %v809, %v584
  %v900 = vmul.f32 %v812, %v584
  %v901 = vmul.f32 %v815, %v584
  %v902 = vmul.f32 %v818, %v584
  %v903 = vmul.f32 %v821, %v584
  %v904 = vmul.f32 %v824, %v584
  %v905 = vmul.f32 %v827, %v584
  %v906 = vmul.f32 %v830, %v584
  %v907 = vmul.f32 %v833, %v584
  %v908 = vmul.f32 %v836, %v584
  %v909 = vmul.f32 %v839, %v584
  %v910 = vmul.f32 %v842, %v584
  %v911 = vmul.f32 %v845, %v584
  %v912 = vmul.f32 %v848, %v584
  %v913 = vmul.f32 %v851, %v584
  %v914 = vmul.f32 %v854, %v584
  %v915 = vmul.f32 %v857, %v584
  %v916 = vmul.f32 %v860, %v584
  %v917 = vmul.f32 %v863, %v584
  %v918 = vmul.f32 %v866, %v584
  %v919 = vmul.f32 %v869, %v584
  %v920 = vmul.f32 %v872, %v584
  %v921 = vadd.f32 %v873, 1e-05
  %v922 = vadd.f32 %v874, 1e-05
  %v923 = vadd.f32 %v875, 1e-05
  %v924 = vadd.f32 %v876, 1e-05
  %v925 = vadd.f32 %v877, 1e-05
  %v926 = vadd.f32 %v878, 1e-05
  %v927 = vadd.f32 %v879, 1e-05
  %v928 = vadd.f32 %v880, 1e-05
  %v929 = vadd.f32 %v881, 1e-05
  %v930 = vadd.f32 %v882, 1e-05
  %v931 = vadd.f32 %v883, 1e-05
  %v932 = vadd.f32 %v884, 1e-05
  %v933 = vadd.f32 %v885, 1e-05
  %v934 = vadd.f32 %v886, 1e-05
  %v935 = vadd.f32 %v887, 1e-05
  %v936 = vadd.f32 %v888, 1e-05
  %v937 = vadd.f32 %v889, 1e-05
  %v938 = vadd.f32 %v890, 1e-05
  %v939 = vadd.f32 %v891, 1e-05
  %v940 = vadd.f32 %v892, 1e-05
  %v941 = vadd.f32 %v893, 1e-05
  %v942 = vadd.f32 %v894, 1e-05
  %v943 = vadd.f32 %v895, 1e-05
  %v944 = vadd.f32 %v896, 1e-05
  %v945 = vadd.f32 %v897, 1e-05
  %v946 = vadd.f32 %v898, 1e-05
  %v947 = vadd.f32 %v899, 1e-05
  %v948 = vadd.f32 %v900, 1e-05
  %v949 = vadd.f32 %v901, 1e-05
  %v950 = vadd.f32 %v902, 1e-05
  %v951 = vadd.f32 %v903, 1e-05
  %v952 = vadd.f32 %v904, 1e-05
  %v953 = vadd.f32 %v905, 1e-05
  %v954 = vadd.f32 %v906, 1e-05
  %v955 = vadd.f32 %v907, 1e-05
  %v956 = vadd.f32 %v908, 1e-05
  %v957 = vadd.f32 %v909, 1e-05
  %v958 = vadd.f32 %v910, 1e-05
  %v959 = vadd.f32 %v911, 1e-05
  %v960 = vadd.f32 %v912, 1e-05
  %v961 = vadd.f32 %v913, 1e-05
  %v962 = vadd.f32 %v914, 1e-05
  %v963 = vadd.f32 %v915, 1e-05
  %v964 = vadd.f32 %v916, 1e-05
  %v965 = vadd.f32 %v917, 1e-05
  %v966 = vadd.f32 %v918, 1e-05
  %v967 = vadd.f32 %v919, 1e-05
  %v968 = vadd.f32 %v920, 1e-05
  %v969 = vrsqrt.pop %v921
  %v970 = vmul.f32 %v969, %v921
  %v971 = vmul.f32 %v970, %v969
  %v972 = vmul.f32 0.5, %v971
  %v973 = vsub.f32 1.5, %v972
  %v974 = vmul.f32 %v969, %v973
  %vm975 = vweird.f32 %v921
  %vm976 = vweird.f32 %v969
  %vm977 = vmor %vm975, %vm976
  %v978 = vsel %vm977, %v969, %v974
  %v979 = vrsqrt.pop %v922
  %v980 = vmul.f32 %v979, %v922
  %v981 = vmul.f32 %v980, %v979
  %v982 = vmul.f32 0.5, %v981
  %v983 = vsub.f32 1.5, %v982
  %v984 = vmul.f32 %v979, %v983
  %vm985 = vweird.f32 %v922
  %vm986 = vweird.f32 %v979
  %vm987 = vmor %vm985, %vm986
  %v988 = vsel %vm987, %v979, %v984
  %v989 = vrsqrt.pop %v923
  %v990 = vmul.f32 %v989, %v923
  %v991 = vmul.f32 %v990, %v989
  %v992 = vmul.f32 0.5, %v991
  %v993 = vsub.f32 1.5, %v992
  %v994 = vmul.f32 %v989, %v993
  %vm995 = vweird.f32 %v923
  %vm996 = vweird.f32 %v989
  %vm997 = vmor %vm995, %vm996
  %v998 = vsel %vm997, %v989, %v994
  %v999 = vrsqrt.pop %v924
  %v1000 = vmul.f32 %v999, %v924
  %v1001 = vmul.f32 %v1000, %v999
  %v1002 = vmul.f32 0.5, %v1001
  %v1003 = vsub.f32 1.5, %v1002
  %v1004 = vmul.f32 %v999, %v1003
  %vm1005 = vweird.f32 %v924
  %vm1006 = vweird.f32 %v999
  %vm1007 = vmor %vm1005, %vm1006
  %v1008 = vsel %vm1007, %v999, %v1004
  %v1009 = vrsqrt.pop %v925
  %v1010 = vmul.f32 %v1009, %v925
  %v1011 = vmul.f32 %v1010, %v1009
  %v1012 = vmul.f32 0.5, %v1011
  %v1013 = vsub.f32 1.5, %v1012
  %v1014 = vmul.f32 %v1009, %v1013
  %vm1015 = vweird.f32 %v925
  %vm1016 = vweird.f32 %v1009
  %vm1017 = vmor %vm1015, %vm1016
  %v1018 = vsel %vm1017, %v1009, %v1014
  %v1019 = vrsqrt.pop %v926
  %v1020 = vmul.f32 %v1019, %v926
  %v1021 = vmul.f32 %v1020, %v1019
  %v1022 = vmul.f32 0.5, %v1021
  %v1023 = vsub.f32 1.5, %v1022
  %v1024 = vmul.f32 %v1019, %v1023
  %vm1025 = vweird.f32 %v926
  %vm1026 = vweird.f32 %v1019
  %vm1027 = vmor %vm1025, %vm1026
  %v1028 = vsel %vm1027, %v1019, %v1024
  %v1029 = vrsqrt.pop %v927
  %v1030 = vmul.f32 %v1029, %v927
  %v1031 = vmul.f32 %v1030, %v1029
  %v1032 = vmul.f32 0.5, %v1031
  %v1033 = vsub.f32 1.5, %v1032
  %v1034 = vmul.f32 %v1029, %v1033
  %vm1035 = vweird.f32 %v927
  %vm1036 = vweird.f32 %v1029
  %vm1037 = vmor %vm1035, %vm1036
  %v1038 = vsel %vm1037, %v1029, %v1034
  %v1039 = vrsqrt.pop %v928
  %v1040 = vmul.f32 %v1039, %v928
  %v1041 = vmul.f32 %v1040, %v1039
  %v1042 = vmul.f32 0.5, %v1041
  %v1043 = vsub.f32 1.5, %v1042
  %v1044 = vmul.f32 %v1039, %v1043
  %vm1045 = vweird.f32 %v928
  %vm1046 = vweird.f32 %v1039
  %vm1047 = vmor %vm1045, %vm1046
  %v1048 = vsel %vm1047, %v1039, %v1044
  %v1049 = vrsqrt.pop %v929
  %v1050 = vmul.f32 %v1049, %v929
  %v1051 = vmul.f32 %v1050, %v1049
  %v1052 = vmul.f32 0.5, %v1051
  %v1053 = vsub.f32 1.5, %v1052
  %v1054 = vmul.f32 %v1049, %v1053
  %vm1055 = vweird.f32 %v929
  %vm1056 = vweird.f32 %v1049
  %vm1057 = vmor %vm1055, %vm1056
  %v1058 = vsel %vm1057, %v1049, %v1054
  %v1059 = vrsqrt.pop %v930
  %v1060 = vmul.f32 %v1059, %v930
  %v1061 = vmul.f32 %v1060, %v1059
  %v1062 = vmul.f32 0.5, %v1061
  %v1063 = vsub.f32 1.5, %v1062
  %v1064 = vmul.f32 %v1059, %v1063
  %vm1065 = vweird.f32 %v930
  %vm1066 = vweird.f32 %v1059
  %vm1067 = vmor %vm1065, %vm1066
  %v1068 = vsel %vm1067, %v1059, %v1064
  %v1069 = vrsqrt.pop %v931
  %v1070 = vmul.f32 %v1069, %v931
  %v1071 = vmul.f32 %v1070, %v1069
  %v1072 = vmul.f32 0.5, %v1071
  %v1073 = vsub.f32 1.5, %v1072
  %v1074 = vmul.f32 %v1069, %v1073
  %vm1075 = vweird.f32 %v931
  %vm1076 = vweird.f32 %v1069
  %vm1077 = vmor %vm1075, %vm1076
  %v1078 = vsel %vm1077, %v1069, %v1074
  %v1079 = vrsqrt.pop %v932
  %v1080 = vmul.f32 %v1079, %v932
  %v1081 = vmul.f32 %v1080, %v1079
  %v1082 = vmul.f32 0.5, %v1081
  %v1083 = vsub.f32 1.5, %v1082
  %v1084 = vmul.f32 %v1079, %v1083
  %vm1085 = vweird.f32 %v932
  %vm1086 = vweird.f32 %v1079
  %vm1087 = vmor %vm1085, %vm1086
  %v1088 = vsel %vm1087, %v1079, %v1084
  %v1089 = vrsqrt.pop %v933
  %v1090 = vmul.f32 %v1089, %v933
  %v1091 = vmul.f32 %v1090, %v1089
  %v1092 = vmul.f32 0.5, %v1091
  %v1093 = vsub.f32 1.5, %v1092
  %v1094 = vmul.f32 %v1089, %v1093
  %vm1095 = vweird.f32 %v933
  %vm1096 = vweird.f32 %v1089
  %vm1097 = vmor %vm1095, %vm1096
  %v1098 = vsel %vm1097, %v1089, %v1094
  %v1099 = vrsqrt.pop %v934
  %v1100 = vmul.f32 %v1099, %v934
  %v1101 = vmul.f32 %v1100, %v1099
  %v1102 = vmul.f32 0.5, %v1101
  %v1103 = vsub.f32 1.5, %v1102
  %v1104 = vmul.f32 %v1099, %v1103
  %vm1105 = vweird.f32 %v934
  %vm1106 = vweird.f32 %v1099
  %vm1107 = vmor %vm1105, %vm1106
  %v1108 = vsel %vm1107, %v1099, %v1104
  %v1109 = vrsqrt.pop %v935
  %v1110 = vmul.f32 %v1109, %v935
  %v1111 = vmul.f32 %v1110, %v1109
  %v1112 = vmul.f32 0.5, %v1111
  %v1113 = vsub.f32 1.5, %v1112
  %v1114 = vmul.f32 %v1109, %v1113
  %vm1115 = vweird.f32 %v935
  %vm1116 = vweird.f32 %v1109
  %vm1117 = vmor %vm1115, %vm1116
  %v1118 = vsel %vm1117, %v1109, %v1114
  %v1119 = vrsqrt.pop %v936
  %v1120 = vmul.f32 %v1119, %v936
  %v1121 = vmul.f32 %v1120, %v1119
  %v1122 = vmul.f32 0.5, %v1121
  %v1123 = vsub.f32 1.5, %v1122
  %v1124 = vmul.f32 %v1119, %v1123
  %vm1125 = vweird.f32 %v936
  %vm1126 = vweird.f32 %v1119
  %vm1127 = vmor %vm1125, %vm1126
  %v1128 = vsel %vm1127, %v1119, %v1124
  %v1129 = vrsqrt.pop %v937
  %v1130 = vmul.f32 %v1129, %v937
  %v1131 = vmul.f32 %v1130, %v1129
  %v1132 = vmul.f32 0.5, %v1131
  %v1133 = vsub.f32 1.5, %v1132
  %v1134 = vmul.f32 %v1129, %v1133
  %vm1135 = vweird.f32 %v937
  %vm1136 = vweird.f32 %v1129
  %vm1137 = vmor %vm1135, %vm1136
  %v1138 = vsel %vm1137, %v1129, %v1134
  %v1139 = vrsqrt.pop %v938
  %v1140 = vmul.f32 %v1139, %v938
  %v1141 = vmul.f32 %v1140, %v1139
  %v1142 = vmul.f32 0.5, %v1141
  %v1143 = vsub.f32 1.5, %v1142
  %v1144 = vmul.f32 %v1139, %v1143
  %vm1145 = vweird.f32 %v938
  %vm1146 = vweird.f32 %v1139
  %vm1147 = vmor %vm1145, %vm1146
  %v1148 = vsel %vm1147, %v1139, %v1144
  %v1149 = vrsqrt.pop %v939
  %v1150 = vmul.f32 %v1149, %v939
  %v1151 = vmul.f32 %v1150, %v1149
  %v1152 = vmul.f32 0.5, %v1151
  %v1153 = vsub.f32 1.5, %v1152
  %v1154 = vmul.f32 %v1149, %v1153
  %vm1155 = vweird.f32 %v939
  %vm1156 = vweird.f32 %v1149
  %vm1157 = vmor %vm1155, %vm1156
  %v1158 = vsel %vm1157, %v1149, %v1154
  %v1159 = vrsqrt.pop %v940
  %v1160 = vmul.f32 %v1159, %v940
  %v1161 = vmul.f32 %v1160, %v1159
  %v1162 = vmul.f32 0.5, %v1161
  %v1163 = vsub.f32 1.5, %v1162
  %v1164 = vmul.f32 %v1159, %v1163
  %vm1165 = vweird.f32 %v940
  %vm1166 = vweird.f32 %v1159
  %vm1167 = vmor %vm1165, %vm1166
  %v1168 = vsel %vm1167, %v1159, %v1164
  %v1169 = vrsqrt.pop %v941
  %v1170 = vmul.f32 %v1169, %v941
  %v1171 = vmul.f32 %v1170, %v1169
  %v1172 = vmul.f32 0.5, %v1171
  %v1173 = vsub.f32 1.5, %v1172
  %v1174 = vmul.f32 %v1169, %v1173
  %vm1175 = vweird.f32 %v941
  %vm1176 = vweird.f32 %v1169
  %vm1177 = vmor %vm1175, %vm1176
  %v1178 = vsel %vm1177, %v1169, %v1174
  %v1179 = vrsqrt.pop %v942
  %v1180 = vmul.f32 %v1179, %v942
  %v1181 = vmul.f32 %v1180, %v1179
  %v1182 = vmul.f32 0.5, %v1181
  %v1183 = vsub.f32 1.5, %v1182
  %v1184 = vmul.f32 %v1179, %v1183
  %vm1185 = vweird.f32 %v942
  %vm1186 = vweird.f32 %v1179
  %vm1187 = vmor %vm1185, %vm1186
  %v1188 = vsel %vm1187, %v1179, %v1184
  %v1189 = vrsqrt.pop %v943
  %v1190 = vmul.f32 %v1189, %v943
  %v1191 = vmul.f32 %v1190, %v1189
  %v1192 = vmul.f32 0.5, %v1191
  %v1193 = vsub.f32 1.5, %v1192
  %v1194 = vmul.f32 %v1189, %v1193
  %vm1195 = vweird.f32 %v943
  %vm1196 = vweird.f32 %v1189
  %vm1197 = vmor %vm1195, %vm1196
  %v1198 = vsel %vm1197, %v1189, %v1194
  %v1199 = vrsqrt.pop %v944
  %v1200 = vmul.f32 %v1199, %v944
  %v1201 = vmul.f32 %v1200, %v1199
  %v1202 = vmul.f32 0.5, %v1201
  %v1203 = vsub.f32 1.5, %v1202
  %v1204 = vmul.f32 %v1199, %v1203
  %vm1205 = vweird.f32 %v944
  %vm1206 = vweird.f32 %v1199
  %vm1207 = vmor %vm1205, %vm1206
  %v1208 = vsel %vm1207, %v1199, %v1204
  %v1209 = vrsqrt.pop %v945
  %v1210 = vmul.f32 %v1209, %v945
  %v1211 = vmul.f32 %v1210, %v1209
  %v1212 = vmul.f32 0.5, %v1211
  %v1213 = vsub.f32 1.5, %v1212
  %v1214 = vmul.f32 %v1209, %v1213
  %vm1215 = vweird.f32 %v945
  %vm1216 = vweird.f32 %v1209
  %vm1217 = vmor %vm1215, %vm1216
  %v1218 = vsel %vm1217, %v1209, %v1214
  %v1219 = vrsqrt.pop %v946
  %v1220 = vmul.f32 %v1219, %v946
  %v1221 = vmul.f32 %v1220, %v1219
  %v1222 = vmul.f32 0.5, %v1221
  %v1223 = vsub.f32 1.5, %v1222
  %v1224 = vmul.f32 %v1219, %v1223
  %vm1225 = vweird.f32 %v946
  %vm1226 = vweird.f32 %v1219
  %vm1227 = vmor %vm1225, %vm1226
  %v1228 = vsel %vm1227, %v1219, %v1224
  %v1229 = vrsqrt.pop %v947
  %v1230 = vmul.f32 %v1229, %v947
  %v1231 = vmul.f32 %v1230, %v1229
  %v1232 = vmul.f32 0.5, %v1231
  %v1233 = vsub.f32 1.5, %v1232
  %v1234 = vmul.f32 %v1229, %v1233
  %vm1235 = vweird.f32 %v947
  %vm1236 = vweird.f32 %v1229
  %vm1237 = vmor %vm1235, %vm1236
  %v1238 = vsel %vm1237, %v1229, %v1234
  %v1239 = vrsqrt.pop %v948
  %v1240 = vmul.f32 %v1239, %v948
  %v1241 = vmul.f32 %v1240, %v1239
  %v1242 = vmul.f32 0.5, %v1241
  %v1243 = vsub.f32 1.5, %v1242
  %v1244 = vmul.f32 %v1239, %v1243
  %vm1245 = vweird.f32 %v948
  %vm1246 = vweird.f32 %v1239
  %vm1247 = vmor %vm1245, %vm1246
  %v1248 = vsel %vm1247, %v1239, %v1244
  %v1249 = vrsqrt.pop %v949
  %v1250 = vmul.f32 %v1249, %v949
  %v1251 = vmul.f32 %v1250, %v1249
  %v1252 = vmul.f32 0.5, %v1251
  %v1253 = vsub.f32 1.5, %v1252
  %v1254 = vmul.f32 %v1249, %v1253
  %vm1255 = vweird.f32 %v949
  %vm1256 = vweird.f32 %v1249
  %vm1257 = vmor %vm1255, %vm1256
  %v1258 = vsel %vm1257, %v1249, %v1254
  %v1259 = vrsqrt.pop %v950
  %v1260 = vmul.f32 %v1259, %v950
  %v1261 = vmul.f32 %v1260, %v1259
  %v1262 = vmul.f32 0.5, %v1261
  %v1263 = vsub.f32 1.5, %v1262
  %v1264 = vmul.f32 %v1259, %v1263
  %vm1265 = vweird.f32 %v950
  %vm1266 = vweird.f32 %v1259
  %vm1267 = vmor %vm1265, %vm1266
  %v1268 = vsel %vm1267, %v1259, %v1264
  %v1269 = vrsqrt.pop %v951
  %v1270 = vmul.f32 %v1269, %v951
  %v1271 = vmul.f32 %v1270, %v1269
  %v1272 = vmul.f32 0.5, %v1271
  %v1273 = vsub.f32 1.5, %v1272
  %v1274 = vmul.f32 %v1269, %v1273
  %vm1275 = vweird.f32 %v951
  %vm1276 = vweird.f32 %v1269
  %vm1277 = vmor %vm1275, %vm1276
  %v1278 = vsel %vm1277, %v1269, %v1274
  %v1279 = vrsqrt.pop %v952
  %v1280 = vmul.f32 %v1279, %v952
  %v1281 = vmul.f32 %v1280, %v1279
  %v1282 = vmul.f32 0.5, %v1281
  %v1283 = vsub.f32 1.5, %v1282
  %v1284 = vmul.f32 %v1279, %v1283
  %vm1285 = vweird.f32 %v952
  %vm1286 = vweird.f32 %v1279
  %vm1287 = vmor %vm1285, %vm1286
  %v1288 = vsel %vm1287, %v1279, %v1284
  %v1289 = vrsqrt.pop %v953
  %v1290 = vmul.f32 %v1289, %v953
  %v1291 = vmul.f32 %v1290, %v1289
  %v1292 = vmul.f32 0.5, %v1291
  %v1293 = vsub.f32 1.5, %v1292
  %v1294 = vmul.f32 %v1289, %v1293
  %vm1295 = vweird.f32 %v953
  %vm1296 = vweird.f32 %v1289
  %vm1297 = vmor %vm1295, %vm1296
  %v1298 = vsel %vm1297, %v1289, %v1294
  %v1299 = vrsqrt.pop %v954
  %v1300 = vmul.f32 %v1299, %v954
  %v1301 = vmul.f32 %v1300, %v1299
  %v1302 = vmul.f32 0.5, %v1301
  %v1303 = vsub.f32 1.5, %v1302
  %v1304 = vmul.f32 %v1299, %v1303
  %vm1305 = vweird.f32 %v954
  %vm1306 = vweird.f32 %v1299
  %vm1307 = vmor %vm1305, %vm1306
  %v1308 = vsel %vm1307, %v1299, %v1304
  %v1309 = vrsqrt.pop %v955
  %v1310 = vmul.f32 %v1309, %v955
  %v1311 = vmul.f32 %v1310, %v1309
  %v1312 = vmul.f32 0.5, %v1311
  %v1313 = vsub.f32 1.5, %v1312
  %v1314 = vmul.f32 %v1309, %v1313
  %vm1315 = vweird.f32 %v955
  %vm1316 = vweird.f32 %v1309
  %vm1317 = vmor %vm1315, %vm1316
  %v1318 = vsel %vm1317, %v1309, %v1314
  %v1319 = vrsqrt.pop %v956
  %v1320 = vmul.f32 %v1319, %v956
  %v1321 = vmul.f32 %v1320, %v1319
  %v1322 = vmul.f32 0.5, %v1321
  %v1323 = vsub.f32 1.5, %v1322
  %v1324 = vmul.f32 %v1319, %v1323
  %vm1325 = vweird.f32 %v956
  %vm1326 = vweird.f32 %v1319
  %vm1327 = vmor %vm1325, %vm1326
  %v1328 = vsel %vm1327, %v1319, %v1324
  %v1329 = vrsqrt.pop %v957
  %v1330 = vmul.f32 %v1329, %v957
  %v1331 = vmul.f32 %v1330, %v1329
  %v1332 = vmul.f32 0.5, %v1331
  %v1333 = vsub.f32 1.5, %v1332
  %v1334 = vmul.f32 %v1329, %v1333
  %vm1335 = vweird.f32 %v957
  %vm1336 = vweird.f32 %v1329
  %vm1337 = vmor %vm1335, %vm1336
  %v1338 = vsel %vm1337, %v1329, %v1334
  %v1339 = vrsqrt.pop %v958
  %v1340 = vmul.f32 %v1339, %v958
  %v1341 = vmul.f32 %v1340, %v1339
  %v1342 = vmul.f32 0.5, %v1341
  %v1343 = vsub.f32 1.5, %v1342
  %v1344 = vmul.f32 %v1339, %v1343
  %vm1345 = vweird.f32 %v958
  %vm1346 = vweird.f32 %v1339
  %vm1347 = vmor %vm1345, %vm1346
  %v1348 = vsel %vm1347, %v1339, %v1344
  %v1349 = vrsqrt.pop %v959
  %v1350 = vmul.f32 %v1349, %v959
  %v1351 = vmul.f32 %v1350, %v1349
  %v1352 = vmul.f32 0.5, %v1351
  %v1353 = vsub.f32 1.5, %v1352
  %v1354 = vmul.f32 %v1349, %v1353
  %vm1355 = vweird.f32 %v959
  %vm1356 = vweird.f32 %v1349
  %vm1357 = vmor %vm1355, %vm1356
  %v1358 = vsel %vm1357, %v1349, %v1354
  %v1359 = vrsqrt.pop %v960
  %v1360 = vmul.f32 %v1359, %v960
  %v1361 = vmul.f32 %v1360, %v1359
  %v1362 = vmul.f32 0.5, %v1361
  %v1363 = vsub.f32 1.5, %v1362
  %v1364 = vmul.f32 %v1359, %v1363
  %vm1365 = vweird.f32 %v960
  %vm1366 = vweird.f32 %v1359
  %vm1367 = vmor %vm1365, %vm1366
  %v1368 = vsel %vm1367, %v1359, %v1364
  %v1369 = vrsqrt.pop %v961
  %v1370 = vmul.f32 %v1369, %v961
  %v1371 = vmul.f32 %v1370, %v1369
  %v1372 = vmul.f32 0.5, %v1371
  %v1373 = vsub.f32 1.5, %v1372
  %v1374 = vmul.f32 %v1369, %v1373
  %vm1375 = vweird.f32 %v961
  %vm1376 = vweird.f32 %v1369
  %vm1377 = vmor %vm1375, %vm1376
  %v1378 = vsel %vm1377, %v1369, %v1374
  %v1379 = vrsqrt.pop %v962
  %v1380 = vmul.f32 %v1379, %v962
  %v1381 = vmul.f32 %v1380, %v1379
  %v1382 = vmul.f32 0.5, %v1381
  %v1383 = vsub.f32 1.5, %v1382
  %v1384 = vmul.f32 %v1379, %v1383
  %vm1385 = vweird.f32 %v962
  %vm1386 = vweird.f32 %v1379
  %vm1387 = vmor %vm1385, %vm1386
  %v1388 = vsel %vm1387, %v1379, %v1384
  %v1389 = vrsqrt.pop %v963
  %v1390 = vmul.f32 %v1389, %v963
  %v1391 = vmul.f32 %v1390, %v1389
  %v1392 = vmul.f32 0.5, %v1391
  %v1393 = vsub.f32 1.5, %v1392
  %v1394 = vmul.f32 %v1389, %v1393
  %vm1395 = vweird.f32 %v963
  %vm1396 = vweird.f32 %v1389
  %vm1397 = vmor %vm1395, %vm1396
  %v1398 = vsel %vm1397, %v1389, %v1394
  %v1399 = vrsqrt.pop %v964
  %v1400 = vmul.f32 %v1399, %v964
  %v1401 = vmul.f32 %v1400, %v1399
  %v1402 = vmul.f32 0.5, %v1401
  %v1403 = vsub.f32 1.5, %v1402
  %v1404 = vmul.f32 %v1399, %v1403
  %vm1405 = vweird.f32 %v964
  %vm1406 = vweird.f32 %v1399
  %vm1407 = vmor %vm1405, %vm1406
  %v1408 = vsel %vm1407, %v1399, %v1404
  %v1409 = vrsqrt.pop %v965
  %v1410 = vmul.f32 %v1409, %v965
  %v1411 = vmul.f32 %v1410, %v1409
  %v1412 = vmul.f32 0.5, %v1411
  %v1413 = vsub.f32 1.5, %v1412
  %v1414 = vmul.f32 %v1409, %v1413
  %vm1415 = vweird.f32 %v965
  %vm1416 = vweird.f32 %v1409
  %vm1417 = vmor %vm1415, %vm1416
  %v1418 = vsel %vm1417, %v1409, %v1414
  %v1419 = vrsqrt.pop %v966
  %v1420 = vmul.f32 %v1419, %v966
  %v1421 = vmul.f32 %v1420, %v1419
  %v1422 = vmul.f32 0.5, %v1421
  %v1423 = vsub.f32 1.5, %v1422
  %v1424 = vmul.f32 %v1419, %v1423
  %vm1425 = vweird.f32 %v966
  %vm1426 = vweird.f32 %v1419
  %vm1427 = vmor %vm1425, %vm1426
  %v1428 = vsel %vm1427, %v1419, %v1424
  %v1429 = vrsqrt.pop %v967
  %v1430 = vmul.f32 %v1429, %v967
  %v1431 = vmul.f32 %v1430, %v1429
  %v1432 = vmul.f32 0.5, %v1431
  %v1433 = vsub.f32 1.5, %v1432
  %v1434 = vmul.f32 %v1429, %v1433
  %vm1435 = vweird.f32 %v967
  %vm1436 = vweird.f32 %v1429
  %vm1437 = vmor %vm1435, %vm1436
  %v1438 = vsel %vm1437, %v1429, %v1434
  %v1439 = vrsqrt.pop %v968
  %v1440 = vmul.f32 %v1439, %v968
  %v1441 = vmul.f32 %v1440, %v1439
  %v1442 = vmul.f32 0.5, %v1441
  %v1443 = vsub.f32 1.5, %v1442
  %v1444 = vmul.f32 %v1439, %v1443
  %vm1445 = vweird.f32 %v968
  %vm1446 = vweird.f32 %v1439
  %vm1447 = vmor %vm1445, %vm1446
  %v1448 = vsel %vm1447, %v1439, %v1444
  %v1449 = vmul.f32 %v633, %v978
  %v1450 = vmul.f32 %v634, %v988
  %v1451 = vmul.f32 %v635, %v998
  %v1452 = vmul.f32 %v636, %v1008
  %v1453 = vmul.f32 %v637, %v1018
  %v1454 = vmul.f32 %v638, %v1028
  %v1455 = vmul.f32 %v639, %v1038
  %v1456 = vmul.f32 %v640, %v1048
  %v1457 = vmul.f32 %v641, %v1058
  %v1458 = vmul.f32 %v642, %v1068
  %v1459 = vmul.f32 %v643, %v1078
  %v1460 = vmul.f32 %v644, %v1088
  %v1461 = vmul.f32 %v645, %v1098
  %v1462 = vmul.f32 %v646, %v1108
  %v1463 = vmul.f32 %v647, %v1118
  %v1464 = vmul.f32 %v648, %v1128
  %v1465 = vmul.f32 %v649, %v1138
  %v1466 = vmul.f32 %v650, %v1148
  %v1467 = vmul.f32 %v651, %v1158
  %v1468 = vmul.f32 %v652, %v1168
  %v1469 = vmul.f32 %v653, %v1178
  %v1470 = vmul.f32 %v654, %v1188
  %v1471 = vmul.f32 %v655, %v1198
  %v1472 = vmul.f32 %v656, %v1208
  %v1473 = vmul.f32 %v657, %v1218
  %v1474 = vmul.f32 %v658, %v1228
  %v1475 = vmul.f32 %v659, %v1238
  %v1476 = vmul.f32 %v660, %v1248
  %v1477 = vmul.f32 %v661, %v1258
  %v1478 = vmul.f32 %v662, %v1268
  %v1479 = vmul.f32 %v663, %v1278
  %v1480 = vmul.f32 %v664, %v1288
  %v1481 = vmul.f32 %v665, %v1298
  %v1482 = vmul.f32 %v666, %v1308
  %v1483 = vmul.f32 %v667, %v1318
  %v1484 = vmul.f32 %v668, %v1328
  %v1485 = vmul.f32 %v669, %v1338
  %v1486 = vmul.f32 %v670, %v1348
  %v1487 = vmul.f32 %v671, %v1358
  %v1488 = vmul.f32 %v672, %v1368
  %v1489 = vmul.f32 %v673, %v1378
  %v1490 = vmul.f32 %v674, %v1388
  %v1491 = vmul.f32 %v675, %v1398
  %v1492 = vmul.f32 %v676, %v1408
  %v1493 = vmul.f32 %v677, %v1418
  %v1494 = vmul.f32 %v678, %v1428
  %v1495 = vmul.f32 %v679, %v1438
  %v1496 = vmul.f32 %v680, %v1448
  %v1498 = vperm.slane %v432, 0
  %v1500 = vmul.f32 %v1449, %v1498
  %v1501 = vmul.f32 %v1450, %v1498
  %v1502 = vmul.f32 %v1451, %v1498
  %v1503 = vmul.f32 %v1452, %v1498
  %v1504 = vmul.f32 %v1453, %v1498
  %v1505 = vmul.f32 %v1454, %v1498
  %v1506 = vmul.f32 %v1455, %v1498
  %v1507 = vmul.f32 %v1456, %v1498
  %v1508 = vmul.f32 %v1457, %v1498
  %v1509 = vmul.f32 %v1458, %v1498
  %v1510 = vmul.f32 %v1459, %v1498
  %v1511 = vmul.f32 %v1460, %v1498
  %v1512 = vmul.f32 %v1461, %v1498
  %v1513 = vmul.f32 %v1462, %v1498
  %v1514 = vmul.f32 %v1463, %v1498
  %v1515 = vmul.f32 %v1464, %v1498
  %v1516 = vmul.f32 %v1465, %v1498
  %v1517 = vmul.f32 %v1466, %v1498
  %v1518 = vmul.f32 %v1467, %v1498
  %v1519 = vmul.f32 %v1468, %v1498
  %v1520 = vmul.f32 %v1469, %v1498
  %v1521 = vmul.f32 %v1470, %v1498
  %v1522 = vmul.f32 %v1471, %v1498
  %v1523 = vmul.f32 %v1472, %v1498
  %v1524 = vmul.f32 %v1473, %v1498
  %v1525 = vmul.f32 %v1474, %v1498
  %v1526 = vmul.f32 %v1475, %v1498
  %v1527 = vmul.f32 %v1476, %v1498
  %v1528 = vmul.f32 %v1477, %v1498
  %v1529 = vmul.f32 %v1478, %v1498
  %v1530 = vmul.f32 %v1479, %v1498
  %v1531 = vmul.f32 %v1480, %v1498
  %v1532 = vmul.f32 %v1481, %v1498
  %v1533 = vmul.f32 %v1482, %v1498
  %v1534 = vmul.f32 %v1483, %v1498
  %v1535 = vmul.f32 %v1484, %v1498
  %v1536 = vmul.f32 %v1485, %v1498
  %v1537 = vmul.f32 %v1486, %v1498
  %v1538 = vmul.f32 %v1487, %v1498
  %v1539 = vmul.f32 %v1488, %v1498
  %v1540 = vmul.f32 %v1489, %v1498
  %v1541 = vmul.f32 %v1490, %v1498
  %v1542 = vmul.f32 %v1491, %v1498
  %v1543 = vmul.f32 %v1492, %v1498
  %v1544 = vmul.f32 %v1493, %v1498
  %v1545 = vmul.f32 %v1494, %v1498
  %v1546 = vmul.f32 %v1495, %v1498
  %v1547 = vmul.f32 %v1496, %v1498
  %v1549 = vperm.slane %v433, 0
  %v1551 = vadd.f32 %v1500, %v1549
  %v1552 = vadd.f32 %v1501, %v1549
  %v1553 = vadd.f32 %v1502, %v1549
  %v1554 = vadd.f32 %v1503, %v1549
  %v1555 = vadd.f32 %v1504, %v1549
  %v1556 = vadd.f32 %v1505, %v1549
  %v1557 = vadd.f32 %v1506, %v1549
  %v1558 = vadd.f32 %v1507, %v1549
  %v1559 = vadd.f32 %v1508, %v1549
  %v1560 = vadd.f32 %v1509, %v1549
  %v1561 = vadd.f32 %v1510, %v1549
  %v1562 = vadd.f32 %v1511, %v1549
  %v1563 = vadd.f32 %v1512, %v1549
  %v1564 = vadd.f32 %v1513, %v1549
  %v1565 = vadd.f32 %v1514, %v1549
  %v1566 = vadd.f32 %v1515, %v1549
  %v1567 = vadd.f32 %v1516, %v1549
  %v1568 = vadd.f32 %v1517, %v1549
  %v1569 = vadd.f32 %v1518, %v1549
  %v1570 = vadd.f32 %v1519, %v1549
  %v1571 = vadd.f32 %v1520, %v1549
  %v1572 = vadd.f32 %v1521, %v1549
  %v1573 = vadd.f32 %v1522, %v1549
  %v1574 = vadd.f32 %v1523, %v1549
  %v1575 = vadd.f32 %v1524, %v1549
  %v1576 = vadd.f32 %v1525, %v1549
  %v1577 = vadd.f32 %v1526, %v1549
  %v1578 = vadd.f32 %v1527, %v1549
  %v1579 = vadd.f32 %v1528, %v1549
  %v1580 = vadd.f32 %v1529, %v1549
  %v1581 = vadd.f32 %v1530, %v1549
  %v1582 = vadd.f32 %v1531, %v1549
  %v1583 = vadd.f32 %v1532, %v1549
  %v1584 = vadd.f32 %v1533, %v1549
  %v1585 = vadd.f32 %v1534, %v1549
  %v1586 = vadd.f32 %v1535, %v1549
  %v1587 = vadd.f32 %v1536, %v1549
  %v1588 = vadd.f32 %v1537, %v1549
  %v1589 = vadd.f32 %v1538, %v1549
  %v1590 = vadd.f32 %v1539, %v1549
  %v1591 = vadd.f32 %v1540, %v1549
  %v1592 = vadd.f32 %v1541, %v1549
  %v1593 = vadd.f32 %v1542, %v1549
  %v1594 = vadd.f32 %v1543, %v1549
  %v1595 = vadd.f32 %v1544, %v1549
  %v1596 = vadd.f32 %v1545, %v1549
  %v1597 = vadd.f32 %v1546, %v1549
  %v1598 = vadd.f32 %v1547, %v1549
  %v1599 = vpack.c.bf16 %v1552, %v1551
  %v1600 = vpack.c.bf16 %v1554, %v1553
  %v1601 = vpack.c.bf16 %v1556, %v1555
  %v1602 = vpack.c.bf16 %v1558, %v1557
  %v1603 = vpack.c.bf16 %v1560, %v1559
  %v1604 = vpack.c.bf16 %v1562, %v1561
  %v1605 = vpack.c.bf16 %v1564, %v1563
  %v1606 = vpack.c.bf16 %v1566, %v1565
  %v1607 = vpack.c.bf16 %v1568, %v1567
  %v1608 = vpack.c.bf16 %v1570, %v1569
  %v1609 = vpack.c.bf16 %v1572, %v1571
  %v1610 = vpack.c.bf16 %v1574, %v1573
  %v1611 = vpack.c.bf16 %v1576, %v1575
  %v1612 = vpack.c.bf16 %v1578, %v1577
  %v1613 = vpack.c.bf16 %v1580, %v1579
  %v1614 = vpack.c.bf16 %v1582, %v1581
  %v1615 = vpack.c.bf16 %v1584, %v1583
  %v1616 = vpack.c.bf16 %v1586, %v1585
  %v1617 = vpack.c.bf16 %v1588, %v1587
  %v1618 = vpack.c.bf16 %v1590, %v1589
  %v1619 = vpack.c.bf16 %v1592, %v1591
  %v1620 = vpack.c.bf16 %v1594, %v1593
  %v1621 = vpack.c.bf16 %v1596, %v1595
  %v1622 = vpack.c.bf16 %v1598, %v1597
  %v1623 = vld [vmem:[%s6] sm:$0xf]
  %v1624 = vld [vmem:[%s6 + $0x4] sm:$0xf]
  %v1625 = vld [vmem:[%s6 + $0x8] sm:$0xf]
  %v1626 = vld [vmem:[%s6 + $0xc] sm:$0xf]
  %v1627 = vld [vmem:[%s7] sm:$0x1]
  %v1629 = vperm.slane %v1627, 0
  %v1635 = vunpack.c.l.b16 %v1623
  %v1636 = vunpack.c.l.b16 %v1624
  %v1637 = vunpack.c.l.b16 %v1625
  %v1638 = vunpack.c.l.b16 %v1626
  %v1639 = vpack.c.b16 %v1636, %v1635
  %v1640 = vpack.c.b16 %v1638, %v1637
  %v1644 = vsel %vm134, %v1599, 0
  %v1647 = vsel %vm134, %v1600, 0
  %v1650 = vsel %vm134, %v1601, 0
  %v1653 = vsel %vm134, %v1602, 0
  %v1656 = vsel %vm134, %v1603, 0
  %v1659 = vsel %vm134, %v1604, 0
  %v1662 = vsel %vm134, %v1605, 0
  %v1665 = vsel %vm134, %v1606, 0
  %v1668 = vsel %vm134, %v1607, 0
  %v1671 = vsel %vm134, %v1608, 0
  %v1674 = vsel %vm134, %v1609, 0
  %v1677 = vsel %vm134, %v1610, 0
  %v1680 = vsel %vm134, %v1611, 0
  %v1683 = vsel %vm134, %v1612, 0
  %v1686 = vsel %vm134, %v1613, 0
  %v1689 = vsel %vm134, %v1614, 0
  %v1692 = vsel %vm134, %v1615, 0
  %v1695 = vsel %vm134, %v1616, 0
  %v1698 = vsel %vm134, %v1617, 0
  %v1701 = vsel %vm134, %v1618, 0
  %v1704 = vsel %vm134, %v1619, 0
  %v1707 = vsel %vm134, %v1620, 0
  %v1710 = vsel %vm134, %v1621, 0
  %v1713 = vsel %vm134, %v1622, 0
  %1715 = vmatpush.bf16.msra.mxu0 0
  %1716 = vmatpush.bf16.msra.mxu0 0
  %1717 = vmatpush.bf16.msra.mxu0 0
  %1718 = vmatpush.bf16.msra.mxu0 0
  %1719 = vmatpush.bf16.msra.mxu0 0
  %1720 = vmatpush.bf16.msra.mxu0 0
  %1721 = vmatpush.bf16.msra.mxu0 %v1640
  %1722 = vmatpush.bf16.msra.mxu0 %v1639
  %1723 = vmatmul.bf16.gmra.mxu0 %v1644
  %v1724 = vpop.f32.mrf.mxu0
  %v1725 = vadd.f32 %v1629, %v1724
  %v1726 = vpop.f32.mrf.mxu0
  %v1727 = vadd.f32 %v1629, %v1726
  %1728 = vmatmul.bf16.gmra.mxu0 %v1647
  %v1729 = vpop.f32.mrf.mxu0
  %v1730 = vadd.f32 %v1629, %v1729
  %v1731 = vpop.f32.mrf.mxu0
  %v1732 = vadd.f32 %v1629, %v1731
  %1733 = vmatmul.bf16.gmra.mxu0 %v1650
  %v1734 = vpop.f32.mrf.mxu0
  %v1735 = vadd.f32 %v1629, %v1734
  %v1736 = vpop.f32.mrf.mxu0
  %v1737 = vadd.f32 %v1629, %v1736
  %1738 = vmatmul.bf16.gmra.mxu0 %v1653
  %v1739 = vpop.f32.mrf.mxu0
  %v1740 = vadd.f32 %v1629, %v1739
  %v1741 = vpop.f32.mrf.mxu0
  %v1742 = vadd.f32 %v1629, %v1741
  %1743 = vmatmul.bf16.gmra.mxu0 %v1656
  %v1744 = vpop.f32.mrf.mxu0
  %v1745 = vadd.f32 %v1629, %v1744
  %v1746 = vpop.f32.mrf.mxu0
  %v1747 = vadd.f32 %v1629, %v1746
  %1748 = vmatmul.bf16.gmra.mxu0 %v1659
  %v1749 = vpop.f32.mrf.mxu0
  %v1750 = vadd.f32 %v1629, %v1749
  %v1751 = vpop.f32.mrf.mxu0
  %v1752 = vadd.f32 %v1629, %v1751
  %1753 = vmatmul.bf16.gmra.mxu0 %v1662
  %v1754 = vpop.f32.mrf.mxu0
  %v1755 = vadd.f32 %v1629, %v1754
  %v1756 = vpop.f32.mrf.mxu0
  %v1757 = vadd.f32 %v1629, %v1756
  %1758 = vmatmul.bf16.gmra.mxu0 %v1665
  %v1759 = vpop.f32.mrf.mxu0
  %v1760 = vadd.f32 %v1629, %v1759
  %v1761 = vpop.f32.mrf.mxu0
  %v1762 = vadd.f32 %v1629, %v1761
  %1763 = vmatmul.bf16.gmra.mxu0 %v1668
  %v1764 = vpop.f32.mrf.mxu0
  %v1765 = vadd.f32 %v1629, %v1764
  %v1766 = vpop.f32.mrf.mxu0
  %v1767 = vadd.f32 %v1629, %v1766
  %1768 = vmatmul.bf16.gmra.mxu0 %v1671
  %v1769 = vpop.f32.mrf.mxu0
  %v1770 = vadd.f32 %v1629, %v1769
  %v1771 = vpop.f32.mrf.mxu0
  %v1772 = vadd.f32 %v1629, %v1771
  %1773 = vmatmul.bf16.gmra.mxu0 %v1674
  %v1774 = vpop.f32.mrf.mxu0
  %v1775 = vadd.f32 %v1629, %v1774
  %v1776 = vpop.f32.mrf.mxu0
  %v1777 = vadd.f32 %v1629, %v1776
  %1778 = vmatmul.bf16.gmra.mxu0 %v1677
  %v1779 = vpop.f32.mrf.mxu0
  %v1780 = vadd.f32 %v1629, %v1779
  %v1781 = vpop.f32.mrf.mxu0
  %v1782 = vadd.f32 %v1629, %v1781
  %1783 = vmatmul.bf16.gmra.mxu0 %v1680
  %v1784 = vpop.f32.mrf.mxu0
  %v1785 = vadd.f32 %v1629, %v1784
  %v1786 = vpop.f32.mrf.mxu0
  %v1787 = vadd.f32 %v1629, %v1786
  %1788 = vmatmul.bf16.gmra.mxu0 %v1683
  %v1789 = vpop.f32.mrf.mxu0
  %v1790 = vadd.f32 %v1629, %v1789
  %v1791 = vpop.f32.mrf.mxu0
  %v1792 = vadd.f32 %v1629, %v1791
  %1793 = vmatmul.bf16.gmra.mxu0 %v1686
  %v1794 = vpop.f32.mrf.mxu0
  %v1795 = vadd.f32 %v1629, %v1794
  %v1796 = vpop.f32.mrf.mxu0
  %v1797 = vadd.f32 %v1629, %v1796
  %1798 = vmatmul.bf16.gmra.mxu0 %v1689
  %v1799 = vpop.f32.mrf.mxu0
  %v1800 = vadd.f32 %v1629, %v1799
  %v1801 = vpop.f32.mrf.mxu0
  %v1802 = vadd.f32 %v1629, %v1801
  %1803 = vmatmul.bf16.gmra.mxu0 %v1692
  %v1804 = vpop.f32.mrf.mxu0
  %v1805 = vadd.f32 %v1629, %v1804
  %v1806 = vpop.f32.mrf.mxu0
  %v1807 = vadd.f32 %v1629, %v1806
  %1808 = vmatmul.bf16.gmra.mxu0 %v1695
  %v1809 = vpop.f32.mrf.mxu0
  %v1810 = vadd.f32 %v1629, %v1809
  %v1811 = vpop.f32.mrf.mxu0
  %v1812 = vadd.f32 %v1629, %v1811
  %1813 = vmatmul.bf16.gmra.mxu0 %v1698
  %v1814 = vpop.f32.mrf.mxu0
  %v1815 = vadd.f32 %v1629, %v1814
  %v1816 = vpop.f32.mrf.mxu0
  %v1817 = vadd.f32 %v1629, %v1816
  %1818 = vmatmul.bf16.gmra.mxu0 %v1701
  %v1819 = vpop.f32.mrf.mxu0
  %v1820 = vadd.f32 %v1629, %v1819
  %v1821 = vpop.f32.mrf.mxu0
  %v1822 = vadd.f32 %v1629, %v1821
  %1823 = vmatmul.bf16.gmra.mxu0 %v1704
  %v1824 = vpop.f32.mrf.mxu0
  %v1825 = vadd.f32 %v1629, %v1824
  %v1826 = vpop.f32.mrf.mxu0
  %v1827 = vadd.f32 %v1629, %v1826
  %1828 = vmatmul.bf16.gmra.mxu0 %v1707
  %v1829 = vpop.f32.mrf.mxu0
  %v1830 = vadd.f32 %v1629, %v1829
  %v1831 = vpop.f32.mrf.mxu0
  %v1832 = vadd.f32 %v1629, %v1831
  %1833 = vmatmul.bf16.gmra.mxu0 %v1710
  %v1834 = vpop.f32.mrf.mxu0
  %v1835 = vadd.f32 %v1629, %v1834
  %v1836 = vpop.f32.mrf.mxu0
  %v1837 = vadd.f32 %v1629, %v1836
  %1838 = vmatmul.bf16.gmra.mxu0 %v1713
  %v1839 = vpop.f32.mrf.mxu0
  %v1840 = vadd.f32 %v1629, %v1839
  %v1841 = vpop.f32.mrf.mxu0
  %v1842 = vadd.f32 %v1629, %v1841
  %1843 = vdwg.mxu0
  %v1844 = vmax.f32 %v1725, 0.0
  %v1845 = vmax.f32 %v1727, 0.0
  %v1846 = vmax.f32 %v1730, 0.0
  %v1847 = vmax.f32 %v1732, 0.0
  %v1848 = vmax.f32 %v1735, 0.0
  %v1849 = vmax.f32 %v1737, 0.0
  %v1850 = vmax.f32 %v1740, 0.0
  %v1851 = vmax.f32 %v1742, 0.0
  %v1852 = vmax.f32 %v1745, 0.0
  %v1853 = vmax.f32 %v1747, 0.0
  %v1854 = vmax.f32 %v1750, 0.0
  %v1855 = vmax.f32 %v1752, 0.0
  %v1856 = vmax.f32 %v1755, 0.0
  %v1857 = vmax.f32 %v1757, 0.0
  %v1858 = vmax.f32 %v1760, 0.0
  %v1859 = vmax.f32 %v1762, 0.0
  %v1860 = vmax.f32 %v1765, 0.0
  %v1861 = vmax.f32 %v1767, 0.0
  %v1862 = vmax.f32 %v1770, 0.0
  %v1863 = vmax.f32 %v1772, 0.0
  %v1864 = vmax.f32 %v1775, 0.0
  %v1865 = vmax.f32 %v1777, 0.0
  %v1866 = vmax.f32 %v1780, 0.0
  %v1867 = vmax.f32 %v1782, 0.0
  %v1868 = vmax.f32 %v1785, 0.0
  %v1869 = vmax.f32 %v1787, 0.0
  %v1870 = vmax.f32 %v1790, 0.0
  %v1871 = vmax.f32 %v1792, 0.0
  %v1872 = vmax.f32 %v1795, 0.0
  %v1873 = vmax.f32 %v1797, 0.0
  %v1874 = vmax.f32 %v1800, 0.0
  %v1875 = vmax.f32 %v1802, 0.0
  %v1876 = vmax.f32 %v1805, 0.0
  %v1877 = vmax.f32 %v1807, 0.0
  %v1878 = vmax.f32 %v1810, 0.0
  %v1879 = vmax.f32 %v1812, 0.0
  %v1880 = vmax.f32 %v1815, 0.0
  %v1881 = vmax.f32 %v1817, 0.0
  %v1882 = vmax.f32 %v1820, 0.0
  %v1883 = vmax.f32 %v1822, 0.0
  %v1884 = vmax.f32 %v1825, 0.0
  %v1885 = vmax.f32 %v1827, 0.0
  %v1886 = vmax.f32 %v1830, 0.0
  %v1887 = vmax.f32 %v1832, 0.0
  %v1888 = vmax.f32 %v1835, 0.0
  %v1889 = vmax.f32 %v1837, 0.0
  %v1890 = vmax.f32 %v1840, 0.0
  %v1891 = vmax.f32 %v1842, 0.0
  %v1892 = vpack.c.bf16 %v1845, %v1844
  %v1893 = vpack.c.bf16 %v1847, %v1846
  %v1894 = vpack.c.bf16 %v1849, %v1848
  %v1895 = vpack.c.bf16 %v1851, %v1850
  %v1896 = vpack.c.bf16 %v1853, %v1852
  %v1897 = vpack.c.bf16 %v1855, %v1854
  %v1898 = vpack.c.bf16 %v1857, %v1856
  %v1899 = vpack.c.bf16 %v1859, %v1858
  %v1900 = vpack.c.bf16 %v1861, %v1860
  %v1901 = vpack.c.bf16 %v1863, %v1862
  %v1902 = vpack.c.bf16 %v1865, %v1864
  %v1903 = vpack.c.bf16 %v1867, %v1866
  %v1904 = vpack.c.bf16 %v1869, %v1868
  %v1905 = vpack.c.bf16 %v1871, %v1870
  %v1906 = vpack.c.bf16 %v1873, %v1872
  %v1907 = vpack.c.bf16 %v1875, %v1874
  %v1908 = vpack.c.bf16 %v1877, %v1876
  %v1909 = vpack.c.bf16 %v1879, %v1878
  %v1910 = vpack.c.bf16 %v1881, %v1880
  %v1911 = vpack.c.bf16 %v1883, %v1882
  %v1912 = vpack.c.bf16 %v1885, %v1884
  %v1913 = vpack.c.bf16 %v1887, %v1886
  %v1914 = vpack.c.bf16 %v1889, %v1888
  %v1915 = vpack.c.bf16 %v1891, %v1890
  %v1916 = vld [vmem:[%s8] sm:$0xf]
  %v1917 = vld [vmem:[%s8 + $0x4] sm:$0xf]
  %v1918 = vld [vmem:[%s8 + $0x8] sm:$0xf]
  %v1919 = vld [vmem:[%s8 + $0xc] sm:$0xf]
  %v1920 = vld [vmem:[%s8 + $0x10] sm:$0xf]
  %v1921 = vld [vmem:[%s8 + $0x14] sm:$0xf]
  %v1922 = vld [vmem:[%s8 + $0x18] sm:$0xf]
  %v1923 = vld [vmem:[%s8 + $0x1c] sm:$0xf]
  %v1924 = vld [vmem:[%s9] sm:$0x1]
  %v1926 = vperm.slane %v1924, 0
  %v1936 = vunpack.c.l.b16 %v1916
  %v1937 = vunpack.c.l.b16 %v1917
  %v1938 = vunpack.c.l.b16 %v1918
  %v1939 = vunpack.c.l.b16 %v1919
  %v1940 = vunpack.c.l.b16 %v1920
  %v1941 = vunpack.c.l.b16 %v1921
  %v1942 = vunpack.c.l.b16 %v1922
  %v1943 = vunpack.c.l.b16 %v1923
  %v1944 = vpack.c.b16 %v1937, %v1936
  %v1945 = vpack.c.b16 %v1939, %v1938
  %v1946 = vpack.c.b16 %v1941, %v1940
  %v1947 = vpack.c.b16 %v1943, %v1942
  %vm1952 = vcmask 523264
  %v1954 = vsel %vm1952, %v1892, 0
  %v1957 = vsel %vm1952, %v1893, 0
  %v1960 = vsel %vm1952, %v1894, 0
  %v1963 = vsel %vm1952, %v1895, 0
  %v1966 = vsel %vm1952, %v1896, 0
  %v1969 = vsel %vm1952, %v1897, 0
  %v1972 = vsel %vm1952, %v1898, 0
  %v1975 = vsel %vm1952, %v1899, 0
  %v1978 = vsel %vm1952, %v1900, 0
  %v1981 = vsel %vm1952, %v1901, 0
  %v1984 = vsel %vm1952, %v1902, 0
  %v1987 = vsel %vm1952, %v1903, 0
  %v1990 = vsel %vm1952, %v1904, 0
  %v1993 = vsel %vm1952, %v1905, 0
  %v1996 = vsel %vm1952, %v1906, 0
  %v1999 = vsel %vm1952, %v1907, 0
  %v2002 = vsel %vm1952, %v1908, 0
  %v2005 = vsel %vm1952, %v1909, 0
  %v2008 = vsel %vm1952, %v1910, 0
  %v2011 = vsel %vm1952, %v1911, 0
  %v2014 = vsel %vm1952, %v1912, 0
  %v2017 = vsel %vm1952, %v1913, 0
  %v2020 = vsel %vm1952, %v1914, 0
  %v2023 = vsel %vm1952, %v1915, 0
  %2025 = vmatpush.bf16.msra.mxu0 0
  %2026 = vmatpush.bf16.msra.mxu0 0
  %2027 = vmatpush.bf16.msra.mxu0 0
  %2028 = vmatpush.bf16.msra.mxu0 0
  %2029 = vmatpush.bf16.msra.mxu0 %v1947
  %2030 = vmatpush.bf16.msra.mxu0 %v1946
  %2031 = vmatpush.bf16.msra.mxu0 %v1945
  %2032 = vmatpush.bf16.msra.mxu0 %v1944
  %2033 = vmatmul.bf16.gmra.mxu0 %v1954
  %v2034 = vpop.f32.mrf.mxu0
  %v2035 = vadd.f32 %v1926, %v2034
  %v2036 = vpop.f32.mrf.mxu0
  %v2037 = vadd.f32 %v1926, %v2036
  %2038 = vmatmul.bf16.gmra.mxu0 %v1957
  %v2039 = vpop.f32.mrf.mxu0
  %v2040 = vadd.f32 %v1926, %v2039
  %v2041 = vpop.f32.mrf.mxu0
  %v2042 = vadd.f32 %v1926, %v2041
  %2043 = vmatmul.bf16.gmra.mxu0 %v1960
  %v2044 = vpop.f32.mrf.mxu0
  %v2045 = vadd.f32 %v1926, %v2044
  %v2046 = vpop.f32.mrf.mxu0
  %v2047 = vadd.f32 %v1926, %v2046
  %2048 = vmatmul.bf16.gmra.mxu0 %v1963
  %v2049 = vpop.f32.mrf.mxu0
  %v2050 = vadd.f32 %v1926, %v2049
  %v2051 = vpop.f32.mrf.mxu0
  %v2052 = vadd.f32 %v1926, %v2051
  %2053 = vmatmul.bf16.gmra.mxu0 %v1966
  %v2054 = vpop.f32.mrf.mxu0
  %v2055 = vadd.f32 %v1926, %v2054
  %v2056 = vpop.f32.mrf.mxu0
  %v2057 = vadd.f32 %v1926, %v2056
  %2058 = vmatmul.bf16.gmra.mxu0 %v1969
  %v2059 = vpop.f32.mrf.mxu0
  %v2060 = vadd.f32 %v1926, %v2059
  %v2061 = vpop.f32.mrf.mxu0
  %v2062 = vadd.f32 %v1926, %v2061
  %2063 = vmatmul.bf16.gmra.mxu0 %v1972
  %v2064 = vpop.f32.mrf.mxu0
  %v2065 = vadd.f32 %v1926, %v2064
  %v2066 = vpop.f32.mrf.mxu0
  %v2067 = vadd.f32 %v1926, %v2066
  %2068 = vmatmul.bf16.gmra.mxu0 %v1975
  %v2069 = vpop.f32.mrf.mxu0
  %v2070 = vadd.f32 %v1926, %v2069
  %v2071 = vpop.f32.mrf.mxu0
  %v2072 = vadd.f32 %v1926, %v2071
  %2073 = vmatmul.bf16.gmra.mxu0 %v1978
  %v2074 = vpop.f32.mrf.mxu0
  %v2075 = vadd.f32 %v1926, %v2074
  %v2076 = vpop.f32.mrf.mxu0
  %v2077 = vadd.f32 %v1926, %v2076
  %2078 = vmatmul.bf16.gmra.mxu0 %v1981
  %v2079 = vpop.f32.mrf.mxu0
  %v2080 = vadd.f32 %v1926, %v2079
  %v2081 = vpop.f32.mrf.mxu0
  %v2082 = vadd.f32 %v1926, %v2081
  %2083 = vmatmul.bf16.gmra.mxu0 %v1984
  %v2084 = vpop.f32.mrf.mxu0
  %v2085 = vadd.f32 %v1926, %v2084
  %v2086 = vpop.f32.mrf.mxu0
  %v2087 = vadd.f32 %v1926, %v2086
  %2088 = vmatmul.bf16.gmra.mxu0 %v1987
  %v2089 = vpop.f32.mrf.mxu0
  %v2090 = vadd.f32 %v1926, %v2089
  %v2091 = vpop.f32.mrf.mxu0
  %v2092 = vadd.f32 %v1926, %v2091
  %2093 = vmatmul.bf16.gmra.mxu0 %v1990
  %v2094 = vpop.f32.mrf.mxu0
  %v2095 = vadd.f32 %v1926, %v2094
  %v2096 = vpop.f32.mrf.mxu0
  %v2097 = vadd.f32 %v1926, %v2096
  %2098 = vmatmul.bf16.gmra.mxu0 %v1993
  %v2099 = vpop.f32.mrf.mxu0
  %v2100 = vadd.f32 %v1926, %v2099
  %v2101 = vpop.f32.mrf.mxu0
  %v2102 = vadd.f32 %v1926, %v2101
  %2103 = vmatmul.bf16.gmra.mxu0 %v1996
  %v2104 = vpop.f32.mrf.mxu0
  %v2105 = vadd.f32 %v1926, %v2104
  %v2106 = vpop.f32.mrf.mxu0
  %v2107 = vadd.f32 %v1926, %v2106
  %2108 = vmatmul.bf16.gmra.mxu0 %v1999
  %v2109 = vpop.f32.mrf.mxu0
  %v2110 = vadd.f32 %v1926, %v2109
  %v2111 = vpop.f32.mrf.mxu0
  %v2112 = vadd.f32 %v1926, %v2111
  %2113 = vmatmul.bf16.gmra.mxu0 %v2002
  %v2114 = vpop.f32.mrf.mxu0
  %v2115 = vadd.f32 %v1926, %v2114
  %v2116 = vpop.f32.mrf.mxu0
  %v2117 = vadd.f32 %v1926, %v2116
  %2118 = vmatmul.bf16.gmra.mxu0 %v2005
  %v2119 = vpop.f32.mrf.mxu0
  %v2120 = vadd.f32 %v1926, %v2119
  %v2121 = vpop.f32.mrf.mxu0
  %v2122 = vadd.f32 %v1926, %v2121
  %2123 = vmatmul.bf16.gmra.mxu0 %v2008
  %v2124 = vpop.f32.mrf.mxu0
  %v2125 = vadd.f32 %v1926, %v2124
  %v2126 = vpop.f32.mrf.mxu0
  %v2127 = vadd.f32 %v1926, %v2126
  %2128 = vmatmul.bf16.gmra.mxu0 %v2011
  %v2129 = vpop.f32.mrf.mxu0
  %v2130 = vadd.f32 %v1926, %v2129
  %v2131 = vpop.f32.mrf.mxu0
  %v2132 = vadd.f32 %v1926, %v2131
  %2133 = vmatmul.bf16.gmra.mxu0 %v2014
  %v2134 = vpop.f32.mrf.mxu0
  %v2135 = vadd.f32 %v1926, %v2134
  %v2136 = vpop.f32.mrf.mxu0
  %v2137 = vadd.f32 %v1926, %v2136
  %2138 = vmatmul.bf16.gmra.mxu0 %v2017
  %v2139 = vpop.f32.mrf.mxu0
  %v2140 = vadd.f32 %v1926, %v2139
  %v2141 = vpop.f32.mrf.mxu0
  %v2142 = vadd.f32 %v1926, %v2141
  %2143 = vmatmul.bf16.gmra.mxu0 %v2020
  %v2144 = vpop.f32.mrf.mxu0
  %v2145 = vadd.f32 %v1926, %v2144
  %v2146 = vpop.f32.mrf.mxu0
  %v2147 = vadd.f32 %v1926, %v2146
  %2148 = vmatmul.bf16.gmra.mxu0 %v2023
  %v2149 = vpop.f32.mrf.mxu0
  %v2150 = vadd.f32 %v1926, %v2149
  %v2151 = vpop.f32.mrf.mxu0
  %v2152 = vadd.f32 %v1926, %v2151
  %2153 = vdwg.mxu0
  %v2154 = vadd.f32 %v1551, %v2035
  %v2155 = vadd.f32 %v1552, %v2037
  %v2156 = vadd.f32 %v1553, %v2040
  %v2157 = vadd.f32 %v1554, %v2042
  %v2158 = vadd.f32 %v1555, %v2045
  %v2159 = vadd.f32 %v1556, %v2047
  %v2160 = vadd.f32 %v1557, %v2050
  %v2161 = vadd.f32 %v1558, %v2052
  %v2162 = vadd.f32 %v1559, %v2055
  %v2163 = vadd.f32 %v1560, %v2057
  %v2164 = vadd.f32 %v1561, %v2060
  %v2165 = vadd.f32 %v1562, %v2062
  %v2166 = vadd.f32 %v1563, %v2065
  %v2167 = vadd.f32 %v1564, %v2067
  %v2168 = vadd.f32 %v1565, %v2070
  %v2169 = vadd.f32 %v1566, %v2072
  %v2170 = vadd.f32 %v1567, %v2075
  %v2171 = vadd.f32 %v1568, %v2077
  %v2172 = vadd.f32 %v1569, %v2080
  %v2173 = vadd.f32 %v1570, %v2082
  %v2174 = vadd.f32 %v1571, %v2085
  %v2175 = vadd.f32 %v1572, %v2087
  %v2176 = vadd.f32 %v1573, %v2090
  %v2177 = vadd.f32 %v1574, %v2092
  %v2178 = vadd.f32 %v1575, %v2095
  %v2179 = vadd.f32 %v1576, %v2097
  %v2180 = vadd.f32 %v1577, %v2100
  %v2181 = vadd.f32 %v1578, %v2102
  %v2182 = vadd.f32 %v1579, %v2105
  %v2183 = vadd.f32 %v1580, %v2107
  %v2184 = vadd.f32 %v1581, %v2110
  %v2185 = vadd.f32 %v1582, %v2112
  %v2186 = vadd.f32 %v1583, %v2115
  %v2187 = vadd.f32 %v1584, %v2117
  %v2188 = vadd.f32 %v1585, %v2120
  %v2189 = vadd.f32 %v1586, %v2122
  %v2190 = vadd.f32 %v1587, %v2125
  %v2191 = vadd.f32 %v1588, %v2127
  %v2192 = vadd.f32 %v1589, %v2130
  %v2193 = vadd.f32 %v1590, %v2132
  %v2194 = vadd.f32 %v1591, %v2135
  %v2195 = vadd.f32 %v1592, %v2137
  %v2196 = vadd.f32 %v1593, %v2140
  %v2197 = vadd.f32 %v1594, %v2142
  %v2198 = vadd.f32 %v1595, %v2145
  %v2199 = vadd.f32 %v1596, %v2147
  %v2200 = vadd.f32 %v1597, %v2150
  %v2201 = vadd.f32 %v1598, %v2152
  %v2202 = vld [vmem:[%s10] sm:$0x1]
  %v2203 = vld [vmem:[%s11] sm:$0x1]
  %v2204 = vsel %vm134, %v2154, 0.0
  %2205 = vadd.xlane.f32.xlu0 %v2204
  %v2206 = vpop.xlane.xlu0 %2205
  %v2207 = vsel %vm134, %v2155, 0.0
  %2208 = vadd.xlane.f32.xlu0 %v2207
  %v2209 = vpop.xlane.xlu0 %2208
  %v2210 = vsel %vm134, %v2156, 0.0
  %2211 = vadd.xlane.f32.xlu0 %v2210
  %v2212 = vpop.xlane.xlu0 %2211
  %v2213 = vsel %vm134, %v2157, 0.0
  %2214 = vadd.xlane.f32.xlu0 %v2213
  %v2215 = vpop.xlane.xlu0 %2214
  %v2216 = vsel %vm134, %v2158, 0.0
  %2217 = vadd.xlane.f32.xlu0 %v2216
  %v2218 = vpop.xlane.xlu0 %2217
  %v2219 = vsel %vm134, %v2159, 0.0
  %2220 = vadd.xlane.f32.xlu0 %v2219
  %v2221 = vpop.xlane.xlu0 %2220
  %v2222 = vsel %vm134, %v2160, 0.0
  %2223 = vadd.xlane.f32.xlu0 %v2222
  %v2224 = vpop.xlane.xlu0 %2223
  %v2225 = vsel %vm134, %v2161, 0.0
  %2226 = vadd.xlane.f32.xlu0 %v2225
  %v2227 = vpop.xlane.xlu0 %2226
  %v2228 = vsel %vm134, %v2162, 0.0
  %2229 = vadd.xlane.f32.xlu0 %v2228
  %v2230 = vpop.xlane.xlu0 %2229
  %v2231 = vsel %vm134, %v2163, 0.0
  %2232 = vadd.xlane.f32.xlu0 %v2231
  %v2233 = vpop.xlane.xlu0 %2232
  %v2234 = vsel %vm134, %v2164, 0.0
  %2235 = vadd.xlane.f32.xlu0 %v2234
  %v2236 = vpop.xlane.xlu0 %2235
  %v2237 = vsel %vm134, %v2165, 0.0
  %2238 = vadd.xlane.f32.xlu0 %v2237
  %v2239 = vpop.xlane.xlu0 %2238
  %v2240 = vsel %vm134, %v2166, 0.0
  %2241 = vadd.xlane.f32.xlu0 %v2240
  %v2242 = vpop.xlane.xlu0 %2241
  %v2243 = vsel %vm134, %v2167, 0.0
  %2244 = vadd.xlane.f32.xlu0 %v2243
  %v2245 = vpop.xlane.xlu0 %2244
  %v2246 = vsel %vm134, %v2168, 0.0
  %2247 = vadd.xlane.f32.xlu0 %v2246
  %v2248 = vpop.xlane.xlu0 %2247
  %v2249 = vsel %vm134, %v2169, 0.0
  %2250 = vadd.xlane.f32.xlu0 %v2249
  %v2251 = vpop.xlane.xlu0 %2250
  %v2252 = vsel %vm134, %v2170, 0.0
  %2253 = vadd.xlane.f32.xlu0 %v2252
  %v2254 = vpop.xlane.xlu0 %2253
  %v2255 = vsel %vm134, %v2171, 0.0
  %2256 = vadd.xlane.f32.xlu0 %v2255
  %v2257 = vpop.xlane.xlu0 %2256
  %v2258 = vsel %vm134, %v2172, 0.0
  %2259 = vadd.xlane.f32.xlu0 %v2258
  %v2260 = vpop.xlane.xlu0 %2259
  %v2261 = vsel %vm134, %v2173, 0.0
  %2262 = vadd.xlane.f32.xlu0 %v2261
  %v2263 = vpop.xlane.xlu0 %2262
  %v2264 = vsel %vm134, %v2174, 0.0
  %2265 = vadd.xlane.f32.xlu0 %v2264
  %v2266 = vpop.xlane.xlu0 %2265
  %v2267 = vsel %vm134, %v2175, 0.0
  %2268 = vadd.xlane.f32.xlu0 %v2267
  %v2269 = vpop.xlane.xlu0 %2268
  %v2270 = vsel %vm134, %v2176, 0.0
  %2271 = vadd.xlane.f32.xlu0 %v2270
  %v2272 = vpop.xlane.xlu0 %2271
  %v2273 = vsel %vm134, %v2177, 0.0
  %2274 = vadd.xlane.f32.xlu0 %v2273
  %v2275 = vpop.xlane.xlu0 %2274
  %v2276 = vsel %vm134, %v2178, 0.0
  %2277 = vadd.xlane.f32.xlu0 %v2276
  %v2278 = vpop.xlane.xlu0 %2277
  %v2279 = vsel %vm134, %v2179, 0.0
  %2280 = vadd.xlane.f32.xlu0 %v2279
  %v2281 = vpop.xlane.xlu0 %2280
  %v2282 = vsel %vm134, %v2180, 0.0
  %2283 = vadd.xlane.f32.xlu0 %v2282
  %v2284 = vpop.xlane.xlu0 %2283
  %v2285 = vsel %vm134, %v2181, 0.0
  %2286 = vadd.xlane.f32.xlu0 %v2285
  %v2287 = vpop.xlane.xlu0 %2286
  %v2288 = vsel %vm134, %v2182, 0.0
  %2289 = vadd.xlane.f32.xlu0 %v2288
  %v2290 = vpop.xlane.xlu0 %2289
  %v2291 = vsel %vm134, %v2183, 0.0
  %2292 = vadd.xlane.f32.xlu0 %v2291
  %v2293 = vpop.xlane.xlu0 %2292
  %v2294 = vsel %vm134, %v2184, 0.0
  %2295 = vadd.xlane.f32.xlu0 %v2294
  %v2296 = vpop.xlane.xlu0 %2295
  %v2297 = vsel %vm134, %v2185, 0.0
  %2298 = vadd.xlane.f32.xlu0 %v2297
  %v2299 = vpop.xlane.xlu0 %2298
  %v2300 = vsel %vm134, %v2186, 0.0
  %2301 = vadd.xlane.f32.xlu0 %v2300
  %v2302 = vpop.xlane.xlu0 %2301
  %v2303 = vsel %vm134, %v2187, 0.0
  %2304 = vadd.xlane.f32.xlu0 %v2303
  %v2305 = vpop.xlane.xlu0 %2304
  %v2306 = vsel %vm134, %v2188, 0.0
  %2307 = vadd.xlane.f32.xlu0 %v2306
  %v2308 = vpop.xlane.xlu0 %2307
  %v2309 = vsel %vm134, %v2189, 0.0
  %2310 = vadd.xlane.f32.xlu0 %v2309
  %v2311 = vpop.xlane.xlu0 %2310
  %v2312 = vsel %vm134, %v2190, 0.0
  %2313 = vadd.xlane.f32.xlu0 %v2312
  %v2314 = vpop.xlane.xlu0 %2313
  %v2315 = vsel %vm134, %v2191, 0.0
  %2316 = vadd.xlane.f32.xlu0 %v2315
  %v2317 = vpop.xlane.xlu0 %2316
  %v2318 = vsel %vm134, %v2192, 0.0
  %2319 = vadd.xlane.f32.xlu0 %v2318
  %v2320 = vpop.xlane.xlu0 %2319
  %v2321 = vsel %vm134, %v2193, 0.0
  %2322 = vadd.xlane.f32.xlu0 %v2321
  %v2323 = vpop.xlane.xlu0 %2322
  %v2324 = vsel %vm134, %v2194, 0.0
  %2325 = vadd.xlane.f32.xlu0 %v2324
  %v2326 = vpop.xlane.xlu0 %2325
  %v2327 = vsel %vm134, %v2195, 0.0
  %2328 = vadd.xlane.f32.xlu0 %v2327
  %v2329 = vpop.xlane.xlu0 %2328
  %v2330 = vsel %vm134, %v2196, 0.0
  %2331 = vadd.xlane.f32.xlu0 %v2330
  %v2332 = vpop.xlane.xlu0 %2331
  %v2333 = vsel %vm134, %v2197, 0.0
  %2334 = vadd.xlane.f32.xlu0 %v2333
  %v2335 = vpop.xlane.xlu0 %2334
  %v2336 = vsel %vm134, %v2198, 0.0
  %2337 = vadd.xlane.f32.xlu0 %v2336
  %v2338 = vpop.xlane.xlu0 %2337
  %v2339 = vsel %vm134, %v2199, 0.0
  %2340 = vadd.xlane.f32.xlu0 %v2339
  %v2341 = vpop.xlane.xlu0 %2340
  %v2342 = vsel %vm134, %v2200, 0.0
  %2343 = vadd.xlane.f32.xlu0 %v2342
  %v2344 = vpop.xlane.xlu0 %2343
  %v2345 = vsel %vm134, %v2201, 0.0
  %2346 = vadd.xlane.f32.xlu0 %v2345
  %v2347 = vpop.xlane.xlu0 %2346
  %v2348 = vmul.f32 %v2206, %v584
  %v2349 = vmul.f32 %v2209, %v584
  %v2350 = vmul.f32 %v2212, %v584
  %v2351 = vmul.f32 %v2215, %v584
  %v2352 = vmul.f32 %v2218, %v584
  %v2353 = vmul.f32 %v2221, %v584
  %v2354 = vmul.f32 %v2224, %v584
  %v2355 = vmul.f32 %v2227, %v584
  %v2356 = vmul.f32 %v2230, %v584
  %v2357 = vmul.f32 %v2233, %v584
  %v2358 = vmul.f32 %v2236, %v584
  %v2359 = vmul.f32 %v2239, %v584
  %v2360 = vmul.f32 %v2242, %v584
  %v2361 = vmul.f32 %v2245, %v584
  %v2362 = vmul.f32 %v2248, %v584
  %v2363 = vmul.f32 %v2251, %v584
  %v2364 = vmul.f32 %v2254, %v584
  %v2365 = vmul.f32 %v2257, %v584
  %v2366 = vmul.f32 %v2260, %v584
  %v2367 = vmul.f32 %v2263, %v584
  %v2368 = vmul.f32 %v2266, %v584
  %v2369 = vmul.f32 %v2269, %v584
  %v2370 = vmul.f32 %v2272, %v584
  %v2371 = vmul.f32 %v2275, %v584
  %v2372 = vmul.f32 %v2278, %v584
  %v2373 = vmul.f32 %v2281, %v584
  %v2374 = vmul.f32 %v2284, %v584
  %v2375 = vmul.f32 %v2287, %v584
  %v2376 = vmul.f32 %v2290, %v584
  %v2377 = vmul.f32 %v2293, %v584
  %v2378 = vmul.f32 %v2296, %v584
  %v2379 = vmul.f32 %v2299, %v584
  %v2380 = vmul.f32 %v2302, %v584
  %v2381 = vmul.f32 %v2305, %v584
  %v2382 = vmul.f32 %v2308, %v584
  %v2383 = vmul.f32 %v2311, %v584
  %v2384 = vmul.f32 %v2314, %v584
  %v2385 = vmul.f32 %v2317, %v584
  %v2386 = vmul.f32 %v2320, %v584
  %v2387 = vmul.f32 %v2323, %v584
  %v2388 = vmul.f32 %v2326, %v584
  %v2389 = vmul.f32 %v2329, %v584
  %v2390 = vmul.f32 %v2332, %v584
  %v2391 = vmul.f32 %v2335, %v584
  %v2392 = vmul.f32 %v2338, %v584
  %v2393 = vmul.f32 %v2341, %v584
  %v2394 = vmul.f32 %v2344, %v584
  %v2395 = vmul.f32 %v2347, %v584
  %v2396 = vsub.f32 %v2154, %v2348
  %v2397 = vsub.f32 %v2155, %v2349
  %v2398 = vsub.f32 %v2156, %v2350
  %v2399 = vsub.f32 %v2157, %v2351
  %v2400 = vsub.f32 %v2158, %v2352
  %v2401 = vsub.f32 %v2159, %v2353
  %v2402 = vsub.f32 %v2160, %v2354
  %v2403 = vsub.f32 %v2161, %v2355
  %v2404 = vsub.f32 %v2162, %v2356
  %v2405 = vsub.f32 %v2163, %v2357
  %v2406 = vsub.f32 %v2164, %v2358
  %v2407 = vsub.f32 %v2165, %v2359
  %v2408 = vsub.f32 %v2166, %v2360
  %v2409 = vsub.f32 %v2167, %v2361
  %v2410 = vsub.f32 %v2168, %v2362
  %v2411 = vsub.f32 %v2169, %v2363
  %v2412 = vsub.f32 %v2170, %v2364
  %v2413 = vsub.f32 %v2171, %v2365
  %v2414 = vsub.f32 %v2172, %v2366
  %v2415 = vsub.f32 %v2173, %v2367
  %v2416 = vsub.f32 %v2174, %v2368
  %v2417 = vsub.f32 %v2175, %v2369
  %v2418 = vsub.f32 %v2176, %v2370
  %v2419 = vsub.f32 %v2177, %v2371
  %v2420 = vsub.f32 %v2178, %v2372
  %v2421 = vsub.f32 %v2179, %v2373
  %v2422 = vsub.f32 %v2180, %v2374
  %v2423 = vsub.f32 %v2181, %v2375
  %v2424 = vsub.f32 %v2182, %v2376
  %v2425 = vsub.f32 %v2183, %v2377
  %v2426 = vsub.f32 %v2184, %v2378
  %v2427 = vsub.f32 %v2185, %v2379
  %v2428 = vsub.f32 %v2186, %v2380
  %v2429 = vsub.f32 %v2187, %v2381
  %v2430 = vsub.f32 %v2188, %v2382
  %v2431 = vsub.f32 %v2189, %v2383
  %v2432 = vsub.f32 %v2190, %v2384
  %v2433 = vsub.f32 %v2191, %v2385
  %v2434 = vsub.f32 %v2192, %v2386
  %v2435 = vsub.f32 %v2193, %v2387
  %v2436 = vsub.f32 %v2194, %v2388
  %v2437 = vsub.f32 %v2195, %v2389
  %v2438 = vsub.f32 %v2196, %v2390
  %v2439 = vsub.f32 %v2197, %v2391
  %v2440 = vsub.f32 %v2198, %v2392
  %v2441 = vsub.f32 %v2199, %v2393
  %v2442 = vsub.f32 %v2200, %v2394
  %v2443 = vsub.f32 %v2201, %v2395
  %v2444 = vmul.f32 %v2396, %v2396
  %v2445 = vmul.f32 %v2397, %v2397
  %v2446 = vmul.f32 %v2398, %v2398
  %v2447 = vmul.f32 %v2399, %v2399
  %v2448 = vmul.f32 %v2400, %v2400
  %v2449 = vmul.f32 %v2401, %v2401
  %v2450 = vmul.f32 %v2402, %v2402
  %v2451 = vmul.f32 %v2403, %v2403
  %v2452 = vmul.f32 %v2404, %v2404
  %v2453 = vmul.f32 %v2405, %v2405
  %v2454 = vmul.f32 %v2406, %v2406
  %v2455 = vmul.f32 %v2407, %v2407
  %v2456 = vmul.f32 %v2408, %v2408
  %v2457 = vmul.f32 %v2409, %v2409
  %v2458 = vmul.f32 %v2410, %v2410
  %v2459 = vmul.f32 %v2411, %v2411
  %v2460 = vmul.f32 %v2412, %v2412
  %v2461 = vmul.f32 %v2413, %v2413
  %v2462 = vmul.f32 %v2414, %v2414
  %v2463 = vmul.f32 %v2415, %v2415
  %v2464 = vmul.f32 %v2416, %v2416
  %v2465 = vmul.f32 %v2417, %v2417
  %v2466 = vmul.f32 %v2418, %v2418
  %v2467 = vmul.f32 %v2419, %v2419
  %v2468 = vmul.f32 %v2420, %v2420
  %v2469 = vmul.f32 %v2421, %v2421
  %v2470 = vmul.f32 %v2422, %v2422
  %v2471 = vmul.f32 %v2423, %v2423
  %v2472 = vmul.f32 %v2424, %v2424
  %v2473 = vmul.f32 %v2425, %v2425
  %v2474 = vmul.f32 %v2426, %v2426
  %v2475 = vmul.f32 %v2427, %v2427
  %v2476 = vmul.f32 %v2428, %v2428
  %v2477 = vmul.f32 %v2429, %v2429
  %v2478 = vmul.f32 %v2430, %v2430
  %v2479 = vmul.f32 %v2431, %v2431
  %v2480 = vmul.f32 %v2432, %v2432
  %v2481 = vmul.f32 %v2433, %v2433
  %v2482 = vmul.f32 %v2434, %v2434
  %v2483 = vmul.f32 %v2435, %v2435
  %v2484 = vmul.f32 %v2436, %v2436
  %v2485 = vmul.f32 %v2437, %v2437
  %v2486 = vmul.f32 %v2438, %v2438
  %v2487 = vmul.f32 %v2439, %v2439
  %v2488 = vmul.f32 %v2440, %v2440
  %v2489 = vmul.f32 %v2441, %v2441
  %v2490 = vmul.f32 %v2442, %v2442
  %v2491 = vmul.f32 %v2443, %v2443
  %v2492 = vsel %vm134, %v2444, 0.0
  %2493 = vadd.xlane.f32.xlu0 %v2492
  %v2494 = vpop.xlane.xlu0 %2493
  %v2495 = vsel %vm134, %v2445, 0.0
  %2496 = vadd.xlane.f32.xlu0 %v2495
  %v2497 = vpop.xlane.xlu0 %2496
  %v2498 = vsel %vm134, %v2446, 0.0
  %2499 = vadd.xlane.f32.xlu0 %v2498
  %v2500 = vpop.xlane.xlu0 %2499
  %v2501 = vsel %vm134, %v2447, 0.0
  %2502 = vadd.xlane.f32.xlu0 %v2501
  %v2503 = vpop.xlane.xlu0 %2502
  %v2504 = vsel %vm134, %v2448, 0.0
  %2505 = vadd.xlane.f32.xlu0 %v2504
  %v2506 = vpop.xlane.xlu0 %2505
  %v2507 = vsel %vm134, %v2449, 0.0
  %2508 = vadd.xlane.f32.xlu0 %v2507
  %v2509 = vpop.xlane.xlu0 %2508
  %v2510 = vsel %vm134, %v2450, 0.0
  %2511 = vadd.xlane.f32.xlu0 %v2510
  %v2512 = vpop.xlane.xlu0 %2511
  %v2513 = vsel %vm134, %v2451, 0.0
  %2514 = vadd.xlane.f32.xlu0 %v2513
  %v2515 = vpop.xlane.xlu0 %2514
  %v2516 = vsel %vm134, %v2452, 0.0
  %2517 = vadd.xlane.f32.xlu0 %v2516
  %v2518 = vpop.xlane.xlu0 %2517
  %v2519 = vsel %vm134, %v2453, 0.0
  %2520 = vadd.xlane.f32.xlu0 %v2519
  %v2521 = vpop.xlane.xlu0 %2520
  %v2522 = vsel %vm134, %v2454, 0.0
  %2523 = vadd.xlane.f32.xlu0 %v2522
  %v2524 = vpop.xlane.xlu0 %2523
  %v2525 = vsel %vm134, %v2455, 0.0
  %2526 = vadd.xlane.f32.xlu0 %v2525
  %v2527 = vpop.xlane.xlu0 %2526
  %v2528 = vsel %vm134, %v2456, 0.0
  %2529 = vadd.xlane.f32.xlu0 %v2528
  %v2530 = vpop.xlane.xlu0 %2529
  %v2531 = vsel %vm134, %v2457, 0.0
  %2532 = vadd.xlane.f32.xlu0 %v2531
  %v2533 = vpop.xlane.xlu0 %2532
  %v2534 = vsel %vm134, %v2458, 0.0
  %2535 = vadd.xlane.f32.xlu0 %v2534
  %v2536 = vpop.xlane.xlu0 %2535
  %v2537 = vsel %vm134, %v2459, 0.0
  %2538 = vadd.xlane.f32.xlu0 %v2537
  %v2539 = vpop.xlane.xlu0 %2538
  %v2540 = vsel %vm134, %v2460, 0.0
  %2541 = vadd.xlane.f32.xlu0 %v2540
  %v2542 = vpop.xlane.xlu0 %2541
  %v2543 = vsel %vm134, %v2461, 0.0
  %2544 = vadd.xlane.f32.xlu0 %v2543
  %v2545 = vpop.xlane.xlu0 %2544
  %v2546 = vsel %vm134, %v2462, 0.0
  %2547 = vadd.xlane.f32.xlu0 %v2546
  %v2548 = vpop.xlane.xlu0 %2547
  %v2549 = vsel %vm134, %v2463, 0.0
  %2550 = vadd.xlane.f32.xlu0 %v2549
  %v2551 = vpop.xlane.xlu0 %2550
  %v2552 = vsel %vm134, %v2464, 0.0
  %2553 = vadd.xlane.f32.xlu0 %v2552
  %v2554 = vpop.xlane.xlu0 %2553
  %v2555 = vsel %vm134, %v2465, 0.0
  %2556 = vadd.xlane.f32.xlu0 %v2555
  %v2557 = vpop.xlane.xlu0 %2556
  %v2558 = vsel %vm134, %v2466, 0.0
  %2559 = vadd.xlane.f32.xlu0 %v2558
  %v2560 = vpop.xlane.xlu0 %2559
  %v2561 = vsel %vm134, %v2467, 0.0
  %2562 = vadd.xlane.f32.xlu0 %v2561
  %v2563 = vpop.xlane.xlu0 %2562
  %v2564 = vsel %vm134, %v2468, 0.0
  %2565 = vadd.xlane.f32.xlu0 %v2564
  %v2566 = vpop.xlane.xlu0 %2565
  %v2567 = vsel %vm134, %v2469, 0.0
  %2568 = vadd.xlane.f32.xlu0 %v2567
  %v2569 = vpop.xlane.xlu0 %2568
  %v2570 = vsel %vm134, %v2470, 0.0
  %2571 = vadd.xlane.f32.xlu0 %v2570
  %v2572 = vpop.xlane.xlu0 %2571
  %v2573 = vsel %vm134, %v2471, 0.0
  %2574 = vadd.xlane.f32.xlu0 %v2573
  %v2575 = vpop.xlane.xlu0 %2574
  %v2576 = vsel %vm134, %v2472, 0.0
  %2577 = vadd.xlane.f32.xlu0 %v2576
  %v2578 = vpop.xlane.xlu0 %2577
  %v2579 = vsel %vm134, %v2473, 0.0
  %2580 = vadd.xlane.f32.xlu0 %v2579
  %v2581 = vpop.xlane.xlu0 %2580
  %v2582 = vsel %vm134, %v2474, 0.0
  %2583 = vadd.xlane.f32.xlu0 %v2582
  %v2584 = vpop.xlane.xlu0 %2583
  %v2585 = vsel %vm134, %v2475, 0.0
  %2586 = vadd.xlane.f32.xlu0 %v2585
  %v2587 = vpop.xlane.xlu0 %2586
  %v2588 = vsel %vm134, %v2476, 0.0
  %2589 = vadd.xlane.f32.xlu0 %v2588
  %v2590 = vpop.xlane.xlu0 %2589
  %v2591 = vsel %vm134, %v2477, 0.0
  %2592 = vadd.xlane.f32.xlu0 %v2591
  %v2593 = vpop.xlane.xlu0 %2592
  %v2594 = vsel %vm134, %v2478, 0.0
  %2595 = vadd.xlane.f32.xlu0 %v2594
  %v2596 = vpop.xlane.xlu0 %2595
  %v2597 = vsel %vm134, %v2479, 0.0
  %2598 = vadd.xlane.f32.xlu0 %v2597
  %v2599 = vpop.xlane.xlu0 %2598
  %v2600 = vsel %vm134, %v2480, 0.0
  %2601 = vadd.xlane.f32.xlu0 %v2600
  %v2602 = vpop.xlane.xlu0 %2601
  %v2603 = vsel %vm134, %v2481, 0.0
  %2604 = vadd.xlane.f32.xlu0 %v2603
  %v2605 = vpop.xlane.xlu0 %2604
  %v2606 = vsel %vm134, %v2482, 0.0
  %2607 = vadd.xlane.f32.xlu0 %v2606
  %v2608 = vpop.xlane.xlu0 %2607
  %v2609 = vsel %vm134, %v2483, 0.0
  %2610 = vadd.xlane.f32.xlu0 %v2609
  %v2611 = vpop.xlane.xlu0 %2610
  %v2612 = vsel %vm134, %v2484, 0.0
  %2613 = vadd.xlane.f32.xlu0 %v2612
  %v2614 = vpop.xlane.xlu0 %2613
  %v2615 = vsel %vm134, %v2485, 0.0
  %2616 = vadd.xlane.f32.xlu0 %v2615
  %v2617 = vpop.xlane.xlu0 %2616
  %v2618 = vsel %vm134, %v2486, 0.0
  %2619 = vadd.xlane.f32.xlu0 %v2618
  %v2620 = vpop.xlane.xlu0 %2619
  %v2621 = vsel %vm134, %v2487, 0.0
  %2622 = vadd.xlane.f32.xlu0 %v2621
  %v2623 = vpop.xlane.xlu0 %2622
  %v2624 = vsel %vm134, %v2488, 0.0
  %2625 = vadd.xlane.f32.xlu0 %v2624
  %v2626 = vpop.xlane.xlu0 %2625
  %v2627 = vsel %vm134, %v2489, 0.0
  %2628 = vadd.xlane.f32.xlu0 %v2627
  %v2629 = vpop.xlane.xlu0 %2628
  %v2630 = vsel %vm134, %v2490, 0.0
  %2631 = vadd.xlane.f32.xlu0 %v2630
  %v2632 = vpop.xlane.xlu0 %2631
  %v2633 = vsel %vm134, %v2491, 0.0
  %2634 = vadd.xlane.f32.xlu0 %v2633
  %v2635 = vpop.xlane.xlu0 %2634
  %v2636 = vmul.f32 %v2494, %v584
  %v2637 = vmul.f32 %v2497, %v584
  %v2638 = vmul.f32 %v2500, %v584
  %v2639 = vmul.f32 %v2503, %v584
  %v2640 = vmul.f32 %v2506, %v584
  %v2641 = vmul.f32 %v2509, %v584
  %v2642 = vmul.f32 %v2512, %v584
  %v2643 = vmul.f32 %v2515, %v584
  %v2644 = vmul.f32 %v2518, %v584
  %v2645 = vmul.f32 %v2521, %v584
  %v2646 = vmul.f32 %v2524, %v584
  %v2647 = vmul.f32 %v2527, %v584
  %v2648 = vmul.f32 %v2530, %v584
  %v2649 = vmul.f32 %v2533, %v584
  %v2650 = vmul.f32 %v2536, %v584
  %v2651 = vmul.f32 %v2539, %v584
  %v2652 = vmul.f32 %v2542, %v584
  %v2653 = vmul.f32 %v2545, %v584
  %v2654 = vmul.f32 %v2548, %v584
  %v2655 = vmul.f32 %v2551, %v584
  %v2656 = vmul.f32 %v2554, %v584
  %v2657 = vmul.f32 %v2557, %v584
  %v2658 = vmul.f32 %v2560, %v584
  %v2659 = vmul.f32 %v2563, %v584
  %v2660 = vmul.f32 %v2566, %v584
  %v2661 = vmul.f32 %v2569, %v584
  %v2662 = vmul.f32 %v2572, %v584
  %v2663 = vmul.f32 %v2575, %v584
  %v2664 = vmul.f32 %v2578, %v584
  %v2665 = vmul.f32 %v2581, %v584
  %v2666 = vmul.f32 %v2584, %v584
  %v2667 = vmul.f32 %v2587, %v584
  %v2668 = vmul.f32 %v2590, %v584
  %v2669 = vmul.f32 %v2593, %v584
  %v2670 = vmul.f32 %v2596, %v584
  %v2671 = vmul.f32 %v2599, %v584
  %v2672 = vmul.f32 %v2602, %v584
  %v2673 = vmul.f32 %v2605, %v584
  %v2674 = vmul.f32 %v2608, %v584
  %v2675 = vmul.f32 %v2611, %v584
  %v2676 = vmul.f32 %v2614, %v584
  %v2677 = vmul.f32 %v2617, %v584
  %v2678 = vmul.f32 %v2620, %v584
  %v2679 = vmul.f32 %v2623, %v584
  %v2680 = vmul.f32 %v2626, %v584
  %v2681 = vmul.f32 %v2629, %v584
  %v2682 = vmul.f32 %v2632, %v584
  %v2683 = vmul.f32 %v2635, %v584
  %v2684 = vadd.f32 %v2636, 1e-05
  %v2685 = vadd.f32 %v2637, 1e-05
  %v2686 = vadd.f32 %v2638, 1e-05
  %v2687 = vadd.f32 %v2639, 1e-05
  %v2688 = vadd.f32 %v2640, 1e-05
  %v2689 = vadd.f32 %v2641, 1e-05
  %v2690 = vadd.f32 %v2642, 1e-05
  %v2691 = vadd.f32 %v2643, 1e-05
  %v2692 = vadd.f32 %v2644, 1e-05
  %v2693 = vadd.f32 %v2645, 1e-05
  %v2694 = vadd.f32 %v2646, 1e-05
  %v2695 = vadd.f32 %v2647, 1e-05
  %v2696 = vadd.f32 %v2648, 1e-05
  %v2697 = vadd.f32 %v2649, 1e-05
  %v2698 = vadd.f32 %v2650, 1e-05
  %v2699 = vadd.f32 %v2651, 1e-05
  %v2700 = vadd.f32 %v2652, 1e-05
  %v2701 = vadd.f32 %v2653, 1e-05
  %v2702 = vadd.f32 %v2654, 1e-05
  %v2703 = vadd.f32 %v2655, 1e-05
  %v2704 = vadd.f32 %v2656, 1e-05
  %v2705 = vadd.f32 %v2657, 1e-05
  %v2706 = vadd.f32 %v2658, 1e-05
  %v2707 = vadd.f32 %v2659, 1e-05
  %v2708 = vadd.f32 %v2660, 1e-05
  %v2709 = vadd.f32 %v2661, 1e-05
  %v2710 = vadd.f32 %v2662, 1e-05
  %v2711 = vadd.f32 %v2663, 1e-05
  %v2712 = vadd.f32 %v2664, 1e-05
  %v2713 = vadd.f32 %v2665, 1e-05
  %v2714 = vadd.f32 %v2666, 1e-05
  %v2715 = vadd.f32 %v2667, 1e-05
  %v2716 = vadd.f32 %v2668, 1e-05
  %v2717 = vadd.f32 %v2669, 1e-05
  %v2718 = vadd.f32 %v2670, 1e-05
  %v2719 = vadd.f32 %v2671, 1e-05
  %v2720 = vadd.f32 %v2672, 1e-05
  %v2721 = vadd.f32 %v2673, 1e-05
  %v2722 = vadd.f32 %v2674, 1e-05
  %v2723 = vadd.f32 %v2675, 1e-05
  %v2724 = vadd.f32 %v2676, 1e-05
  %v2725 = vadd.f32 %v2677, 1e-05
  %v2726 = vadd.f32 %v2678, 1e-05
  %v2727 = vadd.f32 %v2679, 1e-05
  %v2728 = vadd.f32 %v2680, 1e-05
  %v2729 = vadd.f32 %v2681, 1e-05
  %v2730 = vadd.f32 %v2682, 1e-05
  %v2731 = vadd.f32 %v2683, 1e-05
  %v2732 = vrsqrt.pop %v2684
  %v2733 = vmul.f32 %v2732, %v2684
  %v2734 = vmul.f32 %v2733, %v2732
  %v2735 = vmul.f32 0.5, %v2734
  %v2736 = vsub.f32 1.5, %v2735
  %v2737 = vmul.f32 %v2732, %v2736
  %vm2738 = vweird.f32 %v2684
  %vm2739 = vweird.f32 %v2732
  %vm2740 = vmor %vm2738, %vm2739
  %v2741 = vsel %vm2740, %v2732, %v2737
  %v2742 = vrsqrt.pop %v2685
  %v2743 = vmul.f32 %v2742, %v2685
  %v2744 = vmul.f32 %v2743, %v2742
  %v2745 = vmul.f32 0.5, %v2744
  %v2746 = vsub.f32 1.5, %v2745
  %v2747 = vmul.f32 %v2742, %v2746
  %vm2748 = vweird.f32 %v2685
  %vm2749 = vweird.f32 %v2742
  %vm2750 = vmor %vm2748, %vm2749
  %v2751 = vsel %vm2750, %v2742, %v2747
  %v2752 = vrsqrt.pop %v2686
  %v2753 = vmul.f32 %v2752, %v2686
  %v2754 = vmul.f32 %v2753, %v2752
  %v2755 = vmul.f32 0.5, %v2754
  %v2756 = vsub.f32 1.5, %v2755
  %v2757 = vmul.f32 %v2752, %v2756
  %vm2758 = vweird.f32 %v2686
  %vm2759 = vweird.f32 %v2752
  %vm2760 = vmor %vm2758, %vm2759
  %v2761 = vsel %vm2760, %v2752, %v2757
  %v2762 = vrsqrt.pop %v2687
  %v2763 = vmul.f32 %v2762, %v2687
  %v2764 = vmul.f32 %v2763, %v2762
  %v2765 = vmul.f32 0.5, %v2764
  %v2766 = vsub.f32 1.5, %v2765
  %v2767 = vmul.f32 %v2762, %v2766
  %vm2768 = vweird.f32 %v2687
  %vm2769 = vweird.f32 %v2762
  %vm2770 = vmor %vm2768, %vm2769
  %v2771 = vsel %vm2770, %v2762, %v2767
  %v2772 = vrsqrt.pop %v2688
  %v2773 = vmul.f32 %v2772, %v2688
  %v2774 = vmul.f32 %v2773, %v2772
  %v2775 = vmul.f32 0.5, %v2774
  %v2776 = vsub.f32 1.5, %v2775
  %v2777 = vmul.f32 %v2772, %v2776
  %vm2778 = vweird.f32 %v2688
  %vm2779 = vweird.f32 %v2772
  %vm2780 = vmor %vm2778, %vm2779
  %v2781 = vsel %vm2780, %v2772, %v2777
  %v2782 = vrsqrt.pop %v2689
  %v2783 = vmul.f32 %v2782, %v2689
  %v2784 = vmul.f32 %v2783, %v2782
  %v2785 = vmul.f32 0.5, %v2784
  %v2786 = vsub.f32 1.5, %v2785
  %v2787 = vmul.f32 %v2782, %v2786
  %vm2788 = vweird.f32 %v2689
  %vm2789 = vweird.f32 %v2782
  %vm2790 = vmor %vm2788, %vm2789
  %v2791 = vsel %vm2790, %v2782, %v2787
  %v2792 = vrsqrt.pop %v2690
  %v2793 = vmul.f32 %v2792, %v2690
  %v2794 = vmul.f32 %v2793, %v2792
  %v2795 = vmul.f32 0.5, %v2794
  %v2796 = vsub.f32 1.5, %v2795
  %v2797 = vmul.f32 %v2792, %v2796
  %vm2798 = vweird.f32 %v2690
  %vm2799 = vweird.f32 %v2792
  %vm2800 = vmor %vm2798, %vm2799
  %v2801 = vsel %vm2800, %v2792, %v2797
  %v2802 = vrsqrt.pop %v2691
  %v2803 = vmul.f32 %v2802, %v2691
  %v2804 = vmul.f32 %v2803, %v2802
  %v2805 = vmul.f32 0.5, %v2804
  %v2806 = vsub.f32 1.5, %v2805
  %v2807 = vmul.f32 %v2802, %v2806
  %vm2808 = vweird.f32 %v2691
  %vm2809 = vweird.f32 %v2802
  %vm2810 = vmor %vm2808, %vm2809
  %v2811 = vsel %vm2810, %v2802, %v2807
  %v2812 = vrsqrt.pop %v2692
  %v2813 = vmul.f32 %v2812, %v2692
  %v2814 = vmul.f32 %v2813, %v2812
  %v2815 = vmul.f32 0.5, %v2814
  %v2816 = vsub.f32 1.5, %v2815
  %v2817 = vmul.f32 %v2812, %v2816
  %vm2818 = vweird.f32 %v2692
  %vm2819 = vweird.f32 %v2812
  %vm2820 = vmor %vm2818, %vm2819
  %v2821 = vsel %vm2820, %v2812, %v2817
  %v2822 = vrsqrt.pop %v2693
  %v2823 = vmul.f32 %v2822, %v2693
  %v2824 = vmul.f32 %v2823, %v2822
  %v2825 = vmul.f32 0.5, %v2824
  %v2826 = vsub.f32 1.5, %v2825
  %v2827 = vmul.f32 %v2822, %v2826
  %vm2828 = vweird.f32 %v2693
  %vm2829 = vweird.f32 %v2822
  %vm2830 = vmor %vm2828, %vm2829
  %v2831 = vsel %vm2830, %v2822, %v2827
  %v2832 = vrsqrt.pop %v2694
  %v2833 = vmul.f32 %v2832, %v2694
  %v2834 = vmul.f32 %v2833, %v2832
  %v2835 = vmul.f32 0.5, %v2834
  %v2836 = vsub.f32 1.5, %v2835
  %v2837 = vmul.f32 %v2832, %v2836
  %vm2838 = vweird.f32 %v2694
  %vm2839 = vweird.f32 %v2832
  %vm2840 = vmor %vm2838, %vm2839
  %v2841 = vsel %vm2840, %v2832, %v2837
  %v2842 = vrsqrt.pop %v2695
  %v2843 = vmul.f32 %v2842, %v2695
  %v2844 = vmul.f32 %v2843, %v2842
  %v2845 = vmul.f32 0.5, %v2844
  %v2846 = vsub.f32 1.5, %v2845
  %v2847 = vmul.f32 %v2842, %v2846
  %vm2848 = vweird.f32 %v2695
  %vm2849 = vweird.f32 %v2842
  %vm2850 = vmor %vm2848, %vm2849
  %v2851 = vsel %vm2850, %v2842, %v2847
  %v2852 = vrsqrt.pop %v2696
  %v2853 = vmul.f32 %v2852, %v2696
  %v2854 = vmul.f32 %v2853, %v2852
  %v2855 = vmul.f32 0.5, %v2854
  %v2856 = vsub.f32 1.5, %v2855
  %v2857 = vmul.f32 %v2852, %v2856
  %vm2858 = vweird.f32 %v2696
  %vm2859 = vweird.f32 %v2852
  %vm2860 = vmor %vm2858, %vm2859
  %v2861 = vsel %vm2860, %v2852, %v2857
  %v2862 = vrsqrt.pop %v2697
  %v2863 = vmul.f32 %v2862, %v2697
  %v2864 = vmul.f32 %v2863, %v2862
  %v2865 = vmul.f32 0.5, %v2864
  %v2866 = vsub.f32 1.5, %v2865
  %v2867 = vmul.f32 %v2862, %v2866
  %vm2868 = vweird.f32 %v2697
  %vm2869 = vweird.f32 %v2862
  %vm2870 = vmor %vm2868, %vm2869
  %v2871 = vsel %vm2870, %v2862, %v2867
  %v2872 = vrsqrt.pop %v2698
  %v2873 = vmul.f32 %v2872, %v2698
  %v2874 = vmul.f32 %v2873, %v2872
  %v2875 = vmul.f32 0.5, %v2874
  %v2876 = vsub.f32 1.5, %v2875
  %v2877 = vmul.f32 %v2872, %v2876
  %vm2878 = vweird.f32 %v2698
  %vm2879 = vweird.f32 %v2872
  %vm2880 = vmor %vm2878, %vm2879
  %v2881 = vsel %vm2880, %v2872, %v2877
  %v2882 = vrsqrt.pop %v2699
  %v2883 = vmul.f32 %v2882, %v2699
  %v2884 = vmul.f32 %v2883, %v2882
  %v2885 = vmul.f32 0.5, %v2884
  %v2886 = vsub.f32 1.5, %v2885
  %v2887 = vmul.f32 %v2882, %v2886
  %vm2888 = vweird.f32 %v2699
  %vm2889 = vweird.f32 %v2882
  %vm2890 = vmor %vm2888, %vm2889
  %v2891 = vsel %vm2890, %v2882, %v2887
  %v2892 = vrsqrt.pop %v2700
  %v2893 = vmul.f32 %v2892, %v2700
  %v2894 = vmul.f32 %v2893, %v2892
  %v2895 = vmul.f32 0.5, %v2894
  %v2896 = vsub.f32 1.5, %v2895
  %v2897 = vmul.f32 %v2892, %v2896
  %vm2898 = vweird.f32 %v2700
  %vm2899 = vweird.f32 %v2892
  %vm2900 = vmor %vm2898, %vm2899
  %v2901 = vsel %vm2900, %v2892, %v2897
  %v2902 = vrsqrt.pop %v2701
  %v2903 = vmul.f32 %v2902, %v2701
  %v2904 = vmul.f32 %v2903, %v2902
  %v2905 = vmul.f32 0.5, %v2904
  %v2906 = vsub.f32 1.5, %v2905
  %v2907 = vmul.f32 %v2902, %v2906
  %vm2908 = vweird.f32 %v2701
  %vm2909 = vweird.f32 %v2902
  %vm2910 = vmor %vm2908, %vm2909
  %v2911 = vsel %vm2910, %v2902, %v2907
  %v2912 = vrsqrt.pop %v2702
  %v2913 = vmul.f32 %v2912, %v2702
  %v2914 = vmul.f32 %v2913, %v2912
  %v2915 = vmul.f32 0.5, %v2914
  %v2916 = vsub.f32 1.5, %v2915
  %v2917 = vmul.f32 %v2912, %v2916
  %vm2918 = vweird.f32 %v2702
  %vm2919 = vweird.f32 %v2912
  %vm2920 = vmor %vm2918, %vm2919
  %v2921 = vsel %vm2920, %v2912, %v2917
  %v2922 = vrsqrt.pop %v2703
  %v2923 = vmul.f32 %v2922, %v2703
  %v2924 = vmul.f32 %v2923, %v2922
  %v2925 = vmul.f32 0.5, %v2924
  %v2926 = vsub.f32 1.5, %v2925
  %v2927 = vmul.f32 %v2922, %v2926
  %vm2928 = vweird.f32 %v2703
  %vm2929 = vweird.f32 %v2922
  %vm2930 = vmor %vm2928, %vm2929
  %v2931 = vsel %vm2930, %v2922, %v2927
  %v2932 = vrsqrt.pop %v2704
  %v2933 = vmul.f32 %v2932, %v2704
  %v2934 = vmul.f32 %v2933, %v2932
  %v2935 = vmul.f32 0.5, %v2934
  %v2936 = vsub.f32 1.5, %v2935
  %v2937 = vmul.f32 %v2932, %v2936
  %vm2938 = vweird.f32 %v2704
  %vm2939 = vweird.f32 %v2932
  %vm2940 = vmor %vm2938, %vm2939
  %v2941 = vsel %vm2940, %v2932, %v2937
  %v2942 = vrsqrt.pop %v2705
  %v2943 = vmul.f32 %v2942, %v2705
  %v2944 = vmul.f32 %v2943, %v2942
  %v2945 = vmul.f32 0.5, %v2944
  %v2946 = vsub.f32 1.5, %v2945
  %v2947 = vmul.f32 %v2942, %v2946
  %vm2948 = vweird.f32 %v2705
  %vm2949 = vweird.f32 %v2942
  %vm2950 = vmor %vm2948, %vm2949
  %v2951 = vsel %vm2950, %v2942, %v2947
  %v2952 = vrsqrt.pop %v2706
  %v2953 = vmul.f32 %v2952, %v2706
  %v2954 = vmul.f32 %v2953, %v2952
  %v2955 = vmul.f32 0.5, %v2954
  %v2956 = vsub.f32 1.5, %v2955
  %v2957 = vmul.f32 %v2952, %v2956
  %vm2958 = vweird.f32 %v2706
  %vm2959 = vweird.f32 %v2952
  %vm2960 = vmor %vm2958, %vm2959
  %v2961 = vsel %vm2960, %v2952, %v2957
  %v2962 = vrsqrt.pop %v2707
  %v2963 = vmul.f32 %v2962, %v2707
  %v2964 = vmul.f32 %v2963, %v2962
  %v2965 = vmul.f32 0.5, %v2964
  %v2966 = vsub.f32 1.5, %v2965
  %v2967 = vmul.f32 %v2962, %v2966
  %vm2968 = vweird.f32 %v2707
  %vm2969 = vweird.f32 %v2962
  %vm2970 = vmor %vm2968, %vm2969
  %v2971 = vsel %vm2970, %v2962, %v2967
  %v2972 = vrsqrt.pop %v2708
  %v2973 = vmul.f32 %v2972, %v2708
  %v2974 = vmul.f32 %v2973, %v2972
  %v2975 = vmul.f32 0.5, %v2974
  %v2976 = vsub.f32 1.5, %v2975
  %v2977 = vmul.f32 %v2972, %v2976
  %vm2978 = vweird.f32 %v2708
  %vm2979 = vweird.f32 %v2972
  %vm2980 = vmor %vm2978, %vm2979
  %v2981 = vsel %vm2980, %v2972, %v2977
  %v2982 = vrsqrt.pop %v2709
  %v2983 = vmul.f32 %v2982, %v2709
  %v2984 = vmul.f32 %v2983, %v2982
  %v2985 = vmul.f32 0.5, %v2984
  %v2986 = vsub.f32 1.5, %v2985
  %v2987 = vmul.f32 %v2982, %v2986
  %vm2988 = vweird.f32 %v2709
  %vm2989 = vweird.f32 %v2982
  %vm2990 = vmor %vm2988, %vm2989
  %v2991 = vsel %vm2990, %v2982, %v2987
  %v2992 = vrsqrt.pop %v2710
  %v2993 = vmul.f32 %v2992, %v2710
  %v2994 = vmul.f32 %v2993, %v2992
  %v2995 = vmul.f32 0.5, %v2994
  %v2996 = vsub.f32 1.5, %v2995
  %v2997 = vmul.f32 %v2992, %v2996
  %vm2998 = vweird.f32 %v2710
  %vm2999 = vweird.f32 %v2992
  %vm3000 = vmor %vm2998, %vm2999
  %v3001 = vsel %vm3000, %v2992, %v2997
  %v3002 = vrsqrt.pop %v2711
  %v3003 = vmul.f32 %v3002, %v2711
  %v3004 = vmul.f32 %v3003, %v3002
  %v3005 = vmul.f32 0.5, %v3004
  %v3006 = vsub.f32 1.5, %v3005
  %v3007 = vmul.f32 %v3002, %v3006
  %vm3008 = vweird.f32 %v2711
  %vm3009 = vweird.f32 %v3002
  %vm3010 = vmor %vm3008, %vm3009
  %v3011 = vsel %vm3010, %v3002, %v3007
  %v3012 = vrsqrt.pop %v2712
  %v3013 = vmul.f32 %v3012, %v2712
  %v3014 = vmul.f32 %v3013, %v3012
  %v3015 = vmul.f32 0.5, %v3014
  %v3016 = vsub.f32 1.5, %v3015
  %v3017 = vmul.f32 %v3012, %v3016
  %vm3018 = vweird.f32 %v2712
  %vm3019 = vweird.f32 %v3012
  %vm3020 = vmor %vm3018, %vm3019
  %v3021 = vsel %vm3020, %v3012, %v3017
  %v3022 = vrsqrt.pop %v2713
  %v3023 = vmul.f32 %v3022, %v2713
  %v3024 = vmul.f32 %v3023, %v3022
  %v3025 = vmul.f32 0.5, %v3024
  %v3026 = vsub.f32 1.5, %v3025
  %v3027 = vmul.f32 %v3022, %v3026
  %vm3028 = vweird.f32 %v2713
  %vm3029 = vweird.f32 %v3022
  %vm3030 = vmor %vm3028, %vm3029
  %v3031 = vsel %vm3030, %v3022, %v3027
  %v3032 = vrsqrt.pop %v2714
  %v3033 = vmul.f32 %v3032, %v2714
  %v3034 = vmul.f32 %v3033, %v3032
  %v3035 = vmul.f32 0.5, %v3034
  %v3036 = vsub.f32 1.5, %v3035
  %v3037 = vmul.f32 %v3032, %v3036
  %vm3038 = vweird.f32 %v2714
  %vm3039 = vweird.f32 %v3032
  %vm3040 = vmor %vm3038, %vm3039
  %v3041 = vsel %vm3040, %v3032, %v3037
  %v3042 = vrsqrt.pop %v2715
  %v3043 = vmul.f32 %v3042, %v2715
  %v3044 = vmul.f32 %v3043, %v3042
  %v3045 = vmul.f32 0.5, %v3044
  %v3046 = vsub.f32 1.5, %v3045
  %v3047 = vmul.f32 %v3042, %v3046
  %vm3048 = vweird.f32 %v2715
  %vm3049 = vweird.f32 %v3042
  %vm3050 = vmor %vm3048, %vm3049
  %v3051 = vsel %vm3050, %v3042, %v3047
  %v3052 = vrsqrt.pop %v2716
  %v3053 = vmul.f32 %v3052, %v2716
  %v3054 = vmul.f32 %v3053, %v3052
  %v3055 = vmul.f32 0.5, %v3054
  %v3056 = vsub.f32 1.5, %v3055
  %v3057 = vmul.f32 %v3052, %v3056
  %vm3058 = vweird.f32 %v2716
  %vm3059 = vweird.f32 %v3052
  %vm3060 = vmor %vm3058, %vm3059
  %v3061 = vsel %vm3060, %v3052, %v3057
  %v3062 = vrsqrt.pop %v2717
  %v3063 = vmul.f32 %v3062, %v2717
  %v3064 = vmul.f32 %v3063, %v3062
  %v3065 = vmul.f32 0.5, %v3064
  %v3066 = vsub.f32 1.5, %v3065
  %v3067 = vmul.f32 %v3062, %v3066
  %vm3068 = vweird.f32 %v2717
  %vm3069 = vweird.f32 %v3062
  %vm3070 = vmor %vm3068, %vm3069
  %v3071 = vsel %vm3070, %v3062, %v3067
  %v3072 = vrsqrt.pop %v2718
  %v3073 = vmul.f32 %v3072, %v2718
  %v3074 = vmul.f32 %v3073, %v3072
  %v3075 = vmul.f32 0.5, %v3074
  %v3076 = vsub.f32 1.5, %v3075
  %v3077 = vmul.f32 %v3072, %v3076
  %vm3078 = vweird.f32 %v2718
  %vm3079 = vweird.f32 %v3072
  %vm3080 = vmor %vm3078, %vm3079
  %v3081 = vsel %vm3080, %v3072, %v3077
  %v3082 = vrsqrt.pop %v2719
  %v3083 = vmul.f32 %v3082, %v2719
  %v3084 = vmul.f32 %v3083, %v3082
  %v3085 = vmul.f32 0.5, %v3084
  %v3086 = vsub.f32 1.5, %v3085
  %v3087 = vmul.f32 %v3082, %v3086
  %vm3088 = vweird.f32 %v2719
  %vm3089 = vweird.f32 %v3082
  %vm3090 = vmor %vm3088, %vm3089
  %v3091 = vsel %vm3090, %v3082, %v3087
  %v3092 = vrsqrt.pop %v2720
  %v3093 = vmul.f32 %v3092, %v2720
  %v3094 = vmul.f32 %v3093, %v3092
  %v3095 = vmul.f32 0.5, %v3094
  %v3096 = vsub.f32 1.5, %v3095
  %v3097 = vmul.f32 %v3092, %v3096
  %vm3098 = vweird.f32 %v2720
  %vm3099 = vweird.f32 %v3092
  %vm3100 = vmor %vm3098, %vm3099
  %v3101 = vsel %vm3100, %v3092, %v3097
  %v3102 = vrsqrt.pop %v2721
  %v3103 = vmul.f32 %v3102, %v2721
  %v3104 = vmul.f32 %v3103, %v3102
  %v3105 = vmul.f32 0.5, %v3104
  %v3106 = vsub.f32 1.5, %v3105
  %v3107 = vmul.f32 %v3102, %v3106
  %vm3108 = vweird.f32 %v2721
  %vm3109 = vweird.f32 %v3102
  %vm3110 = vmor %vm3108, %vm3109
  %v3111 = vsel %vm3110, %v3102, %v3107
  %v3112 = vrsqrt.pop %v2722
  %v3113 = vmul.f32 %v3112, %v2722
  %v3114 = vmul.f32 %v3113, %v3112
  %v3115 = vmul.f32 0.5, %v3114
  %v3116 = vsub.f32 1.5, %v3115
  %v3117 = vmul.f32 %v3112, %v3116
  %vm3118 = vweird.f32 %v2722
  %vm3119 = vweird.f32 %v3112
  %vm3120 = vmor %vm3118, %vm3119
  %v3121 = vsel %vm3120, %v3112, %v3117
  %v3122 = vrsqrt.pop %v2723
  %v3123 = vmul.f32 %v3122, %v2723
  %v3124 = vmul.f32 %v3123, %v3122
  %v3125 = vmul.f32 0.5, %v3124
  %v3126 = vsub.f32 1.5, %v3125
  %v3127 = vmul.f32 %v3122, %v3126
  %vm3128 = vweird.f32 %v2723
  %vm3129 = vweird.f32 %v3122
  %vm3130 = vmor %vm3128, %vm3129
  %v3131 = vsel %vm3130, %v3122, %v3127
  %v3132 = vrsqrt.pop %v2724
  %v3133 = vmul.f32 %v3132, %v2724
  %v3134 = vmul.f32 %v3133, %v3132
  %v3135 = vmul.f32 0.5, %v3134
  %v3136 = vsub.f32 1.5, %v3135
  %v3137 = vmul.f32 %v3132, %v3136
  %vm3138 = vweird.f32 %v2724
  %vm3139 = vweird.f32 %v3132
  %vm3140 = vmor %vm3138, %vm3139
  %v3141 = vsel %vm3140, %v3132, %v3137
  %v3142 = vrsqrt.pop %v2725
  %v3143 = vmul.f32 %v3142, %v2725
  %v3144 = vmul.f32 %v3143, %v3142
  %v3145 = vmul.f32 0.5, %v3144
  %v3146 = vsub.f32 1.5, %v3145
  %v3147 = vmul.f32 %v3142, %v3146
  %vm3148 = vweird.f32 %v2725
  %vm3149 = vweird.f32 %v3142
  %vm3150 = vmor %vm3148, %vm3149
  %v3151 = vsel %vm3150, %v3142, %v3147
  %v3152 = vrsqrt.pop %v2726
  %v3153 = vmul.f32 %v3152, %v2726
  %v3154 = vmul.f32 %v3153, %v3152
  %v3155 = vmul.f32 0.5, %v3154
  %v3156 = vsub.f32 1.5, %v3155
  %v3157 = vmul.f32 %v3152, %v3156
  %vm3158 = vweird.f32 %v2726
  %vm3159 = vweird.f32 %v3152
  %vm3160 = vmor %vm3158, %vm3159
  %v3161 = vsel %vm3160, %v3152, %v3157
  %v3162 = vrsqrt.pop %v2727
  %v3163 = vmul.f32 %v3162, %v2727
  %v3164 = vmul.f32 %v3163, %v3162
  %v3165 = vmul.f32 0.5, %v3164
  %v3166 = vsub.f32 1.5, %v3165
  %v3167 = vmul.f32 %v3162, %v3166
  %vm3168 = vweird.f32 %v2727
  %vm3169 = vweird.f32 %v3162
  %vm3170 = vmor %vm3168, %vm3169
  %v3171 = vsel %vm3170, %v3162, %v3167
  %v3172 = vrsqrt.pop %v2728
  %v3173 = vmul.f32 %v3172, %v2728
  %v3174 = vmul.f32 %v3173, %v3172
  %v3175 = vmul.f32 0.5, %v3174
  %v3176 = vsub.f32 1.5, %v3175
  %v3177 = vmul.f32 %v3172, %v3176
  %vm3178 = vweird.f32 %v2728
  %vm3179 = vweird.f32 %v3172
  %vm3180 = vmor %vm3178, %vm3179
  %v3181 = vsel %vm3180, %v3172, %v3177
  %v3182 = vrsqrt.pop %v2729
  %v3183 = vmul.f32 %v3182, %v2729
  %v3184 = vmul.f32 %v3183, %v3182
  %v3185 = vmul.f32 0.5, %v3184
  %v3186 = vsub.f32 1.5, %v3185
  %v3187 = vmul.f32 %v3182, %v3186
  %vm3188 = vweird.f32 %v2729
  %vm3189 = vweird.f32 %v3182
  %vm3190 = vmor %vm3188, %vm3189
  %v3191 = vsel %vm3190, %v3182, %v3187
  %v3192 = vrsqrt.pop %v2730
  %v3193 = vmul.f32 %v3192, %v2730
  %v3194 = vmul.f32 %v3193, %v3192
  %v3195 = vmul.f32 0.5, %v3194
  %v3196 = vsub.f32 1.5, %v3195
  %v3197 = vmul.f32 %v3192, %v3196
  %vm3198 = vweird.f32 %v2730
  %vm3199 = vweird.f32 %v3192
  %vm3200 = vmor %vm3198, %vm3199
  %v3201 = vsel %vm3200, %v3192, %v3197
  %v3202 = vrsqrt.pop %v2731
  %v3203 = vmul.f32 %v3202, %v2731
  %v3204 = vmul.f32 %v3203, %v3202
  %v3205 = vmul.f32 0.5, %v3204
  %v3206 = vsub.f32 1.5, %v3205
  %v3207 = vmul.f32 %v3202, %v3206
  %vm3208 = vweird.f32 %v2731
  %vm3209 = vweird.f32 %v3202
  %vm3210 = vmor %vm3208, %vm3209
  %v3211 = vsel %vm3210, %v3202, %v3207
  %v3212 = vmul.f32 %v2396, %v2741
  %v3213 = vmul.f32 %v2397, %v2751
  %v3214 = vmul.f32 %v2398, %v2761
  %v3215 = vmul.f32 %v2399, %v2771
  %v3216 = vmul.f32 %v2400, %v2781
  %v3217 = vmul.f32 %v2401, %v2791
  %v3218 = vmul.f32 %v2402, %v2801
  %v3219 = vmul.f32 %v2403, %v2811
  %v3220 = vmul.f32 %v2404, %v2821
  %v3221 = vmul.f32 %v2405, %v2831
  %v3222 = vmul.f32 %v2406, %v2841
  %v3223 = vmul.f32 %v2407, %v2851
  %v3224 = vmul.f32 %v2408, %v2861
  %v3225 = vmul.f32 %v2409, %v2871
  %v3226 = vmul.f32 %v2410, %v2881
  %v3227 = vmul.f32 %v2411, %v2891
  %v3228 = vmul.f32 %v2412, %v2901
  %v3229 = vmul.f32 %v2413, %v2911
  %v3230 = vmul.f32 %v2414, %v2921
  %v3231 = vmul.f32 %v2415, %v2931
  %v3232 = vmul.f32 %v2416, %v2941
  %v3233 = vmul.f32 %v2417, %v2951
  %v3234 = vmul.f32 %v2418, %v2961
  %v3235 = vmul.f32 %v2419, %v2971
  %v3236 = vmul.f32 %v2420, %v2981
  %v3237 = vmul.f32 %v2421, %v2991
  %v3238 = vmul.f32 %v2422, %v3001
  %v3239 = vmul.f32 %v2423, %v3011
  %v3240 = vmul.f32 %v2424, %v3021
  %v3241 = vmul.f32 %v2425, %v3031
  %v3242 = vmul.f32 %v2426, %v3041
  %v3243 = vmul.f32 %v2427, %v3051
  %v3244 = vmul.f32 %v2428, %v3061
  %v3245 = vmul.f32 %v2429, %v3071
  %v3246 = vmul.f32 %v2430, %v3081
  %v3247 = vmul.f32 %v2431, %v3091
  %v3248 = vmul.f32 %v2432, %v3101
  %v3249 = vmul.f32 %v2433, %v3111
  %v3250 = vmul.f32 %v2434, %v3121
  %v3251 = vmul.f32 %v2435, %v3131
  %v3252 = vmul.f32 %v2436, %v3141
  %v3253 = vmul.f32 %v2437, %v3151
  %v3254 = vmul.f32 %v2438, %v3161
  %v3255 = vmul.f32 %v2439, %v3171
  %v3256 = vmul.f32 %v2440, %v3181
  %v3257 = vmul.f32 %v2441, %v3191
  %v3258 = vmul.f32 %v2442, %v3201
  %v3259 = vmul.f32 %v2443, %v3211
  %v3261 = vperm.slane %v2202, 0
  %v3263 = vmul.f32 %v3212, %v3261
  %v3264 = vmul.f32 %v3213, %v3261
  %v3265 = vmul.f32 %v3214, %v3261
  %v3266 = vmul.f32 %v3215, %v3261
  %v3267 = vmul.f32 %v3216, %v3261
  %v3268 = vmul.f32 %v3217, %v3261
  %v3269 = vmul.f32 %v3218, %v3261
  %v3270 = vmul.f32 %v3219, %v3261
  %v3271 = vmul.f32 %v3220, %v3261
  %v3272 = vmul.f32 %v3221, %v3261
  %v3273 = vmul.f32 %v3222, %v3261
  %v3274 = vmul.f32 %v3223, %v3261
  %v3275 = vmul.f32 %v3224, %v3261
  %v3276 = vmul.f32 %v3225, %v3261
  %v3277 = vmul.f32 %v3226, %v3261
  %v3278 = vmul.f32 %v3227, %v3261
  %v3279 = vmul.f32 %v3228, %v3261
  %v3280 = vmul.f32 %v3229, %v3261
  %v3281 = vmul.f32 %v3230, %v3261
  %v3282 = vmul.f32 %v3231, %v3261
  %v3283 = vmul.f32 %v3232, %v3261
  %v3284 = vmul.f32 %v3233, %v3261
  %v3285 = vmul.f32 %v3234, %v3261
  %v3286 = vmul.f32 %v3235, %v3261
  %v3287 = vmul.f32 %v3236, %v3261
  %v3288 = vmul.f32 %v3237, %v3261
  %v3289 = vmul.f32 %v3238, %v3261
  %v3290 = vmul.f32 %v3239, %v3261
  %v3291 = vmul.f32 %v3240, %v3261
  %v3292 = vmul.f32 %v3241, %v3261
  %v3293 = vmul.f32 %v3242, %v3261
  %v3294 = vmul.f32 %v3243, %v3261
  %v3295 = vmul.f32 %v3244, %v3261
  %v3296 = vmul.f32 %v3245, %v3261
  %v3297 = vmul.f32 %v3246, %v3261
  %v3298 = vmul.f32 %v3247, %v3261
  %v3299 = vmul.f32 %v3248, %v3261
  %v3300 = vmul.f32 %v3249, %v3261
  %v3301 = vmul.f32 %v3250, %v3261
  %v3302 = vmul.f32 %v3251, %v3261
  %v3303 = vmul.f32 %v3252, %v3261
  %v3304 = vmul.f32 %v3253, %v3261
  %v3305 = vmul.f32 %v3254, %v3261
  %v3306 = vmul.f32 %v3255, %v3261
  %v3307 = vmul.f32 %v3256, %v3261
  %v3308 = vmul.f32 %v3257, %v3261
  %v3309 = vmul.f32 %v3258, %v3261
  %v3310 = vmul.f32 %v3259, %v3261
  %v3312 = vperm.slane %v2203, 0
  %v3314 = vadd.f32 %v3263, %v3312
  %v3315 = vadd.f32 %v3264, %v3312
  %v3316 = vadd.f32 %v3265, %v3312
  %v3317 = vadd.f32 %v3266, %v3312
  %v3318 = vadd.f32 %v3267, %v3312
  %v3319 = vadd.f32 %v3268, %v3312
  %v3320 = vadd.f32 %v3269, %v3312
  %v3321 = vadd.f32 %v3270, %v3312
  %v3322 = vadd.f32 %v3271, %v3312
  %v3323 = vadd.f32 %v3272, %v3312
  %v3324 = vadd.f32 %v3273, %v3312
  %v3325 = vadd.f32 %v3274, %v3312
  %v3326 = vadd.f32 %v3275, %v3312
  %v3327 = vadd.f32 %v3276, %v3312
  %v3328 = vadd.f32 %v3277, %v3312
  %v3329 = vadd.f32 %v3278, %v3312
  %v3330 = vadd.f32 %v3279, %v3312
  %v3331 = vadd.f32 %v3280, %v3312
  %v3332 = vadd.f32 %v3281, %v3312
  %v3333 = vadd.f32 %v3282, %v3312
  %v3334 = vadd.f32 %v3283, %v3312
  %v3335 = vadd.f32 %v3284, %v3312
  %v3336 = vadd.f32 %v3285, %v3312
  %v3337 = vadd.f32 %v3286, %v3312
  %v3338 = vadd.f32 %v3287, %v3312
  %v3339 = vadd.f32 %v3288, %v3312
  %v3340 = vadd.f32 %v3289, %v3312
  %v3341 = vadd.f32 %v3290, %v3312
  %v3342 = vadd.f32 %v3291, %v3312
  %v3343 = vadd.f32 %v3292, %v3312
  %v3344 = vadd.f32 %v3293, %v3312
  %v3345 = vadd.f32 %v3294, %v3312
  %v3346 = vadd.f32 %v3295, %v3312
  %v3347 = vadd.f32 %v3296, %v3312
  %v3348 = vadd.f32 %v3297, %v3312
  %v3349 = vadd.f32 %v3298, %v3312
  %v3350 = vadd.f32 %v3299, %v3312
  %v3351 = vadd.f32 %v3300, %v3312
  %v3352 = vadd.f32 %v3301, %v3312
  %v3353 = vadd.f32 %v3302, %v3312
  %v3354 = vadd.f32 %v3303, %v3312
  %v3355 = vadd.f32 %v3304, %v3312
  %v3356 = vadd.f32 %v3305, %v3312
  %v3357 = vadd.f32 %v3306, %v3312
  %v3358 = vadd.f32 %v3307, %v3312
  %v3359 = vadd.f32 %v3308, %v3312
  %v3360 = vadd.f32 %v3309, %v3312
  %v3361 = vadd.f32 %v3310, %v3312
  %3362 = vst.msk [vmem:[%s12] sm:$0xff] %vm134, %v3314
  %3363 = vst.msk [vmem:[%s12 + $0x8] sm:$0xff] %vm134, %v3315
  %3364 = vst.msk [vmem:[%s12 + $0x10] sm:$0xff] %vm134, %v3316
  %3365 = vst.msk [vmem:[%s12 + $0x18] sm:$0xff] %vm134, %v3317
  %3366 = vst.msk [vmem:[%s12 + $0x20] sm:$0xff] %vm134, %v3318
  %3367 = vst.msk [vmem:[%s12 + $0x28] sm:$0xff] %vm134, %v3319
  %3368 = vst.msk [vmem:[%s12 + $0x30] sm:$0xff] %vm134, %v3320
  %3369 = vst.msk [vmem:[%s12 + $0x38] sm:$0xff] %vm134, %v3321
  %3370 = vst.msk [vmem:[%s12 + $0x40] sm:$0xff] %vm134, %v3322
  %3371 = vst.msk [vmem:[%s12 + $0x48] sm:$0xff] %vm134, %v3323
  %3372 = vst.msk [vmem:[%s12 + $0x50] sm:$0xff] %vm134, %v3324
  %3373 = vst.msk [vmem:[%s12 + $0x58] sm:$0xff] %vm134, %v3325
  %3374 = vst.msk [vmem:[%s12 + $0x60] sm:$0xff] %vm134, %v3326
  %3375 = vst.msk [vmem:[%s12 + $0x68] sm:$0xff] %vm134, %v3327
  %3376 = vst.msk [vmem:[%s12 + $0x70] sm:$0xff] %vm134, %v3328
  %3377 = vst.msk [vmem:[%s12 + $0x78] sm:$0xff] %vm134, %v3329
  %3378 = vst.msk [vmem:[%s12 + $0x80] sm:$0xff] %vm134, %v3330
  %3379 = vst.msk [vmem:[%s12 + $0x88] sm:$0xff] %vm134, %v3331
  %3380 = vst.msk [vmem:[%s12 + $0x90] sm:$0xff] %vm134, %v3332
  %3381 = vst.msk [vmem:[%s12 + $0x98] sm:$0xff] %vm134, %v3333
  %3382 = vst.msk [vmem:[%s12 + $0xa0] sm:$0xff] %vm134, %v3334
  %3383 = vst.msk [vmem:[%s12 + $0xa8] sm:$0xff] %vm134, %v3335
  %3384 = vst.msk [vmem:[%s12 + $0xb0] sm:$0xff] %vm134, %v3336
  %3385 = vst.msk [vmem:[%s12 + $0xb8] sm:$0xff] %vm134, %v3337
  %3386 = vst.msk [vmem:[%s12 + $0xc0] sm:$0xff] %vm134, %v3338
  %3387 = vst.msk [vmem:[%s12 + $0xc8] sm:$0xff] %vm134, %v3339
  %3388 = vst.msk [vmem:[%s12 + $0xd0] sm:$0xff] %vm134, %v3340
  %3389 = vst.msk [vmem:[%s12 + $0xd8] sm:$0xff] %vm134, %v3341
  %3390 = vst.msk [vmem:[%s12 + $0xe0] sm:$0xff] %vm134, %v3342
  %3391 = vst.msk [vmem:[%s12 + $0xe8] sm:$0xff] %vm134, %v3343
  %3392 = vst.msk [vmem:[%s12 + $0xf0] sm:$0xff] %vm134, %v3344
  %3393 = vst.msk [vmem:[%s12 + $0xf8] sm:$0xff] %vm134, %v3345
  %3394 = vst.msk [vmem:[%s12 + $0x100] sm:$0xff] %vm134, %v3346
  %3395 = vst.msk [vmem:[%s12 + $0x108] sm:$0xff] %vm134, %v3347
  %3396 = vst.msk [vmem:[%s12 + $0x110] sm:$0xff] %vm134, %v3348
  %3397 = vst.msk [vmem:[%s12 + $0x118] sm:$0xff] %vm134, %v3349
  %3398 = vst.msk [vmem:[%s12 + $0x120] sm:$0xff] %vm134, %v3350
  %3399 = vst.msk [vmem:[%s12 + $0x128] sm:$0xff] %vm134, %v3351
  %3400 = vst.msk [vmem:[%s12 + $0x130] sm:$0xff] %vm134, %v3352
  %3401 = vst.msk [vmem:[%s12 + $0x138] sm:$0xff] %vm134, %v3353
  %3402 = vst.msk [vmem:[%s12 + $0x140] sm:$0xff] %vm134, %v3354
  %3403 = vst.msk [vmem:[%s12 + $0x148] sm:$0xff] %vm134, %v3355
  %3404 = vst.msk [vmem:[%s12 + $0x150] sm:$0xff] %vm134, %v3356
  %3405 = vst.msk [vmem:[%s12 + $0x158] sm:$0xff] %vm134, %v3357
  %3406 = vst.msk [vmem:[%s12 + $0x160] sm:$0xff] %vm134, %v3358
  %3407 = vst.msk [vmem:[%s12 + $0x168] sm:$0xff] %vm134, %v3359
  %3408 = vst.msk [vmem:[%s12 + $0x170] sm:$0xff] %vm134, %v3360
  %3409 = vst.msk [vmem:[%s12 + $0x178] sm:$0xff] %vm134, %v3361
  // Predicated region
  $region50: #{transformer_cs_forward.9} parent=0 // pred_check
    _
  $region51: #{transformer_cs_forward.9} parent=0 // pred_check_branch
    %3411 = sbr.rel (0) target = $region53
  $region52: #{transformer_cs_forward.9} parent=0 // pred_region
    _
  $region53: #{transformer_cs_forward.9} parent=0 // pred_fallthru
    _
  // Predicated region
  $region54: #{transformer_cs_forward.9} parent=0 // pred_check
    _
  $region55: #{transformer_cs_forward.9} parent=0 // pred_check_branch
    %3413 = sbr.rel (0) target = $region57
  $region56: #{transformer_cs_forward.9} parent=0 // pred_region
    _
  $region57: #{transformer_cs_forward.9} parent=0 // pred_fallthru
    _

</llo_original>
